<compile_context>
chip_gen: v6e
topology: v6e:2x2x1
jax: 0.10.0
libtpu: 0.0.40
codegen_flags: <defaults>
</compile_context>

<pallas_src>
import functools

import jax
import jax.numpy as jnp
from jax.experimental import pallas as pl
from jax.experimental.pallas import tpu as pltpu

BN_EPS = 1e-5
LANE = 128


def _round_up(x, m):
    return ((x + m - 1) // m) * m


def _double_conv_kernel(x_ref, w1_ref, w2_ref, s1_ref, b1_ref, s2_ref, b2_ref,
                        o_ref, xpad_ref, ypad_ref, acc_ref):
    """Fused (3x3 conv -> BN -> ReLU) x 2 for one batch element.

    x_ref:    (1, H, W, Cin_p)   bf16 input tile (channels zero-padded to lane mult)
    w1_ref:   (3, 3*Cin_p, C_p)  bf16 packed weights, index (kh, kw*Cin_p + ci, co)
    w2_ref:   (3, 3*C_p,  C_p)   bf16 packed weights
    s*/b*:    (1, C_p)           f32 fused BN scale / bias
    o_ref:    (1, H, W, C_p)     output tile
    xpad_ref: (H+2, W+2, Cin_p)  bf16 scratch, zero halo
    ypad_ref: (H+2, W+2, C_p)    bf16 scratch, stage-1 output with zero halo
    acc_ref:  (H*W, C_p)         f32 scratch accumulator
    """
    _, H, W, C_p = o_ref.shape

    def conv3x3_bn_relu(src_ref, w_ref, scale, bias):
        # src_ref: (H+2, W+2, C) zero-padded activations; w_ref: (3, 3*C, C_p)
        C = src_ref.shape[2]
        for kh in range(3):
            rows = src_ref[kh:kh + H]                      # (H, W+2, C)
            # im2col over width: pack the kw taps into the contraction dim.
            patch = jnp.concatenate(
                [rows[:, kw:kw + W, :] for kw in range(3)], axis=-1
            ).reshape(H * W, 3 * C)                        # (H*W, 3C) bf16
            contrib = jnp.dot(patch, w_ref[kh],
                              preferred_element_type=jnp.float32)
            if kh == 0:
                acc_ref[...] = contrib
            else:
                acc_ref[...] += contrib
        y = acc_ref[...] * scale + bias                    # fused BN affine
        return jnp.maximum(y, 0.0)                         # ReLU, (H*W, C_p) f32

    # Stage 1: build zero-haloed input in VMEM (padding done on-chip, not in HBM).
    xpad_ref[...] = jnp.zeros_like(xpad_ref)
    xpad_ref[1:H + 1, 1:W + 1, :] = x_ref[0]
    y1 = conv3x3_bn_relu(xpad_ref, w1_ref, s1_ref[0], b1_ref[0])

    # Stage 2: stage-1 activation stays on-chip (bf16 scratch with zero halo).
    ypad_ref[...] = jnp.zeros_like(ypad_ref)
    ypad_ref[1:H + 1, 1:W + 1, :] = y1.reshape(H, W, C_p).astype(ypad_ref.dtype)
    y2 = conv3x3_bn_relu(ypad_ref, w2_ref, s2_ref[0], b2_ref[0])

    o_ref[...] = y2.reshape(1, H, W, C_p).astype(o_ref.dtype)


def _pack_conv_weight(w_hwio, cin_p, cout_p):
    """(3, 3, Cin, Cout) HWIO -> (3, 3*Cin_p, Cout_p) bf16, kw folded into the K dim."""
    kh, kw, cin, cout = w_hwio.shape
    w = jnp.pad(w_hwio, ((0, 0), (0, 0), (0, cin_p - cin), (0, cout_p - cout)))
    return w.reshape(kh, kw * cin_p, cout_p).astype(jnp.bfloat16)


def _fuse_bn(conv_b, gamma, beta, mean, var, cout_p):
    scale = gamma / jnp.sqrt(var + BN_EPS)
    bias = (conv_b - mean) * scale + beta
    scale = jnp.pad(scale, (0, cout_p - scale.shape[0]))
    bias = jnp.pad(bias, (0, cout_p - bias.shape[0]))
    return (scale.reshape(1, cout_p).astype(jnp.float32),
            bias.reshape(1, cout_p).astype(jnp.float32))


@jax.jit
def double_conv_forward(x_nchw, params):
    """Forward pass of double_conv.  Input/output are NCHW (PyTorch convention)."""
    N, Cin, H, W = x_nchw.shape
    Cout = params["w1"].shape[-1]
    Cin_p = _round_up(Cin, LANE)
    C_p = _round_up(Cout, LANE)

    # NCHW -> NHWC (channels on the lane axis), zero-pad channels, cast to bf16 for the MXU.
    # TODO(synk): an NHWC end-to-end model would drop these two wrapper transposes.
    x = jnp.transpose(x_nchw, (0, 2, 3, 1))
    x = jnp.pad(x, ((0, 0), (0, 0), (0, 0), (0, Cin_p - Cin))).astype(jnp.bfloat16)

    w1 = _pack_conv_weight(params["w1"], Cin_p, C_p)
    w2 = _pack_conv_weight(params["w2"], C_p, C_p)
    s1, bb1 = _fuse_bn(params["b1"], params["g1"], params["be1"],
                       params["m1"], params["v1"], C_p)
    s2, bb2 = _fuse_bn(params["b2"], params["g2"], params["be2"],
                       params["m2"], params["v2"], C_p)

    out = pl.pallas_call(
        _double_conv_kernel,
        out_shape=jax.ShapeDtypeStruct((N, H, W, C_p), x_nchw.dtype),
        grid_spec=pltpu.PrefetchScalarGridSpec(
            num_scalar_prefetch=0,
            grid=(N,),
            in_specs=[
                pl.BlockSpec((1, H, W, Cin_p), lambda n: (n, 0, 0, 0)),
                pl.BlockSpec((3, 3 * Cin_p, C_p), lambda n: (0, 0, 0)),
                pl.BlockSpec((3, 3 * C_p, C_p), lambda n: (0, 0, 0)),
                pl.BlockSpec((1, C_p), lambda n: (0, 0)),
                pl.BlockSpec((1, C_p), lambda n: (0, 0)),
                pl.BlockSpec((1, C_p), lambda n: (0, 0)),
                pl.BlockSpec((1, C_p), lambda n: (0, 0)),
            ],
            out_specs=pl.BlockSpec((1, H, W, C_p), lambda n: (n, 0, 0, 0)),
            scratch_shapes=[
                pltpu.VMEM((H + 2, W + 2, Cin_p), jnp.bfloat16),
                pltpu.VMEM((H + 2, W + 2, C_p), jnp.bfloat16),
                pltpu.VMEM((H * W, C_p), jnp.float32),
            ],
        ),
        compiler_params=pltpu.CompilerParams(
            dimension_semantics=("parallel",),
        ),
    )(x, w1, w2, s1, bb1, s2, bb2)

    # Drop channel padding, back to NCHW for the PyTorch interface.
    out = out[:, :, :, :Cout]
    return jnp.transpose(out, (0, 3, 1, 2))


def init_double_conv_params(key, in_ch, out_ch):
    """Deterministic synthetic parameters mirroring nn.Conv2d / nn.BatchNorm2d shapes."""
    keys = jax.random.split(key, 8)

    def conv_params(kw_key, kb_key, cin, cout):
        fan_in = cin * 3 * 3
        bound = 1.0 / jnp.sqrt(fan_in)
        # weight in HWIO layout (3, 3, cin, cout); PyTorch stores OIHW — same values, other axes.
        w = jax.random.uniform(kw_key, (3, 3, cin, cout), jnp.float32, -bound, bound)
        b = jax.random.uniform(kb_key, (cout,), jnp.float32, -bound, bound)
        return w, b

    def bn_params(km_key, kv_key, cout):
        gamma = jnp.ones((cout,), jnp.float32)
        beta = jnp.zeros((cout,), jnp.float32)
        running_mean = 0.1 * jax.random.normal(km_key, (cout,), jnp.float32)
        running_var = 1.0 + 0.1 * jax.random.uniform(kv_key, (cout,), jnp.float32)
        return gamma, beta, running_mean, running_var

    w1, b1 = conv_params(keys[0], keys[1], in_ch, out_ch)
    g1, be1, m1, v1 = bn_params(keys[2], keys[3], out_ch)
    w2, b2 = conv_params(keys[4], keys[5], out_ch, out_ch)
    g2, be2, m2, v2 = bn_params(keys[6], keys[7], out_ch)
    return dict(w1=w1, b1=b1, g1=g1, be1=be1, m1=m1, v1=v1,
                w2=w2, b2=b2, g2=g2, be2=be2, m2=m2, v2=v2)


if __name__ == "__main__":
    key = jax.random.PRNGKey(0)
    k_x, k_p = jax.random.split(key)

    N, Cin, H, W = 2, 4, 16, 16
    Cout = 8

    x = jax.random.normal(k_x, (N, Cin, H, W), dtype=jnp.float32)
    params = init_double_conv_params(k_p, Cin, Cout)

    out = double_conv_forward(x, params)
    out = jax.block_until_ready(out)

    assert out.shape == (N, Cout, H, W), out.shape
    assert bool(jnp.all(out >= 0.0))  # ReLU output is non-negative
    assert bool(jnp.all(jnp.isfinite(out)))
    print("KERNEL_OK")
</pallas_src>

<mosaic_0001>
module attributes {stable_mosaic.version = 11 : i64} {
  func.func @_double_conv_kernel(%arg0: i32, %arg1: memref<1x16x16x128xbf16, #tpu.memory_space<vmem>>, %arg2: memref<3x384x128xbf16, #tpu.memory_space<vmem>>, %arg3: memref<3x384x128xbf16, #tpu.memory_space<vmem>>, %arg4: memref<1x128xf32, #tpu.memory_space<vmem>>, %arg5: memref<1x128xf32, #tpu.memory_space<vmem>>, %arg6: memref<1x128xf32, #tpu.memory_space<vmem>>, %arg7: memref<1x128xf32, #tpu.memory_space<vmem>>, %arg8: memref<1x16x16x128xf32, #tpu.memory_space<vmem>>, %arg9: memref<18x18x128xbf16, #tpu.memory_space<vmem>>, %arg10: memref<18x18x128xbf16, #tpu.memory_space<vmem>>, %arg11: memref<256x128xf32, #tpu.memory_space<vmem>>) attributes {dimension_semantics = [#tpu.dimension_semantics<parallel>], iteration_bounds = array<i64: 2>, scalar_prefetch = 0 : i64, scratch_operands = 3 : i64, tpu.core_type = #tpu.core_type<tc>, window_params = [{transform_indices = @transform_0, window_bounds = array<i64: 1, 16, 16, 128>}, {pipeline_mode = #tpu.pipeline_mode<synchronous>, transform_indices = @transform_1, window_bounds = array<i64: 3, 384, 128>}, {pipeline_mode = #tpu.pipeline_mode<synchronous>, transform_indices = @transform_2, window_bounds = array<i64: 3, 384, 128>}, {pipeline_mode = #tpu.pipeline_mode<synchronous>, transform_indices = @transform_3, window_bounds = array<i64: 1, 128>}, {pipeline_mode = #tpu.pipeline_mode<synchronous>, transform_indices = @transform_4, window_bounds = array<i64: 1, 128>}, {pipeline_mode = #tpu.pipeline_mode<synchronous>, transform_indices = @transform_5, window_bounds = array<i64: 1, 128>}, {pipeline_mode = #tpu.pipeline_mode<synchronous>, transform_indices = @transform_6, window_bounds = array<i64: 1, 128>}, {transform_indices = @transform_7, window_bounds = array<i64: 1, 16, 16, 128>}]} {
    %cst = arith.constant 0.000000e+00 : bf16
    %0 = vector.broadcast %cst : bf16 to vector<18x18x128xbf16>
    %c0 = arith.constant 0 : index
    %c0_0 = arith.constant 0 : index
    %c0_1 = arith.constant 0 : index
    %1 = vector.load %arg9[%c0, %c0_0, %c0_1] : memref<18x18x128xbf16, #tpu.memory_space<vmem>>, vector<18x18x128xbf16>
    tpu.vector_store %arg9[%c0, %c0_0, %c0_1], %0 {strides = array<i32>} : memref<18x18x128xbf16, #tpu.memory_space<vmem>>, vector<18x18x128xbf16>,
    %c0_2 = arith.constant 0 : index
    %c0_3 = arith.constant 0 : index
    %c0_4 = arith.constant 0 : index
    %c0_5 = arith.constant 0 : index
    %2 = vector.load %arg1[%c0_2, %c0_3, %c0_4, %c0_5] : memref<1x16x16x128xbf16, #tpu.memory_space<vmem>>, vector<1x16x16x128xbf16>
    %3 = vector.shape_cast %2 : vector<1x16x16x128xbf16> to vector<16x16x128xbf16>
    %c1 = arith.constant 1 : index
    %c1_6 = arith.constant 1 : index
    %c0_7 = arith.constant 0 : index
    %4 = vector.load %arg9[%c1, %c1_6, %c0_7] : memref<18x18x128xbf16, #tpu.memory_space<vmem>>, vector<16x16x128xbf16>
    tpu.vector_store %arg9[%c1, %c1_6, %c0_7], %3 {strides = array<i32>} : memref<18x18x128xbf16, #tpu.memory_space<vmem>>, vector<16x16x128xbf16>,
    %c0_8 = arith.constant 0 : index
    %c0_9 = arith.constant 0 : index
    %5 = vector.load %arg4[%c0_8, %c0_9] : memref<1x128xf32, #tpu.memory_space<vmem>>, vector<1x128xf32>
    %6 = vector.shape_cast %5 : vector<1x128xf32> to vector<128xf32>
    %c0_10 = arith.constant 0 : index
    %c0_11 = arith.constant 0 : index
    %7 = vector.load %arg5[%c0_10, %c0_11] : memref<1x128xf32, #tpu.memory_space<vmem>>, vector<1x128xf32>
    %8 = vector.shape_cast %7 : vector<1x128xf32> to vector<128xf32>
    %c0_12 = arith.constant 0 : index
    %c0_13 = arith.constant 0 : index
    %c0_14 = arith.constant 0 : index
    %9 = vector.load %arg9[%c0_12, %c0_13, %c0_14] : memref<18x18x128xbf16, #tpu.memory_space<vmem>>, vector<16x18x128xbf16>
    %10 = vector.extract_strided_slice %9 {offsets = [0, 0, 0], sizes = [16, 16, 128], strides = [1, 1, 1]} : vector<16x18x128xbf16> to vector<16x16x128xbf16>
    %11 = vector.extract_strided_slice %9 {offsets = [0, 1, 0], sizes = [16, 16, 128], strides = [1, 1, 1]} : vector<16x18x128xbf16> to vector<16x16x128xbf16>
    %12 = vector.extract_strided_slice %9 {offsets = [0, 2, 0], sizes = [16, 16, 128], strides = [1, 1, 1]} : vector<16x18x128xbf16> to vector<16x16x128xbf16>
    %13 = tpu.concatenate %10, %11, %12 in 2 : vector<16x16x128xbf16>, vector<16x16x128xbf16>, vector<16x16x128xbf16> -> vector<16x16x384xbf16>
    %14 = vector.shape_cast %13 : vector<16x16x384xbf16> to vector<256x384xbf16>
    %c0_15 = arith.constant 0 : index
    %c0_16 = arith.constant 0 : index
    %c0_17 = arith.constant 0 : index
    %15 = vector.load %arg2[%c0_15, %c0_16, %c0_17] : memref<3x384x128xbf16, #tpu.memory_space<vmem>>, vector<1x384x128xbf16>
    %16 = vector.shape_cast %15 : vector<1x384x128xbf16> to vector<384x128xbf16>
    %cst_18 = arith.constant dense<0.000000e+00> : vector<256x128xf32>
    %17 = tpu.matmul %14, %16, %cst_18 {dimension_numbers = #tpu.dot_dimension_numbers<[1], [0], [0], [1], [0, 0, 1, 1], [], []>} : vector<256x384xbf16>, vector<384x128xbf16>, vector<256x128xf32> -> vector<256x128xf32>
    %c0_19 = arith.constant 0 : index
    %c0_20 = arith.constant 0 : index
    %18 = vector.load %arg11[%c0_19, %c0_20] : memref<256x128xf32, #tpu.memory_space<vmem>>, vector<256x128xf32>
    tpu.vector_store %arg11[%c0_19, %c0_20], %17 {strides = array<i32>} : memref<256x128xf32, #tpu.memory_space<vmem>>, vector<256x128xf32>,
    %c1_21 = arith.constant 1 : index
    %c0_22 = arith.constant 0 : index
    %c0_23 = arith.constant 0 : index
    %19 = vector.load %arg9[%c1_21, %c0_22, %c0_23] : memref<18x18x128xbf16, #tpu.memory_space<vmem>>, vector<16x18x128xbf16>
    %20 = vector.extract_strided_slice %19 {offsets = [0, 0, 0], sizes = [16, 16, 128], strides = [1, 1, 1]} : vector<16x18x128xbf16> to vector<16x16x128xbf16>
    %21 = vector.extract_strided_slice %19 {offsets = [0, 1, 0], sizes = [16, 16, 128], strides = [1, 1, 1]} : vector<16x18x128xbf16> to vector<16x16x128xbf16>
    %22 = vector.extract_strided_slice %19 {offsets = [0, 2, 0], sizes = [16, 16, 128], strides = [1, 1, 1]} : vector<16x18x128xbf16> to vector<16x16x128xbf16>
    %23 = tpu.concatenate %20, %21, %22 in 2 : vector<16x16x128xbf16>, vector<16x16x128xbf16>, vector<16x16x128xbf16> -> vector<16x16x384xbf16>
    %24 = vector.shape_cast %23 : vector<16x16x384xbf16> to vector<256x384xbf16>
    %c1_24 = arith.constant 1 : index
    %c0_25 = arith.constant 0 : index
    %c0_26 = arith.constant 0 : index
    %25 = vector.load %arg2[%c1_24, %c0_25, %c0_26] : memref<3x384x128xbf16, #tpu.memory_space<vmem>>, vector<1x384x128xbf16>
    %26 = vector.shape_cast %25 : vector<1x384x128xbf16> to vector<384x128xbf16>
    %cst_27 = arith.constant dense<0.000000e+00> : vector<256x128xf32>
    %27 = tpu.matmul %24, %26, %cst_27 {dimension_numbers = #tpu.dot_dimension_numbers<[1], [0], [0], [1], [0, 0, 1, 1], [], []>} : vector<256x384xbf16>, vector<384x128xbf16>, vector<256x128xf32> -> vector<256x128xf32>
    %c0_28 = arith.constant 0 : index
    %c0_29 = arith.constant 0 : index
    %28 = vector.load %arg11[%c0_28, %c0_29] : memref<256x128xf32, #tpu.memory_space<vmem>>, vector<256x128xf32>
    %29 = arith.addf %28, %27 : vector<256x128xf32>
    %c0_30 = arith.constant 0 : index
    %c0_31 = arith.constant 0 : index
    %30 = vector.load %arg11[%c0_30, %c0_31] : memref<256x128xf32, #tpu.memory_space<vmem>>, vector<256x128xf32>
    tpu.vector_store %arg11[%c0_30, %c0_31], %29 {strides = array<i32>} : memref<256x128xf32, #tpu.memory_space<vmem>>, vector<256x128xf32>,
    %c2 = arith.constant 2 : index
    %c0_32 = arith.constant 0 : index
    %c0_33 = arith.constant 0 : index
    %31 = vector.load %arg9[%c2, %c0_32, %c0_33] : memref<18x18x128xbf16, #tpu.memory_space<vmem>>, vector<16x18x128xbf16>
    %32 = vector.extract_strided_slice %31 {offsets = [0, 0, 0], sizes = [16, 16, 128], strides = [1, 1, 1]} : vector<16x18x128xbf16> to vector<16x16x128xbf16>
    %33 = vector.extract_strided_slice %31 {offsets = [0, 1, 0], sizes = [16, 16, 128], strides = [1, 1, 1]} : vector<16x18x128xbf16> to vector<16x16x128xbf16>
    %34 = vector.extract_strided_slice %31 {offsets = [0, 2, 0], sizes = [16, 16, 128], strides = [1, 1, 1]} : vector<16x18x128xbf16> to vector<16x16x128xbf16>
    %35 = tpu.concatenate %32, %33, %34 in 2 : vector<16x16x128xbf16>, vector<16x16x128xbf16>, vector<16x16x128xbf16> -> vector<16x16x384xbf16>
    %36 = vector.shape_cast %35 : vector<16x16x384xbf16> to vector<256x384xbf16>
    %c2_34 = arith.constant 2 : index
    %c0_35 = arith.constant 0 : index
    %c0_36 = arith.constant 0 : index
    %37 = vector.load %arg2[%c2_34, %c0_35, %c0_36] : memref<3x384x128xbf16, #tpu.memory_space<vmem>>, vector<1x384x128xbf16>
    %38 = vector.shape_cast %37 : vector<1x384x128xbf16> to vector<384x128xbf16>
    %cst_37 = arith.constant dense<0.000000e+00> : vector<256x128xf32>
    %39 = tpu.matmul %36, %38, %cst_37 {dimension_numbers = #tpu.dot_dimension_numbers<[1], [0], [0], [1], [0, 0, 1, 1], [], []>} : vector<256x384xbf16>, vector<384x128xbf16>, vector<256x128xf32> -> vector<256x128xf32>
    %c0_38 = arith.constant 0 : index
    %c0_39 = arith.constant 0 : index
    %40 = vector.load %arg11[%c0_38, %c0_39] : memref<256x128xf32, #tpu.memory_space<vmem>>, vector<256x128xf32>
    %41 = arith.addf %40, %39 : vector<256x128xf32>
    %c0_40 = arith.constant 0 : index
    %c0_41 = arith.constant 0 : index
    %42 = vector.load %arg11[%c0_40, %c0_41] : memref<256x128xf32, #tpu.memory_space<vmem>>, vector<256x128xf32>
    tpu.vector_store %arg11[%c0_40, %c0_41], %41 {strides = array<i32>} : memref<256x128xf32, #tpu.memory_space<vmem>>, vector<256x128xf32>,
    %c0_42 = arith.constant 0 : index
    %c0_43 = arith.constant 0 : index
    %43 = vector.load %arg11[%c0_42, %c0_43] : memref<256x128xf32, #tpu.memory_space<vmem>>, vector<256x128xf32>
    %44 = vector.shape_cast %6 : vector<128xf32> to vector<1x128xf32>
    %45 = vector.broadcast %44 : vector<1x128xf32> to vector<256x128xf32>
    %46 = arith.mulf %43, %45 : vector<256x128xf32>
    %47 = vector.shape_cast %8 : vector<128xf32> to vector<1x128xf32>
    %48 = vector.broadcast %47 : vector<1x128xf32> to vector<256x128xf32>
    %49 = arith.addf %46, %48 : vector<256x128xf32>
    %cst_44 = arith.constant 0.000000e+00 : f32
    %50 = vector.broadcast %cst_44 : f32 to vector<256x128xf32>
    %51 = arith.maximumf %49, %50 : vector<256x128xf32>
    %cst_45 = arith.constant 0.000000e+00 : bf16
    %52 = vector.broadcast %cst_45 : bf16 to vector<18x18x128xbf16>
    %c0_46 = arith.constant 0 : index
    %c0_47 = arith.constant 0 : index
    %c0_48 = arith.constant 0 : index
    %53 = vector.load %arg10[%c0_46, %c0_47, %c0_48] : memref<18x18x128xbf16, #tpu.memory_space<vmem>>, vector<18x18x128xbf16>
    tpu.vector_store %arg10[%c0_46, %c0_47, %c0_48], %52 {strides = array<i32>} : memref<18x18x128xbf16, #tpu.memory_space<vmem>>, vector<18x18x128xbf16>,
    %54 = vector.shape_cast %51 : vector<256x128xf32> to vector<16x16x128xf32>
    %55 = arith.truncf %54 : vector<16x16x128xf32> to vector<16x16x128xbf16>
    %c1_49 = arith.constant 1 : index
    %c1_50 = arith.constant 1 : index
    %c0_51 = arith.constant 0 : index
    %56 = vector.load %arg10[%c1_49, %c1_50, %c0_51] : memref<18x18x128xbf16, #tpu.memory_space<vmem>>, vector<16x16x128xbf16>
    tpu.vector_store %arg10[%c1_49, %c1_50, %c0_51], %55 {strides = array<i32>} : memref<18x18x128xbf16, #tpu.memory_space<vmem>>, vector<16x16x128xbf16>,
    %c0_52 = arith.constant 0 : index
    %c0_53 = arith.constant 0 : index
    %57 = vector.load %arg6[%c0_52, %c0_53] : memref<1x128xf32, #tpu.memory_space<vmem>>, vector<1x128xf32>
    %58 = vector.shape_cast %57 : vector<1x128xf32> to vector<128xf32>
    %c0_54 = arith.constant 0 : index
    %c0_55 = arith.constant 0 : index
    %59 = vector.load %arg7[%c0_54, %c0_55] : memref<1x128xf32, #tpu.memory_space<vmem>>, vector<1x128xf32>
    %60 = vector.shape_cast %59 : vector<1x128xf32> to vector<128xf32>
    %c0_56 = arith.constant 0 : index
    %c0_57 = arith.constant 0 : index
    %c0_58 = arith.constant 0 : index
    %61 = vector.load %arg10[%c0_56, %c0_57, %c0_58] : memref<18x18x128xbf16, #tpu.memory_space<vmem>>, vector<16x18x128xbf16>
    %62 = vector.extract_strided_slice %61 {offsets = [0, 0, 0], sizes = [16, 16, 128], strides = [1, 1, 1]} : vector<16x18x128xbf16> to vector<16x16x128xbf16>
    %63 = vector.extract_strided_slice %61 {offsets = [0, 1, 0], sizes = [16, 16, 128], strides = [1, 1, 1]} : vector<16x18x128xbf16> to vector<16x16x128xbf16>
    %64 = vector.extract_strided_slice %61 {offsets = [0, 2, 0], sizes = [16, 16, 128], strides = [1, 1, 1]} : vector<16x18x128xbf16> to vector<16x16x128xbf16>
    %65 = tpu.concatenate %62, %63, %64 in 2 : vector<16x16x128xbf16>, vector<16x16x128xbf16>, vector<16x16x128xbf16> -> vector<16x16x384xbf16>
    %66 = vector.shape_cast %65 : vector<16x16x384xbf16> to vector<256x384xbf16>
    %c0_59 = arith.constant 0 : index
    %c0_60 = arith.constant 0 : index
    %c0_61 = arith.constant 0 : index
    %67 = vector.load %arg3[%c0_59, %c0_60, %c0_61] : memref<3x384x128xbf16, #tpu.memory_space<vmem>>, vector<1x384x128xbf16>
    %68 = vector.shape_cast %67 : vector<1x384x128xbf16> to vector<384x128xbf16>
    %cst_62 = arith.constant dense<0.000000e+00> : vector<256x128xf32>
    %69 = tpu.matmul %66, %68, %cst_62 {dimension_numbers = #tpu.dot_dimension_numbers<[1], [0], [0], [1], [0, 0, 1, 1], [], []>} : vector<256x384xbf16>, vector<384x128xbf16>, vector<256x128xf32> -> vector<256x128xf32>
    %c0_63 = arith.constant 0 : index
    %c0_64 = arith.constant 0 : index
    %70 = vector.load %arg11[%c0_63, %c0_64] : memref<256x128xf32, #tpu.memory_space<vmem>>, vector<256x128xf32>
    tpu.vector_store %arg11[%c0_63, %c0_64], %69 {strides = array<i32>} : memref<256x128xf32, #tpu.memory_space<vmem>>, vector<256x128xf32>,
    %c1_65 = arith.constant 1 : index
    %c0_66 = arith.constant 0 : index
    %c0_67 = arith.constant 0 : index
    %71 = vector.load %arg10[%c1_65, %c0_66, %c0_67] : memref<18x18x128xbf16, #tpu.memory_space<vmem>>, vector<16x18x128xbf16>
    %72 = vector.extract_strided_slice %71 {offsets = [0, 0, 0], sizes = [16, 16, 128], strides = [1, 1, 1]} : vector<16x18x128xbf16> to vector<16x16x128xbf16>
    %73 = vector.extract_strided_slice %71 {offsets = [0, 1, 0], sizes = [16, 16, 128], strides = [1, 1, 1]} : vector<16x18x128xbf16> to vector<16x16x128xbf16>
    %74 = vector.extract_strided_slice %71 {offsets = [0, 2, 0], sizes = [16, 16, 128], strides = [1, 1, 1]} : vector<16x18x128xbf16> to vector<16x16x128xbf16>
    %75 = tpu.concatenate %72, %73, %74 in 2 : vector<16x16x128xbf16>, vector<16x16x128xbf16>, vector<16x16x128xbf16> -> vector<16x16x384xbf16>
    %76 = vector.shape_cast %75 : vector<16x16x384xbf16> to vector<256x384xbf16>
    %c1_68 = arith.constant 1 : index
    %c0_69 = arith.constant 0 : index
    %c0_70 = arith.constant 0 : index
    %77 = vector.load %arg3[%c1_68, %c0_69, %c0_70] : memref<3x384x128xbf16, #tpu.memory_space<vmem>>, vector<1x384x128xbf16>
    %78 = vector.shape_cast %77 : vector<1x384x128xbf16> to vector<384x128xbf16>
    %cst_71 = arith.constant dense<0.000000e+00> : vector<256x128xf32>
    %79 = tpu.matmul %76, %78, %cst_71 {dimension_numbers = #tpu.dot_dimension_numbers<[1], [0], [0], [1], [0, 0, 1, 1], [], []>} : vector<256x384xbf16>, vector<384x128xbf16>, vector<256x128xf32> -> vector<256x128xf32>
    %c0_72 = arith.constant 0 : index
    %c0_73 = arith.constant 0 : index
    %80 = vector.load %arg11[%c0_72, %c0_73] : memref<256x128xf32, #tpu.memory_space<vmem>>, vector<256x128xf32>
    %81 = arith.addf %80, %79 : vector<256x128xf32>
    %c0_74 = arith.constant 0 : index
    %c0_75 = arith.constant 0 : index
    %82 = vector.load %arg11[%c0_74, %c0_75] : memref<256x128xf32, #tpu.memory_space<vmem>>, vector<256x128xf32>
    tpu.vector_store %arg11[%c0_74, %c0_75], %81 {strides = array<i32>} : memref<256x128xf32, #tpu.memory_space<vmem>>, vector<256x128xf32>,
    %c2_76 = arith.constant 2 : index
    %c0_77 = arith.constant 0 : index
    %c0_78 = arith.constant 0 : index
    %83 = vector.load %arg10[%c2_76, %c0_77, %c0_78] : memref<18x18x128xbf16, #tpu.memory_space<vmem>>, vector<16x18x128xbf16>
    %84 = vector.extract_strided_slice %83 {offsets = [0, 0, 0], sizes = [16, 16, 128], strides = [1, 1, 1]} : vector<16x18x128xbf16> to vector<16x16x128xbf16>
    %85 = vector.extract_strided_slice %83 {offsets = [0, 1, 0], sizes = [16, 16, 128], strides = [1, 1, 1]} : vector<16x18x128xbf16> to vector<16x16x128xbf16>
    %86 = vector.extract_strided_slice %83 {offsets = [0, 2, 0], sizes = [16, 16, 128], strides = [1, 1, 1]} : vector<16x18x128xbf16> to vector<16x16x128xbf16>
    %87 = tpu.concatenate %84, %85, %86 in 2 : vector<16x16x128xbf16>, vector<16x16x128xbf16>, vector<16x16x128xbf16> -> vector<16x16x384xbf16>
    %88 = vector.shape_cast %87 : vector<16x16x384xbf16> to vector<256x384xbf16>
    %c2_79 = arith.constant 2 : index
    %c0_80 = arith.constant 0 : index
    %c0_81 = arith.constant 0 : index
    %89 = vector.load %arg3[%c2_79, %c0_80, %c0_81] : memref<3x384x128xbf16, #tpu.memory_space<vmem>>, vector<1x384x128xbf16>
    %90 = vector.shape_cast %89 : vector<1x384x128xbf16> to vector<384x128xbf16>
    %cst_82 = arith.constant dense<0.000000e+00> : vector<256x128xf32>
    %91 = tpu.matmul %88, %90, %cst_82 {dimension_numbers = #tpu.dot_dimension_numbers<[1], [0], [0], [1], [0, 0, 1, 1], [], []>} : vector<256x384xbf16>, vector<384x128xbf16>, vector<256x128xf32> -> vector<256x128xf32>
    %c0_83 = arith.constant 0 : index
    %c0_84 = arith.constant 0 : index
    %92 = vector.load %arg11[%c0_83, %c0_84] : memref<256x128xf32, #tpu.memory_space<vmem>>, vector<256x128xf32>
    %93 = arith.addf %92, %91 : vector<256x128xf32>
    %c0_85 = arith.constant 0 : index
    %c0_86 = arith.constant 0 : index
    %94 = vector.load %arg11[%c0_85, %c0_86] : memref<256x128xf32, #tpu.memory_space<vmem>>, vector<256x128xf32>
    tpu.vector_store %arg11[%c0_85, %c0_86], %93 {strides = array<i32>} : memref<256x128xf32, #tpu.memory_space<vmem>>, vector<256x128xf32>,
    %c0_87 = arith.constant 0 : index
    %c0_88 = arith.constant 0 : index
    %95 = vector.load %arg11[%c0_87, %c0_88] : memref<256x128xf32, #tpu.memory_space<vmem>>, vector<256x128xf32>
    %96 = vector.shape_cast %58 : vector<128xf32> to vector<1x128xf32>
    %97 = vector.broadcast %96 : vector<1x128xf32> to vector<256x128xf32>
    %98 = arith.mulf %95, %97 : vector<256x128xf32>
    %99 = vector.shape_cast %60 : vector<128xf32> to vector<1x128xf32>
    %100 = vector.broadcast %99 : vector<1x128xf32> to vector<256x128xf32>
    %101 = arith.addf %98, %100 : vector<256x128xf32>
    %cst_89 = arith.constant 0.000000e+00 : f32
    %102 = vector.broadcast %cst_89 : f32 to vector<256x128xf32>
    %103 = arith.maximumf %101, %102 : vector<256x128xf32>
    %104 = vector.shape_cast %103 : vector<256x128xf32> to vector<1x16x16x128xf32>
    %c0_90 = arith.constant 0 : index
    %c0_91 = arith.constant 0 : index
    %c0_92 = arith.constant 0 : index
    %c0_93 = arith.constant 0 : index
    %105 = vector.load %arg8[%c0_90, %c0_91, %c0_92, %c0_93] : memref<1x16x16x128xf32, #tpu.memory_space<vmem>>, vector<1x16x16x128xf32>
    tpu.vector_store %arg8[%c0_90, %c0_91, %c0_92, %c0_93], %104 {strides = array<i32>} : memref<1x16x16x128xf32, #tpu.memory_space<vmem>>, vector<1x16x16x128xf32>,
    return
  }
  func.func @transform_0(%arg0: i32) -> (i32, i32, i32, i32) {
    %c0_i32 = arith.constant 0 : i32
    %c0_i32_0 = arith.constant 0 : i32
    %c0_i32_1 = arith.constant 0 : i32
    %c0_i32_2 = arith.constant 0 : i32
    return %arg0, %c0_i32, %c0_i32_0, %c0_i32_1 : i32, i32, i32, i32
  }
  func.func @transform_1(%arg0: i32) -> (i32, i32, i32) {
    %c0_i32 = arith.constant 0 : i32
    %c0_i32_0 = arith.constant 0 : i32
    %c0_i32_1 = arith.constant 0 : i32
    %c0_i32_2 = arith.constant 0 : i32
    return %c0_i32, %c0_i32_0, %c0_i32_1 : i32, i32, i32
  }
  func.func @transform_2(%arg0: i32) -> (i32, i32, i32) {
    %c0_i32 = arith.constant 0 : i32
    %c0_i32_0 = arith.constant 0 : i32
    %c0_i32_1 = arith.constant 0 : i32
    %c0_i32_2 = arith.constant 0 : i32
    return %c0_i32, %c0_i32_0, %c0_i32_1 : i32, i32, i32
  }
  func.func @transform_3(%arg0: i32) -> (i32, i32) {
    %c0_i32 = arith.constant 0 : i32
    %c0_i32_0 = arith.constant 0 : i32
    %c0_i32_1 = arith.constant 0 : i32
    return %c0_i32, %c0_i32_0 : i32, i32
  }
  func.func @transform_4(%arg0: i32) -> (i32, i32) {
    %c0_i32 = arith.constant 0 : i32
    %c0_i32_0 = arith.constant 0 : i32
    %c0_i32_1 = arith.constant 0 : i32
    return %c0_i32, %c0_i32_0 : i32, i32
  }
  func.func @transform_5(%arg0: i32) -> (i32, i32) {
    %c0_i32 = arith.constant 0 : i32
    %c0_i32_0 = arith.constant 0 : i32
    %c0_i32_1 = arith.constant 0 : i32
    return %c0_i32, %c0_i32_0 : i32, i32
  }
  func.func @transform_6(%arg0: i32) -> (i32, i32) {
    %c0_i32 = arith.constant 0 : i32
    %c0_i32_0 = arith.constant 0 : i32
    %c0_i32_1 = arith.constant 0 : i32
    return %c0_i32, %c0_i32_0 : i32, i32
  }
  func.func @transform_7(%arg0: i32) -> (i32, i32, i32, i32) {
    %c0_i32 = arith.constant 0 : i32
    %c0_i32_0 = arith.constant 0 : i32
    %c0_i32_1 = arith.constant 0 : i32
    %c0_i32_2 = arith.constant 0 : i32
    return %arg0, %c0_i32, %c0_i32_0, %c0_i32_1 : i32, i32, i32, i32
  }
}

</mosaic_0001>

<llo_original>
// kernel: double_conv_forward.1
$region0: #{double_conv_forward.1}
  #allocation0 [shape = 'u32[]', space=smem, size = 0x4, offset = 0x4, fixed_abs, tag = 'smem constant byte address 0x4 - core index']
  #allocation1 [shape = 'u32[144,128]{1,0:T(1,128)}', space=vmem, size = 0x12000, scoped, tag = 'internal scratch']
  #allocation2 [shape = 'bf16[18,18,128]{2,1,0:T(8,128)(2,1)}', space=vmem, size = 0x1b000, scoped, tag = 'scratch operand']
  #allocation3 [shape = 'bf16[18,18,128]{2,1,0:T(8,128)(2,1)}', space=vmem, size = 0x1b000, scoped, tag = 'scratch operand']
  #allocation4 [shape = 'f32[256,128]{1,0:T(8,128)}', space=vmem, size = 0x20000, scoped, tag = 'scratch operand']
  %s0 = inlined_call_operand.vmem [shape: bf16[2,16,16,128], index: 0, kind: input, shape index: {}]
  %s1 = inlined_call_operand.vmem [shape: bf16[3,384,128], index: 1, kind: input, shape index: {}]
  %s2 = inlined_call_operand.vmem [shape: bf16[3,384,128], index: 2, kind: input, shape index: {}]
  %s3 = inlined_call_operand.vmem [shape: f32[1,128], index: 3, kind: input, shape index: {}]
  %s4 = inlined_call_operand.vmem [shape: f32[1,128], index: 4, kind: input, shape index: {}]
  %s5 = inlined_call_operand.vmem [shape: f32[1,128], index: 5, kind: input, shape index: {}]
  %s6 = inlined_call_operand.vmem [shape: f32[1,128], index: 6, kind: input, shape index: {}]
  %s7 = inlined_call_operand.vmem [shape: f32[2,16,16,128], index: 7, kind: output, shape index: {}]
  %s8 = sld [smem:[#allocation0]]
  $region61: #{double_conv_forward.1} parent=0
    _
  %s10 = ssub.s32 1, %s8
  %s11 = scalar_select 0, %s10, %s8
  loop: start=0, step=1, limit=4
  $region2: #{double_conv_forward.1} parent=0 // loop_pre_header
    _
  $region3: #{double_conv_forward.1} parent=0 // loop_header
    %s13 = sphi 0, %s17
    %p14 = scmp.ge.s32.totalorder %s13, 4
    %s23 = sphi 0, %s25
    %s26 = sphi 0, %s23
    %s27 = sphi 0, %s26
    %s43 = sphi 0, %s27
    %s47 = sphi 0, %s47
    %s49 = sphi 0, %s47
    %s50 = sphi 0, %s49
    %s64 = sphi 0, %s50
    %s68 = sphi 0, %s68
    %s70 = sphi 0, %s68
    %s71 = sphi 0, %s70
    %s85 = sphi 0, %s71
    %s89 = sphi 0, %s89
    %s91 = sphi 0, %s89
    %s92 = sphi 0, %s91
    %s106 = sphi 0, %s92
    %s110 = sphi 0, %s110
    %s112 = sphi 0, %s110
    %s113 = sphi 0, %s112
    %s127 = sphi 0, %s113
    %s131 = sphi 0, %s131
    %s133 = sphi 0, %s131
    %s134 = sphi 0, %s133
    %s148 = sphi 0, %s134
    %s152 = sphi 0, %s152
    %s154 = sphi 0, %s152
    %s155 = sphi 0, %s154
    %s169 = sphi 0, %s155
    %s175 = sphi 0, %s177
    %s178 = sphi 0, %s175
    %s179 = sphi 0, %s178
    %s195 = sphi 0, %s179
  $region4: #{double_conv_forward.1} parent=0 // loop_header_branch
    %16 = sbr.rel (%p14) target = $region8
  $region5: #{double_conv_forward.1} parent=0 // loop_body
    %s18 = ssub.s32 %s13, 1
    %s19 = ssub.s32 %s13, 2
    %s20 = sadd.s32 %s13, 1
    %s21 = ssub.s32 %s13, %s20
    %p22 = scmp.eq.s32.totalorder %s21, 0
    %s24 = sadd.s32 %s23, 1
    %s25 = scalar_select %p22, %s23, %s24
    %p28 = pneg %p22
    %p29 = scmp.eq.s32.totalorder %s13, 1
    %p30 = por %p28, %p29
    %p31 = scmp.ne.s32.totalorder %s23, %s26
    %p32 = scmp.eq.s32.totalorder %s13, 0
    %p33 = por %p31, %p32
    %p34 = scmp.ne.s32.totalorder %s23, %s26
    %p35 = scmp.eq.s32.totalorder %s18, 1
    %p36 = por %p34, %p35
    %p37 = scmp.ne.s32.totalorder %s26, %s27
    %p38 = scmp.eq.s32.totalorder %s18, 0
    %p39 = por %p37, %p38
    %p40 = scmp.ne.s32.totalorder %s26, %s27
    %p41 = scmp.eq.s32.totalorder %s19, 1
    %p42 = por %p40, %p41
    %p44 = scmp.ne.s32.totalorder %s27, %s43
    %p45 = scmp.eq.s32.totalorder %s19, 0
    %p46 = por %p44, %p45
    %s48 = sadd.s32 %s47, 1
    %p51 = scmp.eq.s32.totalorder %s13, 1
    %p52 = scmp.ne.s32.totalorder %s47, %s49
    %p53 = scmp.eq.s32.totalorder %s13, 0
    %p54 = por %p52, %p53
    %p55 = scmp.ne.s32.totalorder %s47, %s49
    %p56 = scmp.eq.s32.totalorder %s18, 1
    %p57 = por %p55, %p56
    %p58 = scmp.ne.s32.totalorder %s49, %s50
    %p59 = scmp.eq.s32.totalorder %s18, 0
    %p60 = por %p58, %p59
    %p61 = scmp.ne.s32.totalorder %s49, %s50
    %p62 = scmp.eq.s32.totalorder %s19, 1
    %p63 = por %p61, %p62
    %p65 = scmp.ne.s32.totalorder %s50, %s64
    %p66 = scmp.eq.s32.totalorder %s19, 0
    %p67 = por %p65, %p66
    %s69 = sadd.s32 %s68, 1
    %p72 = scmp.eq.s32.totalorder %s13, 1
    %p73 = scmp.ne.s32.totalorder %s68, %s70
    %p74 = scmp.eq.s32.totalorder %s13, 0
    %p75 = por %p73, %p74
    %p76 = scmp.ne.s32.totalorder %s68, %s70
    %p77 = scmp.eq.s32.totalorder %s18, 1
    %p78 = por %p76, %p77
    %p79 = scmp.ne.s32.totalorder %s70, %s71
    %p80 = scmp.eq.s32.totalorder %s18, 0
    %p81 = por %p79, %p80
    %p82 = scmp.ne.s32.totalorder %s70, %s71
    %p83 = scmp.eq.s32.totalorder %s19, 1
    %p84 = por %p82, %p83
    %p86 = scmp.ne.s32.totalorder %s71, %s85
    %p87 = scmp.eq.s32.totalorder %s19, 0
    %p88 = por %p86, %p87
    %s90 = sadd.s32 %s89, 1
    %p93 = scmp.eq.s32.totalorder %s13, 1
    %p94 = scmp.ne.s32.totalorder %s89, %s91
    %p95 = scmp.eq.s32.totalorder %s13, 0
    %p96 = por %p94, %p95
    %p97 = scmp.ne.s32.totalorder %s89, %s91
    %p98 = scmp.eq.s32.totalorder %s18, 1
    %p99 = por %p97, %p98
    %p100 = scmp.ne.s32.totalorder %s91, %s92
    %p101 = scmp.eq.s32.totalorder %s18, 0
    %p102 = por %p100, %p101
    %p103 = scmp.ne.s32.totalorder %s91, %s92
    %p104 = scmp.eq.s32.totalorder %s19, 1
    %p105 = por %p103, %p104
    %p107 = scmp.ne.s32.totalorder %s92, %s106
    %p108 = scmp.eq.s32.totalorder %s19, 0
    %p109 = por %p107, %p108
    %s111 = sadd.s32 %s110, 1
    %p114 = scmp.eq.s32.totalorder %s13, 1
    %p115 = scmp.ne.s32.totalorder %s110, %s112
    %p116 = scmp.eq.s32.totalorder %s13, 0
    %p117 = por %p115, %p116
    %p118 = scmp.ne.s32.totalorder %s110, %s112
    %p119 = scmp.eq.s32.totalorder %s18, 1
    %p120 = por %p118, %p119
    %p121 = scmp.ne.s32.totalorder %s112, %s113
    %p122 = scmp.eq.s32.totalorder %s18, 0
    %p123 = por %p121, %p122
    %p124 = scmp.ne.s32.totalorder %s112, %s113
    %p125 = scmp.eq.s32.totalorder %s19, 1
    %p126 = por %p124, %p125
    %p128 = scmp.ne.s32.totalorder %s113, %s127
    %p129 = scmp.eq.s32.totalorder %s19, 0
    %p130 = por %p128, %p129
    %s132 = sadd.s32 %s131, 1
    %p135 = scmp.eq.s32.totalorder %s13, 1
    %p136 = scmp.ne.s32.totalorder %s131, %s133
    %p137 = scmp.eq.s32.totalorder %s13, 0
    %p138 = por %p136, %p137
    %p139 = scmp.ne.s32.totalorder %s131, %s133
    %p140 = scmp.eq.s32.totalorder %s18, 1
    %p141 = por %p139, %p140
    %p142 = scmp.ne.s32.totalorder %s133, %s134
    %p143 = scmp.eq.s32.totalorder %s18, 0
    %p144 = por %p142, %p143
    %p145 = scmp.ne.s32.totalorder %s133, %s134
    %p146 = scmp.eq.s32.totalorder %s19, 1
    %p147 = por %p145, %p146
    %p149 = scmp.ne.s32.totalorder %s134, %s148
    %p150 = scmp.eq.s32.totalorder %s19, 0
    %p151 = por %p149, %p150
    %s153 = sadd.s32 %s152, 1
    %p156 = scmp.eq.s32.totalorder %s13, 1
    %p157 = scmp.ne.s32.totalorder %s152, %s154
    %p158 = scmp.eq.s32.totalorder %s13, 0
    %p159 = por %p157, %p158
    %p160 = scmp.ne.s32.totalorder %s152, %s154
    %p161 = scmp.eq.s32.totalorder %s18, 1
    %p162 = por %p160, %p161
    %p163 = scmp.ne.s32.totalorder %s154, %s155
    %p164 = scmp.eq.s32.totalorder %s18, 0
    %p165 = por %p163, %p164
    %p166 = scmp.ne.s32.totalorder %s154, %s155
    %p167 = scmp.eq.s32.totalorder %s19, 1
    %p168 = por %p166, %p167
    %p170 = scmp.ne.s32.totalorder %s155, %s169
    %p171 = scmp.eq.s32.totalorder %s19, 0
    %p172 = por %p170, %p171
    %s173 = ssub.s32 %s13, %s20
    %p174 = scmp.eq.s32.totalorder %s173, 0
    %s176 = sadd.s32 %s175, 1
    %s177 = scalar_select %p174, %s175, %s176
    %p180 = pneg %p174
    %p181 = scmp.eq.s32.totalorder %s13, 1
    %p182 = por %p180, %p181
    %p183 = scmp.ne.s32.totalorder %s175, %s178
    %p184 = scmp.eq.s32.totalorder %s13, 0
    %p185 = por %p183, %p184
    %p186 = scmp.ne.s32.totalorder %s175, %s178
    %p187 = scmp.eq.s32.totalorder %s18, 1
    %p188 = por %p186, %p187
    %p189 = scmp.ne.s32.totalorder %s178, %s179
    %p190 = scmp.eq.s32.totalorder %s18, 0
    %p191 = por %p189, %p190
    %p192 = scmp.ne.s32.totalorder %s178, %s179
    %p193 = scmp.eq.s32.totalorder %s19, 1
    %p194 = por %p192, %p193
    %p196 = scmp.ne.s32.totalorder %s179, %s195
    %p197 = scmp.eq.s32.totalorder %s19, 0
    %p198 = por %p196, %p197
    %p199 = scmp.le.s32.totalorder 1, %s13
    %p200 = scmp.lt.s32.totalorder %s13, 3
    %p201 = pnand %p199, %p200
    %p202 = pneg %p201
    // Predicated region
    $region9: #{double_conv_forward.1} parent=5 // pred_check
      _
    $region10: #{double_conv_forward.1} parent=5 // pred_check_branch
      %204 = sbr.rel (%p201) target = $region12
    $region11: #{double_conv_forward.1} parent=5 // pred_region
      %s205 = ssub.s32 %s13, 1
      // Predicated region
      $region13: #{double_conv_forward.1} parent=11 // pred_check
        %p206 = pneg %p60
      $region14: #{double_conv_forward.1} parent=11 // pred_check_branch
        %208 = sbr.rel (%p206) target = $region16
      $region15: #{double_conv_forward.1} parent=11 // pred_region
        _
      $region16: #{double_conv_forward.1} parent=11 // pred_fallthru
        _
      // Predicated region
      $region17: #{double_conv_forward.1} parent=11 // pred_check
        %p209 = pneg %p81
      $region18: #{double_conv_forward.1} parent=11 // pred_check_branch
        %211 = sbr.rel (%p209) target = $region20
      $region19: #{double_conv_forward.1} parent=11 // pred_region
        _
      $region20: #{double_conv_forward.1} parent=11 // pred_fallthru
        _
      // Predicated region
      $region21: #{double_conv_forward.1} parent=11 // pred_check
        %p212 = pneg %p102
      $region22: #{double_conv_forward.1} parent=11 // pred_check_branch
        %214 = sbr.rel (%p212) target = $region24
      $region23: #{double_conv_forward.1} parent=11 // pred_region
        _
      $region24: #{double_conv_forward.1} parent=11 // pred_fallthru
        _
      // Predicated region
      $region25: #{double_conv_forward.1} parent=11 // pred_check
        %p215 = pneg %p123
      $region26: #{double_conv_forward.1} parent=11 // pred_check_branch
        %217 = sbr.rel (%p215) target = $region28
      $region27: #{double_conv_forward.1} parent=11 // pred_region
        _
      $region28: #{double_conv_forward.1} parent=11 // pred_fallthru
        _
      // Predicated region
      $region29: #{double_conv_forward.1} parent=11 // pred_check
        %p218 = pneg %p144
      $region30: #{double_conv_forward.1} parent=11 // pred_check_branch
        %220 = sbr.rel (%p218) target = $region32
      $region31: #{double_conv_forward.1} parent=11 // pred_region
        _
      $region32: #{double_conv_forward.1} parent=11 // pred_fallthru
        _
      // Predicated region
      $region33: #{double_conv_forward.1} parent=11 // pred_check
        %p221 = pneg %p165
      $region34: #{double_conv_forward.1} parent=11 // pred_check_branch
        %223 = sbr.rel (%p221) target = $region36
      $region35: #{double_conv_forward.1} parent=11 // pred_region
        _
      $region36: #{double_conv_forward.1} parent=11 // pred_fallthru
        _
    $region12: #{double_conv_forward.1} parent=5 // pred_fallthru
      _
    %p224 = scmp.lt.s32.totalorder %s13, 2
    // Predicated region
    $region37: #{double_conv_forward.1} parent=5 // pred_check
      %p225 = pneg %p224
    $region38: #{double_conv_forward.1} parent=5 // pred_check_branch
      %227 = sbr.rel (%p225) target = $region40
    $region39: #{double_conv_forward.1} parent=5 // pred_region
      // Predicated region
      $region41: #{double_conv_forward.1} parent=39 // pred_check
        %p228 = pneg %p33
      $region42: #{double_conv_forward.1} parent=39 // pred_check_branch
        %230 = sbr.rel (%p228) target = $region44
      $region43: #{double_conv_forward.1} parent=39 // pred_region
        %p231 = scmp.lt.s32.totalorder %s13, 1
        %s232 = scalar_select %p231, %s13, 1
        %s233 = smul.addr %s232, 32
        %s234 = smul.addr %s233, 4
        %s235 = scalar_lea.vmem %s0, %s234
      $region44: #{double_conv_forward.1} parent=39 // pred_fallthru
        _
    $region40: #{double_conv_forward.1} parent=5 // pred_fallthru
      _
    %p236 = scmp.le.s32.totalorder 1, %s13
    %p237 = scmp.lt.s32.totalorder %s13, 3
    %p238 = pnand %p236, %p237
    %p239 = pneg %p238
    // Predicated region
    $region45: #{double_conv_forward.1} parent=5 // pred_check
      _
    $region46: #{double_conv_forward.1} parent=5 // pred_check_branch
      %241 = sbr.rel (%p238) target = $region48
    $region47: #{double_conv_forward.1} parent=5 // pred_region
      %s242 = ssub.s32 %s13, 1
      %p243 = scmp.lt.s32.totalorder %s18, 1
      %s244 = scalar_select %p243, %s18, 1
      %s245 = smul.addr %s244, 32
      %s246 = smul.addr %s245, 4
      %s247 = scalar_lea.vmem %s0, %s246
      %p248 = pneg %p39
      %p249 = pneg %p36
      %p250 = pneg %p60
      %p251 = pneg %p57
      %p252 = pneg %p81
      %p253 = pneg %p78
      %p254 = pneg %p102
      %p255 = pneg %p99
      %p256 = pneg %p123
      %p257 = pneg %p120
      %p258 = pneg %p144
      %p259 = pneg %p141
      %p260 = pneg %p165
      %p261 = pneg %p162
      %p262 = pneg %p191
      %p263 = pneg %p188
      %p264 = scmp.lt.s32.totalorder %s18, 1
      %s265 = scalar_select %p264, %s18, 1
      %s266 = smul.addr %s265, 32
      %s267 = smul.addr %s266, 8
      %s268 = scalar_lea.vmem %s7, %s267
      %p269 = scmp.lt.s32.totalorder %s18, 1
      %s270 = scalar_select %p269, %s18, 1
      %s271 = smul.addr %s270, 32
      %s272 = smul.addr %s271, 4
      %s273 = scalar_lea.vmem %s0, %s272
      %p274 = scmp.lt.s32.totalorder %s18, 1
      %s275 = scalar_select %p274, %s18, 1
      %s276 = smul.addr %s275, 32
      %s277 = smul.addr %s276, 8
      %s278 = scalar_lea.vmem %s7, %s277
      %280 = vst [vmem:[#allocation2] sm:$0xf] 0
      %281 = vst [vmem:[#allocation2 + $0x4] sm:$0xf] 0
      %282 = vst [vmem:[#allocation2 + $0x8] sm:$0x1] 0
      %283 = vst [vmem:[#allocation2 + $0xc] sm:$0xf] 0
      %284 = vst [vmem:[#allocation2 + $0x10] sm:$0xf] 0
      %285 = vst [vmem:[#allocation2 + $0x14] sm:$0x1] 0
      %286 = vst [vmem:[#allocation2 + $0x18] sm:$0xf] 0
      %287 = vst [vmem:[#allocation2 + $0x1c] sm:$0xf] 0
      %288 = vst [vmem:[#allocation2 + $0x20] sm:$0x1] 0
      %289 = vst [vmem:[#allocation2 + $0x24] sm:$0xf] 0
      %290 = vst [vmem:[#allocation2 + $0x28] sm:$0xf] 0
      %291 = vst [vmem:[#allocation2 + $0x2c] sm:$0x1] 0
      %292 = vst [vmem:[#allocation2 + $0x30] sm:$0xf] 0
      %293 = vst [vmem:[#allocation2 + $0x34] sm:$0xf] 0
      %294 = vst [vmem:[#allocation2 + $0x38] sm:$0x1] 0
      %295 = vst [vmem:[#allocation2 + $0x3c] sm:$0xf] 0
      %296 = vst [vmem:[#allocation2 + $0x40] sm:$0xf] 0
      %297 = vst [vmem:[#allocation2 + $0x44] sm:$0x1] 0
      %298 = vst [vmem:[#allocation2 + $0x48] sm:$0xf] 0
      %299 = vst [vmem:[#allocation2 + $0x4c] sm:$0xf] 0
      %300 = vst [vmem:[#allocation2 + $0x50] sm:$0x1] 0
      %301 = vst [vmem:[#allocation2 + $0x54] sm:$0xf] 0
      %302 = vst [vmem:[#allocation2 + $0x58] sm:$0xf] 0
      %303 = vst [vmem:[#allocation2 + $0x5c] sm:$0x1] 0
      %304 = vst [vmem:[#allocation2 + $0x60] sm:$0xf] 0
      %305 = vst [vmem:[#allocation2 + $0x64] sm:$0xf] 0
      %306 = vst [vmem:[#allocation2 + $0x68] sm:$0x1] 0
      %307 = vst [vmem:[#allocation2 + $0x6c] sm:$0xf] 0
      %308 = vst [vmem:[#allocation2 + $0x70] sm:$0xf] 0
      %309 = vst [vmem:[#allocation2 + $0x74] sm:$0x1] 0
      %310 = vst [vmem:[#allocation2 + $0x78] sm:$0xf] 0
      %311 = vst [vmem:[#allocation2 + $0x7c] sm:$0xf] 0
      %312 = vst [vmem:[#allocation2 + $0x80] sm:$0x1] 0
      %313 = vst [vmem:[#allocation2 + $0x84] sm:$0xf] 0
      %314 = vst [vmem:[#allocation2 + $0x88] sm:$0xf] 0
      %315 = vst [vmem:[#allocation2 + $0x8c] sm:$0x1] 0
      %316 = vst [vmem:[#allocation2 + $0x90] sm:$0xf] 0
      %317 = vst [vmem:[#allocation2 + $0x94] sm:$0xf] 0
      %318 = vst [vmem:[#allocation2 + $0x98] sm:$0x1] 0
      %319 = vst [vmem:[#allocation2 + $0x9c] sm:$0xf] 0
      %320 = vst [vmem:[#allocation2 + $0xa0] sm:$0xf] 0
      %321 = vst [vmem:[#allocation2 + $0xa4] sm:$0x1] 0
      %322 = vst [vmem:[#allocation2 + $0xa8] sm:$0xf] 0
      %323 = vst [vmem:[#allocation2 + $0xac] sm:$0xf] 0
      %324 = vst [vmem:[#allocation2 + $0xb0] sm:$0x1] 0
      %325 = vst [vmem:[#allocation2 + $0xb4] sm:$0xf] 0
      %326 = vst [vmem:[#allocation2 + $0xb8] sm:$0xf] 0
      %327 = vst [vmem:[#allocation2 + $0xbc] sm:$0x1] 0
      %328 = vst [vmem:[#allocation2 + $0xc0] sm:$0xf] 0
      %329 = vst [vmem:[#allocation2 + $0xc4] sm:$0xf] 0
      %330 = vst [vmem:[#allocation2 + $0xc8] sm:$0x1] 0
      %331 = vst [vmem:[#allocation2 + $0xcc] sm:$0xf] 0
      %332 = vst [vmem:[#allocation2 + $0xd0] sm:$0xf] 0
      %333 = vst [vmem:[#allocation2 + $0xd4] sm:$0x1] 0
      %v334 = vld [vmem:[%s273] sm:$0xf]
      %v335 = vld [vmem:[%s273 + $0x4] sm:$0xf]
      %v336 = vld [vmem:[%s273 + $0x8] sm:$0xf]
      %v337 = vld [vmem:[%s273 + $0xc] sm:$0xf]
      %v338 = vld [vmem:[%s273 + $0x10] sm:$0xf]
      %v339 = vld [vmem:[%s273 + $0x14] sm:$0xf]
      %v340 = vld [vmem:[%s273 + $0x18] sm:$0xf]
      %v341 = vld [vmem:[%s273 + $0x1c] sm:$0xf]
      %v342 = vld [vmem:[%s273 + $0x20] sm:$0xf]
      %v343 = vld [vmem:[%s273 + $0x24] sm:$0xf]
      %v344 = vld [vmem:[%s273 + $0x28] sm:$0xf]
      %v345 = vld [vmem:[%s273 + $0x2c] sm:$0xf]
      %v346 = vld [vmem:[%s273 + $0x30] sm:$0xf]
      %v347 = vld [vmem:[%s273 + $0x34] sm:$0xf]
      %v348 = vld [vmem:[%s273 + $0x38] sm:$0xf]
      %v349 = vld [vmem:[%s273 + $0x3c] sm:$0xf]
      %v350 = vld [vmem:[%s273 + $0x40] sm:$0xf]
      %v351 = vld [vmem:[%s273 + $0x44] sm:$0xf]
      %v352 = vld [vmem:[%s273 + $0x48] sm:$0xf]
      %v353 = vld [vmem:[%s273 + $0x4c] sm:$0xf]
      %v354 = vld [vmem:[%s273 + $0x50] sm:$0xf]
      %v355 = vld [vmem:[%s273 + $0x54] sm:$0xf]
      %v356 = vld [vmem:[%s273 + $0x58] sm:$0xf]
      %v357 = vld [vmem:[%s273 + $0x5c] sm:$0xf]
      %v358 = vld [vmem:[%s273 + $0x60] sm:$0xf]
      %v359 = vld [vmem:[%s273 + $0x64] sm:$0xf]
      %v360 = vld [vmem:[%s273 + $0x68] sm:$0xf]
      %v361 = vld [vmem:[%s273 + $0x6c] sm:$0xf]
      %v362 = vld [vmem:[%s273 + $0x70] sm:$0xf]
      %v363 = vld [vmem:[%s273 + $0x74] sm:$0xf]
      %v364 = vld [vmem:[%s273 + $0x78] sm:$0xf]
      %v365 = vld [vmem:[%s273 + $0x7c] sm:$0xf]
      %vm366 = vsmask.f32 256
      %vm367 = vsmask.f32 4368
      %vm368 = vmor %vm366, %vm367
      %v370 = vshrl.u32 %v334, 16
      %v372 = vrot.slane %v370, 7
      %v373 = vshll.u32 %v334, 16
      %v375 = vor.u32 %v372, %v373
      %v376 = vrot.slane %v372, 4
      %v378 = vshrl.u32 %v335, 16
      %v380 = vrot.slane %v378, 7
      %v381 = vshll.u32 %v335, 16
      %v383 = vor.u32 %v380, %v381
      %v384 = vsel %vm368, %v376, %v383
      %v385 = vrot.slane %v380, 4
      %v387 = vshrl.u32 %v336, 16
      %v389 = vrot.slane %v387, 7
      %v390 = vshll.u32 %v336, 16
      %v392 = vor.u32 %v389, %v390
      %v393 = vrot.slane %v389, 4
      %v395 = vshrl.u32 %v337, 16
      %v397 = vrot.slane %v395, 7
      %v398 = vshll.u32 %v337, 16
      %v400 = vor.u32 %v397, %v398
      %v401 = vsel %vm368, %v393, %v400
      %v402 = vrot.slane %v397, 4
      %v404 = vshrl.u32 %v338, 16
      %v406 = vrot.slane %v404, 7
      %v407 = vshll.u32 %v338, 16
      %v409 = vor.u32 %v406, %v407
      %v410 = vrot.slane %v406, 4
      %v412 = vshrl.u32 %v339, 16
      %v414 = vrot.slane %v412, 7
      %v415 = vshll.u32 %v339, 16
      %v417 = vor.u32 %v414, %v415
      %v418 = vsel %vm368, %v410, %v417
      %v419 = vrot.slane %v414, 4
      %v421 = vshrl.u32 %v340, 16
      %v423 = vrot.slane %v421, 7
      %v424 = vshll.u32 %v340, 16
      %v426 = vor.u32 %v423, %v424
      %v427 = vrot.slane %v423, 4
      %v429 = vshrl.u32 %v341, 16
      %v431 = vrot.slane %v429, 7
      %v432 = vshll.u32 %v341, 16
      %v434 = vor.u32 %v431, %v432
      %v435 = vsel %vm368, %v427, %v434
      %v436 = vrot.slane %v431, 4
      %v438 = vshrl.u32 %v342, 16
      %v440 = vrot.slane %v438, 7
      %v441 = vshll.u32 %v342, 16
      %v443 = vor.u32 %v440, %v441
      %v444 = vrot.slane %v440, 4
      %v446 = vshrl.u32 %v343, 16
      %v448 = vrot.slane %v446, 7
      %v449 = vshll.u32 %v343, 16
      %v451 = vor.u32 %v448, %v449
      %v452 = vsel %vm368, %v444, %v451
      %v453 = vrot.slane %v448, 4
      %v455 = vshrl.u32 %v344, 16
      %v457 = vrot.slane %v455, 7
      %v458 = vshll.u32 %v344, 16
      %v460 = vor.u32 %v457, %v458
      %v461 = vrot.slane %v457, 4
      %v463 = vshrl.u32 %v345, 16
      %v465 = vrot.slane %v463, 7
      %v466 = vshll.u32 %v345, 16
      %v468 = vor.u32 %v465, %v466
      %v469 = vsel %vm368, %v461, %v468
      %v470 = vrot.slane %v465, 4
      %v472 = vshrl.u32 %v346, 16
      %v474 = vrot.slane %v472, 7
      %v475 = vshll.u32 %v346, 16
      %v477 = vor.u32 %v474, %v475
      %v478 = vrot.slane %v474, 4
      %v480 = vshrl.u32 %v347, 16
      %v482 = vrot.slane %v480, 7
      %v483 = vshll.u32 %v347, 16
      %v485 = vor.u32 %v482, %v483
      %v486 = vsel %vm368, %v478, %v485
      %v487 = vrot.slane %v482, 4
      %v489 = vshrl.u32 %v348, 16
      %v491 = vrot.slane %v489, 7
      %v492 = vshll.u32 %v348, 16
      %v494 = vor.u32 %v491, %v492
      %v495 = vrot.slane %v491, 4
      %v497 = vshrl.u32 %v349, 16
      %v499 = vrot.slane %v497, 7
      %v500 = vshll.u32 %v349, 16
      %v502 = vor.u32 %v499, %v500
      %v503 = vsel %vm368, %v495, %v502
      %v504 = vrot.slane %v499, 4
      %v506 = vshrl.u32 %v350, 16
      %v508 = vrot.slane %v506, 7
      %v509 = vshll.u32 %v350, 16
      %v511 = vor.u32 %v508, %v509
      %v512 = vrot.slane %v508, 4
      %v514 = vshrl.u32 %v351, 16
      %v516 = vrot.slane %v514, 7
      %v517 = vshll.u32 %v351, 16
      %v519 = vor.u32 %v516, %v517
      %v520 = vsel %vm368, %v512, %v519
      %v521 = vrot.slane %v516, 4
      %v523 = vshrl.u32 %v352, 16
      %v525 = vrot.slane %v523, 7
      %v526 = vshll.u32 %v352, 16
      %v528 = vor.u32 %v525, %v526
      %v529 = vrot.slane %v525, 4
      %v531 = vshrl.u32 %v353, 16
      %v533 = vrot.slane %v531, 7
      %v534 = vshll.u32 %v353, 16
      %v536 = vor.u32 %v533, %v534
      %v537 = vsel %vm368, %v529, %v536
      %v538 = vrot.slane %v533, 4
      %v540 = vshrl.u32 %v354, 16
      %v542 = vrot.slane %v540, 7
      %v543 = vshll.u32 %v354, 16
      %v545 = vor.u32 %v542, %v543
      %v546 = vrot.slane %v542, 4
      %v548 = vshrl.u32 %v355, 16
      %v550 = vrot.slane %v548, 7
      %v551 = vshll.u32 %v355, 16
      %v553 = vor.u32 %v550, %v551
      %v554 = vsel %vm368, %v546, %v553
      %v555 = vrot.slane %v550, 4
      %v557 = vshrl.u32 %v356, 16
      %v559 = vrot.slane %v557, 7
      %v560 = vshll.u32 %v356, 16
      %v562 = vor.u32 %v559, %v560
      %v563 = vrot.slane %v559, 4
      %v565 = vshrl.u32 %v357, 16
      %v567 = vrot.slane %v565, 7
      %v568 = vshll.u32 %v357, 16
      %v570 = vor.u32 %v567, %v568
      %v571 = vsel %vm368, %v563, %v570
      %v572 = vrot.slane %v567, 4
      %v574 = vshrl.u32 %v358, 16
      %v576 = vrot.slane %v574, 7
      %v577 = vshll.u32 %v358, 16
      %v579 = vor.u32 %v576, %v577
      %v580 = vrot.slane %v576, 4
      %v582 = vshrl.u32 %v359, 16
      %v584 = vrot.slane %v582, 7
      %v585 = vshll.u32 %v359, 16
      %v587 = vor.u32 %v584, %v585
      %v588 = vsel %vm368, %v580, %v587
      %v589 = vrot.slane %v584, 4
      %v591 = vshrl.u32 %v360, 16
      %v593 = vrot.slane %v591, 7
      %v594 = vshll.u32 %v360, 16
      %v596 = vor.u32 %v593, %v594
      %v597 = vrot.slane %v593, 4
      %v599 = vshrl.u32 %v361, 16
      %v601 = vrot.slane %v599, 7
      %v602 = vshll.u32 %v361, 16
      %v604 = vor.u32 %v601, %v602
      %v605 = vsel %vm368, %v597, %v604
      %v606 = vrot.slane %v601, 4
      %v608 = vshrl.u32 %v362, 16
      %v610 = vrot.slane %v608, 7
      %v611 = vshll.u32 %v362, 16
      %v613 = vor.u32 %v610, %v611
      %v614 = vrot.slane %v610, 4
      %v616 = vshrl.u32 %v363, 16
      %v618 = vrot.slane %v616, 7
      %v619 = vshll.u32 %v363, 16
      %v621 = vor.u32 %v618, %v619
      %v622 = vsel %vm368, %v614, %v621
      %v623 = vrot.slane %v618, 4
      %v625 = vshrl.u32 %v364, 16
      %v627 = vrot.slane %v625, 7
      %v628 = vshll.u32 %v364, 16
      %v630 = vor.u32 %v627, %v628
      %v631 = vrot.slane %v627, 4
      %v633 = vshrl.u32 %v365, 16
      %v635 = vrot.slane %v633, 7
      %v636 = vshll.u32 %v365, 16
      %v638 = vor.u32 %v635, %v636
      %v639 = vsel %vm368, %v631, %v638
      %v640 = vrot.slane %v635, 4
      %s689 = scalar_lea.vmem [#allocation2], 12
      %vm690 = vcmask 1043456
      %vm691 = vsmask.f32 7938
      %vm692 = vmand %vm690, %vm691
      %v693 = vld [vmem:[%s689] sm:$0xf]
      %v694 = vsel %vm692, %v375, %v693
      %695 = vst [vmem:[%s689] sm:$0xf] %v694
      %696 = vst [vmem:[%s689 + $0x4] sm:$0xf] %v384
      %vm697 = vcmask 1040384
      %vm698 = vmand %vm697, %vm366
      %v699 = vld [vmem:[%s689 + $0x8] sm:$0x1]
      %v700 = vsel %vm698, %v385, %v699
      %701 = vst [vmem:[%s689 + $0x8] sm:$0x1] %v700
      %v702 = vld [vmem:[%s689 + $0xc] sm:$0xf]
      %v703 = vsel %vm692, %v392, %v702
      %704 = vst [vmem:[%s689 + $0xc] sm:$0xf] %v703
      %705 = vst [vmem:[%s689 + $0x10] sm:$0xf] %v401
      %v706 = vld [vmem:[%s689 + $0x14] sm:$0x1]
      %v707 = vsel %vm698, %v402, %v706
      %708 = vst [vmem:[%s689 + $0x14] sm:$0x1] %v707
      %v709 = vld [vmem:[%s689 + $0x18] sm:$0xf]
      %v710 = vsel %vm692, %v409, %v709
      %711 = vst [vmem:[%s689 + $0x18] sm:$0xf] %v710
      %712 = vst [vmem:[%s689 + $0x1c] sm:$0xf] %v418
      %v713 = vld [vmem:[%s689 + $0x20] sm:$0x1]
      %v714 = vsel %vm698, %v419, %v713
      %715 = vst [vmem:[%s689 + $0x20] sm:$0x1] %v714
      %v716 = vld [vmem:[%s689 + $0x24] sm:$0xf]
      %v717 = vsel %vm692, %v426, %v716
      %718 = vst [vmem:[%s689 + $0x24] sm:$0xf] %v717
      %719 = vst [vmem:[%s689 + $0x28] sm:$0xf] %v435
      %v720 = vld [vmem:[%s689 + $0x2c] sm:$0x1]
      %v721 = vsel %vm698, %v436, %v720
      %722 = vst [vmem:[%s689 + $0x2c] sm:$0x1] %v721
      %v723 = vld [vmem:[%s689 + $0x30] sm:$0xf]
      %v724 = vsel %vm692, %v443, %v723
      %725 = vst [vmem:[%s689 + $0x30] sm:$0xf] %v724
      %726 = vst [vmem:[%s689 + $0x34] sm:$0xf] %v452
      %v727 = vld [vmem:[%s689 + $0x38] sm:$0x1]
      %v728 = vsel %vm698, %v453, %v727
      %729 = vst [vmem:[%s689 + $0x38] sm:$0x1] %v728
      %v730 = vld [vmem:[%s689 + $0x3c] sm:$0xf]
      %v731 = vsel %vm692, %v460, %v730
      %732 = vst [vmem:[%s689 + $0x3c] sm:$0xf] %v731
      %733 = vst [vmem:[%s689 + $0x40] sm:$0xf] %v469
      %v734 = vld [vmem:[%s689 + $0x44] sm:$0x1]
      %v735 = vsel %vm698, %v470, %v734
      %736 = vst [vmem:[%s689 + $0x44] sm:$0x1] %v735
      %v737 = vld [vmem:[%s689 + $0x48] sm:$0xf]
      %v738 = vsel %vm692, %v477, %v737
      %739 = vst [vmem:[%s689 + $0x48] sm:$0xf] %v738
      %740 = vst [vmem:[%s689 + $0x4c] sm:$0xf] %v486
      %v741 = vld [vmem:[%s689 + $0x50] sm:$0x1]
      %v742 = vsel %vm698, %v487, %v741
      %743 = vst [vmem:[%s689 + $0x50] sm:$0x1] %v742
      %v744 = vld [vmem:[%s689 + $0x54] sm:$0xf]
      %v745 = vsel %vm692, %v494, %v744
      %746 = vst [vmem:[%s689 + $0x54] sm:$0xf] %v745
      %747 = vst [vmem:[%s689 + $0x58] sm:$0xf] %v503
      %v748 = vld [vmem:[%s689 + $0x5c] sm:$0x1]
      %v749 = vsel %vm698, %v504, %v748
      %750 = vst [vmem:[%s689 + $0x5c] sm:$0x1] %v749
      %v751 = vld [vmem:[%s689 + $0x60] sm:$0xf]
      %v752 = vsel %vm692, %v511, %v751
      %753 = vst [vmem:[%s689 + $0x60] sm:$0xf] %v752
      %754 = vst [vmem:[%s689 + $0x64] sm:$0xf] %v520
      %v755 = vld [vmem:[%s689 + $0x68] sm:$0x1]
      %v756 = vsel %vm698, %v521, %v755
      %757 = vst [vmem:[%s689 + $0x68] sm:$0x1] %v756
      %v758 = vld [vmem:[%s689 + $0x6c] sm:$0xf]
      %v759 = vsel %vm692, %v528, %v758
      %760 = vst [vmem:[%s689 + $0x6c] sm:$0xf] %v759
      %761 = vst [vmem:[%s689 + $0x70] sm:$0xf] %v537
      %v762 = vld [vmem:[%s689 + $0x74] sm:$0x1]
      %v763 = vsel %vm698, %v538, %v762
      %764 = vst [vmem:[%s689 + $0x74] sm:$0x1] %v763
      %v765 = vld [vmem:[%s689 + $0x78] sm:$0xf]
      %v766 = vsel %vm692, %v545, %v765
      %767 = vst [vmem:[%s689 + $0x78] sm:$0xf] %v766
      %768 = vst [vmem:[%s689 + $0x7c] sm:$0xf] %v554
      %v769 = vld [vmem:[%s689 + $0x80] sm:$0x1]
      %v770 = vsel %vm698, %v555, %v769
      %771 = vst [vmem:[%s689 + $0x80] sm:$0x1] %v770
      %v772 = vld [vmem:[%s689 + $0x84] sm:$0xf]
      %v773 = vsel %vm692, %v562, %v772
      %774 = vst [vmem:[%s689 + $0x84] sm:$0xf] %v773
      %775 = vst [vmem:[%s689 + $0x88] sm:$0xf] %v571
      %v776 = vld [vmem:[%s689 + $0x8c] sm:$0x1]
      %v777 = vsel %vm698, %v572, %v776
      %778 = vst [vmem:[%s689 + $0x8c] sm:$0x1] %v777
      %v779 = vld [vmem:[%s689 + $0x90] sm:$0xf]
      %v780 = vsel %vm692, %v579, %v779
      %781 = vst [vmem:[%s689 + $0x90] sm:$0xf] %v780
      %782 = vst [vmem:[%s689 + $0x94] sm:$0xf] %v588
      %v783 = vld [vmem:[%s689 + $0x98] sm:$0x1]
      %v784 = vsel %vm698, %v589, %v783
      %785 = vst [vmem:[%s689 + $0x98] sm:$0x1] %v784
      %v786 = vld [vmem:[%s689 + $0x9c] sm:$0xf]
      %v787 = vsel %vm692, %v596, %v786
      %788 = vst [vmem:[%s689 + $0x9c] sm:$0xf] %v787
      %789 = vst [vmem:[%s689 + $0xa0] sm:$0xf] %v605
      %v790 = vld [vmem:[%s689 + $0xa4] sm:$0x1]
      %v791 = vsel %vm698, %v606, %v790
      %792 = vst [vmem:[%s689 + $0xa4] sm:$0x1] %v791
      %v793 = vld [vmem:[%s689 + $0xa8] sm:$0xf]
      %v794 = vsel %vm692, %v613, %v793
      %795 = vst [vmem:[%s689 + $0xa8] sm:$0xf] %v794
      %796 = vst [vmem:[%s689 + $0xac] sm:$0xf] %v622
      %v797 = vld [vmem:[%s689 + $0xb0] sm:$0x1]
      %v798 = vsel %vm698, %v623, %v797
      %799 = vst [vmem:[%s689 + $0xb0] sm:$0x1] %v798
      %v800 = vld [vmem:[%s689 + $0xb4] sm:$0xf]
      %v801 = vsel %vm692, %v630, %v800
      %802 = vst [vmem:[%s689 + $0xb4] sm:$0xf] %v801
      %803 = vst [vmem:[%s689 + $0xb8] sm:$0xf] %v639
      %v804 = vld [vmem:[%s689 + $0xbc] sm:$0x1]
      %v805 = vsel %vm698, %v640, %v804
      %806 = vst [vmem:[%s689 + $0xbc] sm:$0x1] %v805
      %v807 = vld [vmem:[%s3] sm:$0x1]
      %v808 = vld [vmem:[%s4] sm:$0x1]
      %v809 = vld [vmem:[#allocation2] sm:$0xf]
      %v810 = vld [vmem:[#allocation2 + $0x4] sm:$0xf]
      %v811 = vld [vmem:[#allocation2 + $0x8] sm:$0x1]
      %v812 = vld [vmem:[#allocation2 + $0xc] sm:$0xf]
      %v813 = vld [vmem:[#allocation2 + $0x10] sm:$0xf]
      %v814 = vld [vmem:[#allocation2 + $0x14] sm:$0x1]
      %v815 = vld [vmem:[#allocation2 + $0x18] sm:$0xf]
      %v816 = vld [vmem:[#allocation2 + $0x1c] sm:$0xf]
      %v817 = vld [vmem:[#allocation2 + $0x20] sm:$0x1]
      %v818 = vld [vmem:[#allocation2 + $0x24] sm:$0xf]
      %v819 = vld [vmem:[#allocation2 + $0x28] sm:$0xf]
      %v820 = vld [vmem:[#allocation2 + $0x2c] sm:$0x1]
      %v821 = vld [vmem:[#allocation2 + $0x30] sm:$0xf]
      %v822 = vld [vmem:[#allocation2 + $0x34] sm:$0xf]
      %v823 = vld [vmem:[#allocation2 + $0x38] sm:$0x1]
      %v824 = vld [vmem:[#allocation2 + $0x3c] sm:$0xf]
      %v825 = vld [vmem:[#allocation2 + $0x40] sm:$0xf]
      %v826 = vld [vmem:[#allocation2 + $0x44] sm:$0x1]
      %v827 = vld [vmem:[#allocation2 + $0x48] sm:$0xf]
      %v828 = vld [vmem:[#allocation2 + $0x4c] sm:$0xf]
      %v829 = vld [vmem:[#allocation2 + $0x50] sm:$0x1]
      %v830 = vld [vmem:[#allocation2 + $0x54] sm:$0xf]
      %v831 = vld [vmem:[#allocation2 + $0x58] sm:$0xf]
      %v832 = vld [vmem:[#allocation2 + $0x5c] sm:$0x1]
      %v833 = vld [vmem:[#allocation2 + $0x60] sm:$0xf]
      %v834 = vld [vmem:[#allocation2 + $0x64] sm:$0xf]
      %v835 = vld [vmem:[#allocation2 + $0x68] sm:$0x1]
      %v836 = vld [vmem:[#allocation2 + $0x6c] sm:$0xf]
      %v837 = vld [vmem:[#allocation2 + $0x70] sm:$0xf]
      %v838 = vld [vmem:[#allocation2 + $0x74] sm:$0x1]
      %v839 = vld [vmem:[#allocation2 + $0x78] sm:$0xf]
      %v840 = vld [vmem:[#allocation2 + $0x7c] sm:$0xf]
      %v841 = vld [vmem:[#allocation2 + $0x80] sm:$0x1]
      %v842 = vld [vmem:[#allocation2 + $0x84] sm:$0xf]
      %v843 = vld [vmem:[#allocation2 + $0x88] sm:$0xf]
      %v844 = vld [vmem:[#allocation2 + $0x8c] sm:$0x1]
      %v845 = vld [vmem:[#allocation2 + $0x90] sm:$0xf]
      %v846 = vld [vmem:[#allocation2 + $0x94] sm:$0xf]
      %v847 = vld [vmem:[#allocation2 + $0x98] sm:$0x1]
      %v848 = vld [vmem:[#allocation2 + $0x9c] sm:$0xf]
      %v849 = vld [vmem:[#allocation2 + $0xa0] sm:$0xf]
      %v850 = vld [vmem:[#allocation2 + $0xa4] sm:$0x1]
      %v851 = vld [vmem:[#allocation2 + $0xa8] sm:$0xf]
      %v852 = vld [vmem:[#allocation2 + $0xac] sm:$0xf]
      %v853 = vld [vmem:[#allocation2 + $0xb0] sm:$0x1]
      %v854 = vld [vmem:[#allocation2 + $0xb4] sm:$0xf]
      %v855 = vld [vmem:[#allocation2 + $0xb8] sm:$0xf]
      %v856 = vld [vmem:[#allocation2 + $0xbc] sm:$0x1]
      %v889 = vunpack.c.l.b16 %v809
      %v890 = vunpack.c.l.b16 %v810
      %v891 = vunpack.c.l.b16 %v812
      %v892 = vunpack.c.l.b16 %v813
      %v893 = vunpack.c.l.b16 %v815
      %v894 = vunpack.c.l.b16 %v816
      %v895 = vunpack.c.l.b16 %v818
      %v896 = vunpack.c.l.b16 %v819
      %v897 = vunpack.c.l.b16 %v821
      %v898 = vunpack.c.l.b16 %v822
      %v899 = vunpack.c.l.b16 %v824
      %v900 = vunpack.c.l.b16 %v825
      %v901 = vunpack.c.l.b16 %v827
      %v902 = vunpack.c.l.b16 %v828
      %v903 = vunpack.c.l.b16 %v830
      %v904 = vunpack.c.l.b16 %v831
      %v905 = vunpack.c.l.b16 %v833
      %v906 = vunpack.c.l.b16 %v834
      %v907 = vunpack.c.l.b16 %v836
      %v908 = vunpack.c.l.b16 %v837
      %v909 = vunpack.c.l.b16 %v839
      %v910 = vunpack.c.l.b16 %v840
      %v911 = vunpack.c.l.b16 %v842
      %v912 = vunpack.c.l.b16 %v843
      %v913 = vunpack.c.l.b16 %v845
      %v914 = vunpack.c.l.b16 %v846
      %v915 = vunpack.c.l.b16 %v848
      %v916 = vunpack.c.l.b16 %v849
      %v917 = vunpack.c.l.b16 %v851
      %v918 = vunpack.c.l.b16 %v852
      %v919 = vunpack.c.l.b16 %v854
      %v920 = vunpack.c.l.b16 %v855
      %v921 = vpack.c.b16 %v890, %v889
      %v922 = vpack.c.b16 %v892, %v891
      %v923 = vpack.c.b16 %v894, %v893
      %v924 = vpack.c.b16 %v896, %v895
      %v925 = vpack.c.b16 %v898, %v897
      %v926 = vpack.c.b16 %v900, %v899
      %v927 = vpack.c.b16 %v902, %v901
      %v928 = vpack.c.b16 %v904, %v903
      %v929 = vpack.c.b16 %v906, %v905
      %v930 = vpack.c.b16 %v908, %v907
      %v931 = vpack.c.b16 %v910, %v909
      %v932 = vpack.c.b16 %v912, %v911
      %v933 = vpack.c.b16 %v914, %v913
      %v934 = vpack.c.b16 %v916, %v915
      %v935 = vpack.c.b16 %v918, %v917
      %v936 = vpack.c.b16 %v920, %v919
      %v969 = vunpack.c.l.b16 %v811
      %v970 = vunpack.c.l.b16 %v814
      %v971 = vunpack.c.l.b16 %v817
      %v972 = vunpack.c.l.b16 %v820
      %v973 = vunpack.c.l.b16 %v823
      %v974 = vunpack.c.l.b16 %v826
      %v975 = vunpack.c.l.b16 %v829
      %v976 = vunpack.c.l.b16 %v832
      %v977 = vunpack.c.l.b16 %v835
      %v978 = vunpack.c.l.b16 %v838
      %v979 = vunpack.c.l.b16 %v841
      %v980 = vunpack.c.l.b16 %v844
      %v981 = vunpack.c.l.b16 %v847
      %v982 = vunpack.c.l.b16 %v850
      %v983 = vunpack.c.l.b16 %v853
      %v984 = vunpack.c.l.b16 %v856
      %v985 = vpack.c.b16 %v969, %v969
      %v986 = vpack.c.b16 %v970, %v970
      %v987 = vpack.c.b16 %v971, %v971
      %v988 = vpack.c.b16 %v972, %v972
      %v989 = vpack.c.b16 %v973, %v973
      %v990 = vpack.c.b16 %v974, %v974
      %v991 = vpack.c.b16 %v975, %v975
      %v992 = vpack.c.b16 %v976, %v976
      %v993 = vpack.c.b16 %v977, %v977
      %v994 = vpack.c.b16 %v978, %v978
      %v995 = vpack.c.b16 %v979, %v979
      %v996 = vpack.c.b16 %v980, %v980
      %v997 = vpack.c.b16 %v981, %v981
      %v998 = vpack.c.b16 %v982, %v982
      %v999 = vpack.c.b16 %v983, %v983
      %v1000 = vpack.c.b16 %v984, %v984
      %vm1001 = vsmask.f32 7424
      %v1003 = vshrl.u32 %v921, 16
      %v1005 = vshll.u32 %v921, 16
      %v1007 = vrot.slane %v1005, 1
      %v1008 = vor.u32 %v1003, %v1007
      %v1010 = vshll.u32 %v985, 16
      %v1012 = vrot.slane %v1010, 1
      %v1013 = vsel %vm1001, %v1008, %v1012
      %v1015 = vshrl.u32 %v922, 16
      %v1017 = vshll.u32 %v922, 16
      %v1019 = vrot.slane %v1017, 1
      %v1020 = vor.u32 %v1015, %v1019
      %v1022 = vshll.u32 %v986, 16
      %v1024 = vrot.slane %v1022, 1
      %v1025 = vsel %vm1001, %v1020, %v1024
      %v1027 = vshrl.u32 %v923, 16
      %v1029 = vshll.u32 %v923, 16
      %v1031 = vrot.slane %v1029, 1
      %v1032 = vor.u32 %v1027, %v1031
      %v1034 = vshll.u32 %v987, 16
      %v1036 = vrot.slane %v1034, 1
      %v1037 = vsel %vm1001, %v1032, %v1036
      %v1039 = vshrl.u32 %v924, 16
      %v1041 = vshll.u32 %v924, 16
      %v1043 = vrot.slane %v1041, 1
      %v1044 = vor.u32 %v1039, %v1043
      %v1046 = vshll.u32 %v988, 16
      %v1048 = vrot.slane %v1046, 1
      %v1049 = vsel %vm1001, %v1044, %v1048
      %v1051 = vshrl.u32 %v925, 16
      %v1053 = vshll.u32 %v925, 16
      %v1055 = vrot.slane %v1053, 1
      %v1056 = vor.u32 %v1051, %v1055
      %v1058 = vshll.u32 %v989, 16
      %v1060 = vrot.slane %v1058, 1
      %v1061 = vsel %vm1001, %v1056, %v1060
      %v1063 = vshrl.u32 %v926, 16
      %v1065 = vshll.u32 %v926, 16
      %v1067 = vrot.slane %v1065, 1
      %v1068 = vor.u32 %v1063, %v1067
      %v1070 = vshll.u32 %v990, 16
      %v1072 = vrot.slane %v1070, 1
      %v1073 = vsel %vm1001, %v1068, %v1072
      %v1075 = vshrl.u32 %v927, 16
      %v1077 = vshll.u32 %v927, 16
      %v1079 = vrot.slane %v1077, 1
      %v1080 = vor.u32 %v1075, %v1079
      %v1082 = vshll.u32 %v991, 16
      %v1084 = vrot.slane %v1082, 1
      %v1085 = vsel %vm1001, %v1080, %v1084
      %v1087 = vshrl.u32 %v928, 16
      %v1089 = vshll.u32 %v928, 16
      %v1091 = vrot.slane %v1089, 1
      %v1092 = vor.u32 %v1087, %v1091
      %v1094 = vshll.u32 %v992, 16
      %v1096 = vrot.slane %v1094, 1
      %v1097 = vsel %vm1001, %v1092, %v1096
      %v1099 = vshrl.u32 %v929, 16
      %v1101 = vshll.u32 %v929, 16
      %v1103 = vrot.slane %v1101, 1
      %v1104 = vor.u32 %v1099, %v1103
      %v1106 = vshll.u32 %v993, 16
      %v1108 = vrot.slane %v1106, 1
      %v1109 = vsel %vm1001, %v1104, %v1108
      %v1111 = vshrl.u32 %v930, 16
      %v1113 = vshll.u32 %v930, 16
      %v1115 = vrot.slane %v1113, 1
      %v1116 = vor.u32 %v1111, %v1115
      %v1118 = vshll.u32 %v994, 16
      %v1120 = vrot.slane %v1118, 1
      %v1121 = vsel %vm1001, %v1116, %v1120
      %v1123 = vshrl.u32 %v931, 16
      %v1125 = vshll.u32 %v931, 16
      %v1127 = vrot.slane %v1125, 1
      %v1128 = vor.u32 %v1123, %v1127
      %v1130 = vshll.u32 %v995, 16
      %v1132 = vrot.slane %v1130, 1
      %v1133 = vsel %vm1001, %v1128, %v1132
      %v1135 = vshrl.u32 %v932, 16
      %v1137 = vshll.u32 %v932, 16
      %v1139 = vrot.slane %v1137, 1
      %v1140 = vor.u32 %v1135, %v1139
      %v1142 = vshll.u32 %v996, 16
      %v1144 = vrot.slane %v1142, 1
      %v1145 = vsel %vm1001, %v1140, %v1144
      %v1147 = vshrl.u32 %v933, 16
      %v1149 = vshll.u32 %v933, 16
      %v1151 = vrot.slane %v1149, 1
      %v1152 = vor.u32 %v1147, %v1151
      %v1154 = vshll.u32 %v997, 16
      %v1156 = vrot.slane %v1154, 1
      %v1157 = vsel %vm1001, %v1152, %v1156
      %v1159 = vshrl.u32 %v934, 16
      %v1161 = vshll.u32 %v934, 16
      %v1163 = vrot.slane %v1161, 1
      %v1164 = vor.u32 %v1159, %v1163
      %v1166 = vshll.u32 %v998, 16
      %v1168 = vrot.slane %v1166, 1
      %v1169 = vsel %vm1001, %v1164, %v1168
      %v1171 = vshrl.u32 %v935, 16
      %v1173 = vshll.u32 %v935, 16
      %v1175 = vrot.slane %v1173, 1
      %v1176 = vor.u32 %v1171, %v1175
      %v1178 = vshll.u32 %v999, 16
      %v1180 = vrot.slane %v1178, 1
      %v1181 = vsel %vm1001, %v1176, %v1180
      %v1183 = vshrl.u32 %v936, 16
      %v1185 = vshll.u32 %v936, 16
      %v1187 = vrot.slane %v1185, 1
      %v1188 = vor.u32 %v1183, %v1187
      %v1190 = vshll.u32 %v1000, 16
      %v1192 = vrot.slane %v1190, 1
      %v1193 = vsel %vm1001, %v1188, %v1192
      %vm1210 = vcmask 1046528
      %v1211 = vrot.slane %v921, 1
      %v1212 = vrot.slane %v985, 1
      %v1213 = vsel %vm1210, %v1211, %v1212
      %v1214 = vrot.slane %v922, 1
      %v1215 = vrot.slane %v986, 1
      %v1216 = vsel %vm1210, %v1214, %v1215
      %v1217 = vrot.slane %v923, 1
      %v1218 = vrot.slane %v987, 1
      %v1219 = vsel %vm1210, %v1217, %v1218
      %v1220 = vrot.slane %v924, 1
      %v1221 = vrot.slane %v988, 1
      %v1222 = vsel %vm1210, %v1220, %v1221
      %v1223 = vrot.slane %v925, 1
      %v1224 = vrot.slane %v989, 1
      %v1225 = vsel %vm1210, %v1223, %v1224
      %v1226 = vrot.slane %v926, 1
      %v1227 = vrot.slane %v990, 1
      %v1228 = vsel %vm1210, %v1226, %v1227
      %v1229 = vrot.slane %v927, 1
      %v1230 = vrot.slane %v991, 1
      %v1231 = vsel %vm1210, %v1229, %v1230
      %v1232 = vrot.slane %v928, 1
      %v1233 = vrot.slane %v992, 1
      %v1234 = vsel %vm1210, %v1232, %v1233
      %v1235 = vrot.slane %v929, 1
      %v1236 = vrot.slane %v993, 1
      %v1237 = vsel %vm1210, %v1235, %v1236
      %v1238 = vrot.slane %v930, 1
      %v1239 = vrot.slane %v994, 1
      %v1240 = vsel %vm1210, %v1238, %v1239
      %v1241 = vrot.slane %v931, 1
      %v1242 = vrot.slane %v995, 1
      %v1243 = vsel %vm1210, %v1241, %v1242
      %v1244 = vrot.slane %v932, 1
      %v1245 = vrot.slane %v996, 1
      %v1246 = vsel %vm1210, %v1244, %v1245
      %v1247 = vrot.slane %v933, 1
      %v1248 = vrot.slane %v997, 1
      %v1249 = vsel %vm1210, %v1247, %v1248
      %v1250 = vrot.slane %v934, 1
      %v1251 = vrot.slane %v998, 1
      %v1252 = vsel %vm1210, %v1250, %v1251
      %v1253 = vrot.slane %v935, 1
      %v1254 = vrot.slane %v999, 1
      %v1255 = vsel %vm1210, %v1253, %v1254
      %v1256 = vrot.slane %v936, 1
      %v1257 = vrot.slane %v1000, 1
      %v1258 = vsel %vm1210, %v1256, %v1257
      %v1275 = vld [vmem:[%s1] sm:$0xf]
      %v1276 = vld [vmem:[%s1 + $0x4] sm:$0xf]
      %v1277 = vld [vmem:[%s1 + $0x8] sm:$0xf]
      %v1278 = vld [vmem:[%s1 + $0xc] sm:$0xf]
      %v1279 = vld [vmem:[%s1 + $0x10] sm:$0xf]
      %v1280 = vld [vmem:[%s1 + $0x14] sm:$0xf]
      %v1281 = vld [vmem:[%s1 + $0x18] sm:$0xf]
      %v1282 = vld [vmem:[%s1 + $0x1c] sm:$0xf]
      %v1283 = vld [vmem:[%s1 + $0x20] sm:$0xf]
      %v1284 = vld [vmem:[%s1 + $0x24] sm:$0xf]
      %v1285 = vld [vmem:[%s1 + $0x28] sm:$0xf]
      %v1286 = vld [vmem:[%s1 + $0x2c] sm:$0xf]
      %v1287 = vld [vmem:[%s1 + $0x30] sm:$0xf]
      %v1288 = vld [vmem:[%s1 + $0x34] sm:$0xf]
      %v1289 = vld [vmem:[%s1 + $0x38] sm:$0xf]
      %v1290 = vld [vmem:[%s1 + $0x3c] sm:$0xf]
      %v1291 = vld [vmem:[%s1 + $0x40] sm:$0xf]
      %v1292 = vld [vmem:[%s1 + $0x44] sm:$0xf]
      %v1293 = vld [vmem:[%s1 + $0x48] sm:$0xf]
      %v1294 = vld [vmem:[%s1 + $0x4c] sm:$0xf]
      %v1295 = vld [vmem:[%s1 + $0x50] sm:$0xf]
      %v1296 = vld [vmem:[%s1 + $0x54] sm:$0xf]
      %v1297 = vld [vmem:[%s1 + $0x58] sm:$0xf]
      %v1298 = vld [vmem:[%s1 + $0x5c] sm:$0xf]
      %v1299 = vld [vmem:[%s1 + $0x60] sm:$0xf]
      %v1300 = vld [vmem:[%s1 + $0x64] sm:$0xf]
      %v1301 = vld [vmem:[%s1 + $0x68] sm:$0xf]
      %v1302 = vld [vmem:[%s1 + $0x6c] sm:$0xf]
      %v1303 = vld [vmem:[%s1 + $0x70] sm:$0xf]
      %v1304 = vld [vmem:[%s1 + $0x74] sm:$0xf]
      %v1305 = vld [vmem:[%s1 + $0x78] sm:$0xf]
      %v1306 = vld [vmem:[%s1 + $0x7c] sm:$0xf]
      %v1307 = vld [vmem:[%s1 + $0x80] sm:$0xf]
      %v1308 = vld [vmem:[%s1 + $0x84] sm:$0xf]
      %v1309 = vld [vmem:[%s1 + $0x88] sm:$0xf]
      %v1310 = vld [vmem:[%s1 + $0x8c] sm:$0xf]
      %v1311 = vld [vmem:[%s1 + $0x90] sm:$0xf]
      %v1312 = vld [vmem:[%s1 + $0x94] sm:$0xf]
      %v1313 = vld [vmem:[%s1 + $0x98] sm:$0xf]
      %v1314 = vld [vmem:[%s1 + $0x9c] sm:$0xf]
      %v1315 = vld [vmem:[%s1 + $0xa0] sm:$0xf]
      %v1316 = vld [vmem:[%s1 + $0xa4] sm:$0xf]
      %v1317 = vld [vmem:[%s1 + $0xa8] sm:$0xf]
      %v1318 = vld [vmem:[%s1 + $0xac] sm:$0xf]
      %v1319 = vld [vmem:[%s1 + $0xb0] sm:$0xf]
      %v1320 = vld [vmem:[%s1 + $0xb4] sm:$0xf]
      %v1321 = vld [vmem:[%s1 + $0xb8] sm:$0xf]
      %v1322 = vld [vmem:[%s1 + $0xbc] sm:$0xf]
      %v1371 = vunpack.c.l.b16 %v1275
      %v1372 = vunpack.c.l.b16 %v1276
      %v1373 = vunpack.c.l.b16 %v1277
      %v1374 = vunpack.c.l.b16 %v1278
      %v1375 = vunpack.c.l.b16 %v1279
      %v1376 = vunpack.c.l.b16 %v1280
      %v1377 = vunpack.c.l.b16 %v1281
      %v1378 = vunpack.c.l.b16 %v1282
      %v1379 = vunpack.c.l.b16 %v1283
      %v1380 = vunpack.c.l.b16 %v1284
      %v1381 = vunpack.c.l.b16 %v1285
      %v1382 = vunpack.c.l.b16 %v1286
      %v1383 = vunpack.c.l.b16 %v1287
      %v1384 = vunpack.c.l.b16 %v1288
      %v1385 = vunpack.c.l.b16 %v1289
      %v1386 = vunpack.c.l.b16 %v1290
      %v1387 = vunpack.c.l.b16 %v1291
      %v1388 = vunpack.c.l.b16 %v1292
      %v1389 = vunpack.c.l.b16 %v1293
      %v1390 = vunpack.c.l.b16 %v1294
      %v1391 = vunpack.c.l.b16 %v1295
      %v1392 = vunpack.c.l.b16 %v1296
      %v1393 = vunpack.c.l.b16 %v1297
      %v1394 = vunpack.c.l.b16 %v1298
      %v1395 = vunpack.c.l.b16 %v1299
      %v1396 = vunpack.c.l.b16 %v1300
      %v1397 = vunpack.c.l.b16 %v1301
      %v1398 = vunpack.c.l.b16 %v1302
      %v1399 = vunpack.c.l.b16 %v1303
      %v1400 = vunpack.c.l.b16 %v1304
      %v1401 = vunpack.c.l.b16 %v1305
      %v1402 = vunpack.c.l.b16 %v1306
      %v1403 = vunpack.c.l.b16 %v1307
      %v1404 = vunpack.c.l.b16 %v1308
      %v1405 = vunpack.c.l.b16 %v1309
      %v1406 = vunpack.c.l.b16 %v1310
      %v1407 = vunpack.c.l.b16 %v1311
      %v1408 = vunpack.c.l.b16 %v1312
      %v1409 = vunpack.c.l.b16 %v1313
      %v1410 = vunpack.c.l.b16 %v1314
      %v1411 = vunpack.c.l.b16 %v1315
      %v1412 = vunpack.c.l.b16 %v1316
      %v1413 = vunpack.c.l.b16 %v1317
      %v1414 = vunpack.c.l.b16 %v1318
      %v1415 = vunpack.c.l.b16 %v1319
      %v1416 = vunpack.c.l.b16 %v1320
      %v1417 = vunpack.c.l.b16 %v1321
      %v1418 = vunpack.c.l.b16 %v1322
      %v1419 = vpack.c.b16 %v1372, %v1371
      %v1420 = vpack.c.b16 %v1374, %v1373
      %v1421 = vpack.c.b16 %v1376, %v1375
      %v1422 = vpack.c.b16 %v1378, %v1377
      %v1423 = vpack.c.b16 %v1380, %v1379
      %v1424 = vpack.c.b16 %v1382, %v1381
      %v1425 = vpack.c.b16 %v1384, %v1383
      %v1426 = vpack.c.b16 %v1386, %v1385
      %v1427 = vpack.c.b16 %v1388, %v1387
      %v1428 = vpack.c.b16 %v1390, %v1389
      %v1429 = vpack.c.b16 %v1392, %v1391
      %v1430 = vpack.c.b16 %v1394, %v1393
      %v1431 = vpack.c.b16 %v1396, %v1395
      %v1432 = vpack.c.b16 %v1398, %v1397
      %v1433 = vpack.c.b16 %v1400, %v1399
      %v1434 = vpack.c.b16 %v1402, %v1401
      %v1435 = vpack.c.b16 %v1404, %v1403
      %v1436 = vpack.c.b16 %v1406, %v1405
      %v1437 = vpack.c.b16 %v1408, %v1407
      %v1438 = vpack.c.b16 %v1410, %v1409
      %v1439 = vpack.c.b16 %v1412, %v1411
      %v1440 = vpack.c.b16 %v1414, %v1413
      %v1441 = vpack.c.b16 %v1416, %v1415
      %v1442 = vpack.c.b16 %v1418, %v1417
      %1467 = vmatprep.subr.bf16.mxu0 0
      %1468 = vmatpush1.bf16.msra.mxu0 %v1426
      %1469 = vmatprep.subr.bf16.mxu0 0
      %1470 = vmatpush1.bf16.msra.mxu0 %v1425
      %1471 = vmatprep.subr.bf16.mxu0 0
      %1472 = vmatpush1.bf16.msra.mxu0 %v1424
      %1473 = vmatprep.subr.bf16.mxu0 0
      %1474 = vmatpush1.bf16.msra.mxu0 %v1423
      %1475 = vmatprep.subr.bf16.mxu0 0
      %1476 = vmatpush1.bf16.msra.mxu0 %v1422
      %1477 = vmatprep.subr.bf16.mxu0 0
      %1478 = vmatpush1.bf16.msra.mxu0 %v1421
      %1479 = vmatprep.subr.bf16.mxu0 0
      %1480 = vmatpush1.bf16.msra.mxu0 %v1420
      %1481 = vmatprep.subr.bf16.mxu0 0
      %1482 = vmatpush1.bf16.msra.mxu0 %v1419
      %1483 = vmatprep.subr.bf16.mxu0 0
      %1484 = vmatpush2.bf16.msra.mxu0 %v1434
      %1485 = vmatprep.subr.bf16.mxu0 0
      %1486 = vmatpush2.bf16.msra.mxu0 %v1433
      %1487 = vmatprep.subr.bf16.mxu0 0
      %1488 = vmatpush2.bf16.msra.mxu0 %v1432
      %1489 = vmatprep.subr.bf16.mxu0 0
      %1490 = vmatpush2.bf16.msra.mxu0 %v1431
      %1491 = vmatprep.subr.bf16.mxu0 0
      %1492 = vmatpush2.bf16.msra.mxu0 %v1430
      %1493 = vmatprep.subr.bf16.mxu0 0
      %1494 = vmatpush2.bf16.msra.mxu0 %v1429
      %1495 = vmatprep.subr.bf16.mxu0 0
      %1496 = vmatpush2.bf16.msra.mxu0 %v1428
      %1497 = vmatprep.subr.bf16.mxu0 0
      %1498 = vmatpush2.bf16.msra.mxu0 %v1427
      %1499 = vmatprep.mubr.bf16.mxu0 %v1013
      %1500 = vmatmul.mubr.bf16.gmra.mxu0 %v921
      %v1501 = vpop.f32.mrf.mxu0
      %v1502 = vadd.f32 0.0, %v1501
      %v1503 = vpop.f32.mrf.mxu0
      %v1504 = vpop.f32.mrf.mxu0
      %v1505 = vadd.f32 0.0, %v1504
      %v1506 = vpop.f32.mrf.mxu0
      %1507 = vmatprep.mubr.bf16.mxu0 %v1025
      %1508 = vmatmul.mubr.bf16.gmra.mxu0 %v922
      %v1509 = vpop.f32.mrf.mxu0
      %v1510 = vadd.f32 0.0, %v1509
      %v1511 = vpop.f32.mrf.mxu0
      %v1512 = vpop.f32.mrf.mxu0
      %v1513 = vadd.f32 0.0, %v1512
      %v1514 = vpop.f32.mrf.mxu0
      %1515 = vmatprep.mubr.bf16.mxu0 %v1037
      %1516 = vmatmul.mubr.bf16.gmra.mxu0 %v923
      %v1517 = vpop.f32.mrf.mxu0
      %v1518 = vadd.f32 0.0, %v1517
      %v1519 = vpop.f32.mrf.mxu0
      %v1520 = vpop.f32.mrf.mxu0
      %v1521 = vadd.f32 0.0, %v1520
      %v1522 = vpop.f32.mrf.mxu0
      %1523 = vmatprep.mubr.bf16.mxu0 %v1049
      %1524 = vmatmul.mubr.bf16.gmra.mxu0 %v924
      %v1525 = vpop.f32.mrf.mxu0
      %v1526 = vadd.f32 0.0, %v1525
      %v1527 = vpop.f32.mrf.mxu0
      %v1528 = vpop.f32.mrf.mxu0
      %v1529 = vadd.f32 0.0, %v1528
      %v1530 = vpop.f32.mrf.mxu0
      %1531 = vmatprep.mubr.bf16.mxu0 %v1061
      %1532 = vmatmul.mubr.bf16.gmra.mxu0 %v925
      %v1533 = vpop.f32.mrf.mxu0
      %v1534 = vadd.f32 0.0, %v1533
      %v1535 = vpop.f32.mrf.mxu0
      %v1536 = vpop.f32.mrf.mxu0
      %v1537 = vadd.f32 0.0, %v1536
      %v1538 = vpop.f32.mrf.mxu0
      %1539 = vmatprep.mubr.bf16.mxu0 %v1073
      %1540 = vmatmul.mubr.bf16.gmra.mxu0 %v926
      %v1541 = vpop.f32.mrf.mxu0
      %v1542 = vadd.f32 0.0, %v1541
      %v1543 = vpop.f32.mrf.mxu0
      %v1544 = vpop.f32.mrf.mxu0
      %v1545 = vadd.f32 0.0, %v1544
      %v1546 = vpop.f32.mrf.mxu0
      %1547 = vmatprep.mubr.bf16.mxu0 %v1085
      %1548 = vmatmul.mubr.bf16.gmra.mxu0 %v927
      %v1549 = vpop.f32.mrf.mxu0
      %v1550 = vadd.f32 0.0, %v1549
      %v1551 = vpop.f32.mrf.mxu0
      %v1552 = vpop.f32.mrf.mxu0
      %v1553 = vadd.f32 0.0, %v1552
      %v1554 = vpop.f32.mrf.mxu0
      %1555 = vmatprep.mubr.bf16.mxu0 %v1097
      %1556 = vmatmul.mubr.bf16.gmra.mxu0 %v928
      %v1557 = vpop.f32.mrf.mxu0
      %v1558 = vadd.f32 0.0, %v1557
      %v1559 = vpop.f32.mrf.mxu0
      %v1560 = vpop.f32.mrf.mxu0
      %v1561 = vadd.f32 0.0, %v1560
      %v1562 = vpop.f32.mrf.mxu0
      %1563 = vmatprep.mubr.bf16.mxu0 %v1109
      %1564 = vmatmul.mubr.bf16.gmra.mxu0 %v929
      %v1565 = vpop.f32.mrf.mxu0
      %v1566 = vadd.f32 0.0, %v1565
      %v1567 = vpop.f32.mrf.mxu0
      %v1568 = vpop.f32.mrf.mxu0
      %v1569 = vadd.f32 0.0, %v1568
      %v1570 = vpop.f32.mrf.mxu0
      %1571 = vmatprep.mubr.bf16.mxu0 %v1121
      %1572 = vmatmul.mubr.bf16.gmra.mxu0 %v930
      %v1573 = vpop.f32.mrf.mxu0
      %v1574 = vadd.f32 0.0, %v1573
      %v1575 = vpop.f32.mrf.mxu0
      %v1576 = vpop.f32.mrf.mxu0
      %v1577 = vadd.f32 0.0, %v1576
      %v1578 = vpop.f32.mrf.mxu0
      %1579 = vmatprep.mubr.bf16.mxu0 %v1133
      %1580 = vmatmul.mubr.bf16.gmra.mxu0 %v931
      %v1581 = vpop.f32.mrf.mxu0
      %v1582 = vadd.f32 0.0, %v1581
      %v1583 = vpop.f32.mrf.mxu0
      %v1584 = vpop.f32.mrf.mxu0
      %v1585 = vadd.f32 0.0, %v1584
      %v1586 = vpop.f32.mrf.mxu0
      %1587 = vmatprep.mubr.bf16.mxu0 %v1145
      %1588 = vmatmul.mubr.bf16.gmra.mxu0 %v932
      %v1589 = vpop.f32.mrf.mxu0
      %v1590 = vadd.f32 0.0, %v1589
      %v1591 = vpop.f32.mrf.mxu0
      %v1592 = vpop.f32.mrf.mxu0
      %v1593 = vadd.f32 0.0, %v1592
      %v1594 = vpop.f32.mrf.mxu0
      %1595 = vmatprep.mubr.bf16.mxu0 %v1157
      %1596 = vmatmul.mubr.bf16.gmra.mxu0 %v933
      %v1597 = vpop.f32.mrf.mxu0
      %v1598 = vadd.f32 0.0, %v1597
      %v1599 = vpop.f32.mrf.mxu0
      %v1600 = vpop.f32.mrf.mxu0
      %v1601 = vadd.f32 0.0, %v1600
      %v1602 = vpop.f32.mrf.mxu0
      %1603 = vmatprep.mubr.bf16.mxu0 %v1169
      %1604 = vmatmul.mubr.bf16.gmra.mxu0 %v934
      %v1605 = vpop.f32.mrf.mxu0
      %v1606 = vadd.f32 0.0, %v1605
      %v1607 = vpop.f32.mrf.mxu0
      %v1608 = vpop.f32.mrf.mxu0
      %v1609 = vadd.f32 0.0, %v1608
      %v1610 = vpop.f32.mrf.mxu0
      %1611 = vmatprep.mubr.bf16.mxu0 %v1181
      %1612 = vmatmul.mubr.bf16.gmra.mxu0 %v935
      %v1613 = vpop.f32.mrf.mxu0
      %v1614 = vadd.f32 0.0, %v1613
      %v1615 = vpop.f32.mrf.mxu0
      %v1616 = vpop.f32.mrf.mxu0
      %v1617 = vadd.f32 0.0, %v1616
      %v1618 = vpop.f32.mrf.mxu0
      %1619 = vmatprep.mubr.bf16.mxu0 %v1193
      %1620 = vmatmul.mubr.bf16.gmra.mxu0 %v936
      %v1621 = vpop.f32.mrf.mxu0
      %v1622 = vadd.f32 0.0, %v1621
      %v1623 = vpop.f32.mrf.mxu0
      %v1624 = vpop.f32.mrf.mxu0
      %v1625 = vadd.f32 0.0, %v1624
      %v1626 = vpop.f32.mrf.mxu0
      %1627 = vdwg.mxu0
      %1628 = vmatprep.subr.bf16.mxu0 0
      %1629 = vmatpush1.bf16.msra.mxu0 %v1442
      %1630 = vmatprep.subr.bf16.mxu0 0
      %1631 = vmatpush1.bf16.msra.mxu0 %v1441
      %1632 = vmatprep.subr.bf16.mxu0 0
      %1633 = vmatpush1.bf16.msra.mxu0 %v1440
      %1634 = vmatprep.subr.bf16.mxu0 0
      %1635 = vmatpush1.bf16.msra.mxu0 %v1439
      %1636 = vmatprep.subr.bf16.mxu0 0
      %1637 = vmatpush1.bf16.msra.mxu0 %v1438
      %1638 = vmatprep.subr.bf16.mxu0 0
      %1639 = vmatpush1.bf16.msra.mxu0 %v1437
      %1640 = vmatprep.subr.bf16.mxu0 0
      %1641 = vmatpush1.bf16.msra.mxu0 %v1436
      %1642 = vmatprep.subr.bf16.mxu0 0
      %1643 = vmatpush1.bf16.msra.mxu0 %v1435
      %1644 = vmatprep.subr.bf16.mxu0 0
      %1645 = vmatpush2.bf16.msra.mxu0 0
      %1646 = vmatprep.subr.bf16.mxu0 0
      %1647 = vmatpush2.bf16.msra.mxu0 0
      %1648 = vmatprep.subr.bf16.mxu0 0
      %1649 = vmatpush2.bf16.msra.mxu0 0
      %1650 = vmatprep.subr.bf16.mxu0 0
      %1651 = vmatpush2.bf16.msra.mxu0 0
      %1652 = vmatprep.subr.bf16.mxu0 0
      %1653 = vmatpush2.bf16.msra.mxu0 0
      %1654 = vmatprep.subr.bf16.mxu0 0
      %1655 = vmatpush2.bf16.msra.mxu0 0
      %1656 = vmatprep.subr.bf16.mxu0 0
      %1657 = vmatpush2.bf16.msra.mxu0 0
      %1658 = vmatprep.subr.bf16.mxu0 0
      %1659 = vmatpush2.bf16.msra.mxu0 0
      %1660 = vmatprep.mubr.bf16.mxu0 0
      %1661 = vmatmul.mubr.bf16.gmra.mxu0 %v1213
      %v1662 = vpop.f32.mrf.mxu0
      %v1663 = vadd.f32 %v1502, %v1662
      %v1664 = vpop.f32.mrf.mxu0
      %v1665 = vpop.f32.mrf.mxu0
      %v1666 = vadd.f32 %v1505, %v1665
      %v1667 = vpop.f32.mrf.mxu0
      %1668 = vmatprep.mubr.bf16.mxu0 0
      %1669 = vmatmul.mubr.bf16.gmra.mxu0 %v1216
      %v1670 = vpop.f32.mrf.mxu0
      %v1671 = vadd.f32 %v1510, %v1670
      %v1672 = vpop.f32.mrf.mxu0
      %v1673 = vpop.f32.mrf.mxu0
      %v1674 = vadd.f32 %v1513, %v1673
      %v1675 = vpop.f32.mrf.mxu0
      %1676 = vmatprep.mubr.bf16.mxu0 0
      %1677 = vmatmul.mubr.bf16.gmra.mxu0 %v1219
      %v1678 = vpop.f32.mrf.mxu0
      %v1679 = vadd.f32 %v1518, %v1678
      %v1680 = vpop.f32.mrf.mxu0
      %v1681 = vpop.f32.mrf.mxu0
      %v1682 = vadd.f32 %v1521, %v1681
      %v1683 = vpop.f32.mrf.mxu0
      %1684 = vmatprep.mubr.bf16.mxu0 0
      %1685 = vmatmul.mubr.bf16.gmra.mxu0 %v1222
      %v1686 = vpop.f32.mrf.mxu0
      %v1687 = vadd.f32 %v1526, %v1686
      %v1688 = vpop.f32.mrf.mxu0
      %v1689 = vpop.f32.mrf.mxu0
      %v1690 = vadd.f32 %v1529, %v1689
      %v1691 = vpop.f32.mrf.mxu0
      %1692 = vmatprep.mubr.bf16.mxu0 0
      %1693 = vmatmul.mubr.bf16.gmra.mxu0 %v1225
      %v1694 = vpop.f32.mrf.mxu0
      %v1695 = vadd.f32 %v1534, %v1694
      %v1696 = vpop.f32.mrf.mxu0
      %v1697 = vpop.f32.mrf.mxu0
      %v1698 = vadd.f32 %v1537, %v1697
      %v1699 = vpop.f32.mrf.mxu0
      %1700 = vmatprep.mubr.bf16.mxu0 0
      %1701 = vmatmul.mubr.bf16.gmra.mxu0 %v1228
      %v1702 = vpop.f32.mrf.mxu0
      %v1703 = vadd.f32 %v1542, %v1702
      %v1704 = vpop.f32.mrf.mxu0
      %v1705 = vpop.f32.mrf.mxu0
      %v1706 = vadd.f32 %v1545, %v1705
      %v1707 = vpop.f32.mrf.mxu0
      %1708 = vmatprep.mubr.bf16.mxu0 0
      %1709 = vmatmul.mubr.bf16.gmra.mxu0 %v1231
      %v1710 = vpop.f32.mrf.mxu0
      %v1711 = vadd.f32 %v1550, %v1710
      %v1712 = vpop.f32.mrf.mxu0
      %v1713 = vpop.f32.mrf.mxu0
      %v1714 = vadd.f32 %v1553, %v1713
      %v1715 = vpop.f32.mrf.mxu0
      %1716 = vmatprep.mubr.bf16.mxu0 0
      %1717 = vmatmul.mubr.bf16.gmra.mxu0 %v1234
      %v1718 = vpop.f32.mrf.mxu0
      %v1719 = vadd.f32 %v1558, %v1718
      %v1720 = vpop.f32.mrf.mxu0
      %v1721 = vpop.f32.mrf.mxu0
      %v1722 = vadd.f32 %v1561, %v1721
      %v1723 = vpop.f32.mrf.mxu0
      %1724 = vmatprep.mubr.bf16.mxu0 0
      %1725 = vmatmul.mubr.bf16.gmra.mxu0 %v1237
      %v1726 = vpop.f32.mrf.mxu0
      %v1727 = vadd.f32 %v1566, %v1726
      %v1728 = vpop.f32.mrf.mxu0
      %v1729 = vpop.f32.mrf.mxu0
      %v1730 = vadd.f32 %v1569, %v1729
      %v1731 = vpop.f32.mrf.mxu0
      %1732 = vmatprep.mubr.bf16.mxu0 0
      %1733 = vmatmul.mubr.bf16.gmra.mxu0 %v1240
      %v1734 = vpop.f32.mrf.mxu0
      %v1735 = vadd.f32 %v1574, %v1734
      %v1736 = vpop.f32.mrf.mxu0
      %v1737 = vpop.f32.mrf.mxu0
      %v1738 = vadd.f32 %v1577, %v1737
      %v1739 = vpop.f32.mrf.mxu0
      %1740 = vmatprep.mubr.bf16.mxu0 0
      %1741 = vmatmul.mubr.bf16.gmra.mxu0 %v1243
      %v1742 = vpop.f32.mrf.mxu0
      %v1743 = vadd.f32 %v1582, %v1742
      %v1744 = vpop.f32.mrf.mxu0
      %v1745 = vpop.f32.mrf.mxu0
      %v1746 = vadd.f32 %v1585, %v1745
      %v1747 = vpop.f32.mrf.mxu0
      %1748 = vmatprep.mubr.bf16.mxu0 0
      %1749 = vmatmul.mubr.bf16.gmra.mxu0 %v1246
      %v1750 = vpop.f32.mrf.mxu0
      %v1751 = vadd.f32 %v1590, %v1750
      %v1752 = vpop.f32.mrf.mxu0
      %v1753 = vpop.f32.mrf.mxu0
      %v1754 = vadd.f32 %v1593, %v1753
      %v1755 = vpop.f32.mrf.mxu0
      %1756 = vmatprep.mubr.bf16.mxu0 0
      %1757 = vmatmul.mubr.bf16.gmra.mxu0 %v1249
      %v1758 = vpop.f32.mrf.mxu0
      %v1759 = vadd.f32 %v1598, %v1758
      %v1760 = vpop.f32.mrf.mxu0
      %v1761 = vpop.f32.mrf.mxu0
      %v1762 = vadd.f32 %v1601, %v1761
      %v1763 = vpop.f32.mrf.mxu0
      %1764 = vmatprep.mubr.bf16.mxu0 0
      %1765 = vmatmul.mubr.bf16.gmra.mxu0 %v1252
      %v1766 = vpop.f32.mrf.mxu0
      %v1767 = vadd.f32 %v1606, %v1766
      %v1768 = vpop.f32.mrf.mxu0
      %v1769 = vpop.f32.mrf.mxu0
      %v1770 = vadd.f32 %v1609, %v1769
      %v1771 = vpop.f32.mrf.mxu0
      %1772 = vmatprep.mubr.bf16.mxu0 0
      %1773 = vmatmul.mubr.bf16.gmra.mxu0 %v1255
      %v1774 = vpop.f32.mrf.mxu0
      %v1775 = vadd.f32 %v1614, %v1774
      %v1776 = vpop.f32.mrf.mxu0
      %v1777 = vpop.f32.mrf.mxu0
      %v1778 = vadd.f32 %v1617, %v1777
      %v1779 = vpop.f32.mrf.mxu0
      %1780 = vmatprep.mubr.bf16.mxu0 0
      %1781 = vmatmul.mubr.bf16.gmra.mxu0 %v1258
      %v1782 = vpop.f32.mrf.mxu0
      %v1783 = vadd.f32 %v1622, %v1782
      %v1784 = vpop.f32.mrf.mxu0
      %v1785 = vpop.f32.mrf.mxu0
      %v1786 = vadd.f32 %v1625, %v1785
      %v1787 = vpop.f32.mrf.mxu0
      %1788 = vdwg.mxu0
      %1789 = vst [vmem:[#allocation4] sm:$0xff] %v1663
      %1790 = vst [vmem:[#allocation4 + $0x8] sm:$0xff] %v1666
      %1791 = vst [vmem:[#allocation4 + $0x10] sm:$0xff] %v1671
      %1792 = vst [vmem:[#allocation4 + $0x18] sm:$0xff] %v1674
      %1793 = vst [vmem:[#allocation4 + $0x20] sm:$0xff] %v1679
      %1794 = vst [vmem:[#allocation4 + $0x28] sm:$0xff] %v1682
      %1795 = vst [vmem:[#allocation4 + $0x30] sm:$0xff] %v1687
      %1796 = vst [vmem:[#allocation4 + $0x38] sm:$0xff] %v1690
      %1797 = vst [vmem:[#allocation4 + $0x40] sm:$0xff] %v1695
      %1798 = vst [vmem:[#allocation4 + $0x48] sm:$0xff] %v1698
      %1799 = vst [vmem:[#allocation4 + $0x50] sm:$0xff] %v1703
      %1800 = vst [vmem:[#allocation4 + $0x58] sm:$0xff] %v1706
      %1801 = vst [vmem:[#allocation4 + $0x60] sm:$0xff] %v1711
      %1802 = vst [vmem:[#allocation4 + $0x68] sm:$0xff] %v1714
      %1803 = vst [vmem:[#allocation4 + $0x70] sm:$0xff] %v1719
      %1804 = vst [vmem:[#allocation4 + $0x78] sm:$0xff] %v1722
      %1805 = vst [vmem:[#allocation4 + $0x80] sm:$0xff] %v1727
      %1806 = vst [vmem:[#allocation4 + $0x88] sm:$0xff] %v1730
      %1807 = vst [vmem:[#allocation4 + $0x90] sm:$0xff] %v1735
      %1808 = vst [vmem:[#allocation4 + $0x98] sm:$0xff] %v1738
      %1809 = vst [vmem:[#allocation4 + $0xa0] sm:$0xff] %v1743
      %1810 = vst [vmem:[#allocation4 + $0xa8] sm:$0xff] %v1746
      %1811 = vst [vmem:[#allocation4 + $0xb0] sm:$0xff] %v1751
      %1812 = vst [vmem:[#allocation4 + $0xb8] sm:$0xff] %v1754
      %1813 = vst [vmem:[#allocation4 + $0xc0] sm:$0xff] %v1759
      %1814 = vst [vmem:[#allocation4 + $0xc8] sm:$0xff] %v1762
      %1815 = vst [vmem:[#allocation4 + $0xd0] sm:$0xff] %v1767
      %1816 = vst [vmem:[#allocation4 + $0xd8] sm:$0xff] %v1770
      %1817 = vst [vmem:[#allocation4 + $0xe0] sm:$0xff] %v1775
      %1818 = vst [vmem:[#allocation4 + $0xe8] sm:$0xff] %v1778
      %1819 = vst [vmem:[#allocation4 + $0xf0] sm:$0xff] %v1783
      %1820 = vst [vmem:[#allocation4 + $0xf8] sm:$0xff] %v1786
      %v1821 = vld [vmem:[%s689] sm:$0xf]
      %v1822 = vld [vmem:[%s689 + $0x4] sm:$0xf]
      %v1823 = vld [vmem:[%s689 + $0x8] sm:$0x1]
      %v1824 = vld [vmem:[%s689 + $0xc] sm:$0xf]
      %v1825 = vld [vmem:[%s689 + $0x10] sm:$0xf]
      %v1826 = vld [vmem:[%s689 + $0x14] sm:$0x1]
      %v1827 = vld [vmem:[%s689 + $0x18] sm:$0xf]
      %v1828 = vld [vmem:[%s689 + $0x1c] sm:$0xf]
      %v1829 = vld [vmem:[%s689 + $0x20] sm:$0x1]
      %v1830 = vld [vmem:[%s689 + $0x24] sm:$0xf]
      %v1831 = vld [vmem:[%s689 + $0x28] sm:$0xf]
      %v1832 = vld [vmem:[%s689 + $0x2c] sm:$0x1]
      %v1833 = vld [vmem:[%s689 + $0x30] sm:$0xf]
      %v1834 = vld [vmem:[%s689 + $0x34] sm:$0xf]
      %v1835 = vld [vmem:[%s689 + $0x38] sm:$0x1]
      %v1836 = vld [vmem:[%s689 + $0x3c] sm:$0xf]
      %v1837 = vld [vmem:[%s689 + $0x40] sm:$0xf]
      %v1838 = vld [vmem:[%s689 + $0x44] sm:$0x1]
      %v1839 = vld [vmem:[%s689 + $0x48] sm:$0xf]
      %v1840 = vld [vmem:[%s689 + $0x4c] sm:$0xf]
      %v1841 = vld [vmem:[%s689 + $0x50] sm:$0x1]
      %v1842 = vld [vmem:[%s689 + $0x54] sm:$0xf]
      %v1843 = vld [vmem:[%s689 + $0x58] sm:$0xf]
      %v1844 = vld [vmem:[%s689 + $0x5c] sm:$0x1]
      %v1845 = vld [vmem:[%s689 + $0x60] sm:$0xf]
      %v1846 = vld [vmem:[%s689 + $0x64] sm:$0xf]
      %v1847 = vld [vmem:[%s689 + $0x68] sm:$0x1]
      %v1848 = vld [vmem:[%s689 + $0x6c] sm:$0xf]
      %v1849 = vld [vmem:[%s689 + $0x70] sm:$0xf]
      %v1850 = vld [vmem:[%s689 + $0x74] sm:$0x1]
      %v1851 = vld [vmem:[%s689 + $0x78] sm:$0xf]
      %v1852 = vld [vmem:[%s689 + $0x7c] sm:$0xf]
      %v1853 = vld [vmem:[%s689 + $0x80] sm:$0x1]
      %v1854 = vld [vmem:[%s689 + $0x84] sm:$0xf]
      %v1855 = vld [vmem:[%s689 + $0x88] sm:$0xf]
      %v1856 = vld [vmem:[%s689 + $0x8c] sm:$0x1]
      %v1857 = vld [vmem:[%s689 + $0x90] sm:$0xf]
      %v1858 = vld [vmem:[%s689 + $0x94] sm:$0xf]
      %v1859 = vld [vmem:[%s689 + $0x98] sm:$0x1]
      %v1860 = vld [vmem:[%s689 + $0x9c] sm:$0xf]
      %v1861 = vld [vmem:[%s689 + $0xa0] sm:$0xf]
      %v1862 = vld [vmem:[%s689 + $0xa4] sm:$0x1]
      %v1863 = vld [vmem:[%s689 + $0xa8] sm:$0xf]
      %v1864 = vld [vmem:[%s689 + $0xac] sm:$0xf]
      %v1865 = vld [vmem:[%s689 + $0xb0] sm:$0x1]
      %v1866 = vld [vmem:[%s689 + $0xb4] sm:$0xf]
      %v1867 = vld [vmem:[%s689 + $0xb8] sm:$0xf]
      %v1868 = vld [vmem:[%s689 + $0xbc] sm:$0x1]
      %v1901 = vunpack.c.l.b16 %v1821
      %v1902 = vunpack.c.l.b16 %v1822
      %v1903 = vunpack.c.l.b16 %v1824
      %v1904 = vunpack.c.l.b16 %v1825
      %v1905 = vunpack.c.l.b16 %v1827
      %v1906 = vunpack.c.l.b16 %v1828
      %v1907 = vunpack.c.l.b16 %v1830
      %v1908 = vunpack.c.l.b16 %v1831
      %v1909 = vunpack.c.l.b16 %v1833
      %v1910 = vunpack.c.l.b16 %v1834
      %v1911 = vunpack.c.l.b16 %v1836
      %v1912 = vunpack.c.l.b16 %v1837
      %v1913 = vunpack.c.l.b16 %v1839
      %v1914 = vunpack.c.l.b16 %v1840
      %v1915 = vunpack.c.l.b16 %v1842
      %v1916 = vunpack.c.l.b16 %v1843
      %v1917 = vunpack.c.l.b16 %v1845
      %v1918 = vunpack.c.l.b16 %v1846
      %v1919 = vunpack.c.l.b16 %v1848
      %v1920 = vunpack.c.l.b16 %v1849
      %v1921 = vunpack.c.l.b16 %v1851
      %v1922 = vunpack.c.l.b16 %v1852
      %v1923 = vunpack.c.l.b16 %v1854
      %v1924 = vunpack.c.l.b16 %v1855
      %v1925 = vunpack.c.l.b16 %v1857
      %v1926 = vunpack.c.l.b16 %v1858
      %v1927 = vunpack.c.l.b16 %v1860
      %v1928 = vunpack.c.l.b16 %v1861
      %v1929 = vunpack.c.l.b16 %v1863
      %v1930 = vunpack.c.l.b16 %v1864
      %v1931 = vunpack.c.l.b16 %v1866
      %v1932 = vunpack.c.l.b16 %v1867
      %v1933 = vpack.c.b16 %v1902, %v1901
      %v1934 = vpack.c.b16 %v1904, %v1903
      %v1935 = vpack.c.b16 %v1906, %v1905
      %v1936 = vpack.c.b16 %v1908, %v1907
      %v1937 = vpack.c.b16 %v1910, %v1909
      %v1938 = vpack.c.b16 %v1912, %v1911
      %v1939 = vpack.c.b16 %v1914, %v1913
      %v1940 = vpack.c.b16 %v1916, %v1915
      %v1941 = vpack.c.b16 %v1918, %v1917
      %v1942 = vpack.c.b16 %v1920, %v1919
      %v1943 = vpack.c.b16 %v1922, %v1921
      %v1944 = vpack.c.b16 %v1924, %v1923
      %v1945 = vpack.c.b16 %v1926, %v1925
      %v1946 = vpack.c.b16 %v1928, %v1927
      %v1947 = vpack.c.b16 %v1930, %v1929
      %v1948 = vpack.c.b16 %v1932, %v1931
      %v1981 = vunpack.c.l.b16 %v1823
      %v1982 = vunpack.c.l.b16 %v1826
      %v1983 = vunpack.c.l.b16 %v1829
      %v1984 = vunpack.c.l.b16 %v1832
      %v1985 = vunpack.c.l.b16 %v1835
      %v1986 = vunpack.c.l.b16 %v1838
      %v1987 = vunpack.c.l.b16 %v1841
      %v1988 = vunpack.c.l.b16 %v1844
      %v1989 = vunpack.c.l.b16 %v1847
      %v1990 = vunpack.c.l.b16 %v1850
      %v1991 = vunpack.c.l.b16 %v1853
      %v1992 = vunpack.c.l.b16 %v1856
      %v1993 = vunpack.c.l.b16 %v1859
      %v1994 = vunpack.c.l.b16 %v1862
      %v1995 = vunpack.c.l.b16 %v1865
      %v1996 = vunpack.c.l.b16 %v1868
      %v1997 = vpack.c.b16 %v1981, %v1981
      %v1998 = vpack.c.b16 %v1982, %v1982
      %v1999 = vpack.c.b16 %v1983, %v1983
      %v2000 = vpack.c.b16 %v1984, %v1984
      %v2001 = vpack.c.b16 %v1985, %v1985
      %v2002 = vpack.c.b16 %v1986, %v1986
      %v2003 = vpack.c.b16 %v1987, %v1987
      %v2004 = vpack.c.b16 %v1988, %v1988
      %v2005 = vpack.c.b16 %v1989, %v1989
      %v2006 = vpack.c.b16 %v1990, %v1990
      %v2007 = vpack.c.b16 %v1991, %v1991
      %v2008 = vpack.c.b16 %v1992, %v1992
      %v2009 = vpack.c.b16 %v1993, %v1993
      %v2010 = vpack.c.b16 %v1994, %v1994
      %v2011 = vpack.c.b16 %v1995, %v1995
      %v2012 = vpack.c.b16 %v1996, %v1996
      %v2014 = vshrl.u32 %v1933, 16
      %v2016 = vshll.u32 %v1933, 16
      %v2018 = vrot.slane %v2016, 1
      %v2019 = vor.u32 %v2014, %v2018
      %v2021 = vshll.u32 %v1997, 16
      %v2023 = vrot.slane %v2021, 1
      %v2024 = vsel %vm1001, %v2019, %v2023
      %v2026 = vshrl.u32 %v1934, 16
      %v2028 = vshll.u32 %v1934, 16
      %v2030 = vrot.slane %v2028, 1
      %v2031 = vor.u32 %v2026, %v2030
      %v2033 = vshll.u32 %v1998, 16
      %v2035 = vrot.slane %v2033, 1
      %v2036 = vsel %vm1001, %v2031, %v2035
      %v2038 = vshrl.u32 %v1935, 16
      %v2040 = vshll.u32 %v1935, 16
      %v2042 = vrot.slane %v2040, 1
      %v2043 = vor.u32 %v2038, %v2042
      %v2045 = vshll.u32 %v1999, 16
      %v2047 = vrot.slane %v2045, 1
      %v2048 = vsel %vm1001, %v2043, %v2047
      %v2050 = vshrl.u32 %v1936, 16
      %v2052 = vshll.u32 %v1936, 16
      %v2054 = vrot.slane %v2052, 1
      %v2055 = vor.u32 %v2050, %v2054
      %v2057 = vshll.u32 %v2000, 16
      %v2059 = vrot.slane %v2057, 1
      %v2060 = vsel %vm1001, %v2055, %v2059
      %v2062 = vshrl.u32 %v1937, 16
      %v2064 = vshll.u32 %v1937, 16
      %v2066 = vrot.slane %v2064, 1
      %v2067 = vor.u32 %v2062, %v2066
      %v2069 = vshll.u32 %v2001, 16
      %v2071 = vrot.slane %v2069, 1
      %v2072 = vsel %vm1001, %v2067, %v2071
      %v2074 = vshrl.u32 %v1938, 16
      %v2076 = vshll.u32 %v1938, 16
      %v2078 = vrot.slane %v2076, 1
      %v2079 = vor.u32 %v2074, %v2078
      %v2081 = vshll.u32 %v2002, 16
      %v2083 = vrot.slane %v2081, 1
      %v2084 = vsel %vm1001, %v2079, %v2083
      %v2086 = vshrl.u32 %v1939, 16
      %v2088 = vshll.u32 %v1939, 16
      %v2090 = vrot.slane %v2088, 1
      %v2091 = vor.u32 %v2086, %v2090
      %v2093 = vshll.u32 %v2003, 16
      %v2095 = vrot.slane %v2093, 1
      %v2096 = vsel %vm1001, %v2091, %v2095
      %v2098 = vshrl.u32 %v1940, 16
      %v2100 = vshll.u32 %v1940, 16
      %v2102 = vrot.slane %v2100, 1
      %v2103 = vor.u32 %v2098, %v2102
      %v2105 = vshll.u32 %v2004, 16
      %v2107 = vrot.slane %v2105, 1
      %v2108 = vsel %vm1001, %v2103, %v2107
      %v2110 = vshrl.u32 %v1941, 16
      %v2112 = vshll.u32 %v1941, 16
      %v2114 = vrot.slane %v2112, 1
      %v2115 = vor.u32 %v2110, %v2114
      %v2117 = vshll.u32 %v2005, 16
      %v2119 = vrot.slane %v2117, 1
      %v2120 = vsel %vm1001, %v2115, %v2119
      %v2122 = vshrl.u32 %v1942, 16
      %v2124 = vshll.u32 %v1942, 16
      %v2126 = vrot.slane %v2124, 1
      %v2127 = vor.u32 %v2122, %v2126
      %v2129 = vshll.u32 %v2006, 16
      %v2131 = vrot.slane %v2129, 1
      %v2132 = vsel %vm1001, %v2127, %v2131
      %v2134 = vshrl.u32 %v1943, 16
      %v2136 = vshll.u32 %v1943, 16
      %v2138 = vrot.slane %v2136, 1
      %v2139 = vor.u32 %v2134, %v2138
      %v2141 = vshll.u32 %v2007, 16
      %v2143 = vrot.slane %v2141, 1
      %v2144 = vsel %vm1001, %v2139, %v2143
      %v2146 = vshrl.u32 %v1944, 16
      %v2148 = vshll.u32 %v1944, 16
      %v2150 = vrot.slane %v2148, 1
      %v2151 = vor.u32 %v2146, %v2150
      %v2153 = vshll.u32 %v2008, 16
      %v2155 = vrot.slane %v2153, 1
      %v2156 = vsel %vm1001, %v2151, %v2155
      %v2158 = vshrl.u32 %v1945, 16
      %v2160 = vshll.u32 %v1945, 16
      %v2162 = vrot.slane %v2160, 1
      %v2163 = vor.u32 %v2158, %v2162
      %v2165 = vshll.u32 %v2009, 16
      %v2167 = vrot.slane %v2165, 1
      %v2168 = vsel %vm1001, %v2163, %v2167
      %v2170 = vshrl.u32 %v1946, 16
      %v2172 = vshll.u32 %v1946, 16
      %v2174 = vrot.slane %v2172, 1
      %v2175 = vor.u32 %v2170, %v2174
      %v2177 = vshll.u32 %v2010, 16
      %v2179 = vrot.slane %v2177, 1
      %v2180 = vsel %vm1001, %v2175, %v2179
      %v2182 = vshrl.u32 %v1947, 16
      %v2184 = vshll.u32 %v1947, 16
      %v2186 = vrot.slane %v2184, 1
      %v2187 = vor.u32 %v2182, %v2186
      %v2189 = vshll.u32 %v2011, 16
      %v2191 = vrot.slane %v2189, 1
      %v2192 = vsel %vm1001, %v2187, %v2191
      %v2194 = vshrl.u32 %v1948, 16
      %v2196 = vshll.u32 %v1948, 16
      %v2198 = vrot.slane %v2196, 1
      %v2199 = vor.u32 %v2194, %v2198
      %v2201 = vshll.u32 %v2012, 16
      %v2203 = vrot.slane %v2201, 1
      %v2204 = vsel %vm1001, %v2199, %v2203
      %v2221 = vrot.slane %v1933, 1
      %v2222 = vrot.slane %v1997, 1
      %v2223 = vsel %vm1210, %v2221, %v2222
      %v2224 = vrot.slane %v1934, 1
      %v2225 = vrot.slane %v1998, 1
      %v2226 = vsel %vm1210, %v2224, %v2225
      %v2227 = vrot.slane %v1935, 1
      %v2228 = vrot.slane %v1999, 1
      %v2229 = vsel %vm1210, %v2227, %v2228
      %v2230 = vrot.slane %v1936, 1
      %v2231 = vrot.slane %v2000, 1
      %v2232 = vsel %vm1210, %v2230, %v2231
      %v2233 = vrot.slane %v1937, 1
      %v2234 = vrot.slane %v2001, 1
      %v2235 = vsel %vm1210, %v2233, %v2234
      %v2236 = vrot.slane %v1938, 1
      %v2237 = vrot.slane %v2002, 1
      %v2238 = vsel %vm1210, %v2236, %v2237
      %v2239 = vrot.slane %v1939, 1
      %v2240 = vrot.slane %v2003, 1
      %v2241 = vsel %vm1210, %v2239, %v2240
      %v2242 = vrot.slane %v1940, 1
      %v2243 = vrot.slane %v2004, 1
      %v2244 = vsel %vm1210, %v2242, %v2243
      %v2245 = vrot.slane %v1941, 1
      %v2246 = vrot.slane %v2005, 1
      %v2247 = vsel %vm1210, %v2245, %v2246
      %v2248 = vrot.slane %v1942, 1
      %v2249 = vrot.slane %v2006, 1
      %v2250 = vsel %vm1210, %v2248, %v2249
      %v2251 = vrot.slane %v1943, 1
      %v2252 = vrot.slane %v2007, 1
      %v2253 = vsel %vm1210, %v2251, %v2252
      %v2254 = vrot.slane %v1944, 1
      %v2255 = vrot.slane %v2008, 1
      %v2256 = vsel %vm1210, %v2254, %v2255
      %v2257 = vrot.slane %v1945, 1
      %v2258 = vrot.slane %v2009, 1
      %v2259 = vsel %vm1210, %v2257, %v2258
      %v2260 = vrot.slane %v1946, 1
      %v2261 = vrot.slane %v2010, 1
      %v2262 = vsel %vm1210, %v2260, %v2261
      %v2263 = vrot.slane %v1947, 1
      %v2264 = vrot.slane %v2011, 1
      %v2265 = vsel %vm1210, %v2263, %v2264
      %v2266 = vrot.slane %v1948, 1
      %v2267 = vrot.slane %v2012, 1
      %v2268 = vsel %vm1210, %v2266, %v2267
      %s2285 = scalar_lea.vmem %s1, 192
      %v2286 = vld [vmem:[%s2285] sm:$0xf]
      %v2287 = vld [vmem:[%s2285 + $0x4] sm:$0xf]
      %v2288 = vld [vmem:[%s2285 + $0x8] sm:$0xf]
      %v2289 = vld [vmem:[%s2285 + $0xc] sm:$0xf]
      %v2290 = vld [vmem:[%s2285 + $0x10] sm:$0xf]
      %v2291 = vld [vmem:[%s2285 + $0x14] sm:$0xf]
      %v2292 = vld [vmem:[%s2285 + $0x18] sm:$0xf]
      %v2293 = vld [vmem:[%s2285 + $0x1c] sm:$0xf]
      %v2294 = vld [vmem:[%s2285 + $0x20] sm:$0xf]
      %v2295 = vld [vmem:[%s2285 + $0x24] sm:$0xf]
      %v2296 = vld [vmem:[%s2285 + $0x28] sm:$0xf]
      %v2297 = vld [vmem:[%s2285 + $0x2c] sm:$0xf]
      %v2298 = vld [vmem:[%s2285 + $0x30] sm:$0xf]
      %v2299 = vld [vmem:[%s2285 + $0x34] sm:$0xf]
      %v2300 = vld [vmem:[%s2285 + $0x38] sm:$0xf]
      %v2301 = vld [vmem:[%s2285 + $0x3c] sm:$0xf]
      %v2302 = vld [vmem:[%s2285 + $0x40] sm:$0xf]
      %v2303 = vld [vmem:[%s2285 + $0x44] sm:$0xf]
      %v2304 = vld [vmem:[%s2285 + $0x48] sm:$0xf]
      %v2305 = vld [vmem:[%s2285 + $0x4c] sm:$0xf]
      %v2306 = vld [vmem:[%s2285 + $0x50] sm:$0xf]
      %v2307 = vld [vmem:[%s2285 + $0x54] sm:$0xf]
      %v2308 = vld [vmem:[%s2285 + $0x58] sm:$0xf]
      %v2309 = vld [vmem:[%s2285 + $0x5c] sm:$0xf]
      %v2310 = vld [vmem:[%s2285 + $0x60] sm:$0xf]
      %v2311 = vld [vmem:[%s2285 + $0x64] sm:$0xf]
      %v2312 = vld [vmem:[%s2285 + $0x68] sm:$0xf]
      %v2313 = vld [vmem:[%s2285 + $0x6c] sm:$0xf]
      %v2314 = vld [vmem:[%s2285 + $0x70] sm:$0xf]
      %v2315 = vld [vmem:[%s2285 + $0x74] sm:$0xf]
      %v2316 = vld [vmem:[%s2285 + $0x78] sm:$0xf]
      %v2317 = vld [vmem:[%s2285 + $0x7c] sm:$0xf]
      %v2318 = vld [vmem:[%s2285 + $0x80] sm:$0xf]
      %v2319 = vld [vmem:[%s2285 + $0x84] sm:$0xf]
      %v2320 = vld [vmem:[%s2285 + $0x88] sm:$0xf]
      %v2321 = vld [vmem:[%s2285 + $0x8c] sm:$0xf]
      %v2322 = vld [vmem:[%s2285 + $0x90] sm:$0xf]
      %v2323 = vld [vmem:[%s2285 + $0x94] sm:$0xf]
      %v2324 = vld [vmem:[%s2285 + $0x98] sm:$0xf]
      %v2325 = vld [vmem:[%s2285 + $0x9c] sm:$0xf]
      %v2326 = vld [vmem:[%s2285 + $0xa0] sm:$0xf]
      %v2327 = vld [vmem:[%s2285 + $0xa4] sm:$0xf]
      %v2328 = vld [vmem:[%s2285 + $0xa8] sm:$0xf]
      %v2329 = vld [vmem:[%s2285 + $0xac] sm:$0xf]
      %v2330 = vld [vmem:[%s2285 + $0xb0] sm:$0xf]
      %v2331 = vld [vmem:[%s2285 + $0xb4] sm:$0xf]
      %v2332 = vld [vmem:[%s2285 + $0xb8] sm:$0xf]
      %v2333 = vld [vmem:[%s2285 + $0xbc] sm:$0xf]
      %v2382 = vunpack.c.l.b16 %v2286
      %v2383 = vunpack.c.l.b16 %v2287
      %v2384 = vunpack.c.l.b16 %v2288
      %v2385 = vunpack.c.l.b16 %v2289
      %v2386 = vunpack.c.l.b16 %v2290
      %v2387 = vunpack.c.l.b16 %v2291
      %v2388 = vunpack.c.l.b16 %v2292
      %v2389 = vunpack.c.l.b16 %v2293
      %v2390 = vunpack.c.l.b16 %v2294
      %v2391 = vunpack.c.l.b16 %v2295
      %v2392 = vunpack.c.l.b16 %v2296
      %v2393 = vunpack.c.l.b16 %v2297
      %v2394 = vunpack.c.l.b16 %v2298
      %v2395 = vunpack.c.l.b16 %v2299
      %v2396 = vunpack.c.l.b16 %v2300
      %v2397 = vunpack.c.l.b16 %v2301
      %v2398 = vunpack.c.l.b16 %v2302
      %v2399 = vunpack.c.l.b16 %v2303
      %v2400 = vunpack.c.l.b16 %v2304
      %v2401 = vunpack.c.l.b16 %v2305
      %v2402 = vunpack.c.l.b16 %v2306
      %v2403 = vunpack.c.l.b16 %v2307
      %v2404 = vunpack.c.l.b16 %v2308
      %v2405 = vunpack.c.l.b16 %v2309
      %v2406 = vunpack.c.l.b16 %v2310
      %v2407 = vunpack.c.l.b16 %v2311
      %v2408 = vunpack.c.l.b16 %v2312
      %v2409 = vunpack.c.l.b16 %v2313
      %v2410 = vunpack.c.l.b16 %v2314
      %v2411 = vunpack.c.l.b16 %v2315
      %v2412 = vunpack.c.l.b16 %v2316
      %v2413 = vunpack.c.l.b16 %v2317
      %v2414 = vunpack.c.l.b16 %v2318
      %v2415 = vunpack.c.l.b16 %v2319
      %v2416 = vunpack.c.l.b16 %v2320
      %v2417 = vunpack.c.l.b16 %v2321
      %v2418 = vunpack.c.l.b16 %v2322
      %v2419 = vunpack.c.l.b16 %v2323
      %v2420 = vunpack.c.l.b16 %v2324
      %v2421 = vunpack.c.l.b16 %v2325
      %v2422 = vunpack.c.l.b16 %v2326
      %v2423 = vunpack.c.l.b16 %v2327
      %v2424 = vunpack.c.l.b16 %v2328
      %v2425 = vunpack.c.l.b16 %v2329
      %v2426 = vunpack.c.l.b16 %v2330
      %v2427 = vunpack.c.l.b16 %v2331
      %v2428 = vunpack.c.l.b16 %v2332
      %v2429 = vunpack.c.l.b16 %v2333
      %v2430 = vpack.c.b16 %v2383, %v2382
      %v2431 = vpack.c.b16 %v2385, %v2384
      %v2432 = vpack.c.b16 %v2387, %v2386
      %v2433 = vpack.c.b16 %v2389, %v2388
      %v2434 = vpack.c.b16 %v2391, %v2390
      %v2435 = vpack.c.b16 %v2393, %v2392
      %v2436 = vpack.c.b16 %v2395, %v2394
      %v2437 = vpack.c.b16 %v2397, %v2396
      %v2438 = vpack.c.b16 %v2399, %v2398
      %v2439 = vpack.c.b16 %v2401, %v2400
      %v2440 = vpack.c.b16 %v2403, %v2402
      %v2441 = vpack.c.b16 %v2405, %v2404
      %v2442 = vpack.c.b16 %v2407, %v2406
      %v2443 = vpack.c.b16 %v2409, %v2408
      %v2444 = vpack.c.b16 %v2411, %v2410
      %v2445 = vpack.c.b16 %v2413, %v2412
      %v2446 = vpack.c.b16 %v2415, %v2414
      %v2447 = vpack.c.b16 %v2417, %v2416
      %v2448 = vpack.c.b16 %v2419, %v2418
      %v2449 = vpack.c.b16 %v2421, %v2420
      %v2450 = vpack.c.b16 %v2423, %v2422
      %v2451 = vpack.c.b16 %v2425, %v2424
      %v2452 = vpack.c.b16 %v2427, %v2426
      %v2453 = vpack.c.b16 %v2429, %v2428
      %2478 = vmatprep.subr.bf16.mxu0 0
      %2479 = vmatpush1.bf16.msra.mxu0 %v2437
      %2480 = vmatprep.subr.bf16.mxu0 0
      %2481 = vmatpush1.bf16.msra.mxu0 %v2436
      %2482 = vmatprep.subr.bf16.mxu0 0
      %2483 = vmatpush1.bf16.msra.mxu0 %v2435
      %2484 = vmatprep.subr.bf16.mxu0 0
      %2485 = vmatpush1.bf16.msra.mxu0 %v2434
      %2486 = vmatprep.subr.bf16.mxu0 0
      %2487 = vmatpush1.bf16.msra.mxu0 %v2433
      %2488 = vmatprep.subr.bf16.mxu0 0
      %2489 = vmatpush1.bf16.msra.mxu0 %v2432
      %2490 = vmatprep.subr.bf16.mxu0 0
      %2491 = vmatpush1.bf16.msra.mxu0 %v2431
      %2492 = vmatprep.subr.bf16.mxu0 0
      %2493 = vmatpush1.bf16.msra.mxu0 %v2430
      %2494 = vmatprep.subr.bf16.mxu0 0
      %2495 = vmatpush2.bf16.msra.mxu0 %v2445
      %2496 = vmatprep.subr.bf16.mxu0 0
      %2497 = vmatpush2.bf16.msra.mxu0 %v2444
      %2498 = vmatprep.subr.bf16.mxu0 0
      %2499 = vmatpush2.bf16.msra.mxu0 %v2443
      %2500 = vmatprep.subr.bf16.mxu0 0
      %2501 = vmatpush2.bf16.msra.mxu0 %v2442
      %2502 = vmatprep.subr.bf16.mxu0 0
      %2503 = vmatpush2.bf16.msra.mxu0 %v2441
      %2504 = vmatprep.subr.bf16.mxu0 0
      %2505 = vmatpush2.bf16.msra.mxu0 %v2440
      %2506 = vmatprep.subr.bf16.mxu0 0
      %2507 = vmatpush2.bf16.msra.mxu0 %v2439
      %2508 = vmatprep.subr.bf16.mxu0 0
      %2509 = vmatpush2.bf16.msra.mxu0 %v2438
      %2510 = vmatprep.mubr.bf16.mxu0 %v2024
      %2511 = vmatmul.mubr.bf16.gmra.mxu0 %v1933
      %v2512 = vpop.f32.mrf.mxu0
      %v2513 = vadd.f32 0.0, %v2512
      %v2514 = vpop.f32.mrf.mxu0
      %v2515 = vpop.f32.mrf.mxu0
      %v2516 = vadd.f32 0.0, %v2515
      %v2517 = vpop.f32.mrf.mxu0
      %2518 = vmatprep.mubr.bf16.mxu0 %v2036
      %2519 = vmatmul.mubr.bf16.gmra.mxu0 %v1934
      %v2520 = vpop.f32.mrf.mxu0
      %v2521 = vadd.f32 0.0, %v2520
      %v2522 = vpop.f32.mrf.mxu0
      %v2523 = vpop.f32.mrf.mxu0
      %v2524 = vadd.f32 0.0, %v2523
      %v2525 = vpop.f32.mrf.mxu0
      %2526 = vmatprep.mubr.bf16.mxu0 %v2048
      %2527 = vmatmul.mubr.bf16.gmra.mxu0 %v1935
      %v2528 = vpop.f32.mrf.mxu0
      %v2529 = vadd.f32 0.0, %v2528
      %v2530 = vpop.f32.mrf.mxu0
      %v2531 = vpop.f32.mrf.mxu0
      %v2532 = vadd.f32 0.0, %v2531
      %v2533 = vpop.f32.mrf.mxu0
      %2534 = vmatprep.mubr.bf16.mxu0 %v2060
      %2535 = vmatmul.mubr.bf16.gmra.mxu0 %v1936
      %v2536 = vpop.f32.mrf.mxu0
      %v2537 = vadd.f32 0.0, %v2536
      %v2538 = vpop.f32.mrf.mxu0
      %v2539 = vpop.f32.mrf.mxu0
      %v2540 = vadd.f32 0.0, %v2539
      %v2541 = vpop.f32.mrf.mxu0
      %2542 = vmatprep.mubr.bf16.mxu0 %v2072
      %2543 = vmatmul.mubr.bf16.gmra.mxu0 %v1937
      %v2544 = vpop.f32.mrf.mxu0
      %v2545 = vadd.f32 0.0, %v2544
      %v2546 = vpop.f32.mrf.mxu0
      %v2547 = vpop.f32.mrf.mxu0
      %v2548 = vadd.f32 0.0, %v2547
      %v2549 = vpop.f32.mrf.mxu0
      %2550 = vmatprep.mubr.bf16.mxu0 %v2084
      %2551 = vmatmul.mubr.bf16.gmra.mxu0 %v1938
      %v2552 = vpop.f32.mrf.mxu0
      %v2553 = vadd.f32 0.0, %v2552
      %v2554 = vpop.f32.mrf.mxu0
      %v2555 = vpop.f32.mrf.mxu0
      %v2556 = vadd.f32 0.0, %v2555
      %v2557 = vpop.f32.mrf.mxu0
      %2558 = vmatprep.mubr.bf16.mxu0 %v2096
      %2559 = vmatmul.mubr.bf16.gmra.mxu0 %v1939
      %v2560 = vpop.f32.mrf.mxu0
      %v2561 = vadd.f32 0.0, %v2560
      %v2562 = vpop.f32.mrf.mxu0
      %v2563 = vpop.f32.mrf.mxu0
      %v2564 = vadd.f32 0.0, %v2563
      %v2565 = vpop.f32.mrf.mxu0
      %2566 = vmatprep.mubr.bf16.mxu0 %v2108
      %2567 = vmatmul.mubr.bf16.gmra.mxu0 %v1940
      %v2568 = vpop.f32.mrf.mxu0
      %v2569 = vadd.f32 0.0, %v2568
      %v2570 = vpop.f32.mrf.mxu0
      %v2571 = vpop.f32.mrf.mxu0
      %v2572 = vadd.f32 0.0, %v2571
      %v2573 = vpop.f32.mrf.mxu0
      %2574 = vmatprep.mubr.bf16.mxu0 %v2120
      %2575 = vmatmul.mubr.bf16.gmra.mxu0 %v1941
      %v2576 = vpop.f32.mrf.mxu0
      %v2577 = vadd.f32 0.0, %v2576
      %v2578 = vpop.f32.mrf.mxu0
      %v2579 = vpop.f32.mrf.mxu0
      %v2580 = vadd.f32 0.0, %v2579
      %v2581 = vpop.f32.mrf.mxu0
      %2582 = vmatprep.mubr.bf16.mxu0 %v2132
      %2583 = vmatmul.mubr.bf16.gmra.mxu0 %v1942
      %v2584 = vpop.f32.mrf.mxu0
      %v2585 = vadd.f32 0.0, %v2584
      %v2586 = vpop.f32.mrf.mxu0
      %v2587 = vpop.f32.mrf.mxu0
      %v2588 = vadd.f32 0.0, %v2587
      %v2589 = vpop.f32.mrf.mxu0
      %2590 = vmatprep.mubr.bf16.mxu0 %v2144
      %2591 = vmatmul.mubr.bf16.gmra.mxu0 %v1943
      %v2592 = vpop.f32.mrf.mxu0
      %v2593 = vadd.f32 0.0, %v2592
      %v2594 = vpop.f32.mrf.mxu0
      %v2595 = vpop.f32.mrf.mxu0
      %v2596 = vadd.f32 0.0, %v2595
      %v2597 = vpop.f32.mrf.mxu0
      %2598 = vmatprep.mubr.bf16.mxu0 %v2156
      %2599 = vmatmul.mubr.bf16.gmra.mxu0 %v1944
      %v2600 = vpop.f32.mrf.mxu0
      %v2601 = vadd.f32 0.0, %v2600
      %v2602 = vpop.f32.mrf.mxu0
      %v2603 = vpop.f32.mrf.mxu0
      %v2604 = vadd.f32 0.0, %v2603
      %v2605 = vpop.f32.mrf.mxu0
      %2606 = vmatprep.mubr.bf16.mxu0 %v2168
      %2607 = vmatmul.mubr.bf16.gmra.mxu0 %v1945
      %v2608 = vpop.f32.mrf.mxu0
      %v2609 = vadd.f32 0.0, %v2608
      %v2610 = vpop.f32.mrf.mxu0
      %v2611 = vpop.f32.mrf.mxu0
      %v2612 = vadd.f32 0.0, %v2611
      %v2613 = vpop.f32.mrf.mxu0
      %2614 = vmatprep.mubr.bf16.mxu0 %v2180
      %2615 = vmatmul.mubr.bf16.gmra.mxu0 %v1946
      %v2616 = vpop.f32.mrf.mxu0
      %v2617 = vadd.f32 0.0, %v2616
      %v2618 = vpop.f32.mrf.mxu0
      %v2619 = vpop.f32.mrf.mxu0
      %v2620 = vadd.f32 0.0, %v2619
      %v2621 = vpop.f32.mrf.mxu0
      %2622 = vmatprep.mubr.bf16.mxu0 %v2192
      %2623 = vmatmul.mubr.bf16.gmra.mxu0 %v1947
      %v2624 = vpop.f32.mrf.mxu0
      %v2625 = vadd.f32 0.0, %v2624
      %v2626 = vpop.f32.mrf.mxu0
      %v2627 = vpop.f32.mrf.mxu0
      %v2628 = vadd.f32 0.0, %v2627
      %v2629 = vpop.f32.mrf.mxu0
      %2630 = vmatprep.mubr.bf16.mxu0 %v2204
      %2631 = vmatmul.mubr.bf16.gmra.mxu0 %v1948
      %v2632 = vpop.f32.mrf.mxu0
      %v2633 = vadd.f32 0.0, %v2632
      %v2634 = vpop.f32.mrf.mxu0
      %v2635 = vpop.f32.mrf.mxu0
      %v2636 = vadd.f32 0.0, %v2635
      %v2637 = vpop.f32.mrf.mxu0
      %2638 = vdwg.mxu0
      %2639 = vmatprep.subr.bf16.mxu0 0
      %2640 = vmatpush1.bf16.msra.mxu0 %v2453
      %2641 = vmatprep.subr.bf16.mxu0 0
      %2642 = vmatpush1.bf16.msra.mxu0 %v2452
      %2643 = vmatprep.subr.bf16.mxu0 0
      %2644 = vmatpush1.bf16.msra.mxu0 %v2451
      %2645 = vmatprep.subr.bf16.mxu0 0
      %2646 = vmatpush1.bf16.msra.mxu0 %v2450
      %2647 = vmatprep.subr.bf16.mxu0 0
      %2648 = vmatpush1.bf16.msra.mxu0 %v2449
      %2649 = vmatprep.subr.bf16.mxu0 0
      %2650 = vmatpush1.bf16.msra.mxu0 %v2448
      %2651 = vmatprep.subr.bf16.mxu0 0
      %2652 = vmatpush1.bf16.msra.mxu0 %v2447
      %2653 = vmatprep.subr.bf16.mxu0 0
      %2654 = vmatpush1.bf16.msra.mxu0 %v2446
      %2655 = vmatprep.subr.bf16.mxu0 0
      %2656 = vmatpush2.bf16.msra.mxu0 0
      %2657 = vmatprep.subr.bf16.mxu0 0
      %2658 = vmatpush2.bf16.msra.mxu0 0
      %2659 = vmatprep.subr.bf16.mxu0 0
      %2660 = vmatpush2.bf16.msra.mxu0 0
      %2661 = vmatprep.subr.bf16.mxu0 0
      %2662 = vmatpush2.bf16.msra.mxu0 0
      %2663 = vmatprep.subr.bf16.mxu0 0
      %2664 = vmatpush2.bf16.msra.mxu0 0
      %2665 = vmatprep.subr.bf16.mxu0 0
      %2666 = vmatpush2.bf16.msra.mxu0 0
      %2667 = vmatprep.subr.bf16.mxu0 0
      %2668 = vmatpush2.bf16.msra.mxu0 0
      %2669 = vmatprep.subr.bf16.mxu0 0
      %2670 = vmatpush2.bf16.msra.mxu0 0
      %2671 = vmatprep.mubr.bf16.mxu0 0
      %2672 = vmatmul.mubr.bf16.gmra.mxu0 %v2223
      %v2673 = vpop.f32.mrf.mxu0
      %v2674 = vadd.f32 %v2513, %v2673
      %v2675 = vpop.f32.mrf.mxu0
      %v2676 = vpop.f32.mrf.mxu0
      %v2677 = vadd.f32 %v2516, %v2676
      %v2678 = vpop.f32.mrf.mxu0
      %2679 = vmatprep.mubr.bf16.mxu0 0
      %2680 = vmatmul.mubr.bf16.gmra.mxu0 %v2226
      %v2681 = vpop.f32.mrf.mxu0
      %v2682 = vadd.f32 %v2521, %v2681
      %v2683 = vpop.f32.mrf.mxu0
      %v2684 = vpop.f32.mrf.mxu0
      %v2685 = vadd.f32 %v2524, %v2684
      %v2686 = vpop.f32.mrf.mxu0
      %2687 = vmatprep.mubr.bf16.mxu0 0
      %2688 = vmatmul.mubr.bf16.gmra.mxu0 %v2229
      %v2689 = vpop.f32.mrf.mxu0
      %v2690 = vadd.f32 %v2529, %v2689
      %v2691 = vpop.f32.mrf.mxu0
      %v2692 = vpop.f32.mrf.mxu0
      %v2693 = vadd.f32 %v2532, %v2692
      %v2694 = vpop.f32.mrf.mxu0
      %2695 = vmatprep.mubr.bf16.mxu0 0
      %2696 = vmatmul.mubr.bf16.gmra.mxu0 %v2232
      %v2697 = vpop.f32.mrf.mxu0
      %v2698 = vadd.f32 %v2537, %v2697
      %v2699 = vpop.f32.mrf.mxu0
      %v2700 = vpop.f32.mrf.mxu0
      %v2701 = vadd.f32 %v2540, %v2700
      %v2702 = vpop.f32.mrf.mxu0
      %2703 = vmatprep.mubr.bf16.mxu0 0
      %2704 = vmatmul.mubr.bf16.gmra.mxu0 %v2235
      %v2705 = vpop.f32.mrf.mxu0
      %v2706 = vadd.f32 %v2545, %v2705
      %v2707 = vpop.f32.mrf.mxu0
      %v2708 = vpop.f32.mrf.mxu0
      %v2709 = vadd.f32 %v2548, %v2708
      %v2710 = vpop.f32.mrf.mxu0
      %2711 = vmatprep.mubr.bf16.mxu0 0
      %2712 = vmatmul.mubr.bf16.gmra.mxu0 %v2238
      %v2713 = vpop.f32.mrf.mxu0
      %v2714 = vadd.f32 %v2553, %v2713
      %v2715 = vpop.f32.mrf.mxu0
      %v2716 = vpop.f32.mrf.mxu0
      %v2717 = vadd.f32 %v2556, %v2716
      %v2718 = vpop.f32.mrf.mxu0
      %2719 = vmatprep.mubr.bf16.mxu0 0
      %2720 = vmatmul.mubr.bf16.gmra.mxu0 %v2241
      %v2721 = vpop.f32.mrf.mxu0
      %v2722 = vadd.f32 %v2561, %v2721
      %v2723 = vpop.f32.mrf.mxu0
      %v2724 = vpop.f32.mrf.mxu0
      %v2725 = vadd.f32 %v2564, %v2724
      %v2726 = vpop.f32.mrf.mxu0
      %2727 = vmatprep.mubr.bf16.mxu0 0
      %2728 = vmatmul.mubr.bf16.gmra.mxu0 %v2244
      %v2729 = vpop.f32.mrf.mxu0
      %v2730 = vadd.f32 %v2569, %v2729
      %v2731 = vpop.f32.mrf.mxu0
      %v2732 = vpop.f32.mrf.mxu0
      %v2733 = vadd.f32 %v2572, %v2732
      %v2734 = vpop.f32.mrf.mxu0
      %2735 = vmatprep.mubr.bf16.mxu0 0
      %2736 = vmatmul.mubr.bf16.gmra.mxu0 %v2247
      %v2737 = vpop.f32.mrf.mxu0
      %v2738 = vadd.f32 %v2577, %v2737
      %v2739 = vpop.f32.mrf.mxu0
      %v2740 = vpop.f32.mrf.mxu0
      %v2741 = vadd.f32 %v2580, %v2740
      %v2742 = vpop.f32.mrf.mxu0
      %2743 = vmatprep.mubr.bf16.mxu0 0
      %2744 = vmatmul.mubr.bf16.gmra.mxu0 %v2250
      %v2745 = vpop.f32.mrf.mxu0
      %v2746 = vadd.f32 %v2585, %v2745
      %v2747 = vpop.f32.mrf.mxu0
      %v2748 = vpop.f32.mrf.mxu0
      %v2749 = vadd.f32 %v2588, %v2748
      %v2750 = vpop.f32.mrf.mxu0
      %2751 = vmatprep.mubr.bf16.mxu0 0
      %2752 = vmatmul.mubr.bf16.gmra.mxu0 %v2253
      %v2753 = vpop.f32.mrf.mxu0
      %v2754 = vadd.f32 %v2593, %v2753
      %v2755 = vpop.f32.mrf.mxu0
      %v2756 = vpop.f32.mrf.mxu0
      %v2757 = vadd.f32 %v2596, %v2756
      %v2758 = vpop.f32.mrf.mxu0
      %2759 = vmatprep.mubr.bf16.mxu0 0
      %2760 = vmatmul.mubr.bf16.gmra.mxu0 %v2256
      %v2761 = vpop.f32.mrf.mxu0
      %v2762 = vadd.f32 %v2601, %v2761
      %v2763 = vpop.f32.mrf.mxu0
      %v2764 = vpop.f32.mrf.mxu0
      %v2765 = vadd.f32 %v2604, %v2764
      %v2766 = vpop.f32.mrf.mxu0
      %2767 = vmatprep.mubr.bf16.mxu0 0
      %2768 = vmatmul.mubr.bf16.gmra.mxu0 %v2259
      %v2769 = vpop.f32.mrf.mxu0
      %v2770 = vadd.f32 %v2609, %v2769
      %v2771 = vpop.f32.mrf.mxu0
      %v2772 = vpop.f32.mrf.mxu0
      %v2773 = vadd.f32 %v2612, %v2772
      %v2774 = vpop.f32.mrf.mxu0
      %2775 = vmatprep.mubr.bf16.mxu0 0
      %2776 = vmatmul.mubr.bf16.gmra.mxu0 %v2262
      %v2777 = vpop.f32.mrf.mxu0
      %v2778 = vadd.f32 %v2617, %v2777
      %v2779 = vpop.f32.mrf.mxu0
      %v2780 = vpop.f32.mrf.mxu0
      %v2781 = vadd.f32 %v2620, %v2780
      %v2782 = vpop.f32.mrf.mxu0
      %2783 = vmatprep.mubr.bf16.mxu0 0
      %2784 = vmatmul.mubr.bf16.gmra.mxu0 %v2265
      %v2785 = vpop.f32.mrf.mxu0
      %v2786 = vadd.f32 %v2625, %v2785
      %v2787 = vpop.f32.mrf.mxu0
      %v2788 = vpop.f32.mrf.mxu0
      %v2789 = vadd.f32 %v2628, %v2788
      %v2790 = vpop.f32.mrf.mxu0
      %2791 = vmatprep.mubr.bf16.mxu0 0
      %2792 = vmatmul.mubr.bf16.gmra.mxu0 %v2268
      %v2793 = vpop.f32.mrf.mxu0
      %v2794 = vadd.f32 %v2633, %v2793
      %v2795 = vpop.f32.mrf.mxu0
      %v2796 = vpop.f32.mrf.mxu0
      %v2797 = vadd.f32 %v2636, %v2796
      %v2798 = vpop.f32.mrf.mxu0
      %2799 = vdwg.mxu0
      %v2800 = vld [vmem:[#allocation4] sm:$0xff]
      %v2801 = vld [vmem:[#allocation4 + $0x8] sm:$0xff]
      %v2802 = vld [vmem:[#allocation4 + $0x10] sm:$0xff]
      %v2803 = vld [vmem:[#allocation4 + $0x18] sm:$0xff]
      %v2804 = vld [vmem:[#allocation4 + $0x20] sm:$0xff]
      %v2805 = vld [vmem:[#allocation4 + $0x28] sm:$0xff]
      %v2806 = vld [vmem:[#allocation4 + $0x30] sm:$0xff]
      %v2807 = vld [vmem:[#allocation4 + $0x38] sm:$0xff]
      %v2808 = vld [vmem:[#allocation4 + $0x40] sm:$0xff]
      %v2809 = vld [vmem:[#allocation4 + $0x48] sm:$0xff]
      %v2810 = vld [vmem:[#allocation4 + $0x50] sm:$0xff]
      %v2811 = vld [vmem:[#allocation4 + $0x58] sm:$0xff]
      %v2812 = vld [vmem:[#allocation4 + $0x60] sm:$0xff]
      %v2813 = vld [vmem:[#allocation4 + $0x68] sm:$0xff]
      %v2814 = vld [vmem:[#allocation4 + $0x70] sm:$0xff]
      %v2815 = vld [vmem:[#allocation4 + $0x78] sm:$0xff]
      %v2816 = vld [vmem:[#allocation4 + $0x80] sm:$0xff]
      %v2817 = vld [vmem:[#allocation4 + $0x88] sm:$0xff]
      %v2818 = vld [vmem:[#allocation4 + $0x90] sm:$0xff]
      %v2819 = vld [vmem:[#allocation4 + $0x98] sm:$0xff]
      %v2820 = vld [vmem:[#allocation4 + $0xa0] sm:$0xff]
      %v2821 = vld [vmem:[#allocation4 + $0xa8] sm:$0xff]
      %v2822 = vld [vmem:[#allocation4 + $0xb0] sm:$0xff]
      %v2823 = vld [vmem:[#allocation4 + $0xb8] sm:$0xff]
      %v2824 = vld [vmem:[#allocation4 + $0xc0] sm:$0xff]
      %v2825 = vld [vmem:[#allocation4 + $0xc8] sm:$0xff]
      %v2826 = vld [vmem:[#allocation4 + $0xd0] sm:$0xff]
      %v2827 = vld [vmem:[#allocation4 + $0xd8] sm:$0xff]
      %v2828 = vld [vmem:[#allocation4 + $0xe0] sm:$0xff]
      %v2829 = vld [vmem:[#allocation4 + $0xe8] sm:$0xff]
      %v2830 = vld [vmem:[#allocation4 + $0xf0] sm:$0xff]
      %v2831 = vld [vmem:[#allocation4 + $0xf8] sm:$0xff]
      %v2832 = vadd.f32 %v2800, %v2674
      %v2833 = vadd.f32 %v2801, %v2677
      %v2834 = vadd.f32 %v2802, %v2682
      %v2835 = vadd.f32 %v2803, %v2685
      %v2836 = vadd.f32 %v2804, %v2690
      %v2837 = vadd.f32 %v2805, %v2693
      %v2838 = vadd.f32 %v2806, %v2698
      %v2839 = vadd.f32 %v2807, %v2701
      %v2840 = vadd.f32 %v2808, %v2706
      %v2841 = vadd.f32 %v2809, %v2709
      %v2842 = vadd.f32 %v2810, %v2714
      %v2843 = vadd.f32 %v2811, %v2717
      %v2844 = vadd.f32 %v2812, %v2722
      %v2845 = vadd.f32 %v2813, %v2725
      %v2846 = vadd.f32 %v2814, %v2730
      %v2847 = vadd.f32 %v2815, %v2733
      %v2848 = vadd.f32 %v2816, %v2738
      %v2849 = vadd.f32 %v2817, %v2741
      %v2850 = vadd.f32 %v2818, %v2746
      %v2851 = vadd.f32 %v2819, %v2749
      %v2852 = vadd.f32 %v2820, %v2754
      %v2853 = vadd.f32 %v2821, %v2757
      %v2854 = vadd.f32 %v2822, %v2762
      %v2855 = vadd.f32 %v2823, %v2765
      %v2856 = vadd.f32 %v2824, %v2770
      %v2857 = vadd.f32 %v2825, %v2773
      %v2858 = vadd.f32 %v2826, %v2778
      %v2859 = vadd.f32 %v2827, %v2781
      %v2860 = vadd.f32 %v2828, %v2786
      %v2861 = vadd.f32 %v2829, %v2789
      %v2862 = vadd.f32 %v2830, %v2794
      %v2863 = vadd.f32 %v2831, %v2797
      %2864 = vst [vmem:[#allocation4] sm:$0xff] %v2832
      %2865 = vst [vmem:[#allocation4 + $0x8] sm:$0xff] %v2833
      %2866 = vst [vmem:[#allocation4 + $0x10] sm:$0xff] %v2834
      %2867 = vst [vmem:[#allocation4 + $0x18] sm:$0xff] %v2835
      %2868 = vst [vmem:[#allocation4 + $0x20] sm:$0xff] %v2836
      %2869 = vst [vmem:[#allocation4 + $0x28] sm:$0xff] %v2837
      %2870 = vst [vmem:[#allocation4 + $0x30] sm:$0xff] %v2838
      %2871 = vst [vmem:[#allocation4 + $0x38] sm:$0xff] %v2839
      %2872 = vst [vmem:[#allocation4 + $0x40] sm:$0xff] %v2840
      %2873 = vst [vmem:[#allocation4 + $0x48] sm:$0xff] %v2841
      %2874 = vst [vmem:[#allocation4 + $0x50] sm:$0xff] %v2842
      %2875 = vst [vmem:[#allocation4 + $0x58] sm:$0xff] %v2843
      %2876 = vst [vmem:[#allocation4 + $0x60] sm:$0xff] %v2844
      %2877 = vst [vmem:[#allocation4 + $0x68] sm:$0xff] %v2845
      %2878 = vst [vmem:[#allocation4 + $0x70] sm:$0xff] %v2846
      %2879 = vst [vmem:[#allocation4 + $0x78] sm:$0xff] %v2847
      %2880 = vst [vmem:[#allocation4 + $0x80] sm:$0xff] %v2848
      %2881 = vst [vmem:[#allocation4 + $0x88] sm:$0xff] %v2849
      %2882 = vst [vmem:[#allocation4 + $0x90] sm:$0xff] %v2850
      %2883 = vst [vmem:[#allocation4 + $0x98] sm:$0xff] %v2851
      %2884 = vst [vmem:[#allocation4 + $0xa0] sm:$0xff] %v2852
      %2885 = vst [vmem:[#allocation4 + $0xa8] sm:$0xff] %v2853
      %2886 = vst [vmem:[#allocation4 + $0xb0] sm:$0xff] %v2854
      %2887 = vst [vmem:[#allocation4 + $0xb8] sm:$0xff] %v2855
      %2888 = vst [vmem:[#allocation4 + $0xc0] sm:$0xff] %v2856
      %2889 = vst [vmem:[#allocation4 + $0xc8] sm:$0xff] %v2857
      %2890 = vst [vmem:[#allocation4 + $0xd0] sm:$0xff] %v2858
      %2891 = vst [vmem:[#allocation4 + $0xd8] sm:$0xff] %v2859
      %2892 = vst [vmem:[#allocation4 + $0xe0] sm:$0xff] %v2860
      %2893 = vst [vmem:[#allocation4 + $0xe8] sm:$0xff] %v2861
      %2894 = vst [vmem:[#allocation4 + $0xf0] sm:$0xff] %v2862
      %2895 = vst [vmem:[#allocation4 + $0xf8] sm:$0xff] %v2863
      %s2896 = scalar_lea.vmem [#allocation2], 24
      %v2897 = vld [vmem:[%s2896] sm:$0xf]
      %v2898 = vld [vmem:[%s2896 + $0x4] sm:$0xf]
      %v2899 = vld [vmem:[%s2896 + $0x8] sm:$0x1]
      %v2900 = vld [vmem:[%s2896 + $0xc] sm:$0xf]
      %v2901 = vld [vmem:[%s2896 + $0x10] sm:$0xf]
      %v2902 = vld [vmem:[%s2896 + $0x14] sm:$0x1]
      %v2903 = vld [vmem:[%s2896 + $0x18] sm:$0xf]
      %v2904 = vld [vmem:[%s2896 + $0x1c] sm:$0xf]
      %v2905 = vld [vmem:[%s2896 + $0x20] sm:$0x1]
      %v2906 = vld [vmem:[%s2896 + $0x24] sm:$0xf]
      %v2907 = vld [vmem:[%s2896 + $0x28] sm:$0xf]
      %v2908 = vld [vmem:[%s2896 + $0x2c] sm:$0x1]
      %v2909 = vld [vmem:[%s2896 + $0x30] sm:$0xf]
      %v2910 = vld [vmem:[%s2896 + $0x34] sm:$0xf]
      %v2911 = vld [vmem:[%s2896 + $0x38] sm:$0x1]
      %v2912 = vld [vmem:[%s2896 + $0x3c] sm:$0xf]
      %v2913 = vld [vmem:[%s2896 + $0x40] sm:$0xf]
      %v2914 = vld [vmem:[%s2896 + $0x44] sm:$0x1]
      %v2915 = vld [vmem:[%s2896 + $0x48] sm:$0xf]
      %v2916 = vld [vmem:[%s2896 + $0x4c] sm:$0xf]
      %v2917 = vld [vmem:[%s2896 + $0x50] sm:$0x1]
      %v2918 = vld [vmem:[%s2896 + $0x54] sm:$0xf]
      %v2919 = vld [vmem:[%s2896 + $0x58] sm:$0xf]
      %v2920 = vld [vmem:[%s2896 + $0x5c] sm:$0x1]
      %v2921 = vld [vmem:[%s2896 + $0x60] sm:$0xf]
      %v2922 = vld [vmem:[%s2896 + $0x64] sm:$0xf]
      %v2923 = vld [vmem:[%s2896 + $0x68] sm:$0x1]
      %v2924 = vld [vmem:[%s2896 + $0x6c] sm:$0xf]
      %v2925 = vld [vmem:[%s2896 + $0x70] sm:$0xf]
      %v2926 = vld [vmem:[%s2896 + $0x74] sm:$0x1]
      %v2927 = vld [vmem:[%s2896 + $0x78] sm:$0xf]
      %v2928 = vld [vmem:[%s2896 + $0x7c] sm:$0xf]
      %v2929 = vld [vmem:[%s2896 + $0x80] sm:$0x1]
      %v2930 = vld [vmem:[%s2896 + $0x84] sm:$0xf]
      %v2931 = vld [vmem:[%s2896 + $0x88] sm:$0xf]
      %v2932 = vld [vmem:[%s2896 + $0x8c] sm:$0x1]
      %v2933 = vld [vmem:[%s2896 + $0x90] sm:$0xf]
      %v2934 = vld [vmem:[%s2896 + $0x94] sm:$0xf]
      %v2935 = vld [vmem:[%s2896 + $0x98] sm:$0x1]
      %v2936 = vld [vmem:[%s2896 + $0x9c] sm:$0xf]
      %v2937 = vld [vmem:[%s2896 + $0xa0] sm:$0xf]
      %v2938 = vld [vmem:[%s2896 + $0xa4] sm:$0x1]
      %v2939 = vld [vmem:[%s2896 + $0xa8] sm:$0xf]
      %v2940 = vld [vmem:[%s2896 + $0xac] sm:$0xf]
      %v2941 = vld [vmem:[%s2896 + $0xb0] sm:$0x1]
      %v2942 = vld [vmem:[%s2896 + $0xb4] sm:$0xf]
      %v2943 = vld [vmem:[%s2896 + $0xb8] sm:$0xf]
      %v2944 = vld [vmem:[%s2896 + $0xbc] sm:$0x1]
      %v2977 = vunpack.c.l.b16 %v2897
      %v2978 = vunpack.c.l.b16 %v2898
      %v2979 = vunpack.c.l.b16 %v2900
      %v2980 = vunpack.c.l.b16 %v2901
      %v2981 = vunpack.c.l.b16 %v2903
      %v2982 = vunpack.c.l.b16 %v2904
      %v2983 = vunpack.c.l.b16 %v2906
      %v2984 = vunpack.c.l.b16 %v2907
      %v2985 = vunpack.c.l.b16 %v2909
      %v2986 = vunpack.c.l.b16 %v2910
      %v2987 = vunpack.c.l.b16 %v2912
      %v2988 = vunpack.c.l.b16 %v2913
      %v2989 = vunpack.c.l.b16 %v2915
      %v2990 = vunpack.c.l.b16 %v2916
      %v2991 = vunpack.c.l.b16 %v2918
      %v2992 = vunpack.c.l.b16 %v2919
      %v2993 = vunpack.c.l.b16 %v2921
      %v2994 = vunpack.c.l.b16 %v2922
      %v2995 = vunpack.c.l.b16 %v2924
      %v2996 = vunpack.c.l.b16 %v2925
      %v2997 = vunpack.c.l.b16 %v2927
      %v2998 = vunpack.c.l.b16 %v2928
      %v2999 = vunpack.c.l.b16 %v2930
      %v3000 = vunpack.c.l.b16 %v2931
      %v3001 = vunpack.c.l.b16 %v2933
      %v3002 = vunpack.c.l.b16 %v2934
      %v3003 = vunpack.c.l.b16 %v2936
      %v3004 = vunpack.c.l.b16 %v2937
      %v3005 = vunpack.c.l.b16 %v2939
      %v3006 = vunpack.c.l.b16 %v2940
      %v3007 = vunpack.c.l.b16 %v2942
      %v3008 = vunpack.c.l.b16 %v2943
      %v3009 = vpack.c.b16 %v2978, %v2977
      %v3010 = vpack.c.b16 %v2980, %v2979
      %v3011 = vpack.c.b16 %v2982, %v2981
      %v3012 = vpack.c.b16 %v2984, %v2983
      %v3013 = vpack.c.b16 %v2986, %v2985
      %v3014 = vpack.c.b16 %v2988, %v2987
      %v3015 = vpack.c.b16 %v2990, %v2989
      %v3016 = vpack.c.b16 %v2992, %v2991
      %v3017 = vpack.c.b16 %v2994, %v2993
      %v3018 = vpack.c.b16 %v2996, %v2995
      %v3019 = vpack.c.b16 %v2998, %v2997
      %v3020 = vpack.c.b16 %v3000, %v2999
      %v3021 = vpack.c.b16 %v3002, %v3001
      %v3022 = vpack.c.b16 %v3004, %v3003
      %v3023 = vpack.c.b16 %v3006, %v3005
      %v3024 = vpack.c.b16 %v3008, %v3007
      %v3057 = vunpack.c.l.b16 %v2899
      %v3058 = vunpack.c.l.b16 %v2902
      %v3059 = vunpack.c.l.b16 %v2905
      %v3060 = vunpack.c.l.b16 %v2908
      %v3061 = vunpack.c.l.b16 %v2911
      %v3062 = vunpack.c.l.b16 %v2914
      %v3063 = vunpack.c.l.b16 %v2917
      %v3064 = vunpack.c.l.b16 %v2920
      %v3065 = vunpack.c.l.b16 %v2923
      %v3066 = vunpack.c.l.b16 %v2926
      %v3067 = vunpack.c.l.b16 %v2929
      %v3068 = vunpack.c.l.b16 %v2932
      %v3069 = vunpack.c.l.b16 %v2935
      %v3070 = vunpack.c.l.b16 %v2938
      %v3071 = vunpack.c.l.b16 %v2941
      %v3072 = vunpack.c.l.b16 %v2944
      %v3073 = vpack.c.b16 %v3057, %v3057
      %v3074 = vpack.c.b16 %v3058, %v3058
      %v3075 = vpack.c.b16 %v3059, %v3059
      %v3076 = vpack.c.b16 %v3060, %v3060
      %v3077 = vpack.c.b16 %v3061, %v3061
      %v3078 = vpack.c.b16 %v3062, %v3062
      %v3079 = vpack.c.b16 %v3063, %v3063
      %v3080 = vpack.c.b16 %v3064, %v3064
      %v3081 = vpack.c.b16 %v3065, %v3065
      %v3082 = vpack.c.b16 %v3066, %v3066
      %v3083 = vpack.c.b16 %v3067, %v3067
      %v3084 = vpack.c.b16 %v3068, %v3068
      %v3085 = vpack.c.b16 %v3069, %v3069
      %v3086 = vpack.c.b16 %v3070, %v3070
      %v3087 = vpack.c.b16 %v3071, %v3071
      %v3088 = vpack.c.b16 %v3072, %v3072
      %v3090 = vshrl.u32 %v3009, 16
      %v3092 = vshll.u32 %v3009, 16
      %v3094 = vrot.slane %v3092, 1
      %v3095 = vor.u32 %v3090, %v3094
      %v3097 = vshll.u32 %v3073, 16
      %v3099 = vrot.slane %v3097, 1
      %v3100 = vsel %vm1001, %v3095, %v3099
      %v3102 = vshrl.u32 %v3010, 16
      %v3104 = vshll.u32 %v3010, 16
      %v3106 = vrot.slane %v3104, 1
      %v3107 = vor.u32 %v3102, %v3106
      %v3109 = vshll.u32 %v3074, 16
      %v3111 = vrot.slane %v3109, 1
      %v3112 = vsel %vm1001, %v3107, %v3111
      %v3114 = vshrl.u32 %v3011, 16
      %v3116 = vshll.u32 %v3011, 16
      %v3118 = vrot.slane %v3116, 1
      %v3119 = vor.u32 %v3114, %v3118
      %v3121 = vshll.u32 %v3075, 16
      %v3123 = vrot.slane %v3121, 1
      %v3124 = vsel %vm1001, %v3119, %v3123
      %v3126 = vshrl.u32 %v3012, 16
      %v3128 = vshll.u32 %v3012, 16
      %v3130 = vrot.slane %v3128, 1
      %v3131 = vor.u32 %v3126, %v3130
      %v3133 = vshll.u32 %v3076, 16
      %v3135 = vrot.slane %v3133, 1
      %v3136 = vsel %vm1001, %v3131, %v3135
      %v3138 = vshrl.u32 %v3013, 16
      %v3140 = vshll.u32 %v3013, 16
      %v3142 = vrot.slane %v3140, 1
      %v3143 = vor.u32 %v3138, %v3142
      %v3145 = vshll.u32 %v3077, 16
      %v3147 = vrot.slane %v3145, 1
      %v3148 = vsel %vm1001, %v3143, %v3147
      %v3150 = vshrl.u32 %v3014, 16
      %v3152 = vshll.u32 %v3014, 16
      %v3154 = vrot.slane %v3152, 1
      %v3155 = vor.u32 %v3150, %v3154
      %v3157 = vshll.u32 %v3078, 16
      %v3159 = vrot.slane %v3157, 1
      %v3160 = vsel %vm1001, %v3155, %v3159
      %v3162 = vshrl.u32 %v3015, 16
      %v3164 = vshll.u32 %v3015, 16
      %v3166 = vrot.slane %v3164, 1
      %v3167 = vor.u32 %v3162, %v3166
      %v3169 = vshll.u32 %v3079, 16
      %v3171 = vrot.slane %v3169, 1
      %v3172 = vsel %vm1001, %v3167, %v3171
      %v3174 = vshrl.u32 %v3016, 16
      %v3176 = vshll.u32 %v3016, 16
      %v3178 = vrot.slane %v3176, 1
      %v3179 = vor.u32 %v3174, %v3178
      %v3181 = vshll.u32 %v3080, 16
      %v3183 = vrot.slane %v3181, 1
      %v3184 = vsel %vm1001, %v3179, %v3183
      %v3186 = vshrl.u32 %v3017, 16
      %v3188 = vshll.u32 %v3017, 16
      %v3190 = vrot.slane %v3188, 1
      %v3191 = vor.u32 %v3186, %v3190
      %v3193 = vshll.u32 %v3081, 16
      %v3195 = vrot.slane %v3193, 1
      %v3196 = vsel %vm1001, %v3191, %v3195
      %v3198 = vshrl.u32 %v3018, 16
      %v3200 = vshll.u32 %v3018, 16
      %v3202 = vrot.slane %v3200, 1
      %v3203 = vor.u32 %v3198, %v3202
      %v3205 = vshll.u32 %v3082, 16
      %v3207 = vrot.slane %v3205, 1
      %v3208 = vsel %vm1001, %v3203, %v3207
      %v3210 = vshrl.u32 %v3019, 16
      %v3212 = vshll.u32 %v3019, 16
      %v3214 = vrot.slane %v3212, 1
      %v3215 = vor.u32 %v3210, %v3214
      %v3217 = vshll.u32 %v3083, 16
      %v3219 = vrot.slane %v3217, 1
      %v3220 = vsel %vm1001, %v3215, %v3219
      %v3222 = vshrl.u32 %v3020, 16
      %v3224 = vshll.u32 %v3020, 16
      %v3226 = vrot.slane %v3224, 1
      %v3227 = vor.u32 %v3222, %v3226
      %v3229 = vshll.u32 %v3084, 16
      %v3231 = vrot.slane %v3229, 1
      %v3232 = vsel %vm1001, %v3227, %v3231
      %v3234 = vshrl.u32 %v3021, 16
      %v3236 = vshll.u32 %v3021, 16
      %v3238 = vrot.slane %v3236, 1
      %v3239 = vor.u32 %v3234, %v3238
      %v3241 = vshll.u32 %v3085, 16
      %v3243 = vrot.slane %v3241, 1
      %v3244 = vsel %vm1001, %v3239, %v3243
      %v3246 = vshrl.u32 %v3022, 16
      %v3248 = vshll.u32 %v3022, 16
      %v3250 = vrot.slane %v3248, 1
      %v3251 = vor.u32 %v3246, %v3250
      %v3253 = vshll.u32 %v3086, 16
      %v3255 = vrot.slane %v3253, 1
      %v3256 = vsel %vm1001, %v3251, %v3255
      %v3258 = vshrl.u32 %v3023, 16
      %v3260 = vshll.u32 %v3023, 16
      %v3262 = vrot.slane %v3260, 1
      %v3263 = vor.u32 %v3258, %v3262
      %v3265 = vshll.u32 %v3087, 16
      %v3267 = vrot.slane %v3265, 1
      %v3268 = vsel %vm1001, %v3263, %v3267
      %v3270 = vshrl.u32 %v3024, 16
      %v3272 = vshll.u32 %v3024, 16
      %v3274 = vrot.slane %v3272, 1
      %v3275 = vor.u32 %v3270, %v3274
      %v3277 = vshll.u32 %v3088, 16
      %v3279 = vrot.slane %v3277, 1
      %v3280 = vsel %vm1001, %v3275, %v3279
      %v3297 = vrot.slane %v3009, 1
      %v3298 = vrot.slane %v3073, 1
      %v3299 = vsel %vm1210, %v3297, %v3298
      %v3300 = vrot.slane %v3010, 1
      %v3301 = vrot.slane %v3074, 1
      %v3302 = vsel %vm1210, %v3300, %v3301
      %v3303 = vrot.slane %v3011, 1
      %v3304 = vrot.slane %v3075, 1
      %v3305 = vsel %vm1210, %v3303, %v3304
      %v3306 = vrot.slane %v3012, 1
      %v3307 = vrot.slane %v3076, 1
      %v3308 = vsel %vm1210, %v3306, %v3307
      %v3309 = vrot.slane %v3013, 1
      %v3310 = vrot.slane %v3077, 1
      %v3311 = vsel %vm1210, %v3309, %v3310
      %v3312 = vrot.slane %v3014, 1
      %v3313 = vrot.slane %v3078, 1
      %v3314 = vsel %vm1210, %v3312, %v3313
      %v3315 = vrot.slane %v3015, 1
      %v3316 = vrot.slane %v3079, 1
      %v3317 = vsel %vm1210, %v3315, %v3316
      %v3318 = vrot.slane %v3016, 1
      %v3319 = vrot.slane %v3080, 1
      %v3320 = vsel %vm1210, %v3318, %v3319
      %v3321 = vrot.slane %v3017, 1
      %v3322 = vrot.slane %v3081, 1
      %v3323 = vsel %vm1210, %v3321, %v3322
      %v3324 = vrot.slane %v3018, 1
      %v3325 = vrot.slane %v3082, 1
      %v3326 = vsel %vm1210, %v3324, %v3325
      %v3327 = vrot.slane %v3019, 1
      %v3328 = vrot.slane %v3083, 1
      %v3329 = vsel %vm1210, %v3327, %v3328
      %v3330 = vrot.slane %v3020, 1
      %v3331 = vrot.slane %v3084, 1
      %v3332 = vsel %vm1210, %v3330, %v3331
      %v3333 = vrot.slane %v3021, 1
      %v3334 = vrot.slane %v3085, 1
      %v3335 = vsel %vm1210, %v3333, %v3334
      %v3336 = vrot.slane %v3022, 1
      %v3337 = vrot.slane %v3086, 1
      %v3338 = vsel %vm1210, %v3336, %v3337
      %v3339 = vrot.slane %v3023, 1
      %v3340 = vrot.slane %v3087, 1
      %v3341 = vsel %vm1210, %v3339, %v3340
      %v3342 = vrot.slane %v3024, 1
      %v3343 = vrot.slane %v3088, 1
      %v3344 = vsel %vm1210, %v3342, %v3343
      %s3361 = scalar_lea.vmem %s1, 384
      %v3362 = vld [vmem:[%s3361] sm:$0xf]
      %v3363 = vld [vmem:[%s3361 + $0x4] sm:$0xf]
      %v3364 = vld [vmem:[%s3361 + $0x8] sm:$0xf]
      %v3365 = vld [vmem:[%s3361 + $0xc] sm:$0xf]
      %v3366 = vld [vmem:[%s3361 + $0x10] sm:$0xf]
      %v3367 = vld [vmem:[%s3361 + $0x14] sm:$0xf]
      %v3368 = vld [vmem:[%s3361 + $0x18] sm:$0xf]
      %v3369 = vld [vmem:[%s3361 + $0x1c] sm:$0xf]
      %v3370 = vld [vmem:[%s3361 + $0x20] sm:$0xf]
      %v3371 = vld [vmem:[%s3361 + $0x24] sm:$0xf]
      %v3372 = vld [vmem:[%s3361 + $0x28] sm:$0xf]
      %v3373 = vld [vmem:[%s3361 + $0x2c] sm:$0xf]
      %v3374 = vld [vmem:[%s3361 + $0x30] sm:$0xf]
      %v3375 = vld [vmem:[%s3361 + $0x34] sm:$0xf]
      %v3376 = vld [vmem:[%s3361 + $0x38] sm:$0xf]
      %v3377 = vld [vmem:[%s3361 + $0x3c] sm:$0xf]
      %v3378 = vld [vmem:[%s3361 + $0x40] sm:$0xf]
      %v3379 = vld [vmem:[%s3361 + $0x44] sm:$0xf]
      %v3380 = vld [vmem:[%s3361 + $0x48] sm:$0xf]
      %v3381 = vld [vmem:[%s3361 + $0x4c] sm:$0xf]
      %v3382 = vld [vmem:[%s3361 + $0x50] sm:$0xf]
      %v3383 = vld [vmem:[%s3361 + $0x54] sm:$0xf]
      %v3384 = vld [vmem:[%s3361 + $0x58] sm:$0xf]
      %v3385 = vld [vmem:[%s3361 + $0x5c] sm:$0xf]
      %v3386 = vld [vmem:[%s3361 + $0x60] sm:$0xf]
      %v3387 = vld [vmem:[%s3361 + $0x64] sm:$0xf]
      %v3388 = vld [vmem:[%s3361 + $0x68] sm:$0xf]
      %v3389 = vld [vmem:[%s3361 + $0x6c] sm:$0xf]
      %v3390 = vld [vmem:[%s3361 + $0x70] sm:$0xf]
      %v3391 = vld [vmem:[%s3361 + $0x74] sm:$0xf]
      %v3392 = vld [vmem:[%s3361 + $0x78] sm:$0xf]
      %v3393 = vld [vmem:[%s3361 + $0x7c] sm:$0xf]
      %v3394 = vld [vmem:[%s3361 + $0x80] sm:$0xf]
      %v3395 = vld [vmem:[%s3361 + $0x84] sm:$0xf]
      %v3396 = vld [vmem:[%s3361 + $0x88] sm:$0xf]
      %v3397 = vld [vmem:[%s3361 + $0x8c] sm:$0xf]
      %v3398 = vld [vmem:[%s3361 + $0x90] sm:$0xf]
      %v3399 = vld [vmem:[%s3361 + $0x94] sm:$0xf]
      %v3400 = vld [vmem:[%s3361 + $0x98] sm:$0xf]
      %v3401 = vld [vmem:[%s3361 + $0x9c] sm:$0xf]
      %v3402 = vld [vmem:[%s3361 + $0xa0] sm:$0xf]
      %v3403 = vld [vmem:[%s3361 + $0xa4] sm:$0xf]
      %v3404 = vld [vmem:[%s3361 + $0xa8] sm:$0xf]
      %v3405 = vld [vmem:[%s3361 + $0xac] sm:$0xf]
      %v3406 = vld [vmem:[%s3361 + $0xb0] sm:$0xf]
      %v3407 = vld [vmem:[%s3361 + $0xb4] sm:$0xf]
      %v3408 = vld [vmem:[%s3361 + $0xb8] sm:$0xf]
      %v3409 = vld [vmem:[%s3361 + $0xbc] sm:$0xf]
      %v3458 = vunpack.c.l.b16 %v3362
      %v3459 = vunpack.c.l.b16 %v3363
      %v3460 = vunpack.c.l.b16 %v3364
      %v3461 = vunpack.c.l.b16 %v3365
      %v3462 = vunpack.c.l.b16 %v3366
      %v3463 = vunpack.c.l.b16 %v3367
      %v3464 = vunpack.c.l.b16 %v3368
      %v3465 = vunpack.c.l.b16 %v3369
      %v3466 = vunpack.c.l.b16 %v3370
      %v3467 = vunpack.c.l.b16 %v3371
      %v3468 = vunpack.c.l.b16 %v3372
      %v3469 = vunpack.c.l.b16 %v3373
      %v3470 = vunpack.c.l.b16 %v3374
      %v3471 = vunpack.c.l.b16 %v3375
      %v3472 = vunpack.c.l.b16 %v3376
      %v3473 = vunpack.c.l.b16 %v3377
      %v3474 = vunpack.c.l.b16 %v3378
      %v3475 = vunpack.c.l.b16 %v3379
      %v3476 = vunpack.c.l.b16 %v3380
      %v3477 = vunpack.c.l.b16 %v3381
      %v3478 = vunpack.c.l.b16 %v3382
      %v3479 = vunpack.c.l.b16 %v3383
      %v3480 = vunpack.c.l.b16 %v3384
      %v3481 = vunpack.c.l.b16 %v3385
      %v3482 = vunpack.c.l.b16 %v3386
      %v3483 = vunpack.c.l.b16 %v3387
      %v3484 = vunpack.c.l.b16 %v3388
      %v3485 = vunpack.c.l.b16 %v3389
      %v3486 = vunpack.c.l.b16 %v3390
      %v3487 = vunpack.c.l.b16 %v3391
      %v3488 = vunpack.c.l.b16 %v3392
      %v3489 = vunpack.c.l.b16 %v3393
      %v3490 = vunpack.c.l.b16 %v3394
      %v3491 = vunpack.c.l.b16 %v3395
      %v3492 = vunpack.c.l.b16 %v3396
      %v3493 = vunpack.c.l.b16 %v3397
      %v3494 = vunpack.c.l.b16 %v3398
      %v3495 = vunpack.c.l.b16 %v3399
      %v3496 = vunpack.c.l.b16 %v3400
      %v3497 = vunpack.c.l.b16 %v3401
      %v3498 = vunpack.c.l.b16 %v3402
      %v3499 = vunpack.c.l.b16 %v3403
      %v3500 = vunpack.c.l.b16 %v3404
      %v3501 = vunpack.c.l.b16 %v3405
      %v3502 = vunpack.c.l.b16 %v3406
      %v3503 = vunpack.c.l.b16 %v3407
      %v3504 = vunpack.c.l.b16 %v3408
      %v3505 = vunpack.c.l.b16 %v3409
      %v3506 = vpack.c.b16 %v3459, %v3458
      %v3507 = vpack.c.b16 %v3461, %v3460
      %v3508 = vpack.c.b16 %v3463, %v3462
      %v3509 = vpack.c.b16 %v3465, %v3464
      %v3510 = vpack.c.b16 %v3467, %v3466
      %v3511 = vpack.c.b16 %v3469, %v3468
      %v3512 = vpack.c.b16 %v3471, %v3470
      %v3513 = vpack.c.b16 %v3473, %v3472
      %v3514 = vpack.c.b16 %v3475, %v3474
      %v3515 = vpack.c.b16 %v3477, %v3476
      %v3516 = vpack.c.b16 %v3479, %v3478
      %v3517 = vpack.c.b16 %v3481, %v3480
      %v3518 = vpack.c.b16 %v3483, %v3482
      %v3519 = vpack.c.b16 %v3485, %v3484
      %v3520 = vpack.c.b16 %v3487, %v3486
      %v3521 = vpack.c.b16 %v3489, %v3488
      %v3522 = vpack.c.b16 %v3491, %v3490
      %v3523 = vpack.c.b16 %v3493, %v3492
      %v3524 = vpack.c.b16 %v3495, %v3494
      %v3525 = vpack.c.b16 %v3497, %v3496
      %v3526 = vpack.c.b16 %v3499, %v3498
      %v3527 = vpack.c.b16 %v3501, %v3500
      %v3528 = vpack.c.b16 %v3503, %v3502
      %v3529 = vpack.c.b16 %v3505, %v3504
      %3554 = vmatprep.subr.bf16.mxu0 0
      %3555 = vmatpush1.bf16.msra.mxu0 %v3513
      %3556 = vmatprep.subr.bf16.mxu0 0
      %3557 = vmatpush1.bf16.msra.mxu0 %v3512
      %3558 = vmatprep.subr.bf16.mxu0 0
      %3559 = vmatpush1.bf16.msra.mxu0 %v3511
      %3560 = vmatprep.subr.bf16.mxu0 0
      %3561 = vmatpush1.bf16.msra.mxu0 %v3510
      %3562 = vmatprep.subr.bf16.mxu0 0
      %3563 = vmatpush1.bf16.msra.mxu0 %v3509
      %3564 = vmatprep.subr.bf16.mxu0 0
      %3565 = vmatpush1.bf16.msra.mxu0 %v3508
      %3566 = vmatprep.subr.bf16.mxu0 0
      %3567 = vmatpush1.bf16.msra.mxu0 %v3507
      %3568 = vmatprep.subr.bf16.mxu0 0
      %3569 = vmatpush1.bf16.msra.mxu0 %v3506
      %3570 = vmatprep.subr.bf16.mxu0 0
      %3571 = vmatpush2.bf16.msra.mxu0 %v3521
      %3572 = vmatprep.subr.bf16.mxu0 0
      %3573 = vmatpush2.bf16.msra.mxu0 %v3520
      %3574 = vmatprep.subr.bf16.mxu0 0
      %3575 = vmatpush2.bf16.msra.mxu0 %v3519
      %3576 = vmatprep.subr.bf16.mxu0 0
      %3577 = vmatpush2.bf16.msra.mxu0 %v3518
      %3578 = vmatprep.subr.bf16.mxu0 0
      %3579 = vmatpush2.bf16.msra.mxu0 %v3517
      %3580 = vmatprep.subr.bf16.mxu0 0
      %3581 = vmatpush2.bf16.msra.mxu0 %v3516
      %3582 = vmatprep.subr.bf16.mxu0 0
      %3583 = vmatpush2.bf16.msra.mxu0 %v3515
      %3584 = vmatprep.subr.bf16.mxu0 0
      %3585 = vmatpush2.bf16.msra.mxu0 %v3514
      %3586 = vmatprep.mubr.bf16.mxu0 %v3100
      %3587 = vmatmul.mubr.bf16.gmra.mxu0 %v3009
      %v3588 = vpop.f32.mrf.mxu0
      %v3589 = vadd.f32 0.0, %v3588
      %v3590 = vpop.f32.mrf.mxu0
      %v3591 = vpop.f32.mrf.mxu0
      %v3592 = vadd.f32 0.0, %v3591
      %v3593 = vpop.f32.mrf.mxu0
      %3594 = vmatprep.mubr.bf16.mxu0 %v3112
      %3595 = vmatmul.mubr.bf16.gmra.mxu0 %v3010
      %v3596 = vpop.f32.mrf.mxu0
      %v3597 = vadd.f32 0.0, %v3596
      %v3598 = vpop.f32.mrf.mxu0
      %v3599 = vpop.f32.mrf.mxu0
      %v3600 = vadd.f32 0.0, %v3599
      %v3601 = vpop.f32.mrf.mxu0
      %3602 = vmatprep.mubr.bf16.mxu0 %v3124
      %3603 = vmatmul.mubr.bf16.gmra.mxu0 %v3011
      %v3604 = vpop.f32.mrf.mxu0
      %v3605 = vadd.f32 0.0, %v3604
      %v3606 = vpop.f32.mrf.mxu0
      %v3607 = vpop.f32.mrf.mxu0
      %v3608 = vadd.f32 0.0, %v3607
      %v3609 = vpop.f32.mrf.mxu0
      %3610 = vmatprep.mubr.bf16.mxu0 %v3136
      %3611 = vmatmul.mubr.bf16.gmra.mxu0 %v3012
      %v3612 = vpop.f32.mrf.mxu0
      %v3613 = vadd.f32 0.0, %v3612
      %v3614 = vpop.f32.mrf.mxu0
      %v3615 = vpop.f32.mrf.mxu0
      %v3616 = vadd.f32 0.0, %v3615
      %v3617 = vpop.f32.mrf.mxu0
      %3618 = vmatprep.mubr.bf16.mxu0 %v3148
      %3619 = vmatmul.mubr.bf16.gmra.mxu0 %v3013
      %v3620 = vpop.f32.mrf.mxu0
      %v3621 = vadd.f32 0.0, %v3620
      %v3622 = vpop.f32.mrf.mxu0
      %v3623 = vpop.f32.mrf.mxu0
      %v3624 = vadd.f32 0.0, %v3623
      %v3625 = vpop.f32.mrf.mxu0
      %3626 = vmatprep.mubr.bf16.mxu0 %v3160
      %3627 = vmatmul.mubr.bf16.gmra.mxu0 %v3014
      %v3628 = vpop.f32.mrf.mxu0
      %v3629 = vadd.f32 0.0, %v3628
      %v3630 = vpop.f32.mrf.mxu0
      %v3631 = vpop.f32.mrf.mxu0
      %v3632 = vadd.f32 0.0, %v3631
      %v3633 = vpop.f32.mrf.mxu0
      %3634 = vmatprep.mubr.bf16.mxu0 %v3172
      %3635 = vmatmul.mubr.bf16.gmra.mxu0 %v3015
      %v3636 = vpop.f32.mrf.mxu0
      %v3637 = vadd.f32 0.0, %v3636
      %v3638 = vpop.f32.mrf.mxu0
      %v3639 = vpop.f32.mrf.mxu0
      %v3640 = vadd.f32 0.0, %v3639
      %v3641 = vpop.f32.mrf.mxu0
      %3642 = vmatprep.mubr.bf16.mxu0 %v3184
      %3643 = vmatmul.mubr.bf16.gmra.mxu0 %v3016
      %v3644 = vpop.f32.mrf.mxu0
      %v3645 = vadd.f32 0.0, %v3644
      %v3646 = vpop.f32.mrf.mxu0
      %v3647 = vpop.f32.mrf.mxu0
      %v3648 = vadd.f32 0.0, %v3647
      %v3649 = vpop.f32.mrf.mxu0
      %3650 = vmatprep.mubr.bf16.mxu0 %v3196
      %3651 = vmatmul.mubr.bf16.gmra.mxu0 %v3017
      %v3652 = vpop.f32.mrf.mxu0
      %v3653 = vadd.f32 0.0, %v3652
      %v3654 = vpop.f32.mrf.mxu0
      %v3655 = vpop.f32.mrf.mxu0
      %v3656 = vadd.f32 0.0, %v3655
      %v3657 = vpop.f32.mrf.mxu0
      %3658 = vmatprep.mubr.bf16.mxu0 %v3208
      %3659 = vmatmul.mubr.bf16.gmra.mxu0 %v3018
      %v3660 = vpop.f32.mrf.mxu0
      %v3661 = vadd.f32 0.0, %v3660
      %v3662 = vpop.f32.mrf.mxu0
      %v3663 = vpop.f32.mrf.mxu0
      %v3664 = vadd.f32 0.0, %v3663
      %v3665 = vpop.f32.mrf.mxu0
      %3666 = vmatprep.mubr.bf16.mxu0 %v3220
      %3667 = vmatmul.mubr.bf16.gmra.mxu0 %v3019
      %v3668 = vpop.f32.mrf.mxu0
      %v3669 = vadd.f32 0.0, %v3668
      %v3670 = vpop.f32.mrf.mxu0
      %v3671 = vpop.f32.mrf.mxu0
      %v3672 = vadd.f32 0.0, %v3671
      %v3673 = vpop.f32.mrf.mxu0
      %3674 = vmatprep.mubr.bf16.mxu0 %v3232
      %3675 = vmatmul.mubr.bf16.gmra.mxu0 %v3020
      %v3676 = vpop.f32.mrf.mxu0
      %v3677 = vadd.f32 0.0, %v3676
      %v3678 = vpop.f32.mrf.mxu0
      %v3679 = vpop.f32.mrf.mxu0
      %v3680 = vadd.f32 0.0, %v3679
      %v3681 = vpop.f32.mrf.mxu0
      %3682 = vmatprep.mubr.bf16.mxu0 %v3244
      %3683 = vmatmul.mubr.bf16.gmra.mxu0 %v3021
      %v3684 = vpop.f32.mrf.mxu0
      %v3685 = vadd.f32 0.0, %v3684
      %v3686 = vpop.f32.mrf.mxu0
      %v3687 = vpop.f32.mrf.mxu0
      %v3688 = vadd.f32 0.0, %v3687
      %v3689 = vpop.f32.mrf.mxu0
      %3690 = vmatprep.mubr.bf16.mxu0 %v3256
      %3691 = vmatmul.mubr.bf16.gmra.mxu0 %v3022
      %v3692 = vpop.f32.mrf.mxu0
      %v3693 = vadd.f32 0.0, %v3692
      %v3694 = vpop.f32.mrf.mxu0
      %v3695 = vpop.f32.mrf.mxu0
      %v3696 = vadd.f32 0.0, %v3695
      %v3697 = vpop.f32.mrf.mxu0
      %3698 = vmatprep.mubr.bf16.mxu0 %v3268
      %3699 = vmatmul.mubr.bf16.gmra.mxu0 %v3023
      %v3700 = vpop.f32.mrf.mxu0
      %v3701 = vadd.f32 0.0, %v3700
      %v3702 = vpop.f32.mrf.mxu0
      %v3703 = vpop.f32.mrf.mxu0
      %v3704 = vadd.f32 0.0, %v3703
      %v3705 = vpop.f32.mrf.mxu0
      %3706 = vmatprep.mubr.bf16.mxu0 %v3280
      %3707 = vmatmul.mubr.bf16.gmra.mxu0 %v3024
      %v3708 = vpop.f32.mrf.mxu0
      %v3709 = vadd.f32 0.0, %v3708
      %v3710 = vpop.f32.mrf.mxu0
      %v3711 = vpop.f32.mrf.mxu0
      %v3712 = vadd.f32 0.0, %v3711
      %v3713 = vpop.f32.mrf.mxu0
      %3714 = vdwg.mxu0
      %3715 = vmatprep.subr.bf16.mxu0 0
      %3716 = vmatpush1.bf16.msra.mxu0 %v3529
      %3717 = vmatprep.subr.bf16.mxu0 0
      %3718 = vmatpush1.bf16.msra.mxu0 %v3528
      %3719 = vmatprep.subr.bf16.mxu0 0
      %3720 = vmatpush1.bf16.msra.mxu0 %v3527
      %3721 = vmatprep.subr.bf16.mxu0 0
      %3722 = vmatpush1.bf16.msra.mxu0 %v3526
      %3723 = vmatprep.subr.bf16.mxu0 0
      %3724 = vmatpush1.bf16.msra.mxu0 %v3525
      %3725 = vmatprep.subr.bf16.mxu0 0
      %3726 = vmatpush1.bf16.msra.mxu0 %v3524
      %3727 = vmatprep.subr.bf16.mxu0 0
      %3728 = vmatpush1.bf16.msra.mxu0 %v3523
      %3729 = vmatprep.subr.bf16.mxu0 0
      %3730 = vmatpush1.bf16.msra.mxu0 %v3522
      %3731 = vmatprep.subr.bf16.mxu0 0
      %3732 = vmatpush2.bf16.msra.mxu0 0
      %3733 = vmatprep.subr.bf16.mxu0 0
      %3734 = vmatpush2.bf16.msra.mxu0 0
      %3735 = vmatprep.subr.bf16.mxu0 0
      %3736 = vmatpush2.bf16.msra.mxu0 0
      %3737 = vmatprep.subr.bf16.mxu0 0
      %3738 = vmatpush2.bf16.msra.mxu0 0
      %3739 = vmatprep.subr.bf16.mxu0 0
      %3740 = vmatpush2.bf16.msra.mxu0 0
      %3741 = vmatprep.subr.bf16.mxu0 0
      %3742 = vmatpush2.bf16.msra.mxu0 0
      %3743 = vmatprep.subr.bf16.mxu0 0
      %3744 = vmatpush2.bf16.msra.mxu0 0
      %3745 = vmatprep.subr.bf16.mxu0 0
      %3746 = vmatpush2.bf16.msra.mxu0 0
      %3747 = vmatprep.mubr.bf16.mxu0 0
      %3748 = vmatmul.mubr.bf16.gmra.mxu0 %v3299
      %v3749 = vpop.f32.mrf.mxu0
      %v3750 = vadd.f32 %v3589, %v3749
      %v3751 = vpop.f32.mrf.mxu0
      %v3752 = vpop.f32.mrf.mxu0
      %v3753 = vadd.f32 %v3592, %v3752
      %v3754 = vpop.f32.mrf.mxu0
      %3755 = vmatprep.mubr.bf16.mxu0 0
      %3756 = vmatmul.mubr.bf16.gmra.mxu0 %v3302
      %v3757 = vpop.f32.mrf.mxu0
      %v3758 = vadd.f32 %v3597, %v3757
      %v3759 = vpop.f32.mrf.mxu0
      %v3760 = vpop.f32.mrf.mxu0
      %v3761 = vadd.f32 %v3600, %v3760
      %v3762 = vpop.f32.mrf.mxu0
      %3763 = vmatprep.mubr.bf16.mxu0 0
      %3764 = vmatmul.mubr.bf16.gmra.mxu0 %v3305
      %v3765 = vpop.f32.mrf.mxu0
      %v3766 = vadd.f32 %v3605, %v3765
      %v3767 = vpop.f32.mrf.mxu0
      %v3768 = vpop.f32.mrf.mxu0
      %v3769 = vadd.f32 %v3608, %v3768
      %v3770 = vpop.f32.mrf.mxu0
      %3771 = vmatprep.mubr.bf16.mxu0 0
      %3772 = vmatmul.mubr.bf16.gmra.mxu0 %v3308
      %v3773 = vpop.f32.mrf.mxu0
      %v3774 = vadd.f32 %v3613, %v3773
      %v3775 = vpop.f32.mrf.mxu0
      %v3776 = vpop.f32.mrf.mxu0
      %v3777 = vadd.f32 %v3616, %v3776
      %v3778 = vpop.f32.mrf.mxu0
      %3779 = vmatprep.mubr.bf16.mxu0 0
      %3780 = vmatmul.mubr.bf16.gmra.mxu0 %v3311
      %v3781 = vpop.f32.mrf.mxu0
      %v3782 = vadd.f32 %v3621, %v3781
      %v3783 = vpop.f32.mrf.mxu0
      %v3784 = vpop.f32.mrf.mxu0
      %v3785 = vadd.f32 %v3624, %v3784
      %v3786 = vpop.f32.mrf.mxu0
      %3787 = vmatprep.mubr.bf16.mxu0 0
      %3788 = vmatmul.mubr.bf16.gmra.mxu0 %v3314
      %v3789 = vpop.f32.mrf.mxu0
      %v3790 = vadd.f32 %v3629, %v3789
      %v3791 = vpop.f32.mrf.mxu0
      %v3792 = vpop.f32.mrf.mxu0
      %v3793 = vadd.f32 %v3632, %v3792
      %v3794 = vpop.f32.mrf.mxu0
      %3795 = vmatprep.mubr.bf16.mxu0 0
      %3796 = vmatmul.mubr.bf16.gmra.mxu0 %v3317
      %v3797 = vpop.f32.mrf.mxu0
      %v3798 = vadd.f32 %v3637, %v3797
      %v3799 = vpop.f32.mrf.mxu0
      %v3800 = vpop.f32.mrf.mxu0
      %v3801 = vadd.f32 %v3640, %v3800
      %v3802 = vpop.f32.mrf.mxu0
      %3803 = vmatprep.mubr.bf16.mxu0 0
      %3804 = vmatmul.mubr.bf16.gmra.mxu0 %v3320
      %v3805 = vpop.f32.mrf.mxu0
      %v3806 = vadd.f32 %v3645, %v3805
      %v3807 = vpop.f32.mrf.mxu0
      %v3808 = vpop.f32.mrf.mxu0
      %v3809 = vadd.f32 %v3648, %v3808
      %v3810 = vpop.f32.mrf.mxu0
      %3811 = vmatprep.mubr.bf16.mxu0 0
      %3812 = vmatmul.mubr.bf16.gmra.mxu0 %v3323
      %v3813 = vpop.f32.mrf.mxu0
      %v3814 = vadd.f32 %v3653, %v3813
      %v3815 = vpop.f32.mrf.mxu0
      %v3816 = vpop.f32.mrf.mxu0
      %v3817 = vadd.f32 %v3656, %v3816
      %v3818 = vpop.f32.mrf.mxu0
      %3819 = vmatprep.mubr.bf16.mxu0 0
      %3820 = vmatmul.mubr.bf16.gmra.mxu0 %v3326
      %v3821 = vpop.f32.mrf.mxu0
      %v3822 = vadd.f32 %v3661, %v3821
      %v3823 = vpop.f32.mrf.mxu0
      %v3824 = vpop.f32.mrf.mxu0
      %v3825 = vadd.f32 %v3664, %v3824
      %v3826 = vpop.f32.mrf.mxu0
      %3827 = vmatprep.mubr.bf16.mxu0 0
      %3828 = vmatmul.mubr.bf16.gmra.mxu0 %v3329
      %v3829 = vpop.f32.mrf.mxu0
      %v3830 = vadd.f32 %v3669, %v3829
      %v3831 = vpop.f32.mrf.mxu0
      %v3832 = vpop.f32.mrf.mxu0
      %v3833 = vadd.f32 %v3672, %v3832
      %v3834 = vpop.f32.mrf.mxu0
      %3835 = vmatprep.mubr.bf16.mxu0 0
      %3836 = vmatmul.mubr.bf16.gmra.mxu0 %v3332
      %v3837 = vpop.f32.mrf.mxu0
      %v3838 = vadd.f32 %v3677, %v3837
      %v3839 = vpop.f32.mrf.mxu0
      %v3840 = vpop.f32.mrf.mxu0
      %v3841 = vadd.f32 %v3680, %v3840
      %v3842 = vpop.f32.mrf.mxu0
      %3843 = vmatprep.mubr.bf16.mxu0 0
      %3844 = vmatmul.mubr.bf16.gmra.mxu0 %v3335
      %v3845 = vpop.f32.mrf.mxu0
      %v3846 = vadd.f32 %v3685, %v3845
      %v3847 = vpop.f32.mrf.mxu0
      %v3848 = vpop.f32.mrf.mxu0
      %v3849 = vadd.f32 %v3688, %v3848
      %v3850 = vpop.f32.mrf.mxu0
      %3851 = vmatprep.mubr.bf16.mxu0 0
      %3852 = vmatmul.mubr.bf16.gmra.mxu0 %v3338
      %v3853 = vpop.f32.mrf.mxu0
      %v3854 = vadd.f32 %v3693, %v3853
      %v3855 = vpop.f32.mrf.mxu0
      %v3856 = vpop.f32.mrf.mxu0
      %v3857 = vadd.f32 %v3696, %v3856
      %v3858 = vpop.f32.mrf.mxu0
      %3859 = vmatprep.mubr.bf16.mxu0 0
      %3860 = vmatmul.mubr.bf16.gmra.mxu0 %v3341
      %v3861 = vpop.f32.mrf.mxu0
      %v3862 = vadd.f32 %v3701, %v3861
      %v3863 = vpop.f32.mrf.mxu0
      %v3864 = vpop.f32.mrf.mxu0
      %v3865 = vadd.f32 %v3704, %v3864
      %v3866 = vpop.f32.mrf.mxu0
      %3867 = vmatprep.mubr.bf16.mxu0 0
      %3868 = vmatmul.mubr.bf16.gmra.mxu0 %v3344
      %v3869 = vpop.f32.mrf.mxu0
      %v3870 = vadd.f32 %v3709, %v3869
      %v3871 = vpop.f32.mrf.mxu0
      %v3872 = vpop.f32.mrf.mxu0
      %v3873 = vadd.f32 %v3712, %v3872
      %v3874 = vpop.f32.mrf.mxu0
      %3875 = vdwg.mxu0
      %v3876 = vld [vmem:[#allocation4] sm:$0xff]
      %v3877 = vld [vmem:[#allocation4 + $0x8] sm:$0xff]
      %v3878 = vld [vmem:[#allocation4 + $0x10] sm:$0xff]
      %v3879 = vld [vmem:[#allocation4 + $0x18] sm:$0xff]
      %v3880 = vld [vmem:[#allocation4 + $0x20] sm:$0xff]
      %v3881 = vld [vmem:[#allocation4 + $0x28] sm:$0xff]
      %v3882 = vld [vmem:[#allocation4 + $0x30] sm:$0xff]
      %v3883 = vld [vmem:[#allocation4 + $0x38] sm:$0xff]
      %v3884 = vld [vmem:[#allocation4 + $0x40] sm:$0xff]
      %v3885 = vld [vmem:[#allocation4 + $0x48] sm:$0xff]
      %v3886 = vld [vmem:[#allocation4 + $0x50] sm:$0xff]
      %v3887 = vld [vmem:[#allocation4 + $0x58] sm:$0xff]
      %v3888 = vld [vmem:[#allocation4 + $0x60] sm:$0xff]
      %v3889 = vld [vmem:[#allocation4 + $0x68] sm:$0xff]
      %v3890 = vld [vmem:[#allocation4 + $0x70] sm:$0xff]
      %v3891 = vld [vmem:[#allocation4 + $0x78] sm:$0xff]
      %v3892 = vld [vmem:[#allocation4 + $0x80] sm:$0xff]
      %v3893 = vld [vmem:[#allocation4 + $0x88] sm:$0xff]
      %v3894 = vld [vmem:[#allocation4 + $0x90] sm:$0xff]
      %v3895 = vld [vmem:[#allocation4 + $0x98] sm:$0xff]
      %v3896 = vld [vmem:[#allocation4 + $0xa0] sm:$0xff]
      %v3897 = vld [vmem:[#allocation4 + $0xa8] sm:$0xff]
      %v3898 = vld [vmem:[#allocation4 + $0xb0] sm:$0xff]
      %v3899 = vld [vmem:[#allocation4 + $0xb8] sm:$0xff]
      %v3900 = vld [vmem:[#allocation4 + $0xc0] sm:$0xff]
      %v3901 = vld [vmem:[#allocation4 + $0xc8] sm:$0xff]
      %v3902 = vld [vmem:[#allocation4 + $0xd0] sm:$0xff]
      %v3903 = vld [vmem:[#allocation4 + $0xd8] sm:$0xff]
      %v3904 = vld [vmem:[#allocation4 + $0xe0] sm:$0xff]
      %v3905 = vld [vmem:[#allocation4 + $0xe8] sm:$0xff]
      %v3906 = vld [vmem:[#allocation4 + $0xf0] sm:$0xff]
      %v3907 = vld [vmem:[#allocation4 + $0xf8] sm:$0xff]
      %v3908 = vadd.f32 %v3876, %v3750
      %v3909 = vadd.f32 %v3877, %v3753
      %v3910 = vadd.f32 %v3878, %v3758
      %v3911 = vadd.f32 %v3879, %v3761
      %v3912 = vadd.f32 %v3880, %v3766
      %v3913 = vadd.f32 %v3881, %v3769
      %v3914 = vadd.f32 %v3882, %v3774
      %v3915 = vadd.f32 %v3883, %v3777
      %v3916 = vadd.f32 %v3884, %v3782
      %v3917 = vadd.f32 %v3885, %v3785
      %v3918 = vadd.f32 %v3886, %v3790
      %v3919 = vadd.f32 %v3887, %v3793
      %v3920 = vadd.f32 %v3888, %v3798
      %v3921 = vadd.f32 %v3889, %v3801
      %v3922 = vadd.f32 %v3890, %v3806
      %v3923 = vadd.f32 %v3891, %v3809
      %v3924 = vadd.f32 %v3892, %v3814
      %v3925 = vadd.f32 %v3893, %v3817
      %v3926 = vadd.f32 %v3894, %v3822
      %v3927 = vadd.f32 %v3895, %v3825
      %v3928 = vadd.f32 %v3896, %v3830
      %v3929 = vadd.f32 %v3897, %v3833
      %v3930 = vadd.f32 %v3898, %v3838
      %v3931 = vadd.f32 %v3899, %v3841
      %v3932 = vadd.f32 %v3900, %v3846
      %v3933 = vadd.f32 %v3901, %v3849
      %v3934 = vadd.f32 %v3902, %v3854
      %v3935 = vadd.f32 %v3903, %v3857
      %v3936 = vadd.f32 %v3904, %v3862
      %v3937 = vadd.f32 %v3905, %v3865
      %v3938 = vadd.f32 %v3906, %v3870
      %v3939 = vadd.f32 %v3907, %v3873
      %3940 = vst [vmem:[#allocation4] sm:$0xff] %v3908
      %3941 = vst [vmem:[#allocation4 + $0x8] sm:$0xff] %v3909
      %3942 = vst [vmem:[#allocation4 + $0x10] sm:$0xff] %v3910
      %3943 = vst [vmem:[#allocation4 + $0x18] sm:$0xff] %v3911
      %3944 = vst [vmem:[#allocation4 + $0x20] sm:$0xff] %v3912
      %3945 = vst [vmem:[#allocation4 + $0x28] sm:$0xff] %v3913
      %3946 = vst [vmem:[#allocation4 + $0x30] sm:$0xff] %v3914
      %3947 = vst [vmem:[#allocation4 + $0x38] sm:$0xff] %v3915
      %3948 = vst [vmem:[#allocation4 + $0x40] sm:$0xff] %v3916
      %3949 = vst [vmem:[#allocation4 + $0x48] sm:$0xff] %v3917
      %3950 = vst [vmem:[#allocation4 + $0x50] sm:$0xff] %v3918
      %3951 = vst [vmem:[#allocation4 + $0x58] sm:$0xff] %v3919
      %3952 = vst [vmem:[#allocation4 + $0x60] sm:$0xff] %v3920
      %3953 = vst [vmem:[#allocation4 + $0x68] sm:$0xff] %v3921
      %3954 = vst [vmem:[#allocation4 + $0x70] sm:$0xff] %v3922
      %3955 = vst [vmem:[#allocation4 + $0x78] sm:$0xff] %v3923
      %3956 = vst [vmem:[#allocation4 + $0x80] sm:$0xff] %v3924
      %3957 = vst [vmem:[#allocation4 + $0x88] sm:$0xff] %v3925
      %3958 = vst [vmem:[#allocation4 + $0x90] sm:$0xff] %v3926
      %3959 = vst [vmem:[#allocation4 + $0x98] sm:$0xff] %v3927
      %3960 = vst [vmem:[#allocation4 + $0xa0] sm:$0xff] %v3928
      %3961 = vst [vmem:[#allocation4 + $0xa8] sm:$0xff] %v3929
      %3962 = vst [vmem:[#allocation4 + $0xb0] sm:$0xff] %v3930
      %3963 = vst [vmem:[#allocation4 + $0xb8] sm:$0xff] %v3931
      %3964 = vst [vmem:[#allocation4 + $0xc0] sm:$0xff] %v3932
      %3965 = vst [vmem:[#allocation4 + $0xc8] sm:$0xff] %v3933
      %3966 = vst [vmem:[#allocation4 + $0xd0] sm:$0xff] %v3934
      %3967 = vst [vmem:[#allocation4 + $0xd8] sm:$0xff] %v3935
      %3968 = vst [vmem:[#allocation4 + $0xe0] sm:$0xff] %v3936
      %3969 = vst [vmem:[#allocation4 + $0xe8] sm:$0xff] %v3937
      %3970 = vst [vmem:[#allocation4 + $0xf0] sm:$0xff] %v3938
      %3971 = vst [vmem:[#allocation4 + $0xf8] sm:$0xff] %v3939
      %v3972 = vld [vmem:[#allocation4] sm:$0xff]
      %v3973 = vld [vmem:[#allocation4 + $0x8] sm:$0xff]
      %v3974 = vld [vmem:[#allocation4 + $0x10] sm:$0xff]
      %v3975 = vld [vmem:[#allocation4 + $0x18] sm:$0xff]
      %v3976 = vld [vmem:[#allocation4 + $0x20] sm:$0xff]
      %v3977 = vld [vmem:[#allocation4 + $0x28] sm:$0xff]
      %v3978 = vld [vmem:[#allocation4 + $0x30] sm:$0xff]
      %v3979 = vld [vmem:[#allocation4 + $0x38] sm:$0xff]
      %v3980 = vld [vmem:[#allocation4 + $0x40] sm:$0xff]
      %v3981 = vld [vmem:[#allocation4 + $0x48] sm:$0xff]
      %v3982 = vld [vmem:[#allocation4 + $0x50] sm:$0xff]
      %v3983 = vld [vmem:[#allocation4 + $0x58] sm:$0xff]
      %v3984 = vld [vmem:[#allocation4 + $0x60] sm:$0xff]
      %v3985 = vld [vmem:[#allocation4 + $0x68] sm:$0xff]
      %v3986 = vld [vmem:[#allocation4 + $0x70] sm:$0xff]
      %v3987 = vld [vmem:[#allocation4 + $0x78] sm:$0xff]
      %v3988 = vld [vmem:[#allocation4 + $0x80] sm:$0xff]
      %v3989 = vld [vmem:[#allocation4 + $0x88] sm:$0xff]
      %v3990 = vld [vmem:[#allocation4 + $0x90] sm:$0xff]
      %v3991 = vld [vmem:[#allocation4 + $0x98] sm:$0xff]
      %v3992 = vld [vmem:[#allocation4 + $0xa0] sm:$0xff]
      %v3993 = vld [vmem:[#allocation4 + $0xa8] sm:$0xff]
      %v3994 = vld [vmem:[#allocation4 + $0xb0] sm:$0xff]
      %v3995 = vld [vmem:[#allocation4 + $0xb8] sm:$0xff]
      %v3996 = vld [vmem:[#allocation4 + $0xc0] sm:$0xff]
      %v3997 = vld [vmem:[#allocation4 + $0xc8] sm:$0xff]
      %v3998 = vld [vmem:[#allocation4 + $0xd0] sm:$0xff]
      %v3999 = vld [vmem:[#allocation4 + $0xd8] sm:$0xff]
      %v4000 = vld [vmem:[#allocation4 + $0xe0] sm:$0xff]
      %v4001 = vld [vmem:[#allocation4 + $0xe8] sm:$0xff]
      %v4002 = vld [vmem:[#allocation4 + $0xf0] sm:$0xff]
      %v4003 = vld [vmem:[#allocation4 + $0xf8] sm:$0xff]
      %v4005 = vlaneseq
      %v4006 = vshrl.u32 %v4005, 7
      %v4007 = vsub.s32 0, %v4006
      %v4008 = vrot.slane %v807, %v4007
      %v4010 = vmul.f32 %v3972, %v4008
      %v4011 = vmul.f32 %v3973, %v4008
      %v4012 = vmul.f32 %v3974, %v4008
      %v4013 = vmul.f32 %v3975, %v4008
      %v4014 = vmul.f32 %v3976, %v4008
      %v4015 = vmul.f32 %v3977, %v4008
      %v4016 = vmul.f32 %v3978, %v4008
      %v4017 = vmul.f32 %v3979, %v4008
      %v4018 = vmul.f32 %v3980, %v4008
      %v4019 = vmul.f32 %v3981, %v4008
      %v4020 = vmul.f32 %v3982, %v4008
      %v4021 = vmul.f32 %v3983, %v4008
      %v4022 = vmul.f32 %v3984, %v4008
      %v4023 = vmul.f32 %v3985, %v4008
      %v4024 = vmul.f32 %v3986, %v4008
      %v4025 = vmul.f32 %v3987, %v4008
      %v4026 = vmul.f32 %v3988, %v4008
      %v4027 = vmul.f32 %v3989, %v4008
      %v4028 = vmul.f32 %v3990, %v4008
      %v4029 = vmul.f32 %v3991, %v4008
      %v4030 = vmul.f32 %v3992, %v4008
      %v4031 = vmul.f32 %v3993, %v4008
      %v4032 = vmul.f32 %v3994, %v4008
      %v4033 = vmul.f32 %v3995, %v4008
      %v4034 = vmul.f32 %v3996, %v4008
      %v4035 = vmul.f32 %v3997, %v4008
      %v4036 = vmul.f32 %v3998, %v4008
      %v4037 = vmul.f32 %v3999, %v4008
      %v4038 = vmul.f32 %v4000, %v4008
      %v4039 = vmul.f32 %v4001, %v4008
      %v4040 = vmul.f32 %v4002, %v4008
      %v4041 = vmul.f32 %v4003, %v4008
      %v4043 = vlaneseq
      %v4044 = vshrl.u32 %v4043, 7
      %v4045 = vsub.s32 0, %v4044
      %v4046 = vrot.slane %v808, %v4045
      %v4048 = vadd.f32 %v4010, %v4046
      %v4049 = vadd.f32 %v4011, %v4046
      %v4050 = vadd.f32 %v4012, %v4046
      %v4051 = vadd.f32 %v4013, %v4046
      %v4052 = vadd.f32 %v4014, %v4046
      %v4053 = vadd.f32 %v4015, %v4046
      %v4054 = vadd.f32 %v4016, %v4046
      %v4055 = vadd.f32 %v4017, %v4046
      %v4056 = vadd.f32 %v4018, %v4046
      %v4057 = vadd.f32 %v4019, %v4046
      %v4058 = vadd.f32 %v4020, %v4046
      %v4059 = vadd.f32 %v4021, %v4046
      %v4060 = vadd.f32 %v4022, %v4046
      %v4061 = vadd.f32 %v4023, %v4046
      %v4062 = vadd.f32 %v4024, %v4046
      %v4063 = vadd.f32 %v4025, %v4046
      %v4064 = vadd.f32 %v4026, %v4046
      %v4065 = vadd.f32 %v4027, %v4046
      %v4066 = vadd.f32 %v4028, %v4046
      %v4067 = vadd.f32 %v4029, %v4046
      %v4068 = vadd.f32 %v4030, %v4046
      %v4069 = vadd.f32 %v4031, %v4046
      %v4070 = vadd.f32 %v4032, %v4046
      %v4071 = vadd.f32 %v4033, %v4046
      %v4072 = vadd.f32 %v4034, %v4046
      %v4073 = vadd.f32 %v4035, %v4046
      %v4074 = vadd.f32 %v4036, %v4046
      %v4075 = vadd.f32 %v4037, %v4046
      %v4076 = vadd.f32 %v4038, %v4046
      %v4077 = vadd.f32 %v4039, %v4046
      %v4078 = vadd.f32 %v4040, %v4046
      %v4079 = vadd.f32 %v4041, %v4046
      %v4080 = vmax.f32 %v4048, 0.0
      %v4081 = vmax.f32 %v4049, 0.0
      %v4082 = vmax.f32 %v4050, 0.0
      %v4083 = vmax.f32 %v4051, 0.0
      %v4084 = vmax.f32 %v4052, 0.0
      %v4085 = vmax.f32 %v4053, 0.0
      %v4086 = vmax.f32 %v4054, 0.0
      %v4087 = vmax.f32 %v4055, 0.0
      %v4088 = vmax.f32 %v4056, 0.0
      %v4089 = vmax.f32 %v4057, 0.0
      %v4090 = vmax.f32 %v4058, 0.0
      %v4091 = vmax.f32 %v4059, 0.0
      %v4092 = vmax.f32 %v4060, 0.0
      %v4093 = vmax.f32 %v4061, 0.0
      %v4094 = vmax.f32 %v4062, 0.0
      %v4095 = vmax.f32 %v4063, 0.0
      %v4096 = vmax.f32 %v4064, 0.0
      %v4097 = vmax.f32 %v4065, 0.0
      %v4098 = vmax.f32 %v4066, 0.0
      %v4099 = vmax.f32 %v4067, 0.0
      %v4100 = vmax.f32 %v4068, 0.0
      %v4101 = vmax.f32 %v4069, 0.0
      %v4102 = vmax.f32 %v4070, 0.0
      %v4103 = vmax.f32 %v4071, 0.0
      %v4104 = vmax.f32 %v4072, 0.0
      %v4105 = vmax.f32 %v4073, 0.0
      %v4106 = vmax.f32 %v4074, 0.0
      %v4107 = vmax.f32 %v4075, 0.0
      %v4108 = vmax.f32 %v4076, 0.0
      %v4109 = vmax.f32 %v4077, 0.0
      %v4110 = vmax.f32 %v4078, 0.0
      %v4111 = vmax.f32 %v4079, 0.0
      %4112 = vst [vmem:[#allocation3] sm:$0xf] 0
      %4113 = vst [vmem:[#allocation3 + $0x4] sm:$0xf] 0
      %4114 = vst [vmem:[#allocation3 + $0x8] sm:$0x1] 0
      %4115 = vst [vmem:[#allocation3 + $0xc] sm:$0xf] 0
      %4116 = vst [vmem:[#allocation3 + $0x10] sm:$0xf] 0
      %4117 = vst [vmem:[#allocation3 + $0x14] sm:$0x1] 0
      %4118 = vst [vmem:[#allocation3 + $0x18] sm:$0xf] 0
      %4119 = vst [vmem:[#allocation3 + $0x1c] sm:$0xf] 0
      %4120 = vst [vmem:[#allocation3 + $0x20] sm:$0x1] 0
      %4121 = vst [vmem:[#allocation3 + $0x24] sm:$0xf] 0
      %4122 = vst [vmem:[#allocation3 + $0x28] sm:$0xf] 0
      %4123 = vst [vmem:[#allocation3 + $0x2c] sm:$0x1] 0
      %4124 = vst [vmem:[#allocation3 + $0x30] sm:$0xf] 0
      %4125 = vst [vmem:[#allocation3 + $0x34] sm:$0xf] 0
      %4126 = vst [vmem:[#allocation3 + $0x38] sm:$0x1] 0
      %4127 = vst [vmem:[#allocation3 + $0x3c] sm:$0xf] 0
      %4128 = vst [vmem:[#allocation3 + $0x40] sm:$0xf] 0
      %4129 = vst [vmem:[#allocation3 + $0x44] sm:$0x1] 0
      %4130 = vst [vmem:[#allocation3 + $0x48] sm:$0xf] 0
      %4131 = vst [vmem:[#allocation3 + $0x4c] sm:$0xf] 0
      %4132 = vst [vmem:[#allocation3 + $0x50] sm:$0x1] 0
      %4133 = vst [vmem:[#allocation3 + $0x54] sm:$0xf] 0
      %4134 = vst [vmem:[#allocation3 + $0x58] sm:$0xf] 0
      %4135 = vst [vmem:[#allocation3 + $0x5c] sm:$0x1] 0
      %4136 = vst [vmem:[#allocation3 + $0x60] sm:$0xf] 0
      %4137 = vst [vmem:[#allocation3 + $0x64] sm:$0xf] 0
      %4138 = vst [vmem:[#allocation3 + $0x68] sm:$0x1] 0
      %4139 = vst [vmem:[#allocation3 + $0x6c] sm:$0xf] 0
      %4140 = vst [vmem:[#allocation3 + $0x70] sm:$0xf] 0
      %4141 = vst [vmem:[#allocation3 + $0x74] sm:$0x1] 0
      %4142 = vst [vmem:[#allocation3 + $0x78] sm:$0xf] 0
      %4143 = vst [vmem:[#allocation3 + $0x7c] sm:$0xf] 0
      %4144 = vst [vmem:[#allocation3 + $0x80] sm:$0x1] 0
      %4145 = vst [vmem:[#allocation3 + $0x84] sm:$0xf] 0
      %4146 = vst [vmem:[#allocation3 + $0x88] sm:$0xf] 0
      %4147 = vst [vmem:[#allocation3 + $0x8c] sm:$0x1] 0
      %4148 = vst [vmem:[#allocation3 + $0x90] sm:$0xf] 0
      %4149 = vst [vmem:[#allocation3 + $0x94] sm:$0xf] 0
      %4150 = vst [vmem:[#allocation3 + $0x98] sm:$0x1] 0
      %4151 = vst [vmem:[#allocation3 + $0x9c] sm:$0xf] 0
      %4152 = vst [vmem:[#allocation3 + $0xa0] sm:$0xf] 0
      %4153 = vst [vmem:[#allocation3 + $0xa4] sm:$0x1] 0
      %4154 = vst [vmem:[#allocation3 + $0xa8] sm:$0xf] 0
      %4155 = vst [vmem:[#allocation3 + $0xac] sm:$0xf] 0
      %4156 = vst [vmem:[#allocation3 + $0xb0] sm:$0x1] 0
      %4157 = vst [vmem:[#allocation3 + $0xb4] sm:$0xf] 0
      %4158 = vst [vmem:[#allocation3 + $0xb8] sm:$0xf] 0
      %4159 = vst [vmem:[#allocation3 + $0xbc] sm:$0x1] 0
      %4160 = vst [vmem:[#allocation3 + $0xc0] sm:$0xf] 0
      %4161 = vst [vmem:[#allocation3 + $0xc4] sm:$0xf] 0
      %4162 = vst [vmem:[#allocation3 + $0xc8] sm:$0x1] 0
      %4163 = vst [vmem:[#allocation3 + $0xcc] sm:$0xf] 0
      %4164 = vst [vmem:[#allocation3 + $0xd0] sm:$0xf] 0
      %4165 = vst [vmem:[#allocation3 + $0xd4] sm:$0x1] 0
      %v4166 = vpack.c.bf16 %v4081, %v4080
      %v4167 = vpack.c.bf16 %v4083, %v4082
      %v4168 = vpack.c.bf16 %v4085, %v4084
      %v4169 = vpack.c.bf16 %v4087, %v4086
      %v4170 = vpack.c.bf16 %v4089, %v4088
      %v4171 = vpack.c.bf16 %v4091, %v4090
      %v4172 = vpack.c.bf16 %v4093, %v4092
      %v4173 = vpack.c.bf16 %v4095, %v4094
      %v4174 = vpack.c.bf16 %v4097, %v4096
      %v4175 = vpack.c.bf16 %v4099, %v4098
      %v4176 = vpack.c.bf16 %v4101, %v4100
      %v4177 = vpack.c.bf16 %v4103, %v4102
      %v4178 = vpack.c.bf16 %v4105, %v4104
      %v4179 = vpack.c.bf16 %v4107, %v4106
      %v4180 = vpack.c.bf16 %v4109, %v4108
      %v4181 = vpack.c.bf16 %v4111, %v4110
      %v4198 = vunpack.c.l.b16 %v4166
      %v4199 = vunpack.c.h.b16 %v4166
      %v4200 = vunpack.c.l.b16 %v4167
      %v4201 = vunpack.c.h.b16 %v4167
      %v4202 = vunpack.c.l.b16 %v4168
      %v4203 = vunpack.c.h.b16 %v4168
      %v4204 = vunpack.c.l.b16 %v4169
      %v4205 = vunpack.c.h.b16 %v4169
      %v4206 = vunpack.c.l.b16 %v4170
      %v4207 = vunpack.c.h.b16 %v4170
      %v4208 = vunpack.c.l.b16 %v4171
      %v4209 = vunpack.c.h.b16 %v4171
      %v4210 = vunpack.c.l.b16 %v4172
      %v4211 = vunpack.c.h.b16 %v4172
      %v4212 = vunpack.c.l.b16 %v4173
      %v4213 = vunpack.c.h.b16 %v4173
      %v4214 = vunpack.c.l.b16 %v4174
      %v4215 = vunpack.c.h.b16 %v4174
      %v4216 = vunpack.c.l.b16 %v4175
      %v4217 = vunpack.c.h.b16 %v4175
      %v4218 = vunpack.c.l.b16 %v4176
      %v4219 = vunpack.c.h.b16 %v4176
      %v4220 = vunpack.c.l.b16 %v4177
      %v4221 = vunpack.c.h.b16 %v4177
      %v4222 = vunpack.c.l.b16 %v4178
      %v4223 = vunpack.c.h.b16 %v4178
      %v4224 = vunpack.c.l.b16 %v4179
      %v4225 = vunpack.c.h.b16 %v4179
      %v4226 = vunpack.c.l.b16 %v4180
      %v4227 = vunpack.c.h.b16 %v4180
      %v4228 = vunpack.c.l.b16 %v4181
      %v4229 = vunpack.c.h.b16 %v4181
      %v4230 = vpack.c.b16 %v4198, %v4198
      %v4231 = vpack.c.b16 %v4199, %v4199
      %v4232 = vpack.c.b16 %v4200, %v4200
      %v4233 = vpack.c.b16 %v4201, %v4201
      %v4234 = vpack.c.b16 %v4202, %v4202
      %v4235 = vpack.c.b16 %v4203, %v4203
      %v4236 = vpack.c.b16 %v4204, %v4204
      %v4237 = vpack.c.b16 %v4205, %v4205
      %v4238 = vpack.c.b16 %v4206, %v4206
      %v4239 = vpack.c.b16 %v4207, %v4207
      %v4240 = vpack.c.b16 %v4208, %v4208
      %v4241 = vpack.c.b16 %v4209, %v4209
      %v4242 = vpack.c.b16 %v4210, %v4210
      %v4243 = vpack.c.b16 %v4211, %v4211
      %v4244 = vpack.c.b16 %v4212, %v4212
      %v4245 = vpack.c.b16 %v4213, %v4213
      %v4246 = vpack.c.b16 %v4214, %v4214
      %v4247 = vpack.c.b16 %v4215, %v4215
      %v4248 = vpack.c.b16 %v4216, %v4216
      %v4249 = vpack.c.b16 %v4217, %v4217
      %v4250 = vpack.c.b16 %v4218, %v4218
      %v4251 = vpack.c.b16 %v4219, %v4219
      %v4252 = vpack.c.b16 %v4220, %v4220
      %v4253 = vpack.c.b16 %v4221, %v4221
      %v4254 = vpack.c.b16 %v4222, %v4222
      %v4255 = vpack.c.b16 %v4223, %v4223
      %v4256 = vpack.c.b16 %v4224, %v4224
      %v4257 = vpack.c.b16 %v4225, %v4225
      %v4258 = vpack.c.b16 %v4226, %v4226
      %v4259 = vpack.c.b16 %v4227, %v4227
      %v4260 = vpack.c.b16 %v4228, %v4228
      %v4261 = vpack.c.b16 %v4229, %v4229
      %v4263 = vshrl.u32 %v4230, 16
      %v4265 = vrot.slane %v4263, 7
      %v4266 = vshll.u32 %v4230, 16
      %v4268 = vor.u32 %v4265, %v4266
      %v4269 = vrot.slane %v4265, 4
      %v4271 = vshrl.u32 %v4231, 16
      %v4273 = vrot.slane %v4271, 7
      %v4274 = vshll.u32 %v4231, 16
      %v4276 = vor.u32 %v4273, %v4274
      %v4277 = vsel %vm368, %v4269, %v4276
      %v4278 = vrot.slane %v4273, 4
      %v4280 = vshrl.u32 %v4232, 16
      %v4282 = vrot.slane %v4280, 7
      %v4283 = vshll.u32 %v4232, 16
      %v4285 = vor.u32 %v4282, %v4283
      %v4286 = vrot.slane %v4282, 4
      %v4288 = vshrl.u32 %v4233, 16
      %v4290 = vrot.slane %v4288, 7
      %v4291 = vshll.u32 %v4233, 16
      %v4293 = vor.u32 %v4290, %v4291
      %v4294 = vsel %vm368, %v4286, %v4293
      %v4295 = vrot.slane %v4290, 4
      %v4297 = vshrl.u32 %v4234, 16
      %v4299 = vrot.slane %v4297, 7
      %v4300 = vshll.u32 %v4234, 16
      %v4302 = vor.u32 %v4299, %v4300
      %v4303 = vrot.slane %v4299, 4
      %v4305 = vshrl.u32 %v4235, 16
      %v4307 = vrot.slane %v4305, 7
      %v4308 = vshll.u32 %v4235, 16
      %v4310 = vor.u32 %v4307, %v4308
      %v4311 = vsel %vm368, %v4303, %v4310
      %v4312 = vrot.slane %v4307, 4
      %v4314 = vshrl.u32 %v4236, 16
      %v4316 = vrot.slane %v4314, 7
      %v4317 = vshll.u32 %v4236, 16
      %v4319 = vor.u32 %v4316, %v4317
      %v4320 = vrot.slane %v4316, 4
      %v4322 = vshrl.u32 %v4237, 16
      %v4324 = vrot.slane %v4322, 7
      %v4325 = vshll.u32 %v4237, 16
      %v4327 = vor.u32 %v4324, %v4325
      %v4328 = vsel %vm368, %v4320, %v4327
      %v4329 = vrot.slane %v4324, 4
      %v4331 = vshrl.u32 %v4238, 16
      %v4333 = vrot.slane %v4331, 7
      %v4334 = vshll.u32 %v4238, 16
      %v4336 = vor.u32 %v4333, %v4334
      %v4337 = vrot.slane %v4333, 4
      %v4339 = vshrl.u32 %v4239, 16
      %v4341 = vrot.slane %v4339, 7
      %v4342 = vshll.u32 %v4239, 16
      %v4344 = vor.u32 %v4341, %v4342
      %v4345 = vsel %vm368, %v4337, %v4344
      %v4346 = vrot.slane %v4341, 4
      %v4348 = vshrl.u32 %v4240, 16
      %v4350 = vrot.slane %v4348, 7
      %v4351 = vshll.u32 %v4240, 16
      %v4353 = vor.u32 %v4350, %v4351
      %v4354 = vrot.slane %v4350, 4
      %v4356 = vshrl.u32 %v4241, 16
      %v4358 = vrot.slane %v4356, 7
      %v4359 = vshll.u32 %v4241, 16
      %v4361 = vor.u32 %v4358, %v4359
      %v4362 = vsel %vm368, %v4354, %v4361
      %v4363 = vrot.slane %v4358, 4
      %v4365 = vshrl.u32 %v4242, 16
      %v4367 = vrot.slane %v4365, 7
      %v4368 = vshll.u32 %v4242, 16
      %v4370 = vor.u32 %v4367, %v4368
      %v4371 = vrot.slane %v4367, 4
      %v4373 = vshrl.u32 %v4243, 16
      %v4375 = vrot.slane %v4373, 7
      %v4376 = vshll.u32 %v4243, 16
      %v4378 = vor.u32 %v4375, %v4376
      %v4379 = vsel %vm368, %v4371, %v4378
      %v4380 = vrot.slane %v4375, 4
      %v4382 = vshrl.u32 %v4244, 16
      %v4384 = vrot.slane %v4382, 7
      %v4385 = vshll.u32 %v4244, 16
      %v4387 = vor.u32 %v4384, %v4385
      %v4388 = vrot.slane %v4384, 4
      %v4390 = vshrl.u32 %v4245, 16
      %v4392 = vrot.slane %v4390, 7
      %v4393 = vshll.u32 %v4245, 16
      %v4395 = vor.u32 %v4392, %v4393
      %v4396 = vsel %vm368, %v4388, %v4395
      %v4397 = vrot.slane %v4392, 4
      %v4399 = vshrl.u32 %v4246, 16
      %v4401 = vrot.slane %v4399, 7
      %v4402 = vshll.u32 %v4246, 16
      %v4404 = vor.u32 %v4401, %v4402
      %v4405 = vrot.slane %v4401, 4
      %v4407 = vshrl.u32 %v4247, 16
      %v4409 = vrot.slane %v4407, 7
      %v4410 = vshll.u32 %v4247, 16
      %v4412 = vor.u32 %v4409, %v4410
      %v4413 = vsel %vm368, %v4405, %v4412
      %v4414 = vrot.slane %v4409, 4
      %v4416 = vshrl.u32 %v4248, 16
      %v4418 = vrot.slane %v4416, 7
      %v4419 = vshll.u32 %v4248, 16
      %v4421 = vor.u32 %v4418, %v4419
      %v4422 = vrot.slane %v4418, 4
      %v4424 = vshrl.u32 %v4249, 16
      %v4426 = vrot.slane %v4424, 7
      %v4427 = vshll.u32 %v4249, 16
      %v4429 = vor.u32 %v4426, %v4427
      %v4430 = vsel %vm368, %v4422, %v4429
      %v4431 = vrot.slane %v4426, 4
      %v4433 = vshrl.u32 %v4250, 16
      %v4435 = vrot.slane %v4433, 7
      %v4436 = vshll.u32 %v4250, 16
      %v4438 = vor.u32 %v4435, %v4436
      %v4439 = vrot.slane %v4435, 4
      %v4441 = vshrl.u32 %v4251, 16
      %v4443 = vrot.slane %v4441, 7
      %v4444 = vshll.u32 %v4251, 16
      %v4446 = vor.u32 %v4443, %v4444
      %v4447 = vsel %vm368, %v4439, %v4446
      %v4448 = vrot.slane %v4443, 4
      %v4450 = vshrl.u32 %v4252, 16
      %v4452 = vrot.slane %v4450, 7
      %v4453 = vshll.u32 %v4252, 16
      %v4455 = vor.u32 %v4452, %v4453
      %v4456 = vrot.slane %v4452, 4
      %v4458 = vshrl.u32 %v4253, 16
      %v4460 = vrot.slane %v4458, 7
      %v4461 = vshll.u32 %v4253, 16
      %v4463 = vor.u32 %v4460, %v4461
      %v4464 = vsel %vm368, %v4456, %v4463
      %v4465 = vrot.slane %v4460, 4
      %v4467 = vshrl.u32 %v4254, 16
      %v4469 = vrot.slane %v4467, 7
      %v4470 = vshll.u32 %v4254, 16
      %v4472 = vor.u32 %v4469, %v4470
      %v4473 = vrot.slane %v4469, 4
      %v4475 = vshrl.u32 %v4255, 16
      %v4477 = vrot.slane %v4475, 7
      %v4478 = vshll.u32 %v4255, 16
      %v4480 = vor.u32 %v4477, %v4478
      %v4481 = vsel %vm368, %v4473, %v4480
      %v4482 = vrot.slane %v4477, 4
      %v4484 = vshrl.u32 %v4256, 16
      %v4486 = vrot.slane %v4484, 7
      %v4487 = vshll.u32 %v4256, 16
      %v4489 = vor.u32 %v4486, %v4487
      %v4490 = vrot.slane %v4486, 4
      %v4492 = vshrl.u32 %v4257, 16
      %v4494 = vrot.slane %v4492, 7
      %v4495 = vshll.u32 %v4257, 16
      %v4497 = vor.u32 %v4494, %v4495
      %v4498 = vsel %vm368, %v4490, %v4497
      %v4499 = vrot.slane %v4494, 4
      %v4501 = vshrl.u32 %v4258, 16
      %v4503 = vrot.slane %v4501, 7
      %v4504 = vshll.u32 %v4258, 16
      %v4506 = vor.u32 %v4503, %v4504
      %v4507 = vrot.slane %v4503, 4
      %v4509 = vshrl.u32 %v4259, 16
      %v4511 = vrot.slane %v4509, 7
      %v4512 = vshll.u32 %v4259, 16
      %v4514 = vor.u32 %v4511, %v4512
      %v4515 = vsel %vm368, %v4507, %v4514
      %v4516 = vrot.slane %v4511, 4
      %v4518 = vshrl.u32 %v4260, 16
      %v4520 = vrot.slane %v4518, 7
      %v4521 = vshll.u32 %v4260, 16
      %v4523 = vor.u32 %v4520, %v4521
      %v4524 = vrot.slane %v4520, 4
      %v4526 = vshrl.u32 %v4261, 16
      %v4528 = vrot.slane %v4526, 7
      %v4529 = vshll.u32 %v4261, 16
      %v4531 = vor.u32 %v4528, %v4529
      %v4532 = vsel %vm368, %v4524, %v4531
      %v4533 = vrot.slane %v4528, 4
      %s4582 = scalar_lea.vmem [#allocation3], 12
      %v4583 = vld [vmem:[%s4582] sm:$0xf]
      %v4584 = vsel %vm692, %v4268, %v4583
      %4585 = vst [vmem:[%s4582] sm:$0xf] %v4584
      %4586 = vst [vmem:[%s4582 + $0x4] sm:$0xf] %v4277
      %v4587 = vld [vmem:[%s4582 + $0x8] sm:$0x1]
      %v4588 = vsel %vm698, %v4278, %v4587
      %4589 = vst [vmem:[%s4582 + $0x8] sm:$0x1] %v4588
      %v4590 = vld [vmem:[%s4582 + $0xc] sm:$0xf]
      %v4591 = vsel %vm692, %v4285, %v4590
      %4592 = vst [vmem:[%s4582 + $0xc] sm:$0xf] %v4591
      %4593 = vst [vmem:[%s4582 + $0x10] sm:$0xf] %v4294
      %v4594 = vld [vmem:[%s4582 + $0x14] sm:$0x1]
      %v4595 = vsel %vm698, %v4295, %v4594
      %4596 = vst [vmem:[%s4582 + $0x14] sm:$0x1] %v4595
      %v4597 = vld [vmem:[%s4582 + $0x18] sm:$0xf]
      %v4598 = vsel %vm692, %v4302, %v4597
      %4599 = vst [vmem:[%s4582 + $0x18] sm:$0xf] %v4598
      %4600 = vst [vmem:[%s4582 + $0x1c] sm:$0xf] %v4311
      %v4601 = vld [vmem:[%s4582 + $0x20] sm:$0x1]
      %v4602 = vsel %vm698, %v4312, %v4601
      %4603 = vst [vmem:[%s4582 + $0x20] sm:$0x1] %v4602
      %v4604 = vld [vmem:[%s4582 + $0x24] sm:$0xf]
      %v4605 = vsel %vm692, %v4319, %v4604
      %4606 = vst [vmem:[%s4582 + $0x24] sm:$0xf] %v4605
      %4607 = vst [vmem:[%s4582 + $0x28] sm:$0xf] %v4328
      %v4608 = vld [vmem:[%s4582 + $0x2c] sm:$0x1]
      %v4609 = vsel %vm698, %v4329, %v4608
      %4610 = vst [vmem:[%s4582 + $0x2c] sm:$0x1] %v4609
      %v4611 = vld [vmem:[%s4582 + $0x30] sm:$0xf]
      %v4612 = vsel %vm692, %v4336, %v4611
      %4613 = vst [vmem:[%s4582 + $0x30] sm:$0xf] %v4612
      %4614 = vst [vmem:[%s4582 + $0x34] sm:$0xf] %v4345
      %v4615 = vld [vmem:[%s4582 + $0x38] sm:$0x1]
      %v4616 = vsel %vm698, %v4346, %v4615
      %4617 = vst [vmem:[%s4582 + $0x38] sm:$0x1] %v4616
      %v4618 = vld [vmem:[%s4582 + $0x3c] sm:$0xf]
      %v4619 = vsel %vm692, %v4353, %v4618
      %4620 = vst [vmem:[%s4582 + $0x3c] sm:$0xf] %v4619
      %4621 = vst [vmem:[%s4582 + $0x40] sm:$0xf] %v4362
      %v4622 = vld [vmem:[%s4582 + $0x44] sm:$0x1]
      %v4623 = vsel %vm698, %v4363, %v4622
      %4624 = vst [vmem:[%s4582 + $0x44] sm:$0x1] %v4623
      %v4625 = vld [vmem:[%s4582 + $0x48] sm:$0xf]
      %v4626 = vsel %vm692, %v4370, %v4625
      %4627 = vst [vmem:[%s4582 + $0x48] sm:$0xf] %v4626
      %4628 = vst [vmem:[%s4582 + $0x4c] sm:$0xf] %v4379
      %v4629 = vld [vmem:[%s4582 + $0x50] sm:$0x1]
      %v4630 = vsel %vm698, %v4380, %v4629
      %4631 = vst [vmem:[%s4582 + $0x50] sm:$0x1] %v4630
      %v4632 = vld [vmem:[%s4582 + $0x54] sm:$0xf]
      %v4633 = vsel %vm692, %v4387, %v4632
      %4634 = vst [vmem:[%s4582 + $0x54] sm:$0xf] %v4633
      %4635 = vst [vmem:[%s4582 + $0x58] sm:$0xf] %v4396
      %v4636 = vld [vmem:[%s4582 + $0x5c] sm:$0x1]
      %v4637 = vsel %vm698, %v4397, %v4636
      %4638 = vst [vmem:[%s4582 + $0x5c] sm:$0x1] %v4637
      %v4639 = vld [vmem:[%s4582 + $0x60] sm:$0xf]
      %v4640 = vsel %vm692, %v4404, %v4639
      %4641 = vst [vmem:[%s4582 + $0x60] sm:$0xf] %v4640
      %4642 = vst [vmem:[%s4582 + $0x64] sm:$0xf] %v4413
      %v4643 = vld [vmem:[%s4582 + $0x68] sm:$0x1]
      %v4644 = vsel %vm698, %v4414, %v4643
      %4645 = vst [vmem:[%s4582 + $0x68] sm:$0x1] %v4644
      %v4646 = vld [vmem:[%s4582 + $0x6c] sm:$0xf]
      %v4647 = vsel %vm692, %v4421, %v4646
      %4648 = vst [vmem:[%s4582 + $0x6c] sm:$0xf] %v4647
      %4649 = vst [vmem:[%s4582 + $0x70] sm:$0xf] %v4430
      %v4650 = vld [vmem:[%s4582 + $0x74] sm:$0x1]
      %v4651 = vsel %vm698, %v4431, %v4650
      %4652 = vst [vmem:[%s4582 + $0x74] sm:$0x1] %v4651
      %v4653 = vld [vmem:[%s4582 + $0x78] sm:$0xf]
      %v4654 = vsel %vm692, %v4438, %v4653
      %4655 = vst [vmem:[%s4582 + $0x78] sm:$0xf] %v4654
      %4656 = vst [vmem:[%s4582 + $0x7c] sm:$0xf] %v4447
      %v4657 = vld [vmem:[%s4582 + $0x80] sm:$0x1]
      %v4658 = vsel %vm698, %v4448, %v4657
      %4659 = vst [vmem:[%s4582 + $0x80] sm:$0x1] %v4658
      %v4660 = vld [vmem:[%s4582 + $0x84] sm:$0xf]
      %v4661 = vsel %vm692, %v4455, %v4660
      %4662 = vst [vmem:[%s4582 + $0x84] sm:$0xf] %v4661
      %4663 = vst [vmem:[%s4582 + $0x88] sm:$0xf] %v4464
      %v4664 = vld [vmem:[%s4582 + $0x8c] sm:$0x1]
      %v4665 = vsel %vm698, %v4465, %v4664
      %4666 = vst [vmem:[%s4582 + $0x8c] sm:$0x1] %v4665
      %v4667 = vld [vmem:[%s4582 + $0x90] sm:$0xf]
      %v4668 = vsel %vm692, %v4472, %v4667
      %4669 = vst [vmem:[%s4582 + $0x90] sm:$0xf] %v4668
      %4670 = vst [vmem:[%s4582 + $0x94] sm:$0xf] %v4481
      %v4671 = vld [vmem:[%s4582 + $0x98] sm:$0x1]
      %v4672 = vsel %vm698, %v4482, %v4671
      %4673 = vst [vmem:[%s4582 + $0x98] sm:$0x1] %v4672
      %v4674 = vld [vmem:[%s4582 + $0x9c] sm:$0xf]
      %v4675 = vsel %vm692, %v4489, %v4674
      %4676 = vst [vmem:[%s4582 + $0x9c] sm:$0xf] %v4675
      %4677 = vst [vmem:[%s4582 + $0xa0] sm:$0xf] %v4498
      %v4678 = vld [vmem:[%s4582 + $0xa4] sm:$0x1]
      %v4679 = vsel %vm698, %v4499, %v4678
      %4680 = vst [vmem:[%s4582 + $0xa4] sm:$0x1] %v4679
      %v4681 = vld [vmem:[%s4582 + $0xa8] sm:$0xf]
      %v4682 = vsel %vm692, %v4506, %v4681
      %4683 = vst [vmem:[%s4582 + $0xa8] sm:$0xf] %v4682
      %4684 = vst [vmem:[%s4582 + $0xac] sm:$0xf] %v4515
      %v4685 = vld [vmem:[%s4582 + $0xb0] sm:$0x1]
      %v4686 = vsel %vm698, %v4516, %v4685
      %4687 = vst [vmem:[%s4582 + $0xb0] sm:$0x1] %v4686
      %v4688 = vld [vmem:[%s4582 + $0xb4] sm:$0xf]
      %v4689 = vsel %vm692, %v4523, %v4688
      %4690 = vst [vmem:[%s4582 + $0xb4] sm:$0xf] %v4689
      %4691 = vst [vmem:[%s4582 + $0xb8] sm:$0xf] %v4532
      %v4692 = vld [vmem:[%s4582 + $0xbc] sm:$0x1]
      %v4693 = vsel %vm698, %v4533, %v4692
      %4694 = vst [vmem:[%s4582 + $0xbc] sm:$0x1] %v4693
      %v4695 = vld [vmem:[%s5] sm:$0x1]
      %v4696 = vld [vmem:[%s6] sm:$0x1]
      %v4697 = vld [vmem:[#allocation3] sm:$0xf]
      %v4698 = vld [vmem:[#allocation3 + $0x4] sm:$0xf]
      %v4699 = vld [vmem:[#allocation3 + $0x8] sm:$0x1]
      %v4700 = vld [vmem:[#allocation3 + $0xc] sm:$0xf]
      %v4701 = vld [vmem:[#allocation3 + $0x10] sm:$0xf]
      %v4702 = vld [vmem:[#allocation3 + $0x14] sm:$0x1]
      %v4703 = vld [vmem:[#allocation3 + $0x18] sm:$0xf]
      %v4704 = vld [vmem:[#allocation3 + $0x1c] sm:$0xf]
      %v4705 = vld [vmem:[#allocation3 + $0x20] sm:$0x1]
      %v4706 = vld [vmem:[#allocation3 + $0x24] sm:$0xf]
      %v4707 = vld [vmem:[#allocation3 + $0x28] sm:$0xf]
      %v4708 = vld [vmem:[#allocation3 + $0x2c] sm:$0x1]
      %v4709 = vld [vmem:[#allocation3 + $0x30] sm:$0xf]
      %v4710 = vld [vmem:[#allocation3 + $0x34] sm:$0xf]
      %v4711 = vld [vmem:[#allocation3 + $0x38] sm:$0x1]
      %v4712 = vld [vmem:[#allocation3 + $0x3c] sm:$0xf]
      %v4713 = vld [vmem:[#allocation3 + $0x40] sm:$0xf]
      %v4714 = vld [vmem:[#allocation3 + $0x44] sm:$0x1]
      %v4715 = vld [vmem:[#allocation3 + $0x48] sm:$0xf]
      %v4716 = vld [vmem:[#allocation3 + $0x4c] sm:$0xf]
      %v4717 = vld [vmem:[#allocation3 + $0x50] sm:$0x1]
      %v4718 = vld [vmem:[#allocation3 + $0x54] sm:$0xf]
      %v4719 = vld [vmem:[#allocation3 + $0x58] sm:$0xf]
      %v4720 = vld [vmem:[#allocation3 + $0x5c] sm:$0x1]
      %v4721 = vld [vmem:[#allocation3 + $0x60] sm:$0xf]
      %v4722 = vld [vmem:[#allocation3 + $0x64] sm:$0xf]
      %v4723 = vld [vmem:[#allocation3 + $0x68] sm:$0x1]
      %v4724 = vld [vmem:[#allocation3 + $0x6c] sm:$0xf]
      %v4725 = vld [vmem:[#allocation3 + $0x70] sm:$0xf]
      %v4726 = vld [vmem:[#allocation3 + $0x74] sm:$0x1]
      %v4727 = vld [vmem:[#allocation3 + $0x78] sm:$0xf]
      %v4728 = vld [vmem:[#allocation3 + $0x7c] sm:$0xf]
      %v4729 = vld [vmem:[#allocation3 + $0x80] sm:$0x1]
      %v4730 = vld [vmem:[#allocation3 + $0x84] sm:$0xf]
      %v4731 = vld [vmem:[#allocation3 + $0x88] sm:$0xf]
      %v4732 = vld [vmem:[#allocation3 + $0x8c] sm:$0x1]
      %v4733 = vld [vmem:[#allocation3 + $0x90] sm:$0xf]
      %v4734 = vld [vmem:[#allocation3 + $0x94] sm:$0xf]
      %v4735 = vld [vmem:[#allocation3 + $0x98] sm:$0x1]
      %v4736 = vld [vmem:[#allocation3 + $0x9c] sm:$0xf]
      %v4737 = vld [vmem:[#allocation3 + $0xa0] sm:$0xf]
      %v4738 = vld [vmem:[#allocation3 + $0xa4] sm:$0x1]
      %v4739 = vld [vmem:[#allocation3 + $0xa8] sm:$0xf]
      %v4740 = vld [vmem:[#allocation3 + $0xac] sm:$0xf]
      %v4741 = vld [vmem:[#allocation3 + $0xb0] sm:$0x1]
      %v4742 = vld [vmem:[#allocation3 + $0xb4] sm:$0xf]
      %v4743 = vld [vmem:[#allocation3 + $0xb8] sm:$0xf]
      %v4744 = vld [vmem:[#allocation3 + $0xbc] sm:$0x1]
      %v4777 = vunpack.c.l.b16 %v4697
      %v4778 = vunpack.c.l.b16 %v4698
      %v4779 = vunpack.c.l.b16 %v4700
      %v4780 = vunpack.c.l.b16 %v4701
      %v4781 = vunpack.c.l.b16 %v4703
      %v4782 = vunpack.c.l.b16 %v4704
      %v4783 = vunpack.c.l.b16 %v4706
      %v4784 = vunpack.c.l.b16 %v4707
      %v4785 = vunpack.c.l.b16 %v4709
      %v4786 = vunpack.c.l.b16 %v4710
      %v4787 = vunpack.c.l.b16 %v4712
      %v4788 = vunpack.c.l.b16 %v4713
      %v4789 = vunpack.c.l.b16 %v4715
      %v4790 = vunpack.c.l.b16 %v4716
      %v4791 = vunpack.c.l.b16 %v4718
      %v4792 = vunpack.c.l.b16 %v4719
      %v4793 = vunpack.c.l.b16 %v4721
      %v4794 = vunpack.c.l.b16 %v4722
      %v4795 = vunpack.c.l.b16 %v4724
      %v4796 = vunpack.c.l.b16 %v4725
      %v4797 = vunpack.c.l.b16 %v4727
      %v4798 = vunpack.c.l.b16 %v4728
      %v4799 = vunpack.c.l.b16 %v4730
      %v4800 = vunpack.c.l.b16 %v4731
      %v4801 = vunpack.c.l.b16 %v4733
      %v4802 = vunpack.c.l.b16 %v4734
      %v4803 = vunpack.c.l.b16 %v4736
      %v4804 = vunpack.c.l.b16 %v4737
      %v4805 = vunpack.c.l.b16 %v4739
      %v4806 = vunpack.c.l.b16 %v4740
      %v4807 = vunpack.c.l.b16 %v4742
      %v4808 = vunpack.c.l.b16 %v4743
      %v4809 = vpack.c.b16 %v4778, %v4777
      %v4810 = vpack.c.b16 %v4780, %v4779
      %v4811 = vpack.c.b16 %v4782, %v4781
      %v4812 = vpack.c.b16 %v4784, %v4783
      %v4813 = vpack.c.b16 %v4786, %v4785
      %v4814 = vpack.c.b16 %v4788, %v4787
      %v4815 = vpack.c.b16 %v4790, %v4789
      %v4816 = vpack.c.b16 %v4792, %v4791
      %v4817 = vpack.c.b16 %v4794, %v4793
      %v4818 = vpack.c.b16 %v4796, %v4795
      %v4819 = vpack.c.b16 %v4798, %v4797
      %v4820 = vpack.c.b16 %v4800, %v4799
      %v4821 = vpack.c.b16 %v4802, %v4801
      %v4822 = vpack.c.b16 %v4804, %v4803
      %v4823 = vpack.c.b16 %v4806, %v4805
      %v4824 = vpack.c.b16 %v4808, %v4807
      %v4857 = vunpack.c.l.b16 %v4699
      %v4858 = vunpack.c.l.b16 %v4702
      %v4859 = vunpack.c.l.b16 %v4705
      %v4860 = vunpack.c.l.b16 %v4708
      %v4861 = vunpack.c.l.b16 %v4711
      %v4862 = vunpack.c.l.b16 %v4714
      %v4863 = vunpack.c.l.b16 %v4717
      %v4864 = vunpack.c.l.b16 %v4720
      %v4865 = vunpack.c.l.b16 %v4723
      %v4866 = vunpack.c.l.b16 %v4726
      %v4867 = vunpack.c.l.b16 %v4729
      %v4868 = vunpack.c.l.b16 %v4732
      %v4869 = vunpack.c.l.b16 %v4735
      %v4870 = vunpack.c.l.b16 %v4738
      %v4871 = vunpack.c.l.b16 %v4741
      %v4872 = vunpack.c.l.b16 %v4744
      %v4873 = vpack.c.b16 %v4857, %v4857
      %v4874 = vpack.c.b16 %v4858, %v4858
      %v4875 = vpack.c.b16 %v4859, %v4859
      %v4876 = vpack.c.b16 %v4860, %v4860
      %v4877 = vpack.c.b16 %v4861, %v4861
      %v4878 = vpack.c.b16 %v4862, %v4862
      %v4879 = vpack.c.b16 %v4863, %v4863
      %v4880 = vpack.c.b16 %v4864, %v4864
      %v4881 = vpack.c.b16 %v4865, %v4865
      %v4882 = vpack.c.b16 %v4866, %v4866
      %v4883 = vpack.c.b16 %v4867, %v4867
      %v4884 = vpack.c.b16 %v4868, %v4868
      %v4885 = vpack.c.b16 %v4869, %v4869
      %v4886 = vpack.c.b16 %v4870, %v4870
      %v4887 = vpack.c.b16 %v4871, %v4871
      %v4888 = vpack.c.b16 %v4872, %v4872
      %v4890 = vshrl.u32 %v4809, 16
      %v4892 = vshll.u32 %v4809, 16
      %v4894 = vrot.slane %v4892, 1
      %v4895 = vor.u32 %v4890, %v4894
      %v4897 = vshll.u32 %v4873, 16
      %v4899 = vrot.slane %v4897, 1
      %v4900 = vsel %vm1001, %v4895, %v4899
      %v4902 = vshrl.u32 %v4810, 16
      %v4904 = vshll.u32 %v4810, 16
      %v4906 = vrot.slane %v4904, 1
      %v4907 = vor.u32 %v4902, %v4906
      %v4909 = vshll.u32 %v4874, 16
      %v4911 = vrot.slane %v4909, 1
      %v4912 = vsel %vm1001, %v4907, %v4911
      %v4914 = vshrl.u32 %v4811, 16
      %v4916 = vshll.u32 %v4811, 16
      %v4918 = vrot.slane %v4916, 1
      %v4919 = vor.u32 %v4914, %v4918
      %v4921 = vshll.u32 %v4875, 16
      %v4923 = vrot.slane %v4921, 1
      %v4924 = vsel %vm1001, %v4919, %v4923
      %v4926 = vshrl.u32 %v4812, 16
      %v4928 = vshll.u32 %v4812, 16
      %v4930 = vrot.slane %v4928, 1
      %v4931 = vor.u32 %v4926, %v4930
      %v4933 = vshll.u32 %v4876, 16
      %v4935 = vrot.slane %v4933, 1
      %v4936 = vsel %vm1001, %v4931, %v4935
      %v4938 = vshrl.u32 %v4813, 16
      %v4940 = vshll.u32 %v4813, 16
      %v4942 = vrot.slane %v4940, 1
      %v4943 = vor.u32 %v4938, %v4942
      %v4945 = vshll.u32 %v4877, 16
      %v4947 = vrot.slane %v4945, 1
      %v4948 = vsel %vm1001, %v4943, %v4947
      %v4950 = vshrl.u32 %v4814, 16
      %v4952 = vshll.u32 %v4814, 16
      %v4954 = vrot.slane %v4952, 1
      %v4955 = vor.u32 %v4950, %v4954
      %v4957 = vshll.u32 %v4878, 16
      %v4959 = vrot.slane %v4957, 1
      %v4960 = vsel %vm1001, %v4955, %v4959
      %v4962 = vshrl.u32 %v4815, 16
      %v4964 = vshll.u32 %v4815, 16
      %v4966 = vrot.slane %v4964, 1
      %v4967 = vor.u32 %v4962, %v4966
      %v4969 = vshll.u32 %v4879, 16
      %v4971 = vrot.slane %v4969, 1
      %v4972 = vsel %vm1001, %v4967, %v4971
      %v4974 = vshrl.u32 %v4816, 16
      %v4976 = vshll.u32 %v4816, 16
      %v4978 = vrot.slane %v4976, 1
      %v4979 = vor.u32 %v4974, %v4978
      %v4981 = vshll.u32 %v4880, 16
      %v4983 = vrot.slane %v4981, 1
      %v4984 = vsel %vm1001, %v4979, %v4983
      %v4986 = vshrl.u32 %v4817, 16
      %v4988 = vshll.u32 %v4817, 16
      %v4990 = vrot.slane %v4988, 1
      %v4991 = vor.u32 %v4986, %v4990
      %v4993 = vshll.u32 %v4881, 16
      %v4995 = vrot.slane %v4993, 1
      %v4996 = vsel %vm1001, %v4991, %v4995
      %v4998 = vshrl.u32 %v4818, 16
      %v5000 = vshll.u32 %v4818, 16
      %v5002 = vrot.slane %v5000, 1
      %v5003 = vor.u32 %v4998, %v5002
      %v5005 = vshll.u32 %v4882, 16
      %v5007 = vrot.slane %v5005, 1
      %v5008 = vsel %vm1001, %v5003, %v5007
      %v5010 = vshrl.u32 %v4819, 16
      %v5012 = vshll.u32 %v4819, 16
      %v5014 = vrot.slane %v5012, 1
      %v5015 = vor.u32 %v5010, %v5014
      %v5017 = vshll.u32 %v4883, 16
      %v5019 = vrot.slane %v5017, 1
      %v5020 = vsel %vm1001, %v5015, %v5019
      %v5022 = vshrl.u32 %v4820, 16
      %v5024 = vshll.u32 %v4820, 16
      %v5026 = vrot.slane %v5024, 1
      %v5027 = vor.u32 %v5022, %v5026
      %v5029 = vshll.u32 %v4884, 16
      %v5031 = vrot.slane %v5029, 1
      %v5032 = vsel %vm1001, %v5027, %v5031
      %v5034 = vshrl.u32 %v4821, 16
      %v5036 = vshll.u32 %v4821, 16
      %v5038 = vrot.slane %v5036, 1
      %v5039 = vor.u32 %v5034, %v5038
      %v5041 = vshll.u32 %v4885, 16
      %v5043 = vrot.slane %v5041, 1
      %v5044 = vsel %vm1001, %v5039, %v5043
      %v5046 = vshrl.u32 %v4822, 16
      %v5048 = vshll.u32 %v4822, 16
      %v5050 = vrot.slane %v5048, 1
      %v5051 = vor.u32 %v5046, %v5050
      %v5053 = vshll.u32 %v4886, 16
      %v5055 = vrot.slane %v5053, 1
      %v5056 = vsel %vm1001, %v5051, %v5055
      %v5058 = vshrl.u32 %v4823, 16
      %v5060 = vshll.u32 %v4823, 16
      %v5062 = vrot.slane %v5060, 1
      %v5063 = vor.u32 %v5058, %v5062
      %v5065 = vshll.u32 %v4887, 16
      %v5067 = vrot.slane %v5065, 1
      %v5068 = vsel %vm1001, %v5063, %v5067
      %v5070 = vshrl.u32 %v4824, 16
      %v5072 = vshll.u32 %v4824, 16
      %v5074 = vrot.slane %v5072, 1
      %v5075 = vor.u32 %v5070, %v5074
      %v5077 = vshll.u32 %v4888, 16
      %v5079 = vrot.slane %v5077, 1
      %v5080 = vsel %vm1001, %v5075, %v5079
      %v5097 = vrot.slane %v4809, 1
      %v5098 = vrot.slane %v4873, 1
      %v5099 = vsel %vm1210, %v5097, %v5098
      %v5100 = vrot.slane %v4810, 1
      %v5101 = vrot.slane %v4874, 1
      %v5102 = vsel %vm1210, %v5100, %v5101
      %v5103 = vrot.slane %v4811, 1
      %v5104 = vrot.slane %v4875, 1
      %v5105 = vsel %vm1210, %v5103, %v5104
      %v5106 = vrot.slane %v4812, 1
      %v5107 = vrot.slane %v4876, 1
      %v5108 = vsel %vm1210, %v5106, %v5107
      %v5109 = vrot.slane %v4813, 1
      %v5110 = vrot.slane %v4877, 1
      %v5111 = vsel %vm1210, %v5109, %v5110
      %v5112 = vrot.slane %v4814, 1
      %v5113 = vrot.slane %v4878, 1
      %v5114 = vsel %vm1210, %v5112, %v5113
      %v5115 = vrot.slane %v4815, 1
      %v5116 = vrot.slane %v4879, 1
      %v5117 = vsel %vm1210, %v5115, %v5116
      %v5118 = vrot.slane %v4816, 1
      %v5119 = vrot.slane %v4880, 1
      %v5120 = vsel %vm1210, %v5118, %v5119
      %v5121 = vrot.slane %v4817, 1
      %v5122 = vrot.slane %v4881, 1
      %v5123 = vsel %vm1210, %v5121, %v5122
      %v5124 = vrot.slane %v4818, 1
      %v5125 = vrot.slane %v4882, 1
      %v5126 = vsel %vm1210, %v5124, %v5125
      %v5127 = vrot.slane %v4819, 1
      %v5128 = vrot.slane %v4883, 1
      %v5129 = vsel %vm1210, %v5127, %v5128
      %v5130 = vrot.slane %v4820, 1
      %v5131 = vrot.slane %v4884, 1
      %v5132 = vsel %vm1210, %v5130, %v5131
      %v5133 = vrot.slane %v4821, 1
      %v5134 = vrot.slane %v4885, 1
      %v5135 = vsel %vm1210, %v5133, %v5134
      %v5136 = vrot.slane %v4822, 1
      %v5137 = vrot.slane %v4886, 1
      %v5138 = vsel %vm1210, %v5136, %v5137
      %v5139 = vrot.slane %v4823, 1
      %v5140 = vrot.slane %v4887, 1
      %v5141 = vsel %vm1210, %v5139, %v5140
      %v5142 = vrot.slane %v4824, 1
      %v5143 = vrot.slane %v4888, 1
      %v5144 = vsel %vm1210, %v5142, %v5143
      %v5161 = vld [vmem:[%s2] sm:$0xf]
      %v5162 = vld [vmem:[%s2 + $0x4] sm:$0xf]
      %v5163 = vld [vmem:[%s2 + $0x8] sm:$0xf]
      %v5164 = vld [vmem:[%s2 + $0xc] sm:$0xf]
      %v5165 = vld [vmem:[%s2 + $0x10] sm:$0xf]
      %v5166 = vld [vmem:[%s2 + $0x14] sm:$0xf]
      %v5167 = vld [vmem:[%s2 + $0x18] sm:$0xf]
      %v5168 = vld [vmem:[%s2 + $0x1c] sm:$0xf]
      %v5169 = vld [vmem:[%s2 + $0x20] sm:$0xf]
      %v5170 = vld [vmem:[%s2 + $0x24] sm:$0xf]
      %v5171 = vld [vmem:[%s2 + $0x28] sm:$0xf]
      %v5172 = vld [vmem:[%s2 + $0x2c] sm:$0xf]
      %v5173 = vld [vmem:[%s2 + $0x30] sm:$0xf]
      %v5174 = vld [vmem:[%s2 + $0x34] sm:$0xf]
      %v5175 = vld [vmem:[%s2 + $0x38] sm:$0xf]
      %v5176 = vld [vmem:[%s2 + $0x3c] sm:$0xf]
      %v5177 = vld [vmem:[%s2 + $0x40] sm:$0xf]
      %v5178 = vld [vmem:[%s2 + $0x44] sm:$0xf]
      %v5179 = vld [vmem:[%s2 + $0x48] sm:$0xf]
      %v5180 = vld [vmem:[%s2 + $0x4c] sm:$0xf]
      %v5181 = vld [vmem:[%s2 + $0x50] sm:$0xf]
      %v5182 = vld [vmem:[%s2 + $0x54] sm:$0xf]
      %v5183 = vld [vmem:[%s2 + $0x58] sm:$0xf]
      %v5184 = vld [vmem:[%s2 + $0x5c] sm:$0xf]
      %v5185 = vld [vmem:[%s2 + $0x60] sm:$0xf]
      %v5186 = vld [vmem:[%s2 + $0x64] sm:$0xf]
      %v5187 = vld [vmem:[%s2 + $0x68] sm:$0xf]
      %v5188 = vld [vmem:[%s2 + $0x6c] sm:$0xf]
      %v5189 = vld [vmem:[%s2 + $0x70] sm:$0xf]
      %v5190 = vld [vmem:[%s2 + $0x74] sm:$0xf]
      %v5191 = vld [vmem:[%s2 + $0x78] sm:$0xf]
      %v5192 = vld [vmem:[%s2 + $0x7c] sm:$0xf]
      %v5193 = vld [vmem:[%s2 + $0x80] sm:$0xf]
      %v5194 = vld [vmem:[%s2 + $0x84] sm:$0xf]
      %v5195 = vld [vmem:[%s2 + $0x88] sm:$0xf]
      %v5196 = vld [vmem:[%s2 + $0x8c] sm:$0xf]
      %v5197 = vld [vmem:[%s2 + $0x90] sm:$0xf]
      %v5198 = vld [vmem:[%s2 + $0x94] sm:$0xf]
      %v5199 = vld [vmem:[%s2 + $0x98] sm:$0xf]
      %v5200 = vld [vmem:[%s2 + $0x9c] sm:$0xf]
      %v5201 = vld [vmem:[%s2 + $0xa0] sm:$0xf]
      %v5202 = vld [vmem:[%s2 + $0xa4] sm:$0xf]
      %v5203 = vld [vmem:[%s2 + $0xa8] sm:$0xf]
      %v5204 = vld [vmem:[%s2 + $0xac] sm:$0xf]
      %v5205 = vld [vmem:[%s2 + $0xb0] sm:$0xf]
      %v5206 = vld [vmem:[%s2 + $0xb4] sm:$0xf]
      %v5207 = vld [vmem:[%s2 + $0xb8] sm:$0xf]
      %v5208 = vld [vmem:[%s2 + $0xbc] sm:$0xf]
      %v5257 = vunpack.c.l.b16 %v5161
      %v5258 = vunpack.c.l.b16 %v5162
      %v5259 = vunpack.c.l.b16 %v5163
      %v5260 = vunpack.c.l.b16 %v5164
      %v5261 = vunpack.c.l.b16 %v5165
      %v5262 = vunpack.c.l.b16 %v5166
      %v5263 = vunpack.c.l.b16 %v5167
      %v5264 = vunpack.c.l.b16 %v5168
      %v5265 = vunpack.c.l.b16 %v5169
      %v5266 = vunpack.c.l.b16 %v5170
      %v5267 = vunpack.c.l.b16 %v5171
      %v5268 = vunpack.c.l.b16 %v5172
      %v5269 = vunpack.c.l.b16 %v5173
      %v5270 = vunpack.c.l.b16 %v5174
      %v5271 = vunpack.c.l.b16 %v5175
      %v5272 = vunpack.c.l.b16 %v5176
      %v5273 = vunpack.c.l.b16 %v5177
      %v5274 = vunpack.c.l.b16 %v5178
      %v5275 = vunpack.c.l.b16 %v5179
      %v5276 = vunpack.c.l.b16 %v5180
      %v5277 = vunpack.c.l.b16 %v5181
      %v5278 = vunpack.c.l.b16 %v5182
      %v5279 = vunpack.c.l.b16 %v5183
      %v5280 = vunpack.c.l.b16 %v5184
      %v5281 = vunpack.c.l.b16 %v5185
      %v5282 = vunpack.c.l.b16 %v5186
      %v5283 = vunpack.c.l.b16 %v5187
      %v5284 = vunpack.c.l.b16 %v5188
      %v5285 = vunpack.c.l.b16 %v5189
      %v5286 = vunpack.c.l.b16 %v5190
      %v5287 = vunpack.c.l.b16 %v5191
      %v5288 = vunpack.c.l.b16 %v5192
      %v5289 = vunpack.c.l.b16 %v5193
      %v5290 = vunpack.c.l.b16 %v5194
      %v5291 = vunpack.c.l.b16 %v5195
      %v5292 = vunpack.c.l.b16 %v5196
      %v5293 = vunpack.c.l.b16 %v5197
      %v5294 = vunpack.c.l.b16 %v5198
      %v5295 = vunpack.c.l.b16 %v5199
      %v5296 = vunpack.c.l.b16 %v5200
      %v5297 = vunpack.c.l.b16 %v5201
      %v5298 = vunpack.c.l.b16 %v5202
      %v5299 = vunpack.c.l.b16 %v5203
      %v5300 = vunpack.c.l.b16 %v5204
      %v5301 = vunpack.c.l.b16 %v5205
      %v5302 = vunpack.c.l.b16 %v5206
      %v5303 = vunpack.c.l.b16 %v5207
      %v5304 = vunpack.c.l.b16 %v5208
      %v5305 = vpack.c.b16 %v5258, %v5257
      %v5306 = vpack.c.b16 %v5260, %v5259
      %v5307 = vpack.c.b16 %v5262, %v5261
      %v5308 = vpack.c.b16 %v5264, %v5263
      %v5309 = vpack.c.b16 %v5266, %v5265
      %v5310 = vpack.c.b16 %v5268, %v5267
      %v5311 = vpack.c.b16 %v5270, %v5269
      %v5312 = vpack.c.b16 %v5272, %v5271
      %v5313 = vpack.c.b16 %v5274, %v5273
      %v5314 = vpack.c.b16 %v5276, %v5275
      %v5315 = vpack.c.b16 %v5278, %v5277
      %v5316 = vpack.c.b16 %v5280, %v5279
      %v5317 = vpack.c.b16 %v5282, %v5281
      %v5318 = vpack.c.b16 %v5284, %v5283
      %v5319 = vpack.c.b16 %v5286, %v5285
      %v5320 = vpack.c.b16 %v5288, %v5287
      %v5321 = vpack.c.b16 %v5290, %v5289
      %v5322 = vpack.c.b16 %v5292, %v5291
      %v5323 = vpack.c.b16 %v5294, %v5293
      %v5324 = vpack.c.b16 %v5296, %v5295
      %v5325 = vpack.c.b16 %v5298, %v5297
      %v5326 = vpack.c.b16 %v5300, %v5299
      %v5327 = vpack.c.b16 %v5302, %v5301
      %v5328 = vpack.c.b16 %v5304, %v5303
      %5353 = vmatprep.subr.bf16.mxu0 0
      %5354 = vmatpush1.bf16.msra.mxu0 %v5312
      %5355 = vmatprep.subr.bf16.mxu0 0
      %5356 = vmatpush1.bf16.msra.mxu0 %v5311
      %5357 = vmatprep.subr.bf16.mxu0 0
      %5358 = vmatpush1.bf16.msra.mxu0 %v5310
      %5359 = vmatprep.subr.bf16.mxu0 0
      %5360 = vmatpush1.bf16.msra.mxu0 %v5309
      %5361 = vmatprep.subr.bf16.mxu0 0
      %5362 = vmatpush1.bf16.msra.mxu0 %v5308
      %5363 = vmatprep.subr.bf16.mxu0 0
      %5364 = vmatpush1.bf16.msra.mxu0 %v5307
      %5365 = vmatprep.subr.bf16.mxu0 0
      %5366 = vmatpush1.bf16.msra.mxu0 %v5306
      %5367 = vmatprep.subr.bf16.mxu0 0
      %5368 = vmatpush1.bf16.msra.mxu0 %v5305
      %5369 = vmatprep.subr.bf16.mxu0 0
      %5370 = vmatpush2.bf16.msra.mxu0 %v5320
      %5371 = vmatprep.subr.bf16.mxu0 0
      %5372 = vmatpush2.bf16.msra.mxu0 %v5319
      %5373 = vmatprep.subr.bf16.mxu0 0
      %5374 = vmatpush2.bf16.msra.mxu0 %v5318
      %5375 = vmatprep.subr.bf16.mxu0 0
      %5376 = vmatpush2.bf16.msra.mxu0 %v5317
      %5377 = vmatprep.subr.bf16.mxu0 0
      %5378 = vmatpush2.bf16.msra.mxu0 %v5316
      %5379 = vmatprep.subr.bf16.mxu0 0
      %5380 = vmatpush2.bf16.msra.mxu0 %v5315
      %5381 = vmatprep.subr.bf16.mxu0 0
      %5382 = vmatpush2.bf16.msra.mxu0 %v5314
      %5383 = vmatprep.subr.bf16.mxu0 0
      %5384 = vmatpush2.bf16.msra.mxu0 %v5313
      %5385 = vmatprep.mubr.bf16.mxu0 %v4900
      %5386 = vmatmul.mubr.bf16.gmra.mxu0 %v4809
      %v5387 = vpop.f32.mrf.mxu0
      %v5388 = vadd.f32 0.0, %v5387
      %v5389 = vpop.f32.mrf.mxu0
      %v5390 = vpop.f32.mrf.mxu0
      %v5391 = vadd.f32 0.0, %v5390
      %v5392 = vpop.f32.mrf.mxu0
      %5393 = vmatprep.mubr.bf16.mxu0 %v4912
      %5394 = vmatmul.mubr.bf16.gmra.mxu0 %v4810
      %v5395 = vpop.f32.mrf.mxu0
      %v5396 = vadd.f32 0.0, %v5395
      %v5397 = vpop.f32.mrf.mxu0
      %v5398 = vpop.f32.mrf.mxu0
      %v5399 = vadd.f32 0.0, %v5398
      %v5400 = vpop.f32.mrf.mxu0
      %5401 = vmatprep.mubr.bf16.mxu0 %v4924
      %5402 = vmatmul.mubr.bf16.gmra.mxu0 %v4811
      %v5403 = vpop.f32.mrf.mxu0
      %v5404 = vadd.f32 0.0, %v5403
      %v5405 = vpop.f32.mrf.mxu0
      %v5406 = vpop.f32.mrf.mxu0
      %v5407 = vadd.f32 0.0, %v5406
      %v5408 = vpop.f32.mrf.mxu0
      %5409 = vmatprep.mubr.bf16.mxu0 %v4936
      %5410 = vmatmul.mubr.bf16.gmra.mxu0 %v4812
      %v5411 = vpop.f32.mrf.mxu0
      %v5412 = vadd.f32 0.0, %v5411
      %v5413 = vpop.f32.mrf.mxu0
      %v5414 = vpop.f32.mrf.mxu0
      %v5415 = vadd.f32 0.0, %v5414
      %v5416 = vpop.f32.mrf.mxu0
      %5417 = vmatprep.mubr.bf16.mxu0 %v4948
      %5418 = vmatmul.mubr.bf16.gmra.mxu0 %v4813
      %v5419 = vpop.f32.mrf.mxu0
      %v5420 = vadd.f32 0.0, %v5419
      %v5421 = vpop.f32.mrf.mxu0
      %v5422 = vpop.f32.mrf.mxu0
      %v5423 = vadd.f32 0.0, %v5422
      %v5424 = vpop.f32.mrf.mxu0
      %5425 = vmatprep.mubr.bf16.mxu0 %v4960
      %5426 = vmatmul.mubr.bf16.gmra.mxu0 %v4814
      %v5427 = vpop.f32.mrf.mxu0
      %v5428 = vadd.f32 0.0, %v5427
      %v5429 = vpop.f32.mrf.mxu0
      %v5430 = vpop.f32.mrf.mxu0
      %v5431 = vadd.f32 0.0, %v5430
      %v5432 = vpop.f32.mrf.mxu0
      %5433 = vmatprep.mubr.bf16.mxu0 %v4972
      %5434 = vmatmul.mubr.bf16.gmra.mxu0 %v4815
      %v5435 = vpop.f32.mrf.mxu0
      %v5436 = vadd.f32 0.0, %v5435
      %v5437 = vpop.f32.mrf.mxu0
      %v5438 = vpop.f32.mrf.mxu0
      %v5439 = vadd.f32 0.0, %v5438
      %v5440 = vpop.f32.mrf.mxu0
      %5441 = vmatprep.mubr.bf16.mxu0 %v4984
      %5442 = vmatmul.mubr.bf16.gmra.mxu0 %v4816
      %v5443 = vpop.f32.mrf.mxu0
      %v5444 = vadd.f32 0.0, %v5443
      %v5445 = vpop.f32.mrf.mxu0
      %v5446 = vpop.f32.mrf.mxu0
      %v5447 = vadd.f32 0.0, %v5446
      %v5448 = vpop.f32.mrf.mxu0
      %5449 = vmatprep.mubr.bf16.mxu0 %v4996
      %5450 = vmatmul.mubr.bf16.gmra.mxu0 %v4817
      %v5451 = vpop.f32.mrf.mxu0
      %v5452 = vadd.f32 0.0, %v5451
      %v5453 = vpop.f32.mrf.mxu0
      %v5454 = vpop.f32.mrf.mxu0
      %v5455 = vadd.f32 0.0, %v5454
      %v5456 = vpop.f32.mrf.mxu0
      %5457 = vmatprep.mubr.bf16.mxu0 %v5008
      %5458 = vmatmul.mubr.bf16.gmra.mxu0 %v4818
      %v5459 = vpop.f32.mrf.mxu0
      %v5460 = vadd.f32 0.0, %v5459
      %v5461 = vpop.f32.mrf.mxu0
      %v5462 = vpop.f32.mrf.mxu0
      %v5463 = vadd.f32 0.0, %v5462
      %v5464 = vpop.f32.mrf.mxu0
      %5465 = vmatprep.mubr.bf16.mxu0 %v5020
      %5466 = vmatmul.mubr.bf16.gmra.mxu0 %v4819
      %v5467 = vpop.f32.mrf.mxu0
      %v5468 = vadd.f32 0.0, %v5467
      %v5469 = vpop.f32.mrf.mxu0
      %v5470 = vpop.f32.mrf.mxu0
      %v5471 = vadd.f32 0.0, %v5470
      %v5472 = vpop.f32.mrf.mxu0
      %5473 = vmatprep.mubr.bf16.mxu0 %v5032
      %5474 = vmatmul.mubr.bf16.gmra.mxu0 %v4820
      %v5475 = vpop.f32.mrf.mxu0
      %v5476 = vadd.f32 0.0, %v5475
      %v5477 = vpop.f32.mrf.mxu0
      %v5478 = vpop.f32.mrf.mxu0
      %v5479 = vadd.f32 0.0, %v5478
      %v5480 = vpop.f32.mrf.mxu0
      %5481 = vmatprep.mubr.bf16.mxu0 %v5044
      %5482 = vmatmul.mubr.bf16.gmra.mxu0 %v4821
      %v5483 = vpop.f32.mrf.mxu0
      %v5484 = vadd.f32 0.0, %v5483
      %v5485 = vpop.f32.mrf.mxu0
      %v5486 = vpop.f32.mrf.mxu0
      %v5487 = vadd.f32 0.0, %v5486
      %v5488 = vpop.f32.mrf.mxu0
      %5489 = vmatprep.mubr.bf16.mxu0 %v5056
      %5490 = vmatmul.mubr.bf16.gmra.mxu0 %v4822
      %v5491 = vpop.f32.mrf.mxu0
      %v5492 = vadd.f32 0.0, %v5491
      %v5493 = vpop.f32.mrf.mxu0
      %v5494 = vpop.f32.mrf.mxu0
      %v5495 = vadd.f32 0.0, %v5494
      %v5496 = vpop.f32.mrf.mxu0
      %5497 = vmatprep.mubr.bf16.mxu0 %v5068
      %5498 = vmatmul.mubr.bf16.gmra.mxu0 %v4823
      %v5499 = vpop.f32.mrf.mxu0
      %v5500 = vadd.f32 0.0, %v5499
      %v5501 = vpop.f32.mrf.mxu0
      %v5502 = vpop.f32.mrf.mxu0
      %v5503 = vadd.f32 0.0, %v5502
      %v5504 = vpop.f32.mrf.mxu0
      %5505 = vmatprep.mubr.bf16.mxu0 %v5080
      %5506 = vmatmul.mubr.bf16.gmra.mxu0 %v4824
      %v5507 = vpop.f32.mrf.mxu0
      %v5508 = vadd.f32 0.0, %v5507
      %v5509 = vpop.f32.mrf.mxu0
      %v5510 = vpop.f32.mrf.mxu0
      %v5511 = vadd.f32 0.0, %v5510
      %v5512 = vpop.f32.mrf.mxu0
      %5513 = vdwg.mxu0
      %5514 = vmatprep.subr.bf16.mxu0 0
      %5515 = vmatpush1.bf16.msra.mxu0 %v5328
      %5516 = vmatprep.subr.bf16.mxu0 0
      %5517 = vmatpush1.bf16.msra.mxu0 %v5327
      %5518 = vmatprep.subr.bf16.mxu0 0
      %5519 = vmatpush1.bf16.msra.mxu0 %v5326
      %5520 = vmatprep.subr.bf16.mxu0 0
      %5521 = vmatpush1.bf16.msra.mxu0 %v5325
      %5522 = vmatprep.subr.bf16.mxu0 0
      %5523 = vmatpush1.bf16.msra.mxu0 %v5324
      %5524 = vmatprep.subr.bf16.mxu0 0
      %5525 = vmatpush1.bf16.msra.mxu0 %v5323
      %5526 = vmatprep.subr.bf16.mxu0 0
      %5527 = vmatpush1.bf16.msra.mxu0 %v5322
      %5528 = vmatprep.subr.bf16.mxu0 0
      %5529 = vmatpush1.bf16.msra.mxu0 %v5321
      %5530 = vmatprep.subr.bf16.mxu0 0
      %5531 = vmatpush2.bf16.msra.mxu0 0
      %5532 = vmatprep.subr.bf16.mxu0 0
      %5533 = vmatpush2.bf16.msra.mxu0 0
      %5534 = vmatprep.subr.bf16.mxu0 0
      %5535 = vmatpush2.bf16.msra.mxu0 0
      %5536 = vmatprep.subr.bf16.mxu0 0
      %5537 = vmatpush2.bf16.msra.mxu0 0
      %5538 = vmatprep.subr.bf16.mxu0 0
      %5539 = vmatpush2.bf16.msra.mxu0 0
      %5540 = vmatprep.subr.bf16.mxu0 0
      %5541 = vmatpush2.bf16.msra.mxu0 0
      %5542 = vmatprep.subr.bf16.mxu0 0
      %5543 = vmatpush2.bf16.msra.mxu0 0
      %5544 = vmatprep.subr.bf16.mxu0 0
      %5545 = vmatpush2.bf16.msra.mxu0 0
      %5546 = vmatprep.mubr.bf16.mxu0 0
      %5547 = vmatmul.mubr.bf16.gmra.mxu0 %v5099
      %v5548 = vpop.f32.mrf.mxu0
      %v5549 = vadd.f32 %v5388, %v5548
      %v5550 = vpop.f32.mrf.mxu0
      %v5551 = vpop.f32.mrf.mxu0
      %v5552 = vadd.f32 %v5391, %v5551
      %v5553 = vpop.f32.mrf.mxu0
      %5554 = vmatprep.mubr.bf16.mxu0 0
      %5555 = vmatmul.mubr.bf16.gmra.mxu0 %v5102
      %v5556 = vpop.f32.mrf.mxu0
      %v5557 = vadd.f32 %v5396, %v5556
      %v5558 = vpop.f32.mrf.mxu0
      %v5559 = vpop.f32.mrf.mxu0
      %v5560 = vadd.f32 %v5399, %v5559
      %v5561 = vpop.f32.mrf.mxu0
      %5562 = vmatprep.mubr.bf16.mxu0 0
      %5563 = vmatmul.mubr.bf16.gmra.mxu0 %v5105
      %v5564 = vpop.f32.mrf.mxu0
      %v5565 = vadd.f32 %v5404, %v5564
      %v5566 = vpop.f32.mrf.mxu0
      %v5567 = vpop.f32.mrf.mxu0
      %v5568 = vadd.f32 %v5407, %v5567
      %v5569 = vpop.f32.mrf.mxu0
      %5570 = vmatprep.mubr.bf16.mxu0 0
      %5571 = vmatmul.mubr.bf16.gmra.mxu0 %v5108
      %v5572 = vpop.f32.mrf.mxu0
      %v5573 = vadd.f32 %v5412, %v5572
      %v5574 = vpop.f32.mrf.mxu0
      %v5575 = vpop.f32.mrf.mxu0
      %v5576 = vadd.f32 %v5415, %v5575
      %v5577 = vpop.f32.mrf.mxu0
      %5578 = vmatprep.mubr.bf16.mxu0 0
      %5579 = vmatmul.mubr.bf16.gmra.mxu0 %v5111
      %v5580 = vpop.f32.mrf.mxu0
      %v5581 = vadd.f32 %v5420, %v5580
      %v5582 = vpop.f32.mrf.mxu0
      %v5583 = vpop.f32.mrf.mxu0
      %v5584 = vadd.f32 %v5423, %v5583
      %v5585 = vpop.f32.mrf.mxu0
      %5586 = vmatprep.mubr.bf16.mxu0 0
      %5587 = vmatmul.mubr.bf16.gmra.mxu0 %v5114
      %v5588 = vpop.f32.mrf.mxu0
      %v5589 = vadd.f32 %v5428, %v5588
      %v5590 = vpop.f32.mrf.mxu0
      %v5591 = vpop.f32.mrf.mxu0
      %v5592 = vadd.f32 %v5431, %v5591
      %v5593 = vpop.f32.mrf.mxu0
      %5594 = vmatprep.mubr.bf16.mxu0 0
      %5595 = vmatmul.mubr.bf16.gmra.mxu0 %v5117
      %v5596 = vpop.f32.mrf.mxu0
      %v5597 = vadd.f32 %v5436, %v5596
      %v5598 = vpop.f32.mrf.mxu0
      %v5599 = vpop.f32.mrf.mxu0
      %v5600 = vadd.f32 %v5439, %v5599
      %v5601 = vpop.f32.mrf.mxu0
      %5602 = vmatprep.mubr.bf16.mxu0 0
      %5603 = vmatmul.mubr.bf16.gmra.mxu0 %v5120
      %v5604 = vpop.f32.mrf.mxu0
      %v5605 = vadd.f32 %v5444, %v5604
      %v5606 = vpop.f32.mrf.mxu0
      %v5607 = vpop.f32.mrf.mxu0
      %v5608 = vadd.f32 %v5447, %v5607
      %v5609 = vpop.f32.mrf.mxu0
      %5610 = vmatprep.mubr.bf16.mxu0 0
      %5611 = vmatmul.mubr.bf16.gmra.mxu0 %v5123
      %v5612 = vpop.f32.mrf.mxu0
      %v5613 = vadd.f32 %v5452, %v5612
      %v5614 = vpop.f32.mrf.mxu0
      %v5615 = vpop.f32.mrf.mxu0
      %v5616 = vadd.f32 %v5455, %v5615
      %v5617 = vpop.f32.mrf.mxu0
      %5618 = vmatprep.mubr.bf16.mxu0 0
      %5619 = vmatmul.mubr.bf16.gmra.mxu0 %v5126
      %v5620 = vpop.f32.mrf.mxu0
      %v5621 = vadd.f32 %v5460, %v5620
      %v5622 = vpop.f32.mrf.mxu0
      %v5623 = vpop.f32.mrf.mxu0
      %v5624 = vadd.f32 %v5463, %v5623
      %v5625 = vpop.f32.mrf.mxu0
      %5626 = vmatprep.mubr.bf16.mxu0 0
      %5627 = vmatmul.mubr.bf16.gmra.mxu0 %v5129
      %v5628 = vpop.f32.mrf.mxu0
      %v5629 = vadd.f32 %v5468, %v5628
      %v5630 = vpop.f32.mrf.mxu0
      %v5631 = vpop.f32.mrf.mxu0
      %v5632 = vadd.f32 %v5471, %v5631
      %v5633 = vpop.f32.mrf.mxu0
      %5634 = vmatprep.mubr.bf16.mxu0 0
      %5635 = vmatmul.mubr.bf16.gmra.mxu0 %v5132
      %v5636 = vpop.f32.mrf.mxu0
      %v5637 = vadd.f32 %v5476, %v5636
      %v5638 = vpop.f32.mrf.mxu0
      %v5639 = vpop.f32.mrf.mxu0
      %v5640 = vadd.f32 %v5479, %v5639
      %v5641 = vpop.f32.mrf.mxu0
      %5642 = vmatprep.mubr.bf16.mxu0 0
      %5643 = vmatmul.mubr.bf16.gmra.mxu0 %v5135
      %v5644 = vpop.f32.mrf.mxu0
      %v5645 = vadd.f32 %v5484, %v5644
      %v5646 = vpop.f32.mrf.mxu0
      %v5647 = vpop.f32.mrf.mxu0
      %v5648 = vadd.f32 %v5487, %v5647
      %v5649 = vpop.f32.mrf.mxu0
      %5650 = vmatprep.mubr.bf16.mxu0 0
      %5651 = vmatmul.mubr.bf16.gmra.mxu0 %v5138
      %v5652 = vpop.f32.mrf.mxu0
      %v5653 = vadd.f32 %v5492, %v5652
      %v5654 = vpop.f32.mrf.mxu0
      %v5655 = vpop.f32.mrf.mxu0
      %v5656 = vadd.f32 %v5495, %v5655
      %v5657 = vpop.f32.mrf.mxu0
      %5658 = vmatprep.mubr.bf16.mxu0 0
      %5659 = vmatmul.mubr.bf16.gmra.mxu0 %v5141
      %v5660 = vpop.f32.mrf.mxu0
      %v5661 = vadd.f32 %v5500, %v5660
      %v5662 = vpop.f32.mrf.mxu0
      %v5663 = vpop.f32.mrf.mxu0
      %v5664 = vadd.f32 %v5503, %v5663
      %v5665 = vpop.f32.mrf.mxu0
      %5666 = vmatprep.mubr.bf16.mxu0 0
      %5667 = vmatmul.mubr.bf16.gmra.mxu0 %v5144
      %v5668 = vpop.f32.mrf.mxu0
      %v5669 = vadd.f32 %v5508, %v5668
      %v5670 = vpop.f32.mrf.mxu0
      %v5671 = vpop.f32.mrf.mxu0
      %v5672 = vadd.f32 %v5511, %v5671
      %v5673 = vpop.f32.mrf.mxu0
      %5674 = vdwg.mxu0
      %5675 = vst [vmem:[#allocation4] sm:$0xff] %v5549
      %5676 = vst [vmem:[#allocation4 + $0x8] sm:$0xff] %v5552
      %5677 = vst [vmem:[#allocation4 + $0x10] sm:$0xff] %v5557
      %5678 = vst [vmem:[#allocation4 + $0x18] sm:$0xff] %v5560
      %5679 = vst [vmem:[#allocation4 + $0x20] sm:$0xff] %v5565
      %5680 = vst [vmem:[#allocation4 + $0x28] sm:$0xff] %v5568
      %5681 = vst [vmem:[#allocation4 + $0x30] sm:$0xff] %v5573
      %5682 = vst [vmem:[#allocation4 + $0x38] sm:$0xff] %v5576
      %5683 = vst [vmem:[#allocation4 + $0x40] sm:$0xff] %v5581
      %5684 = vst [vmem:[#allocation4 + $0x48] sm:$0xff] %v5584
      %5685 = vst [vmem:[#allocation4 + $0x50] sm:$0xff] %v5589
      %5686 = vst [vmem:[#allocation4 + $0x58] sm:$0xff] %v5592
      %5687 = vst [vmem:[#allocation4 + $0x60] sm:$0xff] %v5597
      %5688 = vst [vmem:[#allocation4 + $0x68] sm:$0xff] %v5600
      %5689 = vst [vmem:[#allocation4 + $0x70] sm:$0xff] %v5605
      %5690 = vst [vmem:[#allocation4 + $0x78] sm:$0xff] %v5608
      %5691 = vst [vmem:[#allocation4 + $0x80] sm:$0xff] %v5613
      %5692 = vst [vmem:[#allocation4 + $0x88] sm:$0xff] %v5616
      %5693 = vst [vmem:[#allocation4 + $0x90] sm:$0xff] %v5621
      %5694 = vst [vmem:[#allocation4 + $0x98] sm:$0xff] %v5624
      %5695 = vst [vmem:[#allocation4 + $0xa0] sm:$0xff] %v5629
      %5696 = vst [vmem:[#allocation4 + $0xa8] sm:$0xff] %v5632
      %5697 = vst [vmem:[#allocation4 + $0xb0] sm:$0xff] %v5637
      %5698 = vst [vmem:[#allocation4 + $0xb8] sm:$0xff] %v5640
      %5699 = vst [vmem:[#allocation4 + $0xc0] sm:$0xff] %v5645
      %5700 = vst [vmem:[#allocation4 + $0xc8] sm:$0xff] %v5648
      %5701 = vst [vmem:[#allocation4 + $0xd0] sm:$0xff] %v5653
      %5702 = vst [vmem:[#allocation4 + $0xd8] sm:$0xff] %v5656
      %5703 = vst [vmem:[#allocation4 + $0xe0] sm:$0xff] %v5661
      %5704 = vst [vmem:[#allocation4 + $0xe8] sm:$0xff] %v5664
      %5705 = vst [vmem:[#allocation4 + $0xf0] sm:$0xff] %v5669
      %5706 = vst [vmem:[#allocation4 + $0xf8] sm:$0xff] %v5672
      %v5707 = vld [vmem:[%s4582] sm:$0xf]
      %v5708 = vld [vmem:[%s4582 + $0x4] sm:$0xf]
      %v5709 = vld [vmem:[%s4582 + $0x8] sm:$0x1]
      %v5710 = vld [vmem:[%s4582 + $0xc] sm:$0xf]
      %v5711 = vld [vmem:[%s4582 + $0x10] sm:$0xf]
      %v5712 = vld [vmem:[%s4582 + $0x14] sm:$0x1]
      %v5713 = vld [vmem:[%s4582 + $0x18] sm:$0xf]
      %v5714 = vld [vmem:[%s4582 + $0x1c] sm:$0xf]
      %v5715 = vld [vmem:[%s4582 + $0x20] sm:$0x1]
      %v5716 = vld [vmem:[%s4582 + $0x24] sm:$0xf]
      %v5717 = vld [vmem:[%s4582 + $0x28] sm:$0xf]
      %v5718 = vld [vmem:[%s4582 + $0x2c] sm:$0x1]
      %v5719 = vld [vmem:[%s4582 + $0x30] sm:$0xf]
      %v5720 = vld [vmem:[%s4582 + $0x34] sm:$0xf]
      %v5721 = vld [vmem:[%s4582 + $0x38] sm:$0x1]
      %v5722 = vld [vmem:[%s4582 + $0x3c] sm:$0xf]
      %v5723 = vld [vmem:[%s4582 + $0x40] sm:$0xf]
      %v5724 = vld [vmem:[%s4582 + $0x44] sm:$0x1]
      %v5725 = vld [vmem:[%s4582 + $0x48] sm:$0xf]
      %v5726 = vld [vmem:[%s4582 + $0x4c] sm:$0xf]
      %v5727 = vld [vmem:[%s4582 + $0x50] sm:$0x1]
      %v5728 = vld [vmem:[%s4582 + $0x54] sm:$0xf]
      %v5729 = vld [vmem:[%s4582 + $0x58] sm:$0xf]
      %v5730 = vld [vmem:[%s4582 + $0x5c] sm:$0x1]
      %v5731 = vld [vmem:[%s4582 + $0x60] sm:$0xf]
      %v5732 = vld [vmem:[%s4582 + $0x64] sm:$0xf]
      %v5733 = vld [vmem:[%s4582 + $0x68] sm:$0x1]
      %v5734 = vld [vmem:[%s4582 + $0x6c] sm:$0xf]
      %v5735 = vld [vmem:[%s4582 + $0x70] sm:$0xf]
      %v5736 = vld [vmem:[%s4582 + $0x74] sm:$0x1]
      %v5737 = vld [vmem:[%s4582 + $0x78] sm:$0xf]
      %v5738 = vld [vmem:[%s4582 + $0x7c] sm:$0xf]
      %v5739 = vld [vmem:[%s4582 + $0x80] sm:$0x1]
      %v5740 = vld [vmem:[%s4582 + $0x84] sm:$0xf]
      %v5741 = vld [vmem:[%s4582 + $0x88] sm:$0xf]
      %v5742 = vld [vmem:[%s4582 + $0x8c] sm:$0x1]
      %v5743 = vld [vmem:[%s4582 + $0x90] sm:$0xf]
      %v5744 = vld [vmem:[%s4582 + $0x94] sm:$0xf]
      %v5745 = vld [vmem:[%s4582 + $0x98] sm:$0x1]
      %v5746 = vld [vmem:[%s4582 + $0x9c] sm:$0xf]
      %v5747 = vld [vmem:[%s4582 + $0xa0] sm:$0xf]
      %v5748 = vld [vmem:[%s4582 + $0xa4] sm:$0x1]
      %v5749 = vld [vmem:[%s4582 + $0xa8] sm:$0xf]
      %v5750 = vld [vmem:[%s4582 + $0xac] sm:$0xf]
      %v5751 = vld [vmem:[%s4582 + $0xb0] sm:$0x1]
      %v5752 = vld [vmem:[%s4582 + $0xb4] sm:$0xf]
      %v5753 = vld [vmem:[%s4582 + $0xb8] sm:$0xf]
      %v5754 = vld [vmem:[%s4582 + $0xbc] sm:$0x1]
      %v5787 = vunpack.c.l.b16 %v5707
      %v5788 = vunpack.c.l.b16 %v5708
      %v5789 = vunpack.c.l.b16 %v5710
      %v5790 = vunpack.c.l.b16 %v5711
      %v5791 = vunpack.c.l.b16 %v5713
      %v5792 = vunpack.c.l.b16 %v5714
      %v5793 = vunpack.c.l.b16 %v5716
      %v5794 = vunpack.c.l.b16 %v5717
      %v5795 = vunpack.c.l.b16 %v5719
      %v5796 = vunpack.c.l.b16 %v5720
      %v5797 = vunpack.c.l.b16 %v5722
      %v5798 = vunpack.c.l.b16 %v5723
      %v5799 = vunpack.c.l.b16 %v5725
      %v5800 = vunpack.c.l.b16 %v5726
      %v5801 = vunpack.c.l.b16 %v5728
      %v5802 = vunpack.c.l.b16 %v5729
      %v5803 = vunpack.c.l.b16 %v5731
      %v5804 = vunpack.c.l.b16 %v5732
      %v5805 = vunpack.c.l.b16 %v5734
      %v5806 = vunpack.c.l.b16 %v5735
      %v5807 = vunpack.c.l.b16 %v5737
      %v5808 = vunpack.c.l.b16 %v5738
      %v5809 = vunpack.c.l.b16 %v5740
      %v5810 = vunpack.c.l.b16 %v5741
      %v5811 = vunpack.c.l.b16 %v5743
      %v5812 = vunpack.c.l.b16 %v5744
      %v5813 = vunpack.c.l.b16 %v5746
      %v5814 = vunpack.c.l.b16 %v5747
      %v5815 = vunpack.c.l.b16 %v5749
      %v5816 = vunpack.c.l.b16 %v5750
      %v5817 = vunpack.c.l.b16 %v5752
      %v5818 = vunpack.c.l.b16 %v5753
      %v5819 = vpack.c.b16 %v5788, %v5787
      %v5820 = vpack.c.b16 %v5790, %v5789
      %v5821 = vpack.c.b16 %v5792, %v5791
      %v5822 = vpack.c.b16 %v5794, %v5793
      %v5823 = vpack.c.b16 %v5796, %v5795
      %v5824 = vpack.c.b16 %v5798, %v5797
      %v5825 = vpack.c.b16 %v5800, %v5799
      %v5826 = vpack.c.b16 %v5802, %v5801
      %v5827 = vpack.c.b16 %v5804, %v5803
      %v5828 = vpack.c.b16 %v5806, %v5805
      %v5829 = vpack.c.b16 %v5808, %v5807
      %v5830 = vpack.c.b16 %v5810, %v5809
      %v5831 = vpack.c.b16 %v5812, %v5811
      %v5832 = vpack.c.b16 %v5814, %v5813
      %v5833 = vpack.c.b16 %v5816, %v5815
      %v5834 = vpack.c.b16 %v5818, %v5817
      %v5867 = vunpack.c.l.b16 %v5709
      %v5868 = vunpack.c.l.b16 %v5712
      %v5869 = vunpack.c.l.b16 %v5715
      %v5870 = vunpack.c.l.b16 %v5718
      %v5871 = vunpack.c.l.b16 %v5721
      %v5872 = vunpack.c.l.b16 %v5724
      %v5873 = vunpack.c.l.b16 %v5727
      %v5874 = vunpack.c.l.b16 %v5730
      %v5875 = vunpack.c.l.b16 %v5733
      %v5876 = vunpack.c.l.b16 %v5736
      %v5877 = vunpack.c.l.b16 %v5739
      %v5878 = vunpack.c.l.b16 %v5742
      %v5879 = vunpack.c.l.b16 %v5745
      %v5880 = vunpack.c.l.b16 %v5748
      %v5881 = vunpack.c.l.b16 %v5751
      %v5882 = vunpack.c.l.b16 %v5754
      %v5883 = vpack.c.b16 %v5867, %v5867
      %v5884 = vpack.c.b16 %v5868, %v5868
      %v5885 = vpack.c.b16 %v5869, %v5869
      %v5886 = vpack.c.b16 %v5870, %v5870
      %v5887 = vpack.c.b16 %v5871, %v5871
      %v5888 = vpack.c.b16 %v5872, %v5872
      %v5889 = vpack.c.b16 %v5873, %v5873
      %v5890 = vpack.c.b16 %v5874, %v5874
      %v5891 = vpack.c.b16 %v5875, %v5875
      %v5892 = vpack.c.b16 %v5876, %v5876
      %v5893 = vpack.c.b16 %v5877, %v5877
      %v5894 = vpack.c.b16 %v5878, %v5878
      %v5895 = vpack.c.b16 %v5879, %v5879
      %v5896 = vpack.c.b16 %v5880, %v5880
      %v5897 = vpack.c.b16 %v5881, %v5881
      %v5898 = vpack.c.b16 %v5882, %v5882
      %v5900 = vshrl.u32 %v5819, 16
      %v5902 = vshll.u32 %v5819, 16
      %v5904 = vrot.slane %v5902, 1
      %v5905 = vor.u32 %v5900, %v5904
      %v5907 = vshll.u32 %v5883, 16
      %v5909 = vrot.slane %v5907, 1
      %v5910 = vsel %vm1001, %v5905, %v5909
      %v5912 = vshrl.u32 %v5820, 16
      %v5914 = vshll.u32 %v5820, 16
      %v5916 = vrot.slane %v5914, 1
      %v5917 = vor.u32 %v5912, %v5916
      %v5919 = vshll.u32 %v5884, 16
      %v5921 = vrot.slane %v5919, 1
      %v5922 = vsel %vm1001, %v5917, %v5921
      %v5924 = vshrl.u32 %v5821, 16
      %v5926 = vshll.u32 %v5821, 16
      %v5928 = vrot.slane %v5926, 1
      %v5929 = vor.u32 %v5924, %v5928
      %v5931 = vshll.u32 %v5885, 16
      %v5933 = vrot.slane %v5931, 1
      %v5934 = vsel %vm1001, %v5929, %v5933
      %v5936 = vshrl.u32 %v5822, 16
      %v5938 = vshll.u32 %v5822, 16
      %v5940 = vrot.slane %v5938, 1
      %v5941 = vor.u32 %v5936, %v5940
      %v5943 = vshll.u32 %v5886, 16
      %v5945 = vrot.slane %v5943, 1
      %v5946 = vsel %vm1001, %v5941, %v5945
      %v5948 = vshrl.u32 %v5823, 16
      %v5950 = vshll.u32 %v5823, 16
      %v5952 = vrot.slane %v5950, 1
      %v5953 = vor.u32 %v5948, %v5952
      %v5955 = vshll.u32 %v5887, 16
      %v5957 = vrot.slane %v5955, 1
      %v5958 = vsel %vm1001, %v5953, %v5957
      %v5960 = vshrl.u32 %v5824, 16
      %v5962 = vshll.u32 %v5824, 16
      %v5964 = vrot.slane %v5962, 1
      %v5965 = vor.u32 %v5960, %v5964
      %v5967 = vshll.u32 %v5888, 16
      %v5969 = vrot.slane %v5967, 1
      %v5970 = vsel %vm1001, %v5965, %v5969
      %v5972 = vshrl.u32 %v5825, 16
      %v5974 = vshll.u32 %v5825, 16
      %v5976 = vrot.slane %v5974, 1
      %v5977 = vor.u32 %v5972, %v5976
      %v5979 = vshll.u32 %v5889, 16
      %v5981 = vrot.slane %v5979, 1
      %v5982 = vsel %vm1001, %v5977, %v5981
      %v5984 = vshrl.u32 %v5826, 16
      %v5986 = vshll.u32 %v5826, 16
      %v5988 = vrot.slane %v5986, 1
      %v5989 = vor.u32 %v5984, %v5988
      %v5991 = vshll.u32 %v5890, 16
      %v5993 = vrot.slane %v5991, 1
      %v5994 = vsel %vm1001, %v5989, %v5993
      %v5996 = vshrl.u32 %v5827, 16
      %v5998 = vshll.u32 %v5827, 16
      %v6000 = vrot.slane %v5998, 1
      %v6001 = vor.u32 %v5996, %v6000
      %v6003 = vshll.u32 %v5891, 16
      %v6005 = vrot.slane %v6003, 1
      %v6006 = vsel %vm1001, %v6001, %v6005
      %v6008 = vshrl.u32 %v5828, 16
      %v6010 = vshll.u32 %v5828, 16
      %v6012 = vrot.slane %v6010, 1
      %v6013 = vor.u32 %v6008, %v6012
      %v6015 = vshll.u32 %v5892, 16
      %v6017 = vrot.slane %v6015, 1
      %v6018 = vsel %vm1001, %v6013, %v6017
      %v6020 = vshrl.u32 %v5829, 16
      %v6022 = vshll.u32 %v5829, 16
      %v6024 = vrot.slane %v6022, 1
      %v6025 = vor.u32 %v6020, %v6024
      %v6027 = vshll.u32 %v5893, 16
      %v6029 = vrot.slane %v6027, 1
      %v6030 = vsel %vm1001, %v6025, %v6029
      %v6032 = vshrl.u32 %v5830, 16
      %v6034 = vshll.u32 %v5830, 16
      %v6036 = vrot.slane %v6034, 1
      %v6037 = vor.u32 %v6032, %v6036
      %v6039 = vshll.u32 %v5894, 16
      %v6041 = vrot.slane %v6039, 1
      %v6042 = vsel %vm1001, %v6037, %v6041
      %v6044 = vshrl.u32 %v5831, 16
      %v6046 = vshll.u32 %v5831, 16
      %v6048 = vrot.slane %v6046, 1
      %v6049 = vor.u32 %v6044, %v6048
      %v6051 = vshll.u32 %v5895, 16
      %v6053 = vrot.slane %v6051, 1
      %v6054 = vsel %vm1001, %v6049, %v6053
      %v6056 = vshrl.u32 %v5832, 16
      %v6058 = vshll.u32 %v5832, 16
      %v6060 = vrot.slane %v6058, 1
      %v6061 = vor.u32 %v6056, %v6060
      %v6063 = vshll.u32 %v5896, 16
      %v6065 = vrot.slane %v6063, 1
      %v6066 = vsel %vm1001, %v6061, %v6065
      %v6068 = vshrl.u32 %v5833, 16
      %v6070 = vshll.u32 %v5833, 16
      %v6072 = vrot.slane %v6070, 1
      %v6073 = vor.u32 %v6068, %v6072
      %v6075 = vshll.u32 %v5897, 16
      %v6077 = vrot.slane %v6075, 1
      %v6078 = vsel %vm1001, %v6073, %v6077
      %v6080 = vshrl.u32 %v5834, 16
      %v6082 = vshll.u32 %v5834, 16
      %v6084 = vrot.slane %v6082, 1
      %v6085 = vor.u32 %v6080, %v6084
      %v6087 = vshll.u32 %v5898, 16
      %v6089 = vrot.slane %v6087, 1
      %v6090 = vsel %vm1001, %v6085, %v6089
      %v6107 = vrot.slane %v5819, 1
      %v6108 = vrot.slane %v5883, 1
      %v6109 = vsel %vm1210, %v6107, %v6108
      %v6110 = vrot.slane %v5820, 1
      %v6111 = vrot.slane %v5884, 1
      %v6112 = vsel %vm1210, %v6110, %v6111
      %v6113 = vrot.slane %v5821, 1
      %v6114 = vrot.slane %v5885, 1
      %v6115 = vsel %vm1210, %v6113, %v6114
      %v6116 = vrot.slane %v5822, 1
      %v6117 = vrot.slane %v5886, 1
      %v6118 = vsel %vm1210, %v6116, %v6117
      %v6119 = vrot.slane %v5823, 1
      %v6120 = vrot.slane %v5887, 1
      %v6121 = vsel %vm1210, %v6119, %v6120
      %v6122 = vrot.slane %v5824, 1
      %v6123 = vrot.slane %v5888, 1
      %v6124 = vsel %vm1210, %v6122, %v6123
      %v6125 = vrot.slane %v5825, 1
      %v6126 = vrot.slane %v5889, 1
      %v6127 = vsel %vm1210, %v6125, %v6126
      %v6128 = vrot.slane %v5826, 1
      %v6129 = vrot.slane %v5890, 1
      %v6130 = vsel %vm1210, %v6128, %v6129
      %v6131 = vrot.slane %v5827, 1
      %v6132 = vrot.slane %v5891, 1
      %v6133 = vsel %vm1210, %v6131, %v6132
      %v6134 = vrot.slane %v5828, 1
      %v6135 = vrot.slane %v5892, 1
      %v6136 = vsel %vm1210, %v6134, %v6135
      %v6137 = vrot.slane %v5829, 1
      %v6138 = vrot.slane %v5893, 1
      %v6139 = vsel %vm1210, %v6137, %v6138
      %v6140 = vrot.slane %v5830, 1
      %v6141 = vrot.slane %v5894, 1
      %v6142 = vsel %vm1210, %v6140, %v6141
      %v6143 = vrot.slane %v5831, 1
      %v6144 = vrot.slane %v5895, 1
      %v6145 = vsel %vm1210, %v6143, %v6144
      %v6146 = vrot.slane %v5832, 1
      %v6147 = vrot.slane %v5896, 1
      %v6148 = vsel %vm1210, %v6146, %v6147
      %v6149 = vrot.slane %v5833, 1
      %v6150 = vrot.slane %v5897, 1
      %v6151 = vsel %vm1210, %v6149, %v6150
      %v6152 = vrot.slane %v5834, 1
      %v6153 = vrot.slane %v5898, 1
      %v6154 = vsel %vm1210, %v6152, %v6153
      %s6171 = scalar_lea.vmem %s2, 192
      %v6172 = vld [vmem:[%s6171] sm:$0xf]
      %v6173 = vld [vmem:[%s6171 + $0x4] sm:$0xf]
      %v6174 = vld [vmem:[%s6171 + $0x8] sm:$0xf]
      %v6175 = vld [vmem:[%s6171 + $0xc] sm:$0xf]
      %v6176 = vld [vmem:[%s6171 + $0x10] sm:$0xf]
      %v6177 = vld [vmem:[%s6171 + $0x14] sm:$0xf]
      %v6178 = vld [vmem:[%s6171 + $0x18] sm:$0xf]
      %v6179 = vld [vmem:[%s6171 + $0x1c] sm:$0xf]
      %v6180 = vld [vmem:[%s6171 + $0x20] sm:$0xf]
      %v6181 = vld [vmem:[%s6171 + $0x24] sm:$0xf]
      %v6182 = vld [vmem:[%s6171 + $0x28] sm:$0xf]
      %v6183 = vld [vmem:[%s6171 + $0x2c] sm:$0xf]
      %v6184 = vld [vmem:[%s6171 + $0x30] sm:$0xf]
      %v6185 = vld [vmem:[%s6171 + $0x34] sm:$0xf]
      %v6186 = vld [vmem:[%s6171 + $0x38] sm:$0xf]
      %v6187 = vld [vmem:[%s6171 + $0x3c] sm:$0xf]
      %v6188 = vld [vmem:[%s6171 + $0x40] sm:$0xf]
      %v6189 = vld [vmem:[%s6171 + $0x44] sm:$0xf]
      %v6190 = vld [vmem:[%s6171 + $0x48] sm:$0xf]
      %v6191 = vld [vmem:[%s6171 + $0x4c] sm:$0xf]
      %v6192 = vld [vmem:[%s6171 + $0x50] sm:$0xf]
      %v6193 = vld [vmem:[%s6171 + $0x54] sm:$0xf]
      %v6194 = vld [vmem:[%s6171 + $0x58] sm:$0xf]
      %v6195 = vld [vmem:[%s6171 + $0x5c] sm:$0xf]
      %v6196 = vld [vmem:[%s6171 + $0x60] sm:$0xf]
      %v6197 = vld [vmem:[%s6171 + $0x64] sm:$0xf]
      %v6198 = vld [vmem:[%s6171 + $0x68] sm:$0xf]
      %v6199 = vld [vmem:[%s6171 + $0x6c] sm:$0xf]
      %v6200 = vld [vmem:[%s6171 + $0x70] sm:$0xf]
      %v6201 = vld [vmem:[%s6171 + $0x74] sm:$0xf]
      %v6202 = vld [vmem:[%s6171 + $0x78] sm:$0xf]
      %v6203 = vld [vmem:[%s6171 + $0x7c] sm:$0xf]
      %v6204 = vld [vmem:[%s6171 + $0x80] sm:$0xf]
      %v6205 = vld [vmem:[%s6171 + $0x84] sm:$0xf]
      %v6206 = vld [vmem:[%s6171 + $0x88] sm:$0xf]
      %v6207 = vld [vmem:[%s6171 + $0x8c] sm:$0xf]
      %v6208 = vld [vmem:[%s6171 + $0x90] sm:$0xf]
      %v6209 = vld [vmem:[%s6171 + $0x94] sm:$0xf]
      %v6210 = vld [vmem:[%s6171 + $0x98] sm:$0xf]
      %v6211 = vld [vmem:[%s6171 + $0x9c] sm:$0xf]
      %v6212 = vld [vmem:[%s6171 + $0xa0] sm:$0xf]
      %v6213 = vld [vmem:[%s6171 + $0xa4] sm:$0xf]
      %v6214 = vld [vmem:[%s6171 + $0xa8] sm:$0xf]
      %v6215 = vld [vmem:[%s6171 + $0xac] sm:$0xf]
      %v6216 = vld [vmem:[%s6171 + $0xb0] sm:$0xf]
      %v6217 = vld [vmem:[%s6171 + $0xb4] sm:$0xf]
      %v6218 = vld [vmem:[%s6171 + $0xb8] sm:$0xf]
      %v6219 = vld [vmem:[%s6171 + $0xbc] sm:$0xf]
      %v6268 = vunpack.c.l.b16 %v6172
      %v6269 = vunpack.c.l.b16 %v6173
      %v6270 = vunpack.c.l.b16 %v6174
      %v6271 = vunpack.c.l.b16 %v6175
      %v6272 = vunpack.c.l.b16 %v6176
      %v6273 = vunpack.c.l.b16 %v6177
      %v6274 = vunpack.c.l.b16 %v6178
      %v6275 = vunpack.c.l.b16 %v6179
      %v6276 = vunpack.c.l.b16 %v6180
      %v6277 = vunpack.c.l.b16 %v6181
      %v6278 = vunpack.c.l.b16 %v6182
      %v6279 = vunpack.c.l.b16 %v6183
      %v6280 = vunpack.c.l.b16 %v6184
      %v6281 = vunpack.c.l.b16 %v6185
      %v6282 = vunpack.c.l.b16 %v6186
      %v6283 = vunpack.c.l.b16 %v6187
      %v6284 = vunpack.c.l.b16 %v6188
      %v6285 = vunpack.c.l.b16 %v6189
      %v6286 = vunpack.c.l.b16 %v6190
      %v6287 = vunpack.c.l.b16 %v6191
      %v6288 = vunpack.c.l.b16 %v6192
      %v6289 = vunpack.c.l.b16 %v6193
      %v6290 = vunpack.c.l.b16 %v6194
      %v6291 = vunpack.c.l.b16 %v6195
      %v6292 = vunpack.c.l.b16 %v6196
      %v6293 = vunpack.c.l.b16 %v6197
      %v6294 = vunpack.c.l.b16 %v6198
      %v6295 = vunpack.c.l.b16 %v6199
      %v6296 = vunpack.c.l.b16 %v6200
      %v6297 = vunpack.c.l.b16 %v6201
      %v6298 = vunpack.c.l.b16 %v6202
      %v6299 = vunpack.c.l.b16 %v6203
      %v6300 = vunpack.c.l.b16 %v6204
      %v6301 = vunpack.c.l.b16 %v6205
      %v6302 = vunpack.c.l.b16 %v6206
      %v6303 = vunpack.c.l.b16 %v6207
      %v6304 = vunpack.c.l.b16 %v6208
      %v6305 = vunpack.c.l.b16 %v6209
      %v6306 = vunpack.c.l.b16 %v6210
      %v6307 = vunpack.c.l.b16 %v6211
      %v6308 = vunpack.c.l.b16 %v6212
      %v6309 = vunpack.c.l.b16 %v6213
      %v6310 = vunpack.c.l.b16 %v6214
      %v6311 = vunpack.c.l.b16 %v6215
      %v6312 = vunpack.c.l.b16 %v6216
      %v6313 = vunpack.c.l.b16 %v6217
      %v6314 = vunpack.c.l.b16 %v6218
      %v6315 = vunpack.c.l.b16 %v6219
      %v6316 = vpack.c.b16 %v6269, %v6268
      %v6317 = vpack.c.b16 %v6271, %v6270
      %v6318 = vpack.c.b16 %v6273, %v6272
      %v6319 = vpack.c.b16 %v6275, %v6274
      %v6320 = vpack.c.b16 %v6277, %v6276
      %v6321 = vpack.c.b16 %v6279, %v6278
      %v6322 = vpack.c.b16 %v6281, %v6280
      %v6323 = vpack.c.b16 %v6283, %v6282
      %v6324 = vpack.c.b16 %v6285, %v6284
      %v6325 = vpack.c.b16 %v6287, %v6286
      %v6326 = vpack.c.b16 %v6289, %v6288
      %v6327 = vpack.c.b16 %v6291, %v6290
      %v6328 = vpack.c.b16 %v6293, %v6292
      %v6329 = vpack.c.b16 %v6295, %v6294
      %v6330 = vpack.c.b16 %v6297, %v6296
      %v6331 = vpack.c.b16 %v6299, %v6298
      %v6332 = vpack.c.b16 %v6301, %v6300
      %v6333 = vpack.c.b16 %v6303, %v6302
      %v6334 = vpack.c.b16 %v6305, %v6304
      %v6335 = vpack.c.b16 %v6307, %v6306
      %v6336 = vpack.c.b16 %v6309, %v6308
      %v6337 = vpack.c.b16 %v6311, %v6310
      %v6338 = vpack.c.b16 %v6313, %v6312
      %v6339 = vpack.c.b16 %v6315, %v6314
      %6364 = vmatprep.subr.bf16.mxu0 0
      %6365 = vmatpush1.bf16.msra.mxu0 %v6323
      %6366 = vmatprep.subr.bf16.mxu0 0
      %6367 = vmatpush1.bf16.msra.mxu0 %v6322
      %6368 = vmatprep.subr.bf16.mxu0 0
      %6369 = vmatpush1.bf16.msra.mxu0 %v6321
      %6370 = vmatprep.subr.bf16.mxu0 0
      %6371 = vmatpush1.bf16.msra.mxu0 %v6320
      %6372 = vmatprep.subr.bf16.mxu0 0
      %6373 = vmatpush1.bf16.msra.mxu0 %v6319
      %6374 = vmatprep.subr.bf16.mxu0 0
      %6375 = vmatpush1.bf16.msra.mxu0 %v6318
      %6376 = vmatprep.subr.bf16.mxu0 0
      %6377 = vmatpush1.bf16.msra.mxu0 %v6317
      %6378 = vmatprep.subr.bf16.mxu0 0
      %6379 = vmatpush1.bf16.msra.mxu0 %v6316
      %6380 = vmatprep.subr.bf16.mxu0 0
      %6381 = vmatpush2.bf16.msra.mxu0 %v6331
      %6382 = vmatprep.subr.bf16.mxu0 0
      %6383 = vmatpush2.bf16.msra.mxu0 %v6330
      %6384 = vmatprep.subr.bf16.mxu0 0
      %6385 = vmatpush2.bf16.msra.mxu0 %v6329
      %6386 = vmatprep.subr.bf16.mxu0 0
      %6387 = vmatpush2.bf16.msra.mxu0 %v6328
      %6388 = vmatprep.subr.bf16.mxu0 0
      %6389 = vmatpush2.bf16.msra.mxu0 %v6327
      %6390 = vmatprep.subr.bf16.mxu0 0
      %6391 = vmatpush2.bf16.msra.mxu0 %v6326
      %6392 = vmatprep.subr.bf16.mxu0 0
      %6393 = vmatpush2.bf16.msra.mxu0 %v6325
      %6394 = vmatprep.subr.bf16.mxu0 0
      %6395 = vmatpush2.bf16.msra.mxu0 %v6324
      %6396 = vmatprep.mubr.bf16.mxu0 %v5910
      %6397 = vmatmul.mubr.bf16.gmra.mxu0 %v5819
      %v6398 = vpop.f32.mrf.mxu0
      %v6399 = vadd.f32 0.0, %v6398
      %v6400 = vpop.f32.mrf.mxu0
      %v6401 = vpop.f32.mrf.mxu0
      %v6402 = vadd.f32 0.0, %v6401
      %v6403 = vpop.f32.mrf.mxu0
      %6404 = vmatprep.mubr.bf16.mxu0 %v5922
      %6405 = vmatmul.mubr.bf16.gmra.mxu0 %v5820
      %v6406 = vpop.f32.mrf.mxu0
      %v6407 = vadd.f32 0.0, %v6406
      %v6408 = vpop.f32.mrf.mxu0
      %v6409 = vpop.f32.mrf.mxu0
      %v6410 = vadd.f32 0.0, %v6409
      %v6411 = vpop.f32.mrf.mxu0
      %6412 = vmatprep.mubr.bf16.mxu0 %v5934
      %6413 = vmatmul.mubr.bf16.gmra.mxu0 %v5821
      %v6414 = vpop.f32.mrf.mxu0
      %v6415 = vadd.f32 0.0, %v6414
      %v6416 = vpop.f32.mrf.mxu0
      %v6417 = vpop.f32.mrf.mxu0
      %v6418 = vadd.f32 0.0, %v6417
      %v6419 = vpop.f32.mrf.mxu0
      %6420 = vmatprep.mubr.bf16.mxu0 %v5946
      %6421 = vmatmul.mubr.bf16.gmra.mxu0 %v5822
      %v6422 = vpop.f32.mrf.mxu0
      %v6423 = vadd.f32 0.0, %v6422
      %v6424 = vpop.f32.mrf.mxu0
      %v6425 = vpop.f32.mrf.mxu0
      %v6426 = vadd.f32 0.0, %v6425
      %v6427 = vpop.f32.mrf.mxu0
      %6428 = vmatprep.mubr.bf16.mxu0 %v5958
      %6429 = vmatmul.mubr.bf16.gmra.mxu0 %v5823
      %v6430 = vpop.f32.mrf.mxu0
      %v6431 = vadd.f32 0.0, %v6430
      %v6432 = vpop.f32.mrf.mxu0
      %v6433 = vpop.f32.mrf.mxu0
      %v6434 = vadd.f32 0.0, %v6433
      %v6435 = vpop.f32.mrf.mxu0
      %6436 = vmatprep.mubr.bf16.mxu0 %v5970
      %6437 = vmatmul.mubr.bf16.gmra.mxu0 %v5824
      %v6438 = vpop.f32.mrf.mxu0
      %v6439 = vadd.f32 0.0, %v6438
      %v6440 = vpop.f32.mrf.mxu0
      %v6441 = vpop.f32.mrf.mxu0
      %v6442 = vadd.f32 0.0, %v6441
      %v6443 = vpop.f32.mrf.mxu0
      %6444 = vmatprep.mubr.bf16.mxu0 %v5982
      %6445 = vmatmul.mubr.bf16.gmra.mxu0 %v5825
      %v6446 = vpop.f32.mrf.mxu0
      %v6447 = vadd.f32 0.0, %v6446
      %v6448 = vpop.f32.mrf.mxu0
      %v6449 = vpop.f32.mrf.mxu0
      %v6450 = vadd.f32 0.0, %v6449
      %v6451 = vpop.f32.mrf.mxu0
      %6452 = vmatprep.mubr.bf16.mxu0 %v5994
      %6453 = vmatmul.mubr.bf16.gmra.mxu0 %v5826
      %v6454 = vpop.f32.mrf.mxu0
      %v6455 = vadd.f32 0.0, %v6454
      %v6456 = vpop.f32.mrf.mxu0
      %v6457 = vpop.f32.mrf.mxu0
      %v6458 = vadd.f32 0.0, %v6457
      %v6459 = vpop.f32.mrf.mxu0
      %6460 = vmatprep.mubr.bf16.mxu0 %v6006
      %6461 = vmatmul.mubr.bf16.gmra.mxu0 %v5827
      %v6462 = vpop.f32.mrf.mxu0
      %v6463 = vadd.f32 0.0, %v6462
      %v6464 = vpop.f32.mrf.mxu0
      %v6465 = vpop.f32.mrf.mxu0
      %v6466 = vadd.f32 0.0, %v6465
      %v6467 = vpop.f32.mrf.mxu0
      %6468 = vmatprep.mubr.bf16.mxu0 %v6018
      %6469 = vmatmul.mubr.bf16.gmra.mxu0 %v5828
      %v6470 = vpop.f32.mrf.mxu0
      %v6471 = vadd.f32 0.0, %v6470
      %v6472 = vpop.f32.mrf.mxu0
      %v6473 = vpop.f32.mrf.mxu0
      %v6474 = vadd.f32 0.0, %v6473
      %v6475 = vpop.f32.mrf.mxu0
      %6476 = vmatprep.mubr.bf16.mxu0 %v6030
      %6477 = vmatmul.mubr.bf16.gmra.mxu0 %v5829
      %v6478 = vpop.f32.mrf.mxu0
      %v6479 = vadd.f32 0.0, %v6478
      %v6480 = vpop.f32.mrf.mxu0
      %v6481 = vpop.f32.mrf.mxu0
      %v6482 = vadd.f32 0.0, %v6481
      %v6483 = vpop.f32.mrf.mxu0
      %6484 = vmatprep.mubr.bf16.mxu0 %v6042
      %6485 = vmatmul.mubr.bf16.gmra.mxu0 %v5830
      %v6486 = vpop.f32.mrf.mxu0
      %v6487 = vadd.f32 0.0, %v6486
      %v6488 = vpop.f32.mrf.mxu0
      %v6489 = vpop.f32.mrf.mxu0
      %v6490 = vadd.f32 0.0, %v6489
      %v6491 = vpop.f32.mrf.mxu0
      %6492 = vmatprep.mubr.bf16.mxu0 %v6054
      %6493 = vmatmul.mubr.bf16.gmra.mxu0 %v5831
      %v6494 = vpop.f32.mrf.mxu0
      %v6495 = vadd.f32 0.0, %v6494
      %v6496 = vpop.f32.mrf.mxu0
      %v6497 = vpop.f32.mrf.mxu0
      %v6498 = vadd.f32 0.0, %v6497
      %v6499 = vpop.f32.mrf.mxu0
      %6500 = vmatprep.mubr.bf16.mxu0 %v6066
      %6501 = vmatmul.mubr.bf16.gmra.mxu0 %v5832
      %v6502 = vpop.f32.mrf.mxu0
      %v6503 = vadd.f32 0.0, %v6502
      %v6504 = vpop.f32.mrf.mxu0
      %v6505 = vpop.f32.mrf.mxu0
      %v6506 = vadd.f32 0.0, %v6505
      %v6507 = vpop.f32.mrf.mxu0
      %6508 = vmatprep.mubr.bf16.mxu0 %v6078
      %6509 = vmatmul.mubr.bf16.gmra.mxu0 %v5833
      %v6510 = vpop.f32.mrf.mxu0
      %v6511 = vadd.f32 0.0, %v6510
      %v6512 = vpop.f32.mrf.mxu0
      %v6513 = vpop.f32.mrf.mxu0
      %v6514 = vadd.f32 0.0, %v6513
      %v6515 = vpop.f32.mrf.mxu0
      %6516 = vmatprep.mubr.bf16.mxu0 %v6090
      %6517 = vmatmul.mubr.bf16.gmra.mxu0 %v5834
      %v6518 = vpop.f32.mrf.mxu0
      %v6519 = vadd.f32 0.0, %v6518
      %v6520 = vpop.f32.mrf.mxu0
      %v6521 = vpop.f32.mrf.mxu0
      %v6522 = vadd.f32 0.0, %v6521
      %v6523 = vpop.f32.mrf.mxu0
      %6524 = vdwg.mxu0
      %6525 = vmatprep.subr.bf16.mxu0 0
      %6526 = vmatpush1.bf16.msra.mxu0 %v6339
      %6527 = vmatprep.subr.bf16.mxu0 0
      %6528 = vmatpush1.bf16.msra.mxu0 %v6338
      %6529 = vmatprep.subr.bf16.mxu0 0
      %6530 = vmatpush1.bf16.msra.mxu0 %v6337
      %6531 = vmatprep.subr.bf16.mxu0 0
      %6532 = vmatpush1.bf16.msra.mxu0 %v6336
      %6533 = vmatprep.subr.bf16.mxu0 0
      %6534 = vmatpush1.bf16.msra.mxu0 %v6335
      %6535 = vmatprep.subr.bf16.mxu0 0
      %6536 = vmatpush1.bf16.msra.mxu0 %v6334
      %6537 = vmatprep.subr.bf16.mxu0 0
      %6538 = vmatpush1.bf16.msra.mxu0 %v6333
      %6539 = vmatprep.subr.bf16.mxu0 0
      %6540 = vmatpush1.bf16.msra.mxu0 %v6332
      %6541 = vmatprep.subr.bf16.mxu0 0
      %6542 = vmatpush2.bf16.msra.mxu0 0
      %6543 = vmatprep.subr.bf16.mxu0 0
      %6544 = vmatpush2.bf16.msra.mxu0 0
      %6545 = vmatprep.subr.bf16.mxu0 0
      %6546 = vmatpush2.bf16.msra.mxu0 0
      %6547 = vmatprep.subr.bf16.mxu0 0
      %6548 = vmatpush2.bf16.msra.mxu0 0
      %6549 = vmatprep.subr.bf16.mxu0 0
      %6550 = vmatpush2.bf16.msra.mxu0 0
      %6551 = vmatprep.subr.bf16.mxu0 0
      %6552 = vmatpush2.bf16.msra.mxu0 0
      %6553 = vmatprep.subr.bf16.mxu0 0
      %6554 = vmatpush2.bf16.msra.mxu0 0
      %6555 = vmatprep.subr.bf16.mxu0 0
      %6556 = vmatpush2.bf16.msra.mxu0 0
      %6557 = vmatprep.mubr.bf16.mxu0 0
      %6558 = vmatmul.mubr.bf16.gmra.mxu0 %v6109
      %v6559 = vpop.f32.mrf.mxu0
      %v6560 = vadd.f32 %v6399, %v6559
      %v6561 = vpop.f32.mrf.mxu0
      %v6562 = vpop.f32.mrf.mxu0
      %v6563 = vadd.f32 %v6402, %v6562
      %v6564 = vpop.f32.mrf.mxu0
      %6565 = vmatprep.mubr.bf16.mxu0 0
      %6566 = vmatmul.mubr.bf16.gmra.mxu0 %v6112
      %v6567 = vpop.f32.mrf.mxu0
      %v6568 = vadd.f32 %v6407, %v6567
      %v6569 = vpop.f32.mrf.mxu0
      %v6570 = vpop.f32.mrf.mxu0
      %v6571 = vadd.f32 %v6410, %v6570
      %v6572 = vpop.f32.mrf.mxu0
      %6573 = vmatprep.mubr.bf16.mxu0 0
      %6574 = vmatmul.mubr.bf16.gmra.mxu0 %v6115
      %v6575 = vpop.f32.mrf.mxu0
      %v6576 = vadd.f32 %v6415, %v6575
      %v6577 = vpop.f32.mrf.mxu0
      %v6578 = vpop.f32.mrf.mxu0
      %v6579 = vadd.f32 %v6418, %v6578
      %v6580 = vpop.f32.mrf.mxu0
      %6581 = vmatprep.mubr.bf16.mxu0 0
      %6582 = vmatmul.mubr.bf16.gmra.mxu0 %v6118
      %v6583 = vpop.f32.mrf.mxu0
      %v6584 = vadd.f32 %v6423, %v6583
      %v6585 = vpop.f32.mrf.mxu0
      %v6586 = vpop.f32.mrf.mxu0
      %v6587 = vadd.f32 %v6426, %v6586
      %v6588 = vpop.f32.mrf.mxu0
      %6589 = vmatprep.mubr.bf16.mxu0 0
      %6590 = vmatmul.mubr.bf16.gmra.mxu0 %v6121
      %v6591 = vpop.f32.mrf.mxu0
      %v6592 = vadd.f32 %v6431, %v6591
      %v6593 = vpop.f32.mrf.mxu0
      %v6594 = vpop.f32.mrf.mxu0
      %v6595 = vadd.f32 %v6434, %v6594
      %v6596 = vpop.f32.mrf.mxu0
      %6597 = vmatprep.mubr.bf16.mxu0 0
      %6598 = vmatmul.mubr.bf16.gmra.mxu0 %v6124
      %v6599 = vpop.f32.mrf.mxu0
      %v6600 = vadd.f32 %v6439, %v6599
      %v6601 = vpop.f32.mrf.mxu0
      %v6602 = vpop.f32.mrf.mxu0
      %v6603 = vadd.f32 %v6442, %v6602
      %v6604 = vpop.f32.mrf.mxu0
      %6605 = vmatprep.mubr.bf16.mxu0 0
      %6606 = vmatmul.mubr.bf16.gmra.mxu0 %v6127
      %v6607 = vpop.f32.mrf.mxu0
      %v6608 = vadd.f32 %v6447, %v6607
      %v6609 = vpop.f32.mrf.mxu0
      %v6610 = vpop.f32.mrf.mxu0
      %v6611 = vadd.f32 %v6450, %v6610
      %v6612 = vpop.f32.mrf.mxu0
      %6613 = vmatprep.mubr.bf16.mxu0 0
      %6614 = vmatmul.mubr.bf16.gmra.mxu0 %v6130
      %v6615 = vpop.f32.mrf.mxu0
      %v6616 = vadd.f32 %v6455, %v6615
      %v6617 = vpop.f32.mrf.mxu0
      %v6618 = vpop.f32.mrf.mxu0
      %v6619 = vadd.f32 %v6458, %v6618
      %v6620 = vpop.f32.mrf.mxu0
      %6621 = vmatprep.mubr.bf16.mxu0 0
      %6622 = vmatmul.mubr.bf16.gmra.mxu0 %v6133
      %v6623 = vpop.f32.mrf.mxu0
      %v6624 = vadd.f32 %v6463, %v6623
      %v6625 = vpop.f32.mrf.mxu0
      %v6626 = vpop.f32.mrf.mxu0
      %v6627 = vadd.f32 %v6466, %v6626
      %v6628 = vpop.f32.mrf.mxu0
      %6629 = vmatprep.mubr.bf16.mxu0 0
      %6630 = vmatmul.mubr.bf16.gmra.mxu0 %v6136
      %v6631 = vpop.f32.mrf.mxu0
      %v6632 = vadd.f32 %v6471, %v6631
      %v6633 = vpop.f32.mrf.mxu0
      %v6634 = vpop.f32.mrf.mxu0
      %v6635 = vadd.f32 %v6474, %v6634
      %v6636 = vpop.f32.mrf.mxu0
      %6637 = vmatprep.mubr.bf16.mxu0 0
      %6638 = vmatmul.mubr.bf16.gmra.mxu0 %v6139
      %v6639 = vpop.f32.mrf.mxu0
      %v6640 = vadd.f32 %v6479, %v6639
      %v6641 = vpop.f32.mrf.mxu0
      %v6642 = vpop.f32.mrf.mxu0
      %v6643 = vadd.f32 %v6482, %v6642
      %v6644 = vpop.f32.mrf.mxu0
      %6645 = vmatprep.mubr.bf16.mxu0 0
      %6646 = vmatmul.mubr.bf16.gmra.mxu0 %v6142
      %v6647 = vpop.f32.mrf.mxu0
      %v6648 = vadd.f32 %v6487, %v6647
      %v6649 = vpop.f32.mrf.mxu0
      %v6650 = vpop.f32.mrf.mxu0
      %v6651 = vadd.f32 %v6490, %v6650
      %v6652 = vpop.f32.mrf.mxu0
      %6653 = vmatprep.mubr.bf16.mxu0 0
      %6654 = vmatmul.mubr.bf16.gmra.mxu0 %v6145
      %v6655 = vpop.f32.mrf.mxu0
      %v6656 = vadd.f32 %v6495, %v6655
      %v6657 = vpop.f32.mrf.mxu0
      %v6658 = vpop.f32.mrf.mxu0
      %v6659 = vadd.f32 %v6498, %v6658
      %v6660 = vpop.f32.mrf.mxu0
      %6661 = vmatprep.mubr.bf16.mxu0 0
      %6662 = vmatmul.mubr.bf16.gmra.mxu0 %v6148
      %v6663 = vpop.f32.mrf.mxu0
      %v6664 = vadd.f32 %v6503, %v6663
      %v6665 = vpop.f32.mrf.mxu0
      %v6666 = vpop.f32.mrf.mxu0
      %v6667 = vadd.f32 %v6506, %v6666
      %v6668 = vpop.f32.mrf.mxu0
      %6669 = vmatprep.mubr.bf16.mxu0 0
      %6670 = vmatmul.mubr.bf16.gmra.mxu0 %v6151
      %v6671 = vpop.f32.mrf.mxu0
      %v6672 = vadd.f32 %v6511, %v6671
      %v6673 = vpop.f32.mrf.mxu0
      %v6674 = vpop.f32.mrf.mxu0
      %v6675 = vadd.f32 %v6514, %v6674
      %v6676 = vpop.f32.mrf.mxu0
      %6677 = vmatprep.mubr.bf16.mxu0 0
      %6678 = vmatmul.mubr.bf16.gmra.mxu0 %v6154
      %v6679 = vpop.f32.mrf.mxu0
      %v6680 = vadd.f32 %v6519, %v6679
      %v6681 = vpop.f32.mrf.mxu0
      %v6682 = vpop.f32.mrf.mxu0
      %v6683 = vadd.f32 %v6522, %v6682
      %v6684 = vpop.f32.mrf.mxu0
      %6685 = vdwg.mxu0
      %v6686 = vld [vmem:[#allocation4] sm:$0xff]
      %v6687 = vld [vmem:[#allocation4 + $0x8] sm:$0xff]
      %v6688 = vld [vmem:[#allocation4 + $0x10] sm:$0xff]
      %v6689 = vld [vmem:[#allocation4 + $0x18] sm:$0xff]
      %v6690 = vld [vmem:[#allocation4 + $0x20] sm:$0xff]
      %v6691 = vld [vmem:[#allocation4 + $0x28] sm:$0xff]
      %v6692 = vld [vmem:[#allocation4 + $0x30] sm:$0xff]
      %v6693 = vld [vmem:[#allocation4 + $0x38] sm:$0xff]
      %v6694 = vld [vmem:[#allocation4 + $0x40] sm:$0xff]
      %v6695 = vld [vmem:[#allocation4 + $0x48] sm:$0xff]
      %v6696 = vld [vmem:[#allocation4 + $0x50] sm:$0xff]
      %v6697 = vld [vmem:[#allocation4 + $0x58] sm:$0xff]
      %v6698 = vld [vmem:[#allocation4 + $0x60] sm:$0xff]
      %v6699 = vld [vmem:[#allocation4 + $0x68] sm:$0xff]
      %v6700 = vld [vmem:[#allocation4 + $0x70] sm:$0xff]
      %v6701 = vld [vmem:[#allocation4 + $0x78] sm:$0xff]
      %v6702 = vld [vmem:[#allocation4 + $0x80] sm:$0xff]
      %v6703 = vld [vmem:[#allocation4 + $0x88] sm:$0xff]
      %v6704 = vld [vmem:[#allocation4 + $0x90] sm:$0xff]
      %v6705 = vld [vmem:[#allocation4 + $0x98] sm:$0xff]
      %v6706 = vld [vmem:[#allocation4 + $0xa0] sm:$0xff]
      %v6707 = vld [vmem:[#allocation4 + $0xa8] sm:$0xff]
      %v6708 = vld [vmem:[#allocation4 + $0xb0] sm:$0xff]
      %v6709 = vld [vmem:[#allocation4 + $0xb8] sm:$0xff]
      %v6710 = vld [vmem:[#allocation4 + $0xc0] sm:$0xff]
      %v6711 = vld [vmem:[#allocation4 + $0xc8] sm:$0xff]
      %v6712 = vld [vmem:[#allocation4 + $0xd0] sm:$0xff]
      %v6713 = vld [vmem:[#allocation4 + $0xd8] sm:$0xff]
      %v6714 = vld [vmem:[#allocation4 + $0xe0] sm:$0xff]
      %v6715 = vld [vmem:[#allocation4 + $0xe8] sm:$0xff]
      %v6716 = vld [vmem:[#allocation4 + $0xf0] sm:$0xff]
      %v6717 = vld [vmem:[#allocation4 + $0xf8] sm:$0xff]
      %v6718 = vadd.f32 %v6686, %v6560
      %v6719 = vadd.f32 %v6687, %v6563
      %v6720 = vadd.f32 %v6688, %v6568
      %v6721 = vadd.f32 %v6689, %v6571
      %v6722 = vadd.f32 %v6690, %v6576
      %v6723 = vadd.f32 %v6691, %v6579
      %v6724 = vadd.f32 %v6692, %v6584
      %v6725 = vadd.f32 %v6693, %v6587
      %v6726 = vadd.f32 %v6694, %v6592
      %v6727 = vadd.f32 %v6695, %v6595
      %v6728 = vadd.f32 %v6696, %v6600
      %v6729 = vadd.f32 %v6697, %v6603
      %v6730 = vadd.f32 %v6698, %v6608
      %v6731 = vadd.f32 %v6699, %v6611
      %v6732 = vadd.f32 %v6700, %v6616
      %v6733 = vadd.f32 %v6701, %v6619
      %v6734 = vadd.f32 %v6702, %v6624
      %v6735 = vadd.f32 %v6703, %v6627
      %v6736 = vadd.f32 %v6704, %v6632
      %v6737 = vadd.f32 %v6705, %v6635
      %v6738 = vadd.f32 %v6706, %v6640
      %v6739 = vadd.f32 %v6707, %v6643
      %v6740 = vadd.f32 %v6708, %v6648
      %v6741 = vadd.f32 %v6709, %v6651
      %v6742 = vadd.f32 %v6710, %v6656
      %v6743 = vadd.f32 %v6711, %v6659
      %v6744 = vadd.f32 %v6712, %v6664
      %v6745 = vadd.f32 %v6713, %v6667
      %v6746 = vadd.f32 %v6714, %v6672
      %v6747 = vadd.f32 %v6715, %v6675
      %v6748 = vadd.f32 %v6716, %v6680
      %v6749 = vadd.f32 %v6717, %v6683
      %6750 = vst [vmem:[#allocation4] sm:$0xff] %v6718
      %6751 = vst [vmem:[#allocation4 + $0x8] sm:$0xff] %v6719
      %6752 = vst [vmem:[#allocation4 + $0x10] sm:$0xff] %v6720
      %6753 = vst [vmem:[#allocation4 + $0x18] sm:$0xff] %v6721
      %6754 = vst [vmem:[#allocation4 + $0x20] sm:$0xff] %v6722
      %6755 = vst [vmem:[#allocation4 + $0x28] sm:$0xff] %v6723
      %6756 = vst [vmem:[#allocation4 + $0x30] sm:$0xff] %v6724
      %6757 = vst [vmem:[#allocation4 + $0x38] sm:$0xff] %v6725
      %6758 = vst [vmem:[#allocation4 + $0x40] sm:$0xff] %v6726
      %6759 = vst [vmem:[#allocation4 + $0x48] sm:$0xff] %v6727
      %6760 = vst [vmem:[#allocation4 + $0x50] sm:$0xff] %v6728
      %6761 = vst [vmem:[#allocation4 + $0x58] sm:$0xff] %v6729
      %6762 = vst [vmem:[#allocation4 + $0x60] sm:$0xff] %v6730
      %6763 = vst [vmem:[#allocation4 + $0x68] sm:$0xff] %v6731
      %6764 = vst [vmem:[#allocation4 + $0x70] sm:$0xff] %v6732
      %6765 = vst [vmem:[#allocation4 + $0x78] sm:$0xff] %v6733
      %6766 = vst [vmem:[#allocation4 + $0x80] sm:$0xff] %v6734
      %6767 = vst [vmem:[#allocation4 + $0x88] sm:$0xff] %v6735
      %6768 = vst [vmem:[#allocation4 + $0x90] sm:$0xff] %v6736
      %6769 = vst [vmem:[#allocation4 + $0x98] sm:$0xff] %v6737
      %6770 = vst [vmem:[#allocation4 + $0xa0] sm:$0xff] %v6738
      %6771 = vst [vmem:[#allocation4 + $0xa8] sm:$0xff] %v6739
      %6772 = vst [vmem:[#allocation4 + $0xb0] sm:$0xff] %v6740
      %6773 = vst [vmem:[#allocation4 + $0xb8] sm:$0xff] %v6741
      %6774 = vst [vmem:[#allocation4 + $0xc0] sm:$0xff] %v6742
      %6775 = vst [vmem:[#allocation4 + $0xc8] sm:$0xff] %v6743
      %6776 = vst [vmem:[#allocation4 + $0xd0] sm:$0xff] %v6744
      %6777 = vst [vmem:[#allocation4 + $0xd8] sm:$0xff] %v6745
      %6778 = vst [vmem:[#allocation4 + $0xe0] sm:$0xff] %v6746
      %6779 = vst [vmem:[#allocation4 + $0xe8] sm:$0xff] %v6747
      %6780 = vst [vmem:[#allocation4 + $0xf0] sm:$0xff] %v6748
      %6781 = vst [vmem:[#allocation4 + $0xf8] sm:$0xff] %v6749
      %s6782 = scalar_lea.vmem [#allocation3], 24
      %v6783 = vld [vmem:[%s6782] sm:$0xf]
      %v6784 = vld [vmem:[%s6782 + $0x4] sm:$0xf]
      %v6785 = vld [vmem:[%s6782 + $0x8] sm:$0x1]
      %v6786 = vld [vmem:[%s6782 + $0xc] sm:$0xf]
      %v6787 = vld [vmem:[%s6782 + $0x10] sm:$0xf]
      %v6788 = vld [vmem:[%s6782 + $0x14] sm:$0x1]
      %v6789 = vld [vmem:[%s6782 + $0x18] sm:$0xf]
      %v6790 = vld [vmem:[%s6782 + $0x1c] sm:$0xf]
      %v6791 = vld [vmem:[%s6782 + $0x20] sm:$0x1]
      %v6792 = vld [vmem:[%s6782 + $0x24] sm:$0xf]
      %v6793 = vld [vmem:[%s6782 + $0x28] sm:$0xf]
      %v6794 = vld [vmem:[%s6782 + $0x2c] sm:$0x1]
      %v6795 = vld [vmem:[%s6782 + $0x30] sm:$0xf]
      %v6796 = vld [vmem:[%s6782 + $0x34] sm:$0xf]
      %v6797 = vld [vmem:[%s6782 + $0x38] sm:$0x1]
      %v6798 = vld [vmem:[%s6782 + $0x3c] sm:$0xf]
      %v6799 = vld [vmem:[%s6782 + $0x40] sm:$0xf]
      %v6800 = vld [vmem:[%s6782 + $0x44] sm:$0x1]
      %v6801 = vld [vmem:[%s6782 + $0x48] sm:$0xf]
      %v6802 = vld [vmem:[%s6782 + $0x4c] sm:$0xf]
      %v6803 = vld [vmem:[%s6782 + $0x50] sm:$0x1]
      %v6804 = vld [vmem:[%s6782 + $0x54] sm:$0xf]
      %v6805 = vld [vmem:[%s6782 + $0x58] sm:$0xf]
      %v6806 = vld [vmem:[%s6782 + $0x5c] sm:$0x1]
      %v6807 = vld [vmem:[%s6782 + $0x60] sm:$0xf]
      %v6808 = vld [vmem:[%s6782 + $0x64] sm:$0xf]
      %v6809 = vld [vmem:[%s6782 + $0x68] sm:$0x1]
      %v6810 = vld [vmem:[%s6782 + $0x6c] sm:$0xf]
      %v6811 = vld [vmem:[%s6782 + $0x70] sm:$0xf]
      %v6812 = vld [vmem:[%s6782 + $0x74] sm:$0x1]
      %v6813 = vld [vmem:[%s6782 + $0x78] sm:$0xf]
      %v6814 = vld [vmem:[%s6782 + $0x7c] sm:$0xf]
      %v6815 = vld [vmem:[%s6782 + $0x80] sm:$0x1]
      %v6816 = vld [vmem:[%s6782 + $0x84] sm:$0xf]
      %v6817 = vld [vmem:[%s6782 + $0x88] sm:$0xf]
      %v6818 = vld [vmem:[%s6782 + $0x8c] sm:$0x1]
      %v6819 = vld [vmem:[%s6782 + $0x90] sm:$0xf]
      %v6820 = vld [vmem:[%s6782 + $0x94] sm:$0xf]
      %v6821 = vld [vmem:[%s6782 + $0x98] sm:$0x1]
      %v6822 = vld [vmem:[%s6782 + $0x9c] sm:$0xf]
      %v6823 = vld [vmem:[%s6782 + $0xa0] sm:$0xf]
      %v6824 = vld [vmem:[%s6782 + $0xa4] sm:$0x1]
      %v6825 = vld [vmem:[%s6782 + $0xa8] sm:$0xf]
      %v6826 = vld [vmem:[%s6782 + $0xac] sm:$0xf]
      %v6827 = vld [vmem:[%s6782 + $0xb0] sm:$0x1]
      %v6828 = vld [vmem:[%s6782 + $0xb4] sm:$0xf]
      %v6829 = vld [vmem:[%s6782 + $0xb8] sm:$0xf]
      %v6830 = vld [vmem:[%s6782 + $0xbc] sm:$0x1]
      %v6863 = vunpack.c.l.b16 %v6783
      %v6864 = vunpack.c.l.b16 %v6784
      %v6865 = vunpack.c.l.b16 %v6786
      %v6866 = vunpack.c.l.b16 %v6787
      %v6867 = vunpack.c.l.b16 %v6789
      %v6868 = vunpack.c.l.b16 %v6790
      %v6869 = vunpack.c.l.b16 %v6792
      %v6870 = vunpack.c.l.b16 %v6793
      %v6871 = vunpack.c.l.b16 %v6795
      %v6872 = vunpack.c.l.b16 %v6796
      %v6873 = vunpack.c.l.b16 %v6798
      %v6874 = vunpack.c.l.b16 %v6799
      %v6875 = vunpack.c.l.b16 %v6801
      %v6876 = vunpack.c.l.b16 %v6802
      %v6877 = vunpack.c.l.b16 %v6804
      %v6878 = vunpack.c.l.b16 %v6805
      %v6879 = vunpack.c.l.b16 %v6807
      %v6880 = vunpack.c.l.b16 %v6808
      %v6881 = vunpack.c.l.b16 %v6810
      %v6882 = vunpack.c.l.b16 %v6811
      %v6883 = vunpack.c.l.b16 %v6813
      %v6884 = vunpack.c.l.b16 %v6814
      %v6885 = vunpack.c.l.b16 %v6816
      %v6886 = vunpack.c.l.b16 %v6817
      %v6887 = vunpack.c.l.b16 %v6819
      %v6888 = vunpack.c.l.b16 %v6820
      %v6889 = vunpack.c.l.b16 %v6822
      %v6890 = vunpack.c.l.b16 %v6823
      %v6891 = vunpack.c.l.b16 %v6825
      %v6892 = vunpack.c.l.b16 %v6826
      %v6893 = vunpack.c.l.b16 %v6828
      %v6894 = vunpack.c.l.b16 %v6829
      %v6895 = vpack.c.b16 %v6864, %v6863
      %v6896 = vpack.c.b16 %v6866, %v6865
      %v6897 = vpack.c.b16 %v6868, %v6867
      %v6898 = vpack.c.b16 %v6870, %v6869
      %v6899 = vpack.c.b16 %v6872, %v6871
      %v6900 = vpack.c.b16 %v6874, %v6873
      %v6901 = vpack.c.b16 %v6876, %v6875
      %v6902 = vpack.c.b16 %v6878, %v6877
      %v6903 = vpack.c.b16 %v6880, %v6879
      %v6904 = vpack.c.b16 %v6882, %v6881
      %v6905 = vpack.c.b16 %v6884, %v6883
      %v6906 = vpack.c.b16 %v6886, %v6885
      %v6907 = vpack.c.b16 %v6888, %v6887
      %v6908 = vpack.c.b16 %v6890, %v6889
      %v6909 = vpack.c.b16 %v6892, %v6891
      %v6910 = vpack.c.b16 %v6894, %v6893
      %v6943 = vunpack.c.l.b16 %v6785
      %v6944 = vunpack.c.l.b16 %v6788
      %v6945 = vunpack.c.l.b16 %v6791
      %v6946 = vunpack.c.l.b16 %v6794
      %v6947 = vunpack.c.l.b16 %v6797
      %v6948 = vunpack.c.l.b16 %v6800
      %v6949 = vunpack.c.l.b16 %v6803
      %v6950 = vunpack.c.l.b16 %v6806
      %v6951 = vunpack.c.l.b16 %v6809
      %v6952 = vunpack.c.l.b16 %v6812
      %v6953 = vunpack.c.l.b16 %v6815
      %v6954 = vunpack.c.l.b16 %v6818
      %v6955 = vunpack.c.l.b16 %v6821
      %v6956 = vunpack.c.l.b16 %v6824
      %v6957 = vunpack.c.l.b16 %v6827
      %v6958 = vunpack.c.l.b16 %v6830
      %v6959 = vpack.c.b16 %v6943, %v6943
      %v6960 = vpack.c.b16 %v6944, %v6944
      %v6961 = vpack.c.b16 %v6945, %v6945
      %v6962 = vpack.c.b16 %v6946, %v6946
      %v6963 = vpack.c.b16 %v6947, %v6947
      %v6964 = vpack.c.b16 %v6948, %v6948
      %v6965 = vpack.c.b16 %v6949, %v6949
      %v6966 = vpack.c.b16 %v6950, %v6950
      %v6967 = vpack.c.b16 %v6951, %v6951
      %v6968 = vpack.c.b16 %v6952, %v6952
      %v6969 = vpack.c.b16 %v6953, %v6953
      %v6970 = vpack.c.b16 %v6954, %v6954
      %v6971 = vpack.c.b16 %v6955, %v6955
      %v6972 = vpack.c.b16 %v6956, %v6956
      %v6973 = vpack.c.b16 %v6957, %v6957
      %v6974 = vpack.c.b16 %v6958, %v6958
      %v6976 = vshrl.u32 %v6895, 16
      %v6978 = vshll.u32 %v6895, 16
      %v6980 = vrot.slane %v6978, 1
      %v6981 = vor.u32 %v6976, %v6980
      %v6983 = vshll.u32 %v6959, 16
      %v6985 = vrot.slane %v6983, 1
      %v6986 = vsel %vm1001, %v6981, %v6985
      %v6988 = vshrl.u32 %v6896, 16
      %v6990 = vshll.u32 %v6896, 16
      %v6992 = vrot.slane %v6990, 1
      %v6993 = vor.u32 %v6988, %v6992
      %v6995 = vshll.u32 %v6960, 16
      %v6997 = vrot.slane %v6995, 1
      %v6998 = vsel %vm1001, %v6993, %v6997
      %v7000 = vshrl.u32 %v6897, 16
      %v7002 = vshll.u32 %v6897, 16
      %v7004 = vrot.slane %v7002, 1
      %v7005 = vor.u32 %v7000, %v7004
      %v7007 = vshll.u32 %v6961, 16
      %v7009 = vrot.slane %v7007, 1
      %v7010 = vsel %vm1001, %v7005, %v7009
      %v7012 = vshrl.u32 %v6898, 16
      %v7014 = vshll.u32 %v6898, 16
      %v7016 = vrot.slane %v7014, 1
      %v7017 = vor.u32 %v7012, %v7016
      %v7019 = vshll.u32 %v6962, 16
      %v7021 = vrot.slane %v7019, 1
      %v7022 = vsel %vm1001, %v7017, %v7021
      %v7024 = vshrl.u32 %v6899, 16
      %v7026 = vshll.u32 %v6899, 16
      %v7028 = vrot.slane %v7026, 1
      %v7029 = vor.u32 %v7024, %v7028
      %v7031 = vshll.u32 %v6963, 16
      %v7033 = vrot.slane %v7031, 1
      %v7034 = vsel %vm1001, %v7029, %v7033
      %v7036 = vshrl.u32 %v6900, 16
      %v7038 = vshll.u32 %v6900, 16
      %v7040 = vrot.slane %v7038, 1
      %v7041 = vor.u32 %v7036, %v7040
      %v7043 = vshll.u32 %v6964, 16
      %v7045 = vrot.slane %v7043, 1
      %v7046 = vsel %vm1001, %v7041, %v7045
      %v7048 = vshrl.u32 %v6901, 16
      %v7050 = vshll.u32 %v6901, 16
      %v7052 = vrot.slane %v7050, 1
      %v7053 = vor.u32 %v7048, %v7052
      %v7055 = vshll.u32 %v6965, 16
      %v7057 = vrot.slane %v7055, 1
      %v7058 = vsel %vm1001, %v7053, %v7057
      %v7060 = vshrl.u32 %v6902, 16
      %v7062 = vshll.u32 %v6902, 16
      %v7064 = vrot.slane %v7062, 1
      %v7065 = vor.u32 %v7060, %v7064
      %v7067 = vshll.u32 %v6966, 16
      %v7069 = vrot.slane %v7067, 1
      %v7070 = vsel %vm1001, %v7065, %v7069
      %v7072 = vshrl.u32 %v6903, 16
      %v7074 = vshll.u32 %v6903, 16
      %v7076 = vrot.slane %v7074, 1
      %v7077 = vor.u32 %v7072, %v7076
      %v7079 = vshll.u32 %v6967, 16
      %v7081 = vrot.slane %v7079, 1
      %v7082 = vsel %vm1001, %v7077, %v7081
      %v7084 = vshrl.u32 %v6904, 16
      %v7086 = vshll.u32 %v6904, 16
      %v7088 = vrot.slane %v7086, 1
      %v7089 = vor.u32 %v7084, %v7088
      %v7091 = vshll.u32 %v6968, 16
      %v7093 = vrot.slane %v7091, 1
      %v7094 = vsel %vm1001, %v7089, %v7093
      %v7096 = vshrl.u32 %v6905, 16
      %v7098 = vshll.u32 %v6905, 16
      %v7100 = vrot.slane %v7098, 1
      %v7101 = vor.u32 %v7096, %v7100
      %v7103 = vshll.u32 %v6969, 16
      %v7105 = vrot.slane %v7103, 1
      %v7106 = vsel %vm1001, %v7101, %v7105
      %v7108 = vshrl.u32 %v6906, 16
      %v7110 = vshll.u32 %v6906, 16
      %v7112 = vrot.slane %v7110, 1
      %v7113 = vor.u32 %v7108, %v7112
      %v7115 = vshll.u32 %v6970, 16
      %v7117 = vrot.slane %v7115, 1
      %v7118 = vsel %vm1001, %v7113, %v7117
      %v7120 = vshrl.u32 %v6907, 16
      %v7122 = vshll.u32 %v6907, 16
      %v7124 = vrot.slane %v7122, 1
      %v7125 = vor.u32 %v7120, %v7124
      %v7127 = vshll.u32 %v6971, 16
      %v7129 = vrot.slane %v7127, 1
      %v7130 = vsel %vm1001, %v7125, %v7129
      %v7132 = vshrl.u32 %v6908, 16
      %v7134 = vshll.u32 %v6908, 16
      %v7136 = vrot.slane %v7134, 1
      %v7137 = vor.u32 %v7132, %v7136
      %v7139 = vshll.u32 %v6972, 16
      %v7141 = vrot.slane %v7139, 1
      %v7142 = vsel %vm1001, %v7137, %v7141
      %v7144 = vshrl.u32 %v6909, 16
      %v7146 = vshll.u32 %v6909, 16
      %v7148 = vrot.slane %v7146, 1
      %v7149 = vor.u32 %v7144, %v7148
      %v7151 = vshll.u32 %v6973, 16
      %v7153 = vrot.slane %v7151, 1
      %v7154 = vsel %vm1001, %v7149, %v7153
      %v7156 = vshrl.u32 %v6910, 16
      %v7158 = vshll.u32 %v6910, 16
      %v7160 = vrot.slane %v7158, 1
      %v7161 = vor.u32 %v7156, %v7160
      %v7163 = vshll.u32 %v6974, 16
      %v7165 = vrot.slane %v7163, 1
      %v7166 = vsel %vm1001, %v7161, %v7165
      %v7183 = vrot.slane %v6895, 1
      %v7184 = vrot.slane %v6959, 1
      %v7185 = vsel %vm1210, %v7183, %v7184
      %v7186 = vrot.slane %v6896, 1
      %v7187 = vrot.slane %v6960, 1
      %v7188 = vsel %vm1210, %v7186, %v7187
      %v7189 = vrot.slane %v6897, 1
      %v7190 = vrot.slane %v6961, 1
      %v7191 = vsel %vm1210, %v7189, %v7190
      %v7192 = vrot.slane %v6898, 1
      %v7193 = vrot.slane %v6962, 1
      %v7194 = vsel %vm1210, %v7192, %v7193
      %v7195 = vrot.slane %v6899, 1
      %v7196 = vrot.slane %v6963, 1
      %v7197 = vsel %vm1210, %v7195, %v7196
      %v7198 = vrot.slane %v6900, 1
      %v7199 = vrot.slane %v6964, 1
      %v7200 = vsel %vm1210, %v7198, %v7199
      %v7201 = vrot.slane %v6901, 1
      %v7202 = vrot.slane %v6965, 1
      %v7203 = vsel %vm1210, %v7201, %v7202
      %v7204 = vrot.slane %v6902, 1
      %v7205 = vrot.slane %v6966, 1
      %v7206 = vsel %vm1210, %v7204, %v7205
      %v7207 = vrot.slane %v6903, 1
      %v7208 = vrot.slane %v6967, 1
      %v7209 = vsel %vm1210, %v7207, %v7208
      %v7210 = vrot.slane %v6904, 1
      %v7211 = vrot.slane %v6968, 1
      %v7212 = vsel %vm1210, %v7210, %v7211
      %v7213 = vrot.slane %v6905, 1
      %v7214 = vrot.slane %v6969, 1
      %v7215 = vsel %vm1210, %v7213, %v7214
      %v7216 = vrot.slane %v6906, 1
      %v7217 = vrot.slane %v6970, 1
      %v7218 = vsel %vm1210, %v7216, %v7217
      %v7219 = vrot.slane %v6907, 1
      %v7220 = vrot.slane %v6971, 1
      %v7221 = vsel %vm1210, %v7219, %v7220
      %v7222 = vrot.slane %v6908, 1
      %v7223 = vrot.slane %v6972, 1
      %v7224 = vsel %vm1210, %v7222, %v7223
      %v7225 = vrot.slane %v6909, 1
      %v7226 = vrot.slane %v6973, 1
      %v7227 = vsel %vm1210, %v7225, %v7226
      %v7228 = vrot.slane %v6910, 1
      %v7229 = vrot.slane %v6974, 1
      %v7230 = vsel %vm1210, %v7228, %v7229
      %s7247 = scalar_lea.vmem %s2, 384
      %v7248 = vld [vmem:[%s7247] sm:$0xf]
      %v7249 = vld [vmem:[%s7247 + $0x4] sm:$0xf]
      %v7250 = vld [vmem:[%s7247 + $0x8] sm:$0xf]
      %v7251 = vld [vmem:[%s7247 + $0xc] sm:$0xf]
      %v7252 = vld [vmem:[%s7247 + $0x10] sm:$0xf]
      %v7253 = vld [vmem:[%s7247 + $0x14] sm:$0xf]
      %v7254 = vld [vmem:[%s7247 + $0x18] sm:$0xf]
      %v7255 = vld [vmem:[%s7247 + $0x1c] sm:$0xf]
      %v7256 = vld [vmem:[%s7247 + $0x20] sm:$0xf]
      %v7257 = vld [vmem:[%s7247 + $0x24] sm:$0xf]
      %v7258 = vld [vmem:[%s7247 + $0x28] sm:$0xf]
      %v7259 = vld [vmem:[%s7247 + $0x2c] sm:$0xf]
      %v7260 = vld [vmem:[%s7247 + $0x30] sm:$0xf]
      %v7261 = vld [vmem:[%s7247 + $0x34] sm:$0xf]
      %v7262 = vld [vmem:[%s7247 + $0x38] sm:$0xf]
      %v7263 = vld [vmem:[%s7247 + $0x3c] sm:$0xf]
      %v7264 = vld [vmem:[%s7247 + $0x40] sm:$0xf]
      %v7265 = vld [vmem:[%s7247 + $0x44] sm:$0xf]
      %v7266 = vld [vmem:[%s7247 + $0x48] sm:$0xf]
      %v7267 = vld [vmem:[%s7247 + $0x4c] sm:$0xf]
      %v7268 = vld [vmem:[%s7247 + $0x50] sm:$0xf]
      %v7269 = vld [vmem:[%s7247 + $0x54] sm:$0xf]
      %v7270 = vld [vmem:[%s7247 + $0x58] sm:$0xf]
      %v7271 = vld [vmem:[%s7247 + $0x5c] sm:$0xf]
      %v7272 = vld [vmem:[%s7247 + $0x60] sm:$0xf]
      %v7273 = vld [vmem:[%s7247 + $0x64] sm:$0xf]
      %v7274 = vld [vmem:[%s7247 + $0x68] sm:$0xf]
      %v7275 = vld [vmem:[%s7247 + $0x6c] sm:$0xf]
      %v7276 = vld [vmem:[%s7247 + $0x70] sm:$0xf]
      %v7277 = vld [vmem:[%s7247 + $0x74] sm:$0xf]
      %v7278 = vld [vmem:[%s7247 + $0x78] sm:$0xf]
      %v7279 = vld [vmem:[%s7247 + $0x7c] sm:$0xf]
      %v7280 = vld [vmem:[%s7247 + $0x80] sm:$0xf]
      %v7281 = vld [vmem:[%s7247 + $0x84] sm:$0xf]
      %v7282 = vld [vmem:[%s7247 + $0x88] sm:$0xf]
      %v7283 = vld [vmem:[%s7247 + $0x8c] sm:$0xf]
      %v7284 = vld [vmem:[%s7247 + $0x90] sm:$0xf]
      %v7285 = vld [vmem:[%s7247 + $0x94] sm:$0xf]
      %v7286 = vld [vmem:[%s7247 + $0x98] sm:$0xf]
      %v7287 = vld [vmem:[%s7247 + $0x9c] sm:$0xf]
      %v7288 = vld [vmem:[%s7247 + $0xa0] sm:$0xf]
      %v7289 = vld [vmem:[%s7247 + $0xa4] sm:$0xf]
      %v7290 = vld [vmem:[%s7247 + $0xa8] sm:$0xf]
      %v7291 = vld [vmem:[%s7247 + $0xac] sm:$0xf]
      %v7292 = vld [vmem:[%s7247 + $0xb0] sm:$0xf]
      %v7293 = vld [vmem:[%s7247 + $0xb4] sm:$0xf]
      %v7294 = vld [vmem:[%s7247 + $0xb8] sm:$0xf]
      %v7295 = vld [vmem:[%s7247 + $0xbc] sm:$0xf]
      %v7344 = vunpack.c.l.b16 %v7248
      %v7345 = vunpack.c.l.b16 %v7249
      %v7346 = vunpack.c.l.b16 %v7250
      %v7347 = vunpack.c.l.b16 %v7251
      %v7348 = vunpack.c.l.b16 %v7252
      %v7349 = vunpack.c.l.b16 %v7253
      %v7350 = vunpack.c.l.b16 %v7254
      %v7351 = vunpack.c.l.b16 %v7255
      %v7352 = vunpack.c.l.b16 %v7256
      %v7353 = vunpack.c.l.b16 %v7257
      %v7354 = vunpack.c.l.b16 %v7258
      %v7355 = vunpack.c.l.b16 %v7259
      %v7356 = vunpack.c.l.b16 %v7260
      %v7357 = vunpack.c.l.b16 %v7261
      %v7358 = vunpack.c.l.b16 %v7262
      %v7359 = vunpack.c.l.b16 %v7263
      %v7360 = vunpack.c.l.b16 %v7264
      %v7361 = vunpack.c.l.b16 %v7265
      %v7362 = vunpack.c.l.b16 %v7266
      %v7363 = vunpack.c.l.b16 %v7267
      %v7364 = vunpack.c.l.b16 %v7268
      %v7365 = vunpack.c.l.b16 %v7269
      %v7366 = vunpack.c.l.b16 %v7270
      %v7367 = vunpack.c.l.b16 %v7271
      %v7368 = vunpack.c.l.b16 %v7272
      %v7369 = vunpack.c.l.b16 %v7273
      %v7370 = vunpack.c.l.b16 %v7274
      %v7371 = vunpack.c.l.b16 %v7275
      %v7372 = vunpack.c.l.b16 %v7276
      %v7373 = vunpack.c.l.b16 %v7277
      %v7374 = vunpack.c.l.b16 %v7278
      %v7375 = vunpack.c.l.b16 %v7279
      %v7376 = vunpack.c.l.b16 %v7280
      %v7377 = vunpack.c.l.b16 %v7281
      %v7378 = vunpack.c.l.b16 %v7282
      %v7379 = vunpack.c.l.b16 %v7283
      %v7380 = vunpack.c.l.b16 %v7284
      %v7381 = vunpack.c.l.b16 %v7285
      %v7382 = vunpack.c.l.b16 %v7286
      %v7383 = vunpack.c.l.b16 %v7287
      %v7384 = vunpack.c.l.b16 %v7288
      %v7385 = vunpack.c.l.b16 %v7289
      %v7386 = vunpack.c.l.b16 %v7290
      %v7387 = vunpack.c.l.b16 %v7291
      %v7388 = vunpack.c.l.b16 %v7292
      %v7389 = vunpack.c.l.b16 %v7293
      %v7390 = vunpack.c.l.b16 %v7294
      %v7391 = vunpack.c.l.b16 %v7295
      %v7392 = vpack.c.b16 %v7345, %v7344
      %v7393 = vpack.c.b16 %v7347, %v7346
      %v7394 = vpack.c.b16 %v7349, %v7348
      %v7395 = vpack.c.b16 %v7351, %v7350
      %v7396 = vpack.c.b16 %v7353, %v7352
      %v7397 = vpack.c.b16 %v7355, %v7354
      %v7398 = vpack.c.b16 %v7357, %v7356
      %v7399 = vpack.c.b16 %v7359, %v7358
      %v7400 = vpack.c.b16 %v7361, %v7360
      %v7401 = vpack.c.b16 %v7363, %v7362
      %v7402 = vpack.c.b16 %v7365, %v7364
      %v7403 = vpack.c.b16 %v7367, %v7366
      %v7404 = vpack.c.b16 %v7369, %v7368
      %v7405 = vpack.c.b16 %v7371, %v7370
      %v7406 = vpack.c.b16 %v7373, %v7372
      %v7407 = vpack.c.b16 %v7375, %v7374
      %v7408 = vpack.c.b16 %v7377, %v7376
      %v7409 = vpack.c.b16 %v7379, %v7378
      %v7410 = vpack.c.b16 %v7381, %v7380
      %v7411 = vpack.c.b16 %v7383, %v7382
      %v7412 = vpack.c.b16 %v7385, %v7384
      %v7413 = vpack.c.b16 %v7387, %v7386
      %v7414 = vpack.c.b16 %v7389, %v7388
      %v7415 = vpack.c.b16 %v7391, %v7390
      %7440 = vmatprep.subr.bf16.mxu0 0
      %7441 = vmatpush1.bf16.msra.mxu0 %v7399
      %7442 = vmatprep.subr.bf16.mxu0 0
      %7443 = vmatpush1.bf16.msra.mxu0 %v7398
      %7444 = vmatprep.subr.bf16.mxu0 0
      %7445 = vmatpush1.bf16.msra.mxu0 %v7397
      %7446 = vmatprep.subr.bf16.mxu0 0
      %7447 = vmatpush1.bf16.msra.mxu0 %v7396
      %7448 = vmatprep.subr.bf16.mxu0 0
      %7449 = vmatpush1.bf16.msra.mxu0 %v7395
      %7450 = vmatprep.subr.bf16.mxu0 0
      %7451 = vmatpush1.bf16.msra.mxu0 %v7394
      %7452 = vmatprep.subr.bf16.mxu0 0
      %7453 = vmatpush1.bf16.msra.mxu0 %v7393
      %7454 = vmatprep.subr.bf16.mxu0 0
      %7455 = vmatpush1.bf16.msra.mxu0 %v7392
      %7456 = vmatprep.subr.bf16.mxu0 0
      %7457 = vmatpush2.bf16.msra.mxu0 %v7407
      %7458 = vmatprep.subr.bf16.mxu0 0
      %7459 = vmatpush2.bf16.msra.mxu0 %v7406
      %7460 = vmatprep.subr.bf16.mxu0 0
      %7461 = vmatpush2.bf16.msra.mxu0 %v7405
      %7462 = vmatprep.subr.bf16.mxu0 0
      %7463 = vmatpush2.bf16.msra.mxu0 %v7404
      %7464 = vmatprep.subr.bf16.mxu0 0
      %7465 = vmatpush2.bf16.msra.mxu0 %v7403
      %7466 = vmatprep.subr.bf16.mxu0 0
      %7467 = vmatpush2.bf16.msra.mxu0 %v7402
      %7468 = vmatprep.subr.bf16.mxu0 0
      %7469 = vmatpush2.bf16.msra.mxu0 %v7401
      %7470 = vmatprep.subr.bf16.mxu0 0
      %7471 = vmatpush2.bf16.msra.mxu0 %v7400
      %7472 = vmatprep.mubr.bf16.mxu0 %v6986
      %7473 = vmatmul.mubr.bf16.gmra.mxu0 %v6895
      %v7474 = vpop.f32.mrf.mxu0
      %v7475 = vadd.f32 0.0, %v7474
      %v7476 = vpop.f32.mrf.mxu0
      %v7477 = vpop.f32.mrf.mxu0
      %v7478 = vadd.f32 0.0, %v7477
      %v7479 = vpop.f32.mrf.mxu0
      %7480 = vmatprep.mubr.bf16.mxu0 %v6998
      %7481 = vmatmul.mubr.bf16.gmra.mxu0 %v6896
      %v7482 = vpop.f32.mrf.mxu0
      %v7483 = vadd.f32 0.0, %v7482
      %v7484 = vpop.f32.mrf.mxu0
      %v7485 = vpop.f32.mrf.mxu0
      %v7486 = vadd.f32 0.0, %v7485
      %v7487 = vpop.f32.mrf.mxu0
      %7488 = vmatprep.mubr.bf16.mxu0 %v7010
      %7489 = vmatmul.mubr.bf16.gmra.mxu0 %v6897
      %v7490 = vpop.f32.mrf.mxu0
      %v7491 = vadd.f32 0.0, %v7490
      %v7492 = vpop.f32.mrf.mxu0
      %v7493 = vpop.f32.mrf.mxu0
      %v7494 = vadd.f32 0.0, %v7493
      %v7495 = vpop.f32.mrf.mxu0
      %7496 = vmatprep.mubr.bf16.mxu0 %v7022
      %7497 = vmatmul.mubr.bf16.gmra.mxu0 %v6898
      %v7498 = vpop.f32.mrf.mxu0
      %v7499 = vadd.f32 0.0, %v7498
      %v7500 = vpop.f32.mrf.mxu0
      %v7501 = vpop.f32.mrf.mxu0
      %v7502 = vadd.f32 0.0, %v7501
      %v7503 = vpop.f32.mrf.mxu0
      %7504 = vmatprep.mubr.bf16.mxu0 %v7034
      %7505 = vmatmul.mubr.bf16.gmra.mxu0 %v6899
      %v7506 = vpop.f32.mrf.mxu0
      %v7507 = vadd.f32 0.0, %v7506
      %v7508 = vpop.f32.mrf.mxu0
      %v7509 = vpop.f32.mrf.mxu0
      %v7510 = vadd.f32 0.0, %v7509
      %v7511 = vpop.f32.mrf.mxu0
      %7512 = vmatprep.mubr.bf16.mxu0 %v7046
      %7513 = vmatmul.mubr.bf16.gmra.mxu0 %v6900
      %v7514 = vpop.f32.mrf.mxu0
      %v7515 = vadd.f32 0.0, %v7514
      %v7516 = vpop.f32.mrf.mxu0
      %v7517 = vpop.f32.mrf.mxu0
      %v7518 = vadd.f32 0.0, %v7517
      %v7519 = vpop.f32.mrf.mxu0
      %7520 = vmatprep.mubr.bf16.mxu0 %v7058
      %7521 = vmatmul.mubr.bf16.gmra.mxu0 %v6901
      %v7522 = vpop.f32.mrf.mxu0
      %v7523 = vadd.f32 0.0, %v7522
      %v7524 = vpop.f32.mrf.mxu0
      %v7525 = vpop.f32.mrf.mxu0
      %v7526 = vadd.f32 0.0, %v7525
      %v7527 = vpop.f32.mrf.mxu0
      %7528 = vmatprep.mubr.bf16.mxu0 %v7070
      %7529 = vmatmul.mubr.bf16.gmra.mxu0 %v6902
      %v7530 = vpop.f32.mrf.mxu0
      %v7531 = vadd.f32 0.0, %v7530
      %v7532 = vpop.f32.mrf.mxu0
      %v7533 = vpop.f32.mrf.mxu0
      %v7534 = vadd.f32 0.0, %v7533
      %v7535 = vpop.f32.mrf.mxu0
      %7536 = vmatprep.mubr.bf16.mxu0 %v7082
      %7537 = vmatmul.mubr.bf16.gmra.mxu0 %v6903
      %v7538 = vpop.f32.mrf.mxu0
      %v7539 = vadd.f32 0.0, %v7538
      %v7540 = vpop.f32.mrf.mxu0
      %v7541 = vpop.f32.mrf.mxu0
      %v7542 = vadd.f32 0.0, %v7541
      %v7543 = vpop.f32.mrf.mxu0
      %7544 = vmatprep.mubr.bf16.mxu0 %v7094
      %7545 = vmatmul.mubr.bf16.gmra.mxu0 %v6904
      %v7546 = vpop.f32.mrf.mxu0
      %v7547 = vadd.f32 0.0, %v7546
      %v7548 = vpop.f32.mrf.mxu0
      %v7549 = vpop.f32.mrf.mxu0
      %v7550 = vadd.f32 0.0, %v7549
      %v7551 = vpop.f32.mrf.mxu0
      %7552 = vmatprep.mubr.bf16.mxu0 %v7106
      %7553 = vmatmul.mubr.bf16.gmra.mxu0 %v6905
      %v7554 = vpop.f32.mrf.mxu0
      %v7555 = vadd.f32 0.0, %v7554
      %v7556 = vpop.f32.mrf.mxu0
      %v7557 = vpop.f32.mrf.mxu0
      %v7558 = vadd.f32 0.0, %v7557
      %v7559 = vpop.f32.mrf.mxu0
      %7560 = vmatprep.mubr.bf16.mxu0 %v7118
      %7561 = vmatmul.mubr.bf16.gmra.mxu0 %v6906
      %v7562 = vpop.f32.mrf.mxu0
      %v7563 = vadd.f32 0.0, %v7562
      %v7564 = vpop.f32.mrf.mxu0
      %v7565 = vpop.f32.mrf.mxu0
      %v7566 = vadd.f32 0.0, %v7565
      %v7567 = vpop.f32.mrf.mxu0
      %7568 = vmatprep.mubr.bf16.mxu0 %v7130
      %7569 = vmatmul.mubr.bf16.gmra.mxu0 %v6907
      %v7570 = vpop.f32.mrf.mxu0
      %v7571 = vadd.f32 0.0, %v7570
      %v7572 = vpop.f32.mrf.mxu0
      %v7573 = vpop.f32.mrf.mxu0
      %v7574 = vadd.f32 0.0, %v7573
      %v7575 = vpop.f32.mrf.mxu0
      %7576 = vmatprep.mubr.bf16.mxu0 %v7142
      %7577 = vmatmul.mubr.bf16.gmra.mxu0 %v6908
      %v7578 = vpop.f32.mrf.mxu0
      %v7579 = vadd.f32 0.0, %v7578
      %v7580 = vpop.f32.mrf.mxu0
      %v7581 = vpop.f32.mrf.mxu0
      %v7582 = vadd.f32 0.0, %v7581
      %v7583 = vpop.f32.mrf.mxu0
      %7584 = vmatprep.mubr.bf16.mxu0 %v7154
      %7585 = vmatmul.mubr.bf16.gmra.mxu0 %v6909
      %v7586 = vpop.f32.mrf.mxu0
      %v7587 = vadd.f32 0.0, %v7586
      %v7588 = vpop.f32.mrf.mxu0
      %v7589 = vpop.f32.mrf.mxu0
      %v7590 = vadd.f32 0.0, %v7589
      %v7591 = vpop.f32.mrf.mxu0
      %7592 = vmatprep.mubr.bf16.mxu0 %v7166
      %7593 = vmatmul.mubr.bf16.gmra.mxu0 %v6910
      %v7594 = vpop.f32.mrf.mxu0
      %v7595 = vadd.f32 0.0, %v7594
      %v7596 = vpop.f32.mrf.mxu0
      %v7597 = vpop.f32.mrf.mxu0
      %v7598 = vadd.f32 0.0, %v7597
      %v7599 = vpop.f32.mrf.mxu0
      %7600 = vdwg.mxu0
      %7601 = vmatprep.subr.bf16.mxu0 0
      %7602 = vmatpush1.bf16.msra.mxu0 %v7415
      %7603 = vmatprep.subr.bf16.mxu0 0
      %7604 = vmatpush1.bf16.msra.mxu0 %v7414
      %7605 = vmatprep.subr.bf16.mxu0 0
      %7606 = vmatpush1.bf16.msra.mxu0 %v7413
      %7607 = vmatprep.subr.bf16.mxu0 0
      %7608 = vmatpush1.bf16.msra.mxu0 %v7412
      %7609 = vmatprep.subr.bf16.mxu0 0
      %7610 = vmatpush1.bf16.msra.mxu0 %v7411
      %7611 = vmatprep.subr.bf16.mxu0 0
      %7612 = vmatpush1.bf16.msra.mxu0 %v7410
      %7613 = vmatprep.subr.bf16.mxu0 0
      %7614 = vmatpush1.bf16.msra.mxu0 %v7409
      %7615 = vmatprep.subr.bf16.mxu0 0
      %7616 = vmatpush1.bf16.msra.mxu0 %v7408
      %7617 = vmatprep.subr.bf16.mxu0 0
      %7618 = vmatpush2.bf16.msra.mxu0 0
      %7619 = vmatprep.subr.bf16.mxu0 0
      %7620 = vmatpush2.bf16.msra.mxu0 0
      %7621 = vmatprep.subr.bf16.mxu0 0
      %7622 = vmatpush2.bf16.msra.mxu0 0
      %7623 = vmatprep.subr.bf16.mxu0 0
      %7624 = vmatpush2.bf16.msra.mxu0 0
      %7625 = vmatprep.subr.bf16.mxu0 0
      %7626 = vmatpush2.bf16.msra.mxu0 0
      %7627 = vmatprep.subr.bf16.mxu0 0
      %7628 = vmatpush2.bf16.msra.mxu0 0
      %7629 = vmatprep.subr.bf16.mxu0 0
      %7630 = vmatpush2.bf16.msra.mxu0 0
      %7631 = vmatprep.subr.bf16.mxu0 0
      %7632 = vmatpush2.bf16.msra.mxu0 0
      %7633 = vmatprep.mubr.bf16.mxu0 0
      %7634 = vmatmul.mubr.bf16.gmra.mxu0 %v7185
      %v7635 = vpop.f32.mrf.mxu0
      %v7636 = vadd.f32 %v7475, %v7635
      %v7637 = vpop.f32.mrf.mxu0
      %v7638 = vpop.f32.mrf.mxu0
      %v7639 = vadd.f32 %v7478, %v7638
      %v7640 = vpop.f32.mrf.mxu0
      %7641 = vmatprep.mubr.bf16.mxu0 0
      %7642 = vmatmul.mubr.bf16.gmra.mxu0 %v7188
      %v7643 = vpop.f32.mrf.mxu0
      %v7644 = vadd.f32 %v7483, %v7643
      %v7645 = vpop.f32.mrf.mxu0
      %v7646 = vpop.f32.mrf.mxu0
      %v7647 = vadd.f32 %v7486, %v7646
      %v7648 = vpop.f32.mrf.mxu0
      %7649 = vmatprep.mubr.bf16.mxu0 0
      %7650 = vmatmul.mubr.bf16.gmra.mxu0 %v7191
      %v7651 = vpop.f32.mrf.mxu0
      %v7652 = vadd.f32 %v7491, %v7651
      %v7653 = vpop.f32.mrf.mxu0
      %v7654 = vpop.f32.mrf.mxu0
      %v7655 = vadd.f32 %v7494, %v7654
      %v7656 = vpop.f32.mrf.mxu0
      %7657 = vmatprep.mubr.bf16.mxu0 0
      %7658 = vmatmul.mubr.bf16.gmra.mxu0 %v7194
      %v7659 = vpop.f32.mrf.mxu0
      %v7660 = vadd.f32 %v7499, %v7659
      %v7661 = vpop.f32.mrf.mxu0
      %v7662 = vpop.f32.mrf.mxu0
      %v7663 = vadd.f32 %v7502, %v7662
      %v7664 = vpop.f32.mrf.mxu0
      %7665 = vmatprep.mubr.bf16.mxu0 0
      %7666 = vmatmul.mubr.bf16.gmra.mxu0 %v7197
      %v7667 = vpop.f32.mrf.mxu0
      %v7668 = vadd.f32 %v7507, %v7667
      %v7669 = vpop.f32.mrf.mxu0
      %v7670 = vpop.f32.mrf.mxu0
      %v7671 = vadd.f32 %v7510, %v7670
      %v7672 = vpop.f32.mrf.mxu0
      %7673 = vmatprep.mubr.bf16.mxu0 0
      %7674 = vmatmul.mubr.bf16.gmra.mxu0 %v7200
      %v7675 = vpop.f32.mrf.mxu0
      %v7676 = vadd.f32 %v7515, %v7675
      %v7677 = vpop.f32.mrf.mxu0
      %v7678 = vpop.f32.mrf.mxu0
      %v7679 = vadd.f32 %v7518, %v7678
      %v7680 = vpop.f32.mrf.mxu0
      %7681 = vmatprep.mubr.bf16.mxu0 0
      %7682 = vmatmul.mubr.bf16.gmra.mxu0 %v7203
      %v7683 = vpop.f32.mrf.mxu0
      %v7684 = vadd.f32 %v7523, %v7683
      %v7685 = vpop.f32.mrf.mxu0
      %v7686 = vpop.f32.mrf.mxu0
      %v7687 = vadd.f32 %v7526, %v7686
      %v7688 = vpop.f32.mrf.mxu0
      %7689 = vmatprep.mubr.bf16.mxu0 0
      %7690 = vmatmul.mubr.bf16.gmra.mxu0 %v7206
      %v7691 = vpop.f32.mrf.mxu0
      %v7692 = vadd.f32 %v7531, %v7691
      %v7693 = vpop.f32.mrf.mxu0
      %v7694 = vpop.f32.mrf.mxu0
      %v7695 = vadd.f32 %v7534, %v7694
      %v7696 = vpop.f32.mrf.mxu0
      %7697 = vmatprep.mubr.bf16.mxu0 0
      %7698 = vmatmul.mubr.bf16.gmra.mxu0 %v7209
      %v7699 = vpop.f32.mrf.mxu0
      %v7700 = vadd.f32 %v7539, %v7699
      %v7701 = vpop.f32.mrf.mxu0
      %v7702 = vpop.f32.mrf.mxu0
      %v7703 = vadd.f32 %v7542, %v7702
      %v7704 = vpop.f32.mrf.mxu0
      %7705 = vmatprep.mubr.bf16.mxu0 0
      %7706 = vmatmul.mubr.bf16.gmra.mxu0 %v7212
      %v7707 = vpop.f32.mrf.mxu0
      %v7708 = vadd.f32 %v7547, %v7707
      %v7709 = vpop.f32.mrf.mxu0
      %v7710 = vpop.f32.mrf.mxu0
      %v7711 = vadd.f32 %v7550, %v7710
      %v7712 = vpop.f32.mrf.mxu0
      %7713 = vmatprep.mubr.bf16.mxu0 0
      %7714 = vmatmul.mubr.bf16.gmra.mxu0 %v7215
      %v7715 = vpop.f32.mrf.mxu0
      %v7716 = vadd.f32 %v7555, %v7715
      %v7717 = vpop.f32.mrf.mxu0
      %v7718 = vpop.f32.mrf.mxu0
      %v7719 = vadd.f32 %v7558, %v7718
      %v7720 = vpop.f32.mrf.mxu0
      %7721 = vmatprep.mubr.bf16.mxu0 0
      %7722 = vmatmul.mubr.bf16.gmra.mxu0 %v7218
      %v7723 = vpop.f32.mrf.mxu0
      %v7724 = vadd.f32 %v7563, %v7723
      %v7725 = vpop.f32.mrf.mxu0
      %v7726 = vpop.f32.mrf.mxu0
      %v7727 = vadd.f32 %v7566, %v7726
      %v7728 = vpop.f32.mrf.mxu0
      %7729 = vmatprep.mubr.bf16.mxu0 0
      %7730 = vmatmul.mubr.bf16.gmra.mxu0 %v7221
      %v7731 = vpop.f32.mrf.mxu0
      %v7732 = vadd.f32 %v7571, %v7731
      %v7733 = vpop.f32.mrf.mxu0
      %v7734 = vpop.f32.mrf.mxu0
      %v7735 = vadd.f32 %v7574, %v7734
      %v7736 = vpop.f32.mrf.mxu0
      %7737 = vmatprep.mubr.bf16.mxu0 0
      %7738 = vmatmul.mubr.bf16.gmra.mxu0 %v7224
      %v7739 = vpop.f32.mrf.mxu0
      %v7740 = vadd.f32 %v7579, %v7739
      %v7741 = vpop.f32.mrf.mxu0
      %v7742 = vpop.f32.mrf.mxu0
      %v7743 = vadd.f32 %v7582, %v7742
      %v7744 = vpop.f32.mrf.mxu0
      %7745 = vmatprep.mubr.bf16.mxu0 0
      %7746 = vmatmul.mubr.bf16.gmra.mxu0 %v7227
      %v7747 = vpop.f32.mrf.mxu0
      %v7748 = vadd.f32 %v7587, %v7747
      %v7749 = vpop.f32.mrf.mxu0
      %v7750 = vpop.f32.mrf.mxu0
      %v7751 = vadd.f32 %v7590, %v7750
      %v7752 = vpop.f32.mrf.mxu0
      %7753 = vmatprep.mubr.bf16.mxu0 0
      %7754 = vmatmul.mubr.bf16.gmra.mxu0 %v7230
      %v7755 = vpop.f32.mrf.mxu0
      %v7756 = vadd.f32 %v7595, %v7755
      %v7757 = vpop.f32.mrf.mxu0
      %v7758 = vpop.f32.mrf.mxu0
      %v7759 = vadd.f32 %v7598, %v7758
      %v7760 = vpop.f32.mrf.mxu0
      %7761 = vdwg.mxu0
      %v7762 = vld [vmem:[#allocation4] sm:$0xff]
      %v7763 = vld [vmem:[#allocation4 + $0x8] sm:$0xff]
      %v7764 = vld [vmem:[#allocation4 + $0x10] sm:$0xff]
      %v7765 = vld [vmem:[#allocation4 + $0x18] sm:$0xff]
      %v7766 = vld [vmem:[#allocation4 + $0x20] sm:$0xff]
      %v7767 = vld [vmem:[#allocation4 + $0x28] sm:$0xff]
      %v7768 = vld [vmem:[#allocation4 + $0x30] sm:$0xff]
      %v7769 = vld [vmem:[#allocation4 + $0x38] sm:$0xff]
      %v7770 = vld [vmem:[#allocation4 + $0x40] sm:$0xff]
      %v7771 = vld [vmem:[#allocation4 + $0x48] sm:$0xff]
      %v7772 = vld [vmem:[#allocation4 + $0x50] sm:$0xff]
      %v7773 = vld [vmem:[#allocation4 + $0x58] sm:$0xff]
      %v7774 = vld [vmem:[#allocation4 + $0x60] sm:$0xff]
      %v7775 = vld [vmem:[#allocation4 + $0x68] sm:$0xff]
      %v7776 = vld [vmem:[#allocation4 + $0x70] sm:$0xff]
      %v7777 = vld [vmem:[#allocation4 + $0x78] sm:$0xff]
      %v7778 = vld [vmem:[#allocation4 + $0x80] sm:$0xff]
      %v7779 = vld [vmem:[#allocation4 + $0x88] sm:$0xff]
      %v7780 = vld [vmem:[#allocation4 + $0x90] sm:$0xff]
      %v7781 = vld [vmem:[#allocation4 + $0x98] sm:$0xff]
      %v7782 = vld [vmem:[#allocation4 + $0xa0] sm:$0xff]
      %v7783 = vld [vmem:[#allocation4 + $0xa8] sm:$0xff]
      %v7784 = vld [vmem:[#allocation4 + $0xb0] sm:$0xff]
      %v7785 = vld [vmem:[#allocation4 + $0xb8] sm:$0xff]
      %v7786 = vld [vmem:[#allocation4 + $0xc0] sm:$0xff]
      %v7787 = vld [vmem:[#allocation4 + $0xc8] sm:$0xff]
      %v7788 = vld [vmem:[#allocation4 + $0xd0] sm:$0xff]
      %v7789 = vld [vmem:[#allocation4 + $0xd8] sm:$0xff]
      %v7790 = vld [vmem:[#allocation4 + $0xe0] sm:$0xff]
      %v7791 = vld [vmem:[#allocation4 + $0xe8] sm:$0xff]
      %v7792 = vld [vmem:[#allocation4 + $0xf0] sm:$0xff]
      %v7793 = vld [vmem:[#allocation4 + $0xf8] sm:$0xff]
      %v7794 = vadd.f32 %v7762, %v7636
      %v7795 = vadd.f32 %v7763, %v7639
      %v7796 = vadd.f32 %v7764, %v7644
      %v7797 = vadd.f32 %v7765, %v7647
      %v7798 = vadd.f32 %v7766, %v7652
      %v7799 = vadd.f32 %v7767, %v7655
      %v7800 = vadd.f32 %v7768, %v7660
      %v7801 = vadd.f32 %v7769, %v7663
      %v7802 = vadd.f32 %v7770, %v7668
      %v7803 = vadd.f32 %v7771, %v7671
      %v7804 = vadd.f32 %v7772, %v7676
      %v7805 = vadd.f32 %v7773, %v7679
      %v7806 = vadd.f32 %v7774, %v7684
      %v7807 = vadd.f32 %v7775, %v7687
      %v7808 = vadd.f32 %v7776, %v7692
      %v7809 = vadd.f32 %v7777, %v7695
      %v7810 = vadd.f32 %v7778, %v7700
      %v7811 = vadd.f32 %v7779, %v7703
      %v7812 = vadd.f32 %v7780, %v7708
      %v7813 = vadd.f32 %v7781, %v7711
      %v7814 = vadd.f32 %v7782, %v7716
      %v7815 = vadd.f32 %v7783, %v7719
      %v7816 = vadd.f32 %v7784, %v7724
      %v7817 = vadd.f32 %v7785, %v7727
      %v7818 = vadd.f32 %v7786, %v7732
      %v7819 = vadd.f32 %v7787, %v7735
      %v7820 = vadd.f32 %v7788, %v7740
      %v7821 = vadd.f32 %v7789, %v7743
      %v7822 = vadd.f32 %v7790, %v7748
      %v7823 = vadd.f32 %v7791, %v7751
      %v7824 = vadd.f32 %v7792, %v7756
      %v7825 = vadd.f32 %v7793, %v7759
      %7826 = vst [vmem:[#allocation4] sm:$0xff] %v7794
      %7827 = vst [vmem:[#allocation4 + $0x8] sm:$0xff] %v7795
      %7828 = vst [vmem:[#allocation4 + $0x10] sm:$0xff] %v7796
      %7829 = vst [vmem:[#allocation4 + $0x18] sm:$0xff] %v7797
      %7830 = vst [vmem:[#allocation4 + $0x20] sm:$0xff] %v7798
      %7831 = vst [vmem:[#allocation4 + $0x28] sm:$0xff] %v7799
      %7832 = vst [vmem:[#allocation4 + $0x30] sm:$0xff] %v7800
      %7833 = vst [vmem:[#allocation4 + $0x38] sm:$0xff] %v7801
      %7834 = vst [vmem:[#allocation4 + $0x40] sm:$0xff] %v7802
      %7835 = vst [vmem:[#allocation4 + $0x48] sm:$0xff] %v7803
      %7836 = vst [vmem:[#allocation4 + $0x50] sm:$0xff] %v7804
      %7837 = vst [vmem:[#allocation4 + $0x58] sm:$0xff] %v7805
      %7838 = vst [vmem:[#allocation4 + $0x60] sm:$0xff] %v7806
      %7839 = vst [vmem:[#allocation4 + $0x68] sm:$0xff] %v7807
      %7840 = vst [vmem:[#allocation4 + $0x70] sm:$0xff] %v7808
      %7841 = vst [vmem:[#allocation4 + $0x78] sm:$0xff] %v7809
      %7842 = vst [vmem:[#allocation4 + $0x80] sm:$0xff] %v7810
      %7843 = vst [vmem:[#allocation4 + $0x88] sm:$0xff] %v7811
      %7844 = vst [vmem:[#allocation4 + $0x90] sm:$0xff] %v7812
      %7845 = vst [vmem:[#allocation4 + $0x98] sm:$0xff] %v7813
      %7846 = vst [vmem:[#allocation4 + $0xa0] sm:$0xff] %v7814
      %7847 = vst [vmem:[#allocation4 + $0xa8] sm:$0xff] %v7815
      %7848 = vst [vmem:[#allocation4 + $0xb0] sm:$0xff] %v7816
      %7849 = vst [vmem:[#allocation4 + $0xb8] sm:$0xff] %v7817
      %7850 = vst [vmem:[#allocation4 + $0xc0] sm:$0xff] %v7818
      %7851 = vst [vmem:[#allocation4 + $0xc8] sm:$0xff] %v7819
      %7852 = vst [vmem:[#allocation4 + $0xd0] sm:$0xff] %v7820
      %7853 = vst [vmem:[#allocation4 + $0xd8] sm:$0xff] %v7821
      %7854 = vst [vmem:[#allocation4 + $0xe0] sm:$0xff] %v7822
      %7855 = vst [vmem:[#allocation4 + $0xe8] sm:$0xff] %v7823
      %7856 = vst [vmem:[#allocation4 + $0xf0] sm:$0xff] %v7824
      %7857 = vst [vmem:[#allocation4 + $0xf8] sm:$0xff] %v7825
      %v7858 = vld [vmem:[#allocation4] sm:$0xff]
      %v7859 = vld [vmem:[#allocation4 + $0x8] sm:$0xff]
      %v7860 = vld [vmem:[#allocation4 + $0x10] sm:$0xff]
      %v7861 = vld [vmem:[#allocation4 + $0x18] sm:$0xff]
      %v7862 = vld [vmem:[#allocation4 + $0x20] sm:$0xff]
      %v7863 = vld [vmem:[#allocation4 + $0x28] sm:$0xff]
      %v7864 = vld [vmem:[#allocation4 + $0x30] sm:$0xff]
      %v7865 = vld [vmem:[#allocation4 + $0x38] sm:$0xff]
      %v7866 = vld [vmem:[#allocation4 + $0x40] sm:$0xff]
      %v7867 = vld [vmem:[#allocation4 + $0x48] sm:$0xff]
      %v7868 = vld [vmem:[#allocation4 + $0x50] sm:$0xff]
      %v7869 = vld [vmem:[#allocation4 + $0x58] sm:$0xff]
      %v7870 = vld [vmem:[#allocation4 + $0x60] sm:$0xff]
      %v7871 = vld [vmem:[#allocation4 + $0x68] sm:$0xff]
      %v7872 = vld [vmem:[#allocation4 + $0x70] sm:$0xff]
      %v7873 = vld [vmem:[#allocation4 + $0x78] sm:$0xff]
      %v7874 = vld [vmem:[#allocation4 + $0x80] sm:$0xff]
      %v7875 = vld [vmem:[#allocation4 + $0x88] sm:$0xff]
      %v7876 = vld [vmem:[#allocation4 + $0x90] sm:$0xff]
      %v7877 = vld [vmem:[#allocation4 + $0x98] sm:$0xff]
      %v7878 = vld [vmem:[#allocation4 + $0xa0] sm:$0xff]
      %v7879 = vld [vmem:[#allocation4 + $0xa8] sm:$0xff]
      %v7880 = vld [vmem:[#allocation4 + $0xb0] sm:$0xff]
      %v7881 = vld [vmem:[#allocation4 + $0xb8] sm:$0xff]
      %v7882 = vld [vmem:[#allocation4 + $0xc0] sm:$0xff]
      %v7883 = vld [vmem:[#allocation4 + $0xc8] sm:$0xff]
      %v7884 = vld [vmem:[#allocation4 + $0xd0] sm:$0xff]
      %v7885 = vld [vmem:[#allocation4 + $0xd8] sm:$0xff]
      %v7886 = vld [vmem:[#allocation4 + $0xe0] sm:$0xff]
      %v7887 = vld [vmem:[#allocation4 + $0xe8] sm:$0xff]
      %v7888 = vld [vmem:[#allocation4 + $0xf0] sm:$0xff]
      %v7889 = vld [vmem:[#allocation4 + $0xf8] sm:$0xff]
      %v7891 = vlaneseq
      %v7892 = vshrl.u32 %v7891, 7
      %v7893 = vsub.s32 0, %v7892
      %v7894 = vrot.slane %v4695, %v7893
      %v7896 = vmul.f32 %v7858, %v7894
      %v7897 = vmul.f32 %v7859, %v7894
      %v7898 = vmul.f32 %v7860, %v7894
      %v7899 = vmul.f32 %v7861, %v7894
      %v7900 = vmul.f32 %v7862, %v7894
      %v7901 = vmul.f32 %v7863, %v7894
      %v7902 = vmul.f32 %v7864, %v7894
      %v7903 = vmul.f32 %v7865, %v7894
      %v7904 = vmul.f32 %v7866, %v7894
      %v7905 = vmul.f32 %v7867, %v7894
      %v7906 = vmul.f32 %v7868, %v7894
      %v7907 = vmul.f32 %v7869, %v7894
      %v7908 = vmul.f32 %v7870, %v7894
      %v7909 = vmul.f32 %v7871, %v7894
      %v7910 = vmul.f32 %v7872, %v7894
      %v7911 = vmul.f32 %v7873, %v7894
      %v7912 = vmul.f32 %v7874, %v7894
      %v7913 = vmul.f32 %v7875, %v7894
      %v7914 = vmul.f32 %v7876, %v7894
      %v7915 = vmul.f32 %v7877, %v7894
      %v7916 = vmul.f32 %v7878, %v7894
      %v7917 = vmul.f32 %v7879, %v7894
      %v7918 = vmul.f32 %v7880, %v7894
      %v7919 = vmul.f32 %v7881, %v7894
      %v7920 = vmul.f32 %v7882, %v7894
      %v7921 = vmul.f32 %v7883, %v7894
      %v7922 = vmul.f32 %v7884, %v7894
      %v7923 = vmul.f32 %v7885, %v7894
      %v7924 = vmul.f32 %v7886, %v7894
      %v7925 = vmul.f32 %v7887, %v7894
      %v7926 = vmul.f32 %v7888, %v7894
      %v7927 = vmul.f32 %v7889, %v7894
      %v7929 = vlaneseq
      %v7930 = vshrl.u32 %v7929, 7
      %v7931 = vsub.s32 0, %v7930
      %v7932 = vrot.slane %v4696, %v7931
      %v7934 = vadd.f32 %v7896, %v7932
      %v7935 = vadd.f32 %v7897, %v7932
      %v7936 = vadd.f32 %v7898, %v7932
      %v7937 = vadd.f32 %v7899, %v7932
      %v7938 = vadd.f32 %v7900, %v7932
      %v7939 = vadd.f32 %v7901, %v7932
      %v7940 = vadd.f32 %v7902, %v7932
      %v7941 = vadd.f32 %v7903, %v7932
      %v7942 = vadd.f32 %v7904, %v7932
      %v7943 = vadd.f32 %v7905, %v7932
      %v7944 = vadd.f32 %v7906, %v7932
      %v7945 = vadd.f32 %v7907, %v7932
      %v7946 = vadd.f32 %v7908, %v7932
      %v7947 = vadd.f32 %v7909, %v7932
      %v7948 = vadd.f32 %v7910, %v7932
      %v7949 = vadd.f32 %v7911, %v7932
      %v7950 = vadd.f32 %v7912, %v7932
      %v7951 = vadd.f32 %v7913, %v7932
      %v7952 = vadd.f32 %v7914, %v7932
      %v7953 = vadd.f32 %v7915, %v7932
      %v7954 = vadd.f32 %v7916, %v7932
      %v7955 = vadd.f32 %v7917, %v7932
      %v7956 = vadd.f32 %v7918, %v7932
      %v7957 = vadd.f32 %v7919, %v7932
      %v7958 = vadd.f32 %v7920, %v7932
      %v7959 = vadd.f32 %v7921, %v7932
      %v7960 = vadd.f32 %v7922, %v7932
      %v7961 = vadd.f32 %v7923, %v7932
      %v7962 = vadd.f32 %v7924, %v7932
      %v7963 = vadd.f32 %v7925, %v7932
      %v7964 = vadd.f32 %v7926, %v7932
      %v7965 = vadd.f32 %v7927, %v7932
      %v7966 = vmax.f32 %v7934, 0.0
      %v7967 = vmax.f32 %v7935, 0.0
      %v7968 = vmax.f32 %v7936, 0.0
      %v7969 = vmax.f32 %v7937, 0.0
      %v7970 = vmax.f32 %v7938, 0.0
      %v7971 = vmax.f32 %v7939, 0.0
      %v7972 = vmax.f32 %v7940, 0.0
      %v7973 = vmax.f32 %v7941, 0.0
      %v7974 = vmax.f32 %v7942, 0.0
      %v7975 = vmax.f32 %v7943, 0.0
      %v7976 = vmax.f32 %v7944, 0.0
      %v7977 = vmax.f32 %v7945, 0.0
      %v7978 = vmax.f32 %v7946, 0.0
      %v7979 = vmax.f32 %v7947, 0.0
      %v7980 = vmax.f32 %v7948, 0.0
      %v7981 = vmax.f32 %v7949, 0.0
      %v7982 = vmax.f32 %v7950, 0.0
      %v7983 = vmax.f32 %v7951, 0.0
      %v7984 = vmax.f32 %v7952, 0.0
      %v7985 = vmax.f32 %v7953, 0.0
      %v7986 = vmax.f32 %v7954, 0.0
      %v7987 = vmax.f32 %v7955, 0.0
      %v7988 = vmax.f32 %v7956, 0.0
      %v7989 = vmax.f32 %v7957, 0.0
      %v7990 = vmax.f32 %v7958, 0.0
      %v7991 = vmax.f32 %v7959, 0.0
      %v7992 = vmax.f32 %v7960, 0.0
      %v7993 = vmax.f32 %v7961, 0.0
      %v7994 = vmax.f32 %v7962, 0.0
      %v7995 = vmax.f32 %v7963, 0.0
      %v7996 = vmax.f32 %v7964, 0.0
      %v7997 = vmax.f32 %v7965, 0.0
      %7998 = vst [vmem:[%s278] sm:$0xff] %v7966
      %7999 = vst [vmem:[%s278 + $0x8] sm:$0xff] %v7967
      %8000 = vst [vmem:[%s278 + $0x10] sm:$0xff] %v7968
      %8001 = vst [vmem:[%s278 + $0x18] sm:$0xff] %v7969
      %8002 = vst [vmem:[%s278 + $0x20] sm:$0xff] %v7970
      %8003 = vst [vmem:[%s278 + $0x28] sm:$0xff] %v7971
      %8004 = vst [vmem:[%s278 + $0x30] sm:$0xff] %v7972
      %8005 = vst [vmem:[%s278 + $0x38] sm:$0xff] %v7973
      %8006 = vst [vmem:[%s278 + $0x40] sm:$0xff] %v7974
      %8007 = vst [vmem:[%s278 + $0x48] sm:$0xff] %v7975
      %8008 = vst [vmem:[%s278 + $0x50] sm:$0xff] %v7976
      %8009 = vst [vmem:[%s278 + $0x58] sm:$0xff] %v7977
      %8010 = vst [vmem:[%s278 + $0x60] sm:$0xff] %v7978
      %8011 = vst [vmem:[%s278 + $0x68] sm:$0xff] %v7979
      %8012 = vst [vmem:[%s278 + $0x70] sm:$0xff] %v7980
      %8013 = vst [vmem:[%s278 + $0x78] sm:$0xff] %v7981
      %8014 = vst [vmem:[%s278 + $0x80] sm:$0xff] %v7982
      %8015 = vst [vmem:[%s278 + $0x88] sm:$0xff] %v7983
      %8016 = vst [vmem:[%s278 + $0x90] sm:$0xff] %v7984
      %8017 = vst [vmem:[%s278 + $0x98] sm:$0xff] %v7985
      %8018 = vst [vmem:[%s278 + $0xa0] sm:$0xff] %v7986
      %8019 = vst [vmem:[%s278 + $0xa8] sm:$0xff] %v7987
      %8020 = vst [vmem:[%s278 + $0xb0] sm:$0xff] %v7988
      %8021 = vst [vmem:[%s278 + $0xb8] sm:$0xff] %v7989
      %8022 = vst [vmem:[%s278 + $0xc0] sm:$0xff] %v7990
      %8023 = vst [vmem:[%s278 + $0xc8] sm:$0xff] %v7991
      %8024 = vst [vmem:[%s278 + $0xd0] sm:$0xff] %v7992
      %8025 = vst [vmem:[%s278 + $0xd8] sm:$0xff] %v7993
      %8026 = vst [vmem:[%s278 + $0xe0] sm:$0xff] %v7994
      %8027 = vst [vmem:[%s278 + $0xe8] sm:$0xff] %v7995
      %8028 = vst [vmem:[%s278 + $0xf0] sm:$0xff] %v7996
      %8029 = vst [vmem:[%s278 + $0xf8] sm:$0xff] %v7997
      %p8030 = scmp.lt.s32.totalorder %s18, 1
      %s8031 = scalar_select %p8030, %s18, 1
      %s8032 = smul.addr %s8031, 32
      %s8033 = smul.addr %s8032, 8
      %s8034 = scalar_lea.vmem %s7, %s8033
      // Predicated region
      $region49: #{double_conv_forward.1} parent=47 // pred_check
        %p8035 = pneg %p188
      $region50: #{double_conv_forward.1} parent=47 // pred_check_branch
        %8037 = sbr.rel (%p8035) target = $region52
      $region51: #{double_conv_forward.1} parent=47 // pred_region
        _
      $region52: #{double_conv_forward.1} parent=47 // pred_fallthru
        _
    $region48: #{double_conv_forward.1} parent=5 // pred_fallthru
      _
    %p8038 = scmp.le.s32.totalorder 2, %s13
    // Predicated region
    $region53: #{double_conv_forward.1} parent=5 // pred_check
      %p8039 = pneg %p8038
    $region54: #{double_conv_forward.1} parent=5 // pred_check_branch
      %8041 = sbr.rel (%p8039) target = $region56
    $region55: #{double_conv_forward.1} parent=5 // pred_region
      %s8042 = ssub.s32 %s13, 2
      // Predicated region
      $region57: #{double_conv_forward.1} parent=55 // pred_check
        %p8043 = pneg %p194
      $region58: #{double_conv_forward.1} parent=55 // pred_check_branch
        %8045 = sbr.rel (%p8043) target = $region60
      $region59: #{double_conv_forward.1} parent=55 // pred_region
        %p8046 = scmp.lt.s32.totalorder %s19, 1
        %s8047 = scalar_select %p8046, %s19, 1
        %s8048 = smul.addr %s8047, 32
        %s8049 = smul.addr %s8048, 8
        %s8050 = scalar_lea.vmem %s7, %s8049
      $region60: #{double_conv_forward.1} parent=55 // pred_fallthru
        _
    $region56: #{double_conv_forward.1} parent=5 // pred_fallthru
      _
  $region6: #{double_conv_forward.1} parent=0 // loop_footer
    %s17 = sadd.s32 1, %s13
  $region7: #{double_conv_forward.1} parent=0 // loop_footer_branch
    %12 = sbr.rel target = $region3
  $region8: #{double_conv_forward.1} parent=0 // loop_exit
    _

</llo_original>
